<compile_context>
chip_gen: v6e
topology: v6e:2x2x1
jax: 0.10.0
libtpu: 0.0.40
codegen_flags: <defaults>
</compile_context>

<pallas_src>
import jax
import jax.numpy as jnp
from jax.experimental import pallas as pl
from jax.experimental.pallas import tpu as pltpu


_VMEM_LIMIT = 32 * 1024 * 1024   # bytes; safe on v5e/v6e (128 MiB) and v7x (64 MiB)
_TM = 1024                       # lane-axis tile (columns of the flattened spatial dim)


# ----------------------------- Pallas kernels ------------------------------

def _matmul_t_kernel(x_ref, w_ref, b_ref, o_ref):
    """One M-tile of y(N, m) = w(N, K) @ x(K, m) + b(N, 1).

    Transposed layout: channels on sublanes, flattened spatial on lanes, so the
    (N, tm) output tile is lane-dense.  Used for conv1 (1x1) and conv2
    (3x3 stride-2 via transposed im2col)."""
    x = x_ref[...].astype(w_ref.dtype)                      # bf16 MXU operands
    y = jnp.dot(w_ref[...], x, preferred_element_type=jnp.float32) + b_ref[...]
    o_ref[...] = y.astype(o_ref.dtype)


def _gate_kernel(x_ref, c3_ref, c1_ref, wf_ref, bf_ref, w4_ref, b4_ref, o_ref):
    """Fused ESA tail on one M-tile:
         cf  = conv_f(c1_)                       (1x1, fused - no HBM round trip)
         out = x * sigmoid(conv4(c3_up + cf))    (1x1 + sigmoid + gate)
    All operands are (channels, tm): lane-dense; bf16 MXU dots, f32 accumulation,
    f32 epilogue."""
    cf = jnp.dot(wf_ref[...], c1_ref[...],
                 preferred_element_type=jnp.float32) + bf_ref[...]
    s = (c3_ref[...] + cf).astype(w4_ref.dtype)
    y = jnp.dot(w4_ref[...], s, preferred_element_type=jnp.float32) + b4_ref[...]
    o_ref[...] = (x_ref[...] * jax.nn.sigmoid(y)).astype(o_ref.dtype)


def _conv_chain_kernel(xp_ref, wm_ref, bm_ref, w3_ref, b3_ref, w3b_ref, b3b_ref,
                       o_ref, buf_a, buf_b):
    """Per-batch fused  relu(conv_max) -> relu(conv3) -> conv3_  (all 3x3, pad 1).

    The pooled map is tiny (~H/6 x W/6), so the whole padded image lives in VMEM
    and the three convolutions run back to back with no im2col and no HBM
    round-trips: each output row is 9 shifted (Cout,Cin)@(Cin,wp) dots.
    Intermediates go into zero-initialized VMEM scratch as FULL padded rows
    (lane offset 0, full lane extent) so no partial-lane stores are needed."""
    f_, hp2, wp2 = buf_a.shape
    hp, wp = hp2 - 2, wp2 - 2
    zcol = jnp.zeros((f_, 1), jnp.float32)

    def conv_row(load_row, w_ref, b_ref, ho):
        acc = jnp.zeros((f_, wp), jnp.float32)
        for kh in range(3):
            row = load_row(ho + kh)                          # (f, wp + 2)
            for kw in range(3):
                acc = acc + jnp.dot(w_ref[kh * 3 + kw], row[:, kw:kw + wp],
                                    preferred_element_type=jnp.float32)
        return acc + b_ref[...]

    buf_a[...] = jnp.zeros_like(buf_a)                       # halo rows/cols = 0
    buf_b[...] = jnp.zeros_like(buf_b)

    # NOTE: static Python row loops -- the pooled map only has ~H/6 rows.
    for ho in range(hp):                                     # relu(conv_max)
        r = jnp.maximum(conv_row(lambda i: xp_ref[0, :, i, :], wm_ref, bm_ref, ho), 0.0)
        buf_a[:, ho + 1, :] = jnp.concatenate([zcol, r, zcol], axis=1)
    for ho in range(hp):                                     # relu(conv3)
        r = jnp.maximum(conv_row(lambda i: buf_a[:, i, :], w3_ref, b3_ref, ho), 0.0)
        buf_b[:, ho + 1, :] = jnp.concatenate([zcol, r, zcol], axis=1)
    for ho in range(hp):                                     # conv3_
        o_ref[0, :, ho, :] = conv_row(lambda i: buf_b[:, i, :], w3b_ref, b3b_ref, ho)


# ------------------------------ Pallas wrappers -----------------------------

def conv1x1_t(x_t, w, b, out_dtype=jnp.bfloat16, tm=_TM):
    """y(N, M) = w(N, K) @ x_t(K, M) + b, tiled over the lane axis M."""
    k, m = x_t.shape
    n_out = w.shape[0]
    tm = min(tm, m)
    return pl.pallas_call(
        _matmul_t_kernel,
        grid=(pl.cdiv(m, tm),),
        in_specs=[pl.BlockSpec((k, tm), lambda i: (0, i)),
                  pl.BlockSpec((n_out, k), lambda i: (0, 0)),
                  pl.BlockSpec((n_out, 1), lambda i: (0, 0))],
        out_specs=pl.BlockSpec((n_out, tm), lambda i: (0, i)),
        out_shape=jax.ShapeDtypeStruct((n_out, m), out_dtype),
        compiler_params=pltpu.CompilerParams(
            dimension_semantics=("parallel",),
            vmem_limit_bytes=_VMEM_LIMIT),
    )(x_t, w, b)


def gate_t(x_t, c3_t, c1_t, wf, bfc, w4, b4, tm=_TM):
    """out(C, M) = x * sigmoid(conv4(c3_up + conv_f(c1_))), tiled over M."""
    c, m = x_t.shape
    f = c1_t.shape[0]
    tm = min(tm, m)
    return pl.pallas_call(
        _gate_kernel,
        grid=(pl.cdiv(m, tm),),
        in_specs=[pl.BlockSpec((c, tm), lambda i: (0, i)),
                  pl.BlockSpec((f, tm), lambda i: (0, i)),
                  pl.BlockSpec((f, tm), lambda i: (0, i)),
                  pl.BlockSpec((f, f), lambda i: (0, 0)),
                  pl.BlockSpec((f, 1), lambda i: (0, 0)),
                  pl.BlockSpec((c, f), lambda i: (0, 0)),
                  pl.BlockSpec((c, 1), lambda i: (0, 0))],
        out_specs=pl.BlockSpec((c, tm), lambda i: (0, i)),
        out_shape=jax.ShapeDtypeStruct((c, m), jnp.float32),
        input_output_aliases={0: 0},            # x_t is dead after the gate
        compiler_params=pltpu.CompilerParams(
            dimension_semantics=("parallel",),
            vmem_limit_bytes=_VMEM_LIMIT),
    )(x_t, c3_t, c1_t, wf, bfc, w4, b4)


def conv_chain(v_pad, wm, bm, w3, b3, w3b, b3b):
    """Fused relu(conv_max) -> relu(conv3) -> conv3_ over a padded pooled map."""
    n, f, hp2, wp2 = v_pad.shape
    hp, wp = hp2 - 2, wp2 - 2
    return pl.pallas_call(
        _conv_chain_kernel,
        grid=(n,),
        in_specs=[pl.BlockSpec((1, f, hp2, wp2), lambda i: (i, 0, 0, 0)),
                  pl.BlockSpec((9, f, f), lambda i: (0, 0, 0)),
                  pl.BlockSpec((f, 1), lambda i: (0, 0)),
                  pl.BlockSpec((9, f, f), lambda i: (0, 0, 0)),
                  pl.BlockSpec((f, 1), lambda i: (0, 0)),
                  pl.BlockSpec((9, f, f), lambda i: (0, 0, 0)),
                  pl.BlockSpec((f, 1), lambda i: (0, 0))],
        out_specs=pl.BlockSpec((1, f, hp, wp), lambda i: (i, 0, 0, 0)),
        out_shape=jax.ShapeDtypeStruct((n, f, hp, wp), jnp.float32),
        scratch_shapes=[pltpu.VMEM((f, hp2, wp2), jnp.float32),
                        pltpu.VMEM((f, hp2, wp2), jnp.float32)],
        compiler_params=pltpu.CompilerParams(
            dimension_semantics=("parallel",),
            vmem_limit_bytes=_VMEM_LIMIT),
    )(v_pad, wm, bm, w3, b3, w3b, b3b)


# --------------------------- pure-JAX glue helpers --------------------------

def _w1x1(w):
    """(O, I, 1, 1) -> (O, I) bf16."""
    return w[:, :, 0, 0].astype(jnp.bfloat16)


def _w3x3_flat(w):
    """(O, I, 3, 3) -> (O, 9*I) bf16; column index = (kh*3+kw)*I + i."""
    o, i = w.shape[:2]
    return jnp.transpose(w, (0, 2, 3, 1)).reshape(o, 9 * i).astype(jnp.bfloat16)


def _w3x3_taps(w, dtype=jnp.float32):
    """(O, I, 3, 3) -> (9, O, I); tap k = kh*3+kw."""
    o, i = w.shape[:2]
    return jnp.transpose(w, (2, 3, 0, 1)).reshape(9, o, i).astype(dtype)


def _colb(b):
    """(O,) -> (O, 1) f32 column bias."""
    return b.reshape(-1, 1).astype(jnp.float32)


def _max_pool(x, k, stride):
    """F.max_pool2d(kernel=k, stride=stride) as a VPU max tree (fuses in XLA)."""
    n, c, h, w = x.shape
    ho = (h - k) // stride + 1
    wo = (w - k) // stride + 1
    out = None
    for kh in range(k):
        for kw in range(k):
            sl = x[:, :, kh:kh + stride * (ho - 1) + 1:stride,
                         kw:kw + stride * (wo - 1) + 1:stride]
            out = sl if out is None else jnp.maximum(out, sl)
    return out


def _im2col_s2_t(img):
    """(N, Cin, H, W) -> (9*Cin, N*Ho*Wo) patches for a 3x3 stride-2 pad-0 conv,
    K ordered (kh, kw, cin) to match _w3x3_flat.
    # TODO(synk): fuse this stride-2 im2col into a halo/phase-split Pallas conv."""
    n, cin, h, w = img.shape
    ho = (h - 3) // 2 + 1
    wo = (w - 3) // 2 + 1
    cols = []
    for kh in range(3):
        for kw in range(3):
            cols.append(img[:, :, kh:kh + 2 * (ho - 1) + 1:2,
                                  kw:kw + 2 * (wo - 1) + 1:2])
    patches = jnp.stack(cols, axis=0)                       # (9, N, Cin, Ho, Wo)
    patches = jnp.transpose(patches, (0, 2, 1, 3, 4))       # (9, Cin, N, Ho, Wo)
    return patches.reshape(9 * cin, n * ho * wo), ho, wo


def _bilinear_matrix(out_size, in_size):
    """Row-interpolation matrix matching F.interpolate(bilinear, align_corners=False)."""
    o = jnp.arange(out_size, dtype=jnp.float32)
    scale = in_size / out_size
    src = jnp.maximum((o + 0.5) * scale - 0.5, 0.0)
    i0 = jnp.minimum(jnp.floor(src).astype(jnp.int32), in_size - 1)
    i1 = jnp.minimum(i0 + 1, in_size - 1)
    frac = src - i0.astype(jnp.float32)
    a = jnp.zeros((out_size, in_size), jnp.float32)
    a = a.at[jnp.arange(out_size), i0].add(1.0 - frac)
    a = a.at[jnp.arange(out_size), i1].add(frac)
    return a


# ------------------------------ ESA forward --------------------------------

def esa_forward(x_nchw, params):
    n, c, h, w = x_nchw.shape
    f = c // 4
    m = n * h * w

    # (C, M) transposed layout: channels on sublanes, flattened (N,H,W) on lanes.
    x_t = jnp.transpose(x_nchw, (1, 0, 2, 3)).reshape(c, m).astype(jnp.float32)

    # conv1 (1x1): n_feats -> f
    c1_t = conv1x1_t(x_t, _w1x1(params["w1"]), _colb(params["b1"]))     # (f, m) bf16

    # conv2 (3x3, stride 2, pad 0) via transposed im2col + the same matmul kernel
    c1_img = jnp.transpose(c1_t.reshape(f, n, h, w), (1, 0, 2, 3))      # (n,f,h,w)
    patches_t, ho2, wo2 = _im2col_s2_t(c1_img)
    c1c_t = conv1x1_t(patches_t, _w3x3_flat(params["w2"]), _colb(params["b2"]),
                      out_dtype=jnp.float32)
    c1c = jnp.transpose(c1c_t.reshape(f, n, ho2, wo2), (1, 0, 2, 3))    # (n,f,ho2,wo2)

    # max_pool2d(kernel=7, stride=3) -- VPU max tree in XLA (tiny data)
    v_max = _max_pool(c1c, 7, 3)
    hp, wp = v_max.shape[2:]

    # fused relu(conv_max) -> relu(conv3) -> conv3_ (single per-batch kernel)
    v_pad = jnp.pad(v_max, ((0, 0), (0, 0), (1, 1), (1, 1)))
    c3 = conv_chain(v_pad,
                    _w3x3_taps(params["wm"]), _colb(params["bm"]),
                    _w3x3_taps(params["w3"]), _colb(params["b3"]),
                    _w3x3_taps(params["w3b"]), _colb(params["b3b"]))    # (n,f,hp,wp) f32

    # separable bilinear upsample (hp,wp)->(h,w), align_corners=False, f32
    ah = _bilinear_matrix(h, hp)
    aw = _bilinear_matrix(w, wp)
    tmp = jnp.einsum("Ww,nfhw->nfhW", aw, c3)
    c3_up_t = jnp.einsum("Hh,nfhW->fnHW", ah, tmp).reshape(f, m)        # (f, m) f32

    # fused tail: cf = conv_f(c1_);  out = x * sigmoid(conv4(c3_up + cf))
    out_t = gate_t(x_t, c3_up_t, c1_t,
                   _w1x1(params["wf"]), _colb(params["bf"]),
                   _w1x1(params["w4"]), _colb(params["b4"]))            # (c, m) f32

    return jnp.transpose(out_t.reshape(c, n, h, w), (1, 0, 2, 3))       # NCHW


# ------------------------------ params init --------------------------------

def init_params(key, n_feats):
    f = n_feats // 4

    def conv_init(k, cout, cin, ks):
        kw_, kb_ = jax.random.split(k)
        w = jax.random.normal(kw_, (cout, cin, ks, ks), jnp.float32) * 0.1
        b = jax.random.normal(kb_, (cout,), jnp.float32) * 0.1
        return w, b

    keys = jax.random.split(key, 7)
    w1, b1 = conv_init(keys[0], f, n_feats, 1)      # conv1
    wf, bf = conv_init(keys[1], f, f, 1)            # conv_f
    wm, bm = conv_init(keys[2], f, f, 3)            # conv_max
    w2, b2 = conv_init(keys[3], f, f, 3)            # conv2
    w3, b3 = conv_init(keys[4], f, f, 3)            # conv3
    w3b, b3b = conv_init(keys[5], f, f, 3)          # conv3_
    w4, b4 = conv_init(keys[6], n_feats, f, 1)      # conv4
    return dict(w1=w1, b1=b1, wf=wf, bf=bf, wm=wm, bm=bm, w2=w2, b2=b2,
                w3=w3, b3=b3, w3b=w3b, b3b=b3b, w4=w4, b4=b4)


# ------------------------- pure-JAX reference (f32) -------------------------

def _conv_ref(x, w, b, stride=1, pad=0):
    y = jax.lax.conv_general_dilated(
        x, w, window_strides=(stride, stride),
        padding=[(pad, pad), (pad, pad)],
        dimension_numbers=("NCHW", "OIHW", "NCHW"))
    return y + b.reshape(1, -1, 1, 1)


def esa_reference(x, p):
    n, c, h, w = x.shape
    c1_ = _conv_ref(x, p["w1"], p["b1"])
    c1 = _conv_ref(c1_, p["w2"], p["b2"], stride=2, pad=0)
    v_max = jax.lax.reduce_window(c1, -jnp.inf, jax.lax.max,
                                  (1, 1, 7, 7), (1, 1, 3, 3), "VALID")
    v_range = jax.nn.relu(_conv_ref(v_max, p["wm"], p["bm"], pad=1))
    c3 = jax.nn.relu(_conv_ref(v_range, p["w3"], p["b3"], pad=1))
    c3 = _conv_ref(c3, p["w3b"], p["b3b"], pad=1)
    hp, wp = c3.shape[2:]
    ah = _bilinear_matrix(h, hp)
    aw = _bilinear_matrix(w, wp)
    c3 = jnp.einsum("Hh,nchw,Ww->ncHW", ah, c3, aw)
    cf = _conv_ref(c1_, p["wf"], p["bf"])
    c4 = _conv_ref(c3 + cf, p["w4"], p["b4"])
    return x * jax.nn.sigmoid(c4)


# ---------------------------------- main ------------------------------------

if __name__ == "__main__":
    key = jax.random.PRNGKey(0)
    kx, kp = jax.random.split(key)
    n_feats, batch, H, W = 16, 2, 24, 24
    x = jax.random.normal(kx, (batch, n_feats, H, W), jnp.float32)    # NCHW input
    params = init_params(kp, n_feats)

    fwd = jax.jit(esa_forward)
    y = fwd(x, params)
    jax.block_until_ready(y)

    ref = esa_reference(x, params)
    err = float(jnp.max(jnp.abs(y - ref)))

    assert y.shape == x.shape, y.shape
    assert bool(jnp.all(jnp.isfinite(y)))
    assert err < 5e-2, f"max abs err vs f32 reference: {err}"
    print("KERNEL_OK")
</pallas_src>

<mosaic_0001>
module attributes {stable_mosaic.version = 11 : i64} {
  func.func private @main(%arg0: i32) attributes {dimension_semantics = [#tpu.dimension_semantics<core_parallel>], iteration_bounds = array<i64: 2>, tpu.core_type = #tpu.core_type<sc_scalar_subcore>, window_params = []} {
    return
  }
}

module attributes {stable_mosaic.version = 11 : i64} {
  func.func private @main(%arg0: i32) attributes {dimension_semantics = [#tpu.dimension_semantics<core_parallel>], iteration_bounds = array<i64: 2>, tpu.core_type = #tpu.core_type<sc_scalar_subcore>, window_params = []} {
    return
  }
}

module attributes {stable_mosaic.version = 11 : i64} {
  func.func @_matmul_t_kernel(%arg0: i32, %arg1: memref<16x1024xf32, #tpu.memory_space<vmem>>, %arg2: memref<4x16xbf16, #tpu.memory_space<vmem>>, %arg3: memref<4x1xf32, #tpu.memory_space<vmem>>, %arg4: memref<4x1024xbf16, #tpu.memory_space<vmem>>) attributes {dimension_semantics = [#tpu.dimension_semantics<parallel>], iteration_bounds = array<i64: 2>, scalar_prefetch = 0 : i64, scratch_operands = 0 : i64, tpu.core_type = #tpu.core_type<tc>, window_params = [{transform_indices = @transform_0, window_bounds = array<i64: 16, 1024>}, {pipeline_mode = #tpu.pipeline_mode<synchronous>, transform_indices = @transform_1, window_bounds = array<i64: 4, 16>}, {pipeline_mode = #tpu.pipeline_mode<synchronous>, transform_indices = @transform_2, window_bounds = array<i64: 4, 1>}, {transform_indices = @transform_3, window_bounds = array<i64: 4, 1024>}]} {
    %c0 = arith.constant 0 : index
    %c0_0 = arith.constant 0 : index
    %0 = vector.load %arg1[%c0, %c0_0] : memref<16x1024xf32, #tpu.memory_space<vmem>>, vector<16x1024xf32>
    %1 = arith.truncf %0 : vector<16x1024xf32> to vector<16x1024xbf16>
    %c0_1 = arith.constant 0 : index
    %c0_2 = arith.constant 0 : index
    %2 = vector.load %arg2[%c0_1, %c0_2] : memref<4x16xbf16, #tpu.memory_space<vmem>>, vector<4x16xbf16>
    %cst = arith.constant dense<0.000000e+00> : vector<4x1024xf32>
    %3 = tpu.matmul %2, %1, %cst {dimension_numbers = #tpu.dot_dimension_numbers<[1], [0], [0], [1], [0, 0, 1, 1], [], []>} : vector<4x16xbf16>, vector<16x1024xbf16>, vector<4x1024xf32> -> vector<4x1024xf32>
    %c0_3 = arith.constant 0 : index
    %c0_4 = arith.constant 0 : index
    %4 = vector.load %arg3[%c0_3, %c0_4] : memref<4x1xf32, #tpu.memory_space<vmem>>, vector<4x1xf32>
    %5 = vector.broadcast %4 : vector<4x1xf32> to vector<4x1024xf32>
    %6 = arith.addf %3, %5 : vector<4x1024xf32>
    %7 = arith.truncf %6 : vector<4x1024xf32> to vector<4x1024xbf16>
    %c0_5 = arith.constant 0 : index
    %c0_6 = arith.constant 0 : index
    %8 = vector.load %arg4[%c0_5, %c0_6] : memref<4x1024xbf16, #tpu.memory_space<vmem>>, vector<4x1024xbf16>
    tpu.vector_store %arg4[%c0_5, %c0_6], %7 {strides = array<i32>} : memref<4x1024xbf16, #tpu.memory_space<vmem>>, vector<4x1024xbf16>,
    return
  }
  func.func @transform_0(%arg0: i32) -> (i32, i32) {
    %c0_i32 = arith.constant 0 : i32
    %c0_i32_0 = arith.constant 0 : i32
    return %c0_i32, %arg0 : i32, i32
  }
  func.func @transform_1(%arg0: i32) -> (i32, i32) {
    %c0_i32 = arith.constant 0 : i32
    %c0_i32_0 = arith.constant 0 : i32
    %c0_i32_1 = arith.constant 0 : i32
    return %c0_i32, %c0_i32_0 : i32, i32
  }
  func.func @transform_2(%arg0: i32) -> (i32, i32) {
    %c0_i32 = arith.constant 0 : i32
    %c0_i32_0 = arith.constant 0 : i32
    %c0_i32_1 = arith.constant 0 : i32
    return %c0_i32, %c0_i32_0 : i32, i32
  }
  func.func @transform_3(%arg0: i32) -> (i32, i32) {
    %c0_i32 = arith.constant 0 : i32
    %c0_i32_0 = arith.constant 0 : i32
    return %c0_i32, %arg0 : i32, i32
  }
}

module attributes {stable_mosaic.version = 11 : i64} {
  func.func @_matmul_t_kernel(%arg0: i32, %arg1: memref<36x242xbf16, #tpu.memory_space<vmem>>, %arg2: memref<4x36xbf16, #tpu.memory_space<vmem>>, %arg3: memref<4x1xf32, #tpu.memory_space<vmem>>, %arg4: memref<4x242xf32, #tpu.memory_space<vmem>>) attributes {dimension_semantics = [#tpu.dimension_semantics<parallel>], iteration_bounds = array<i64: 1>, scalar_prefetch = 0 : i64, scratch_operands = 0 : i64, tpu.core_type = #tpu.core_type<tc>, window_params = [{transform_indices = @transform_0, window_bounds = array<i64: 36, 242>}, {pipeline_mode = #tpu.pipeline_mode<synchronous>, transform_indices = @transform_1, window_bounds = array<i64: 4, 36>}, {pipeline_mode = #tpu.pipeline_mode<synchronous>, transform_indices = @transform_2, window_bounds = array<i64: 4, 1>}, {transform_indices = @transform_3, window_bounds = array<i64: 4, 242>}]} {
    %c0 = arith.constant 0 : index
    %c0_0 = arith.constant 0 : index
    %0 = vector.load %arg1[%c0, %c0_0] : memref<36x242xbf16, #tpu.memory_space<vmem>>, vector<36x242xbf16>
    %c0_1 = arith.constant 0 : index
    %c0_2 = arith.constant 0 : index
    %1 = vector.load %arg2[%c0_1, %c0_2] : memref<4x36xbf16, #tpu.memory_space<vmem>>, vector<4x36xbf16>
    %cst = arith.constant dense<0.000000e+00> : vector<4x242xf32>
    %2 = tpu.matmul %1, %0, %cst {dimension_numbers = #tpu.dot_dimension_numbers<[1], [0], [0], [1], [0, 0, 1, 1], [], []>} : vector<4x36xbf16>, vector<36x242xbf16>, vector<4x242xf32> -> vector<4x242xf32>
    %c0_3 = arith.constant 0 : index
    %c0_4 = arith.constant 0 : index
    %3 = vector.load %arg3[%c0_3, %c0_4] : memref<4x1xf32, #tpu.memory_space<vmem>>, vector<4x1xf32>
    %4 = vector.broadcast %3 : vector<4x1xf32> to vector<4x242xf32>
    %5 = arith.addf %2, %4 : vector<4x242xf32>
    %c0_5 = arith.constant 0 : index
    %c0_6 = arith.constant 0 : index
    %6 = vector.load %arg4[%c0_5, %c0_6] : memref<4x242xf32, #tpu.memory_space<vmem>>, vector<4x242xf32>
    tpu.vector_store %arg4[%c0_5, %c0_6], %5 {strides = array<i32>} : memref<4x242xf32, #tpu.memory_space<vmem>>, vector<4x242xf32>,
    return
  }
  func.func @transform_0(%arg0: i32) -> (i32, i32) {
    %c0_i32 = arith.constant 0 : i32
    %c0_i32_0 = arith.constant 0 : i32
    return %c0_i32, %arg0 : i32, i32
  }
  func.func @transform_1(%arg0: i32) -> (i32, i32) {
    %c0_i32 = arith.constant 0 : i32
    %c0_i32_0 = arith.constant 0 : i32
    %c0_i32_1 = arith.constant 0 : i32
    return %c0_i32, %c0_i32_0 : i32, i32
  }
  func.func @transform_2(%arg0: i32) -> (i32, i32) {
    %c0_i32 = arith.constant 0 : i32
    %c0_i32_0 = arith.constant 0 : i32
    %c0_i32_1 = arith.constant 0 : i32
    return %c0_i32, %c0_i32_0 : i32, i32
  }
  func.func @transform_3(%arg0: i32) -> (i32, i32) {
    %c0_i32 = arith.constant 0 : i32
    %c0_i32_0 = arith.constant 0 : i32
    return %c0_i32, %arg0 : i32, i32
  }
}

module attributes {stable_mosaic.version = 11 : i64} {
  func.func @_conv_chain_kernel(%arg0: i32, %arg1: memref<1x4x4x4xf32, #tpu.memory_space<vmem>>, %arg2: memref<9x4x4xf32, #tpu.memory_space<vmem>>, %arg3: memref<4x1xf32, #tpu.memory_space<vmem>>, %arg4: memref<9x4x4xf32, #tpu.memory_space<vmem>>, %arg5: memref<4x1xf32, #tpu.memory_space<vmem>>, %arg6: memref<9x4x4xf32, #tpu.memory_space<vmem>>, %arg7: memref<4x1xf32, #tpu.memory_space<vmem>>, %arg8: memref<1x4x2x2xf32, #tpu.memory_space<vmem>>, %arg9: memref<4x4x4xf32, #tpu.memory_space<vmem>>, %arg10: memref<4x4x4xf32, #tpu.memory_space<vmem>>) attributes {dimension_semantics = [#tpu.dimension_semantics<parallel>], iteration_bounds = array<i64: 2>, scalar_prefetch = 0 : i64, scratch_operands = 2 : i64, tpu.core_type = #tpu.core_type<tc>, window_params = [{transform_indices = @transform_0, window_bounds = array<i64: 1, 4, 4, 4>}, {pipeline_mode = #tpu.pipeline_mode<synchronous>, transform_indices = @transform_1, window_bounds = array<i64: 9, 4, 4>}, {pipeline_mode = #tpu.pipeline_mode<synchronous>, transform_indices = @transform_2, window_bounds = array<i64: 4, 1>}, {pipeline_mode = #tpu.pipeline_mode<synchronous>, transform_indices = @transform_3, window_bounds = array<i64: 9, 4, 4>}, {pipeline_mode = #tpu.pipeline_mode<synchronous>, transform_indices = @transform_4, window_bounds = array<i64: 4, 1>}, {pipeline_mode = #tpu.pipeline_mode<synchronous>, transform_indices = @transform_5, window_bounds = array<i64: 9, 4, 4>}, {pipeline_mode = #tpu.pipeline_mode<synchronous>, transform_indices = @transform_6, window_bounds = array<i64: 4, 1>}, {transform_indices = @transform_7, window_bounds = array<i64: 1, 4, 2, 2>}]} {
    %cst = arith.constant 0.000000e+00 : f32
    %0 = vector.broadcast %cst : f32 to vector<4x1xf32>
    %cst_0 = arith.constant 0.000000e+00 : f32
    %1 = vector.broadcast %cst_0 : f32 to vector<4x4x4xf32>
    %c0 = arith.constant 0 : index
    %c0_1 = arith.constant 0 : index
    %c0_2 = arith.constant 0 : index
    %2 = vector.load %arg9[%c0, %c0_1, %c0_2] : memref<4x4x4xf32, #tpu.memory_space<vmem>>, vector<4x4x4xf32>
    tpu.vector_store %arg9[%c0, %c0_1, %c0_2], %1 {strides = array<i32>} : memref<4x4x4xf32, #tpu.memory_space<vmem>>, vector<4x4x4xf32>,
    %cst_3 = arith.constant 0.000000e+00 : f32
    %3 = vector.broadcast %cst_3 : f32 to vector<4x4x4xf32>
    %c0_4 = arith.constant 0 : index
    %c0_5 = arith.constant 0 : index
    %c0_6 = arith.constant 0 : index
    %4 = vector.load %arg10[%c0_4, %c0_5, %c0_6] : memref<4x4x4xf32, #tpu.memory_space<vmem>>, vector<4x4x4xf32>
    tpu.vector_store %arg10[%c0_4, %c0_5, %c0_6], %3 {strides = array<i32>} : memref<4x4x4xf32, #tpu.memory_space<vmem>>, vector<4x4x4xf32>,
    %cst_7 = arith.constant 0.000000e+00 : f32
    %5 = vector.broadcast %cst_7 : f32 to vector<4x2xf32>
    %c0_8 = arith.constant 0 : index
    %c0_9 = arith.constant 0 : index
    %c0_10 = arith.constant 0 : index
    %c0_11 = arith.constant 0 : index
    %6 = vector.load %arg1[%c0_8, %c0_9, %c0_10, %c0_11] : memref<1x4x4x4xf32, #tpu.memory_space<vmem>>, vector<1x4x1x4xf32>
    %7 = vector.shape_cast %6 : vector<1x4x1x4xf32> to vector<4x4xf32>
    %c0_12 = arith.constant 0 : index
    %c0_13 = arith.constant 0 : index
    %c0_14 = arith.constant 0 : index
    %8 = vector.load %arg2[%c0_12, %c0_13, %c0_14] : memref<9x4x4xf32, #tpu.memory_space<vmem>>, vector<1x4x4xf32>
    %9 = vector.shape_cast %8 : vector<1x4x4xf32> to vector<4x4xf32>
    %10 = vector.extract_strided_slice %7 {offsets = [0, 0], sizes = [4, 2], strides = [1, 1]} : vector<4x4xf32> to vector<4x2xf32>
    %cst_15 = arith.constant dense<0.000000e+00> : vector<4x2xf32>
    %11 = tpu.matmul %9, %10, %cst_15 {dimension_numbers = #tpu.dot_dimension_numbers<[1], [0], [0], [1], [0, 0, 1, 1], [], []>} : vector<4x4xf32>, vector<4x2xf32>, vector<4x2xf32> -> vector<4x2xf32>
    %12 = arith.addf %5, %11 : vector<4x2xf32>
    %c1 = arith.constant 1 : index
    %c0_16 = arith.constant 0 : index
    %c0_17 = arith.constant 0 : index
    %13 = vector.load %arg2[%c1, %c0_16, %c0_17] : memref<9x4x4xf32, #tpu.memory_space<vmem>>, vector<1x4x4xf32>
    %14 = vector.shape_cast %13 : vector<1x4x4xf32> to vector<4x4xf32>
    %15 = vector.extract_strided_slice %7 {offsets = [0, 1], sizes = [4, 2], strides = [1, 1]} : vector<4x4xf32> to vector<4x2xf32>
    %cst_18 = arith.constant dense<0.000000e+00> : vector<4x2xf32>
    %16 = tpu.matmul %14, %15, %cst_18 {dimension_numbers = #tpu.dot_dimension_numbers<[1], [0], [0], [1], [0, 0, 1, 1], [], []>} : vector<4x4xf32>, vector<4x2xf32>, vector<4x2xf32> -> vector<4x2xf32>
    %17 = arith.addf %12, %16 : vector<4x2xf32>
    %c2 = arith.constant 2 : index
    %c0_19 = arith.constant 0 : index
    %c0_20 = arith.constant 0 : index
    %18 = vector.load %arg2[%c2, %c0_19, %c0_20] : memref<9x4x4xf32, #tpu.memory_space<vmem>>, vector<1x4x4xf32>
    %19 = vector.shape_cast %18 : vector<1x4x4xf32> to vector<4x4xf32>
    %20 = vector.extract_strided_slice %7 {offsets = [0, 2], sizes = [4, 2], strides = [1, 1]} : vector<4x4xf32> to vector<4x2xf32>
    %cst_21 = arith.constant dense<0.000000e+00> : vector<4x2xf32>
    %21 = tpu.matmul %19, %20, %cst_21 {dimension_numbers = #tpu.dot_dimension_numbers<[1], [0], [0], [1], [0, 0, 1, 1], [], []>} : vector<4x4xf32>, vector<4x2xf32>, vector<4x2xf32> -> vector<4x2xf32>
    %22 = arith.addf %17, %21 : vector<4x2xf32>
    %c0_22 = arith.constant 0 : index
    %c0_23 = arith.constant 0 : index
    %c1_24 = arith.constant 1 : index
    %c0_25 = arith.constant 0 : index
    %23 = vector.load %arg1[%c0_22, %c0_23, %c1_24, %c0_25] : memref<1x4x4x4xf32, #tpu.memory_space<vmem>>, vector<1x4x1x4xf32>
    %24 = vector.shape_cast %23 : vector<1x4x1x4xf32> to vector<4x4xf32>
    %c3 = arith.constant 3 : index
    %c0_26 = arith.constant 0 : index
    %c0_27 = arith.constant 0 : index
    %25 = vector.load %arg2[%c3, %c0_26, %c0_27] : memref<9x4x4xf32, #tpu.memory_space<vmem>>, vector<1x4x4xf32>
    %26 = vector.shape_cast %25 : vector<1x4x4xf32> to vector<4x4xf32>
    %27 = vector.extract_strided_slice %24 {offsets = [0, 0], sizes = [4, 2], strides = [1, 1]} : vector<4x4xf32> to vector<4x2xf32>
    %cst_28 = arith.constant dense<0.000000e+00> : vector<4x2xf32>
    %28 = tpu.matmul %26, %27, %cst_28 {dimension_numbers = #tpu.dot_dimension_numbers<[1], [0], [0], [1], [0, 0, 1, 1], [], []>} : vector<4x4xf32>, vector<4x2xf32>, vector<4x2xf32> -> vector<4x2xf32>
    %29 = arith.addf %22, %28 : vector<4x2xf32>
    %c4 = arith.constant 4 : index
    %c0_29 = arith.constant 0 : index
    %c0_30 = arith.constant 0 : index
    %30 = vector.load %arg2[%c4, %c0_29, %c0_30] : memref<9x4x4xf32, #tpu.memory_space<vmem>>, vector<1x4x4xf32>
    %31 = vector.shape_cast %30 : vector<1x4x4xf32> to vector<4x4xf32>
    %32 = vector.extract_strided_slice %24 {offsets = [0, 1], sizes = [4, 2], strides = [1, 1]} : vector<4x4xf32> to vector<4x2xf32>
    %cst_31 = arith.constant dense<0.000000e+00> : vector<4x2xf32>
    %33 = tpu.matmul %31, %32, %cst_31 {dimension_numbers = #tpu.dot_dimension_numbers<[1], [0], [0], [1], [0, 0, 1, 1], [], []>} : vector<4x4xf32>, vector<4x2xf32>, vector<4x2xf32> -> vector<4x2xf32>
    %34 = arith.addf %29, %33 : vector<4x2xf32>
    %c5 = arith.constant 5 : index
    %c0_32 = arith.constant 0 : index
    %c0_33 = arith.constant 0 : index
    %35 = vector.load %arg2[%c5, %c0_32, %c0_33] : memref<9x4x4xf32, #tpu.memory_space<vmem>>, vector<1x4x4xf32>
    %36 = vector.shape_cast %35 : vector<1x4x4xf32> to vector<4x4xf32>
    %37 = vector.extract_strided_slice %24 {offsets = [0, 2], sizes = [4, 2], strides = [1, 1]} : vector<4x4xf32> to vector<4x2xf32>
    %cst_34 = arith.constant dense<0.000000e+00> : vector<4x2xf32>
    %38 = tpu.matmul %36, %37, %cst_34 {dimension_numbers = #tpu.dot_dimension_numbers<[1], [0], [0], [1], [0, 0, 1, 1], [], []>} : vector<4x4xf32>, vector<4x2xf32>, vector<4x2xf32> -> vector<4x2xf32>
    %39 = arith.addf %34, %38 : vector<4x2xf32>
    %c0_35 = arith.constant 0 : index
    %c0_36 = arith.constant 0 : index
    %c2_37 = arith.constant 2 : index
    %c0_38 = arith.constant 0 : index
    %40 = vector.load %arg1[%c0_35, %c0_36, %c2_37, %c0_38] : memref<1x4x4x4xf32, #tpu.memory_space<vmem>>, vector<1x4x1x4xf32>
    %41 = vector.shape_cast %40 : vector<1x4x1x4xf32> to vector<4x4xf32>
    %c6 = arith.constant 6 : index
    %c0_39 = arith.constant 0 : index
    %c0_40 = arith.constant 0 : index
    %42 = vector.load %arg2[%c6, %c0_39, %c0_40] : memref<9x4x4xf32, #tpu.memory_space<vmem>>, vector<1x4x4xf32>
    %43 = vector.shape_cast %42 : vector<1x4x4xf32> to vector<4x4xf32>
    %44 = vector.extract_strided_slice %41 {offsets = [0, 0], sizes = [4, 2], strides = [1, 1]} : vector<4x4xf32> to vector<4x2xf32>
    %cst_41 = arith.constant dense<0.000000e+00> : vector<4x2xf32>
    %45 = tpu.matmul %43, %44, %cst_41 {dimension_numbers = #tpu.dot_dimension_numbers<[1], [0], [0], [1], [0, 0, 1, 1], [], []>} : vector<4x4xf32>, vector<4x2xf32>, vector<4x2xf32> -> vector<4x2xf32>
    %46 = arith.addf %39, %45 : vector<4x2xf32>
    %c7 = arith.constant 7 : index
    %c0_42 = arith.constant 0 : index
    %c0_43 = arith.constant 0 : index
    %47 = vector.load %arg2[%c7, %c0_42, %c0_43] : memref<9x4x4xf32, #tpu.memory_space<vmem>>, vector<1x4x4xf32>
    %48 = vector.shape_cast %47 : vector<1x4x4xf32> to vector<4x4xf32>
    %49 = vector.extract_strided_slice %41 {offsets = [0, 1], sizes = [4, 2], strides = [1, 1]} : vector<4x4xf32> to vector<4x2xf32>
    %cst_44 = arith.constant dense<0.000000e+00> : vector<4x2xf32>
    %50 = tpu.matmul %48, %49, %cst_44 {dimension_numbers = #tpu.dot_dimension_numbers<[1], [0], [0], [1], [0, 0, 1, 1], [], []>} : vector<4x4xf32>, vector<4x2xf32>, vector<4x2xf32> -> vector<4x2xf32>
    %51 = arith.addf %46, %50 : vector<4x2xf32>
    %c8 = arith.constant 8 : index
    %c0_45 = arith.constant 0 : index
    %c0_46 = arith.constant 0 : index
    %52 = vector.load %arg2[%c8, %c0_45, %c0_46] : memref<9x4x4xf32, #tpu.memory_space<vmem>>, vector<1x4x4xf32>
    %53 = vector.shape_cast %52 : vector<1x4x4xf32> to vector<4x4xf32>
    %54 = vector.extract_strided_slice %41 {offsets = [0, 2], sizes = [4, 2], strides = [1, 1]} : vector<4x4xf32> to vector<4x2xf32>
    %cst_47 = arith.constant dense<0.000000e+00> : vector<4x2xf32>
    %55 = tpu.matmul %53, %54, %cst_47 {dimension_numbers = #tpu.dot_dimension_numbers<[1], [0], [0], [1], [0, 0, 1, 1], [], []>} : vector<4x4xf32>, vector<4x2xf32>, vector<4x2xf32> -> vector<4x2xf32>
    %56 = arith.addf %51, %55 : vector<4x2xf32>
    %c0_48 = arith.constant 0 : index
    %c0_49 = arith.constant 0 : index
    %57 = vector.load %arg3[%c0_48, %c0_49] : memref<4x1xf32, #tpu.memory_space<vmem>>, vector<4x1xf32>
    %58 = vector.broadcast %57 : vector<4x1xf32> to vector<4x2xf32>
    %59 = arith.addf %56, %58 : vector<4x2xf32>
    %cst_50 = arith.constant 0.000000e+00 : f32
    %60 = vector.broadcast %cst_50 : f32 to vector<4x2xf32>
    %61 = arith.maximumf %59, %60 : vector<4x2xf32>
    %62 = tpu.concatenate %0, %61, %0 in 1 : vector<4x1xf32>, vector<4x2xf32>, vector<4x1xf32> -> vector<4x4xf32>
    %c0_51 = arith.constant 0 : index
    %c1_52 = arith.constant 1 : index
    %c0_53 = arith.constant 0 : index
    %63 = vector.load %arg9[%c0_51, %c1_52, %c0_53] : memref<4x4x4xf32, #tpu.memory_space<vmem>>, vector<4x1x4xf32>
    %64 = vector.shape_cast %63 : vector<4x1x4xf32> to vector<4x4xf32>
    %65 = vector.shape_cast %62 : vector<4x4xf32> to vector<4x1x4xf32>
    tpu.vector_store %arg9[%c0_51, %c1_52, %c0_53], %65 {strides = array<i32>} : memref<4x4x4xf32, #tpu.memory_space<vmem>>, vector<4x1x4xf32>,
    %cst_54 = arith.constant 0.000000e+00 : f32
    %66 = vector.broadcast %cst_54 : f32 to vector<4x2xf32>
    %c0_55 = arith.constant 0 : index
    %c0_56 = arith.constant 0 : index
    %c1_57 = arith.constant 1 : index
    %c0_58 = arith.constant 0 : index
    %67 = vector.load %arg1[%c0_55, %c0_56, %c1_57, %c0_58] : memref<1x4x4x4xf32, #tpu.memory_space<vmem>>, vector<1x4x1x4xf32>
    %68 = vector.shape_cast %67 : vector<1x4x1x4xf32> to vector<4x4xf32>
    %c0_59 = arith.constant 0 : index
    %c0_60 = arith.constant 0 : index
    %c0_61 = arith.constant 0 : index
    %69 = vector.load %arg2[%c0_59, %c0_60, %c0_61] : memref<9x4x4xf32, #tpu.memory_space<vmem>>, vector<1x4x4xf32>
    %70 = vector.shape_cast %69 : vector<1x4x4xf32> to vector<4x4xf32>
    %71 = vector.extract_strided_slice %68 {offsets = [0, 0], sizes = [4, 2], strides = [1, 1]} : vector<4x4xf32> to vector<4x2xf32>
    %cst_62 = arith.constant dense<0.000000e+00> : vector<4x2xf32>
    %72 = tpu.matmul %70, %71, %cst_62 {dimension_numbers = #tpu.dot_dimension_numbers<[1], [0], [0], [1], [0, 0, 1, 1], [], []>} : vector<4x4xf32>, vector<4x2xf32>, vector<4x2xf32> -> vector<4x2xf32>
    %73 = arith.addf %66, %72 : vector<4x2xf32>
    %c1_63 = arith.constant 1 : index
    %c0_64 = arith.constant 0 : index
    %c0_65 = arith.constant 0 : index
    %74 = vector.load %arg2[%c1_63, %c0_64, %c0_65] : memref<9x4x4xf32, #tpu.memory_space<vmem>>, vector<1x4x4xf32>
    %75 = vector.shape_cast %74 : vector<1x4x4xf32> to vector<4x4xf32>
    %76 = vector.extract_strided_slice %68 {offsets = [0, 1], sizes = [4, 2], strides = [1, 1]} : vector<4x4xf32> to vector<4x2xf32>
    %cst_66 = arith.constant dense<0.000000e+00> : vector<4x2xf32>
    %77 = tpu.matmul %75, %76, %cst_66 {dimension_numbers = #tpu.dot_dimension_numbers<[1], [0], [0], [1], [0, 0, 1, 1], [], []>} : vector<4x4xf32>, vector<4x2xf32>, vector<4x2xf32> -> vector<4x2xf32>
    %78 = arith.addf %73, %77 : vector<4x2xf32>
    %c2_67 = arith.constant 2 : index
    %c0_68 = arith.constant 0 : index
    %c0_69 = arith.constant 0 : index
    %79 = vector.load %arg2[%c2_67, %c0_68, %c0_69] : memref<9x4x4xf32, #tpu.memory_space<vmem>>, vector<1x4x4xf32>
    %80 = vector.shape_cast %79 : vector<1x4x4xf32> to vector<4x4xf32>
    %81 = vector.extract_strided_slice %68 {offsets = [0, 2], sizes = [4, 2], strides = [1, 1]} : vector<4x4xf32> to vector<4x2xf32>
    %cst_70 = arith.constant dense<0.000000e+00> : vector<4x2xf32>
    %82 = tpu.matmul %80, %81, %cst_70 {dimension_numbers = #tpu.dot_dimension_numbers<[1], [0], [0], [1], [0, 0, 1, 1], [], []>} : vector<4x4xf32>, vector<4x2xf32>, vector<4x2xf32> -> vector<4x2xf32>
    %83 = arith.addf %78, %82 : vector<4x2xf32>
    %c0_71 = arith.constant 0 : index
    %c0_72 = arith.constant 0 : index
    %c2_73 = arith.constant 2 : index
    %c0_74 = arith.constant 0 : index
    %84 = vector.load %arg1[%c0_71, %c0_72, %c2_73, %c0_74] : memref<1x4x4x4xf32, #tpu.memory_space<vmem>>, vector<1x4x1x4xf32>
    %85 = vector.shape_cast %84 : vector<1x4x1x4xf32> to vector<4x4xf32>
    %c3_75 = arith.constant 3 : index
    %c0_76 = arith.constant 0 : index
    %c0_77 = arith.constant 0 : index
    %86 = vector.load %arg2[%c3_75, %c0_76, %c0_77] : memref<9x4x4xf32, #tpu.memory_space<vmem>>, vector<1x4x4xf32>
    %87 = vector.shape_cast %86 : vector<1x4x4xf32> to vector<4x4xf32>
    %88 = vector.extract_strided_slice %85 {offsets = [0, 0], sizes = [4, 2], strides = [1, 1]} : vector<4x4xf32> to vector<4x2xf32>
    %cst_78 = arith.constant dense<0.000000e+00> : vector<4x2xf32>
    %89 = tpu.matmul %87, %88, %cst_78 {dimension_numbers = #tpu.dot_dimension_numbers<[1], [0], [0], [1], [0, 0, 1, 1], [], []>} : vector<4x4xf32>, vector<4x2xf32>, vector<4x2xf32> -> vector<4x2xf32>
    %90 = arith.addf %83, %89 : vector<4x2xf32>
    %c4_79 = arith.constant 4 : index
    %c0_80 = arith.constant 0 : index
    %c0_81 = arith.constant 0 : index
    %91 = vector.load %arg2[%c4_79, %c0_80, %c0_81] : memref<9x4x4xf32, #tpu.memory_space<vmem>>, vector<1x4x4xf32>
    %92 = vector.shape_cast %91 : vector<1x4x4xf32> to vector<4x4xf32>
    %93 = vector.extract_strided_slice %85 {offsets = [0, 1], sizes = [4, 2], strides = [1, 1]} : vector<4x4xf32> to vector<4x2xf32>
    %cst_82 = arith.constant dense<0.000000e+00> : vector<4x2xf32>
    %94 = tpu.matmul %92, %93, %cst_82 {dimension_numbers = #tpu.dot_dimension_numbers<[1], [0], [0], [1], [0, 0, 1, 1], [], []>} : vector<4x4xf32>, vector<4x2xf32>, vector<4x2xf32> -> vector<4x2xf32>
    %95 = arith.addf %90, %94 : vector<4x2xf32>
    %c5_83 = arith.constant 5 : index
    %c0_84 = arith.constant 0 : index
    %c0_85 = arith.constant 0 : index
    %96 = vector.load %arg2[%c5_83, %c0_84, %c0_85] : memref<9x4x4xf32, #tpu.memory_space<vmem>>, vector<1x4x4xf32>
    %97 = vector.shape_cast %96 : vector<1x4x4xf32> to vector<4x4xf32>
    %98 = vector.extract_strided_slice %85 {offsets = [0, 2], sizes = [4, 2], strides = [1, 1]} : vector<4x4xf32> to vector<4x2xf32>
    %cst_86 = arith.constant dense<0.000000e+00> : vector<4x2xf32>
    %99 = tpu.matmul %97, %98, %cst_86 {dimension_numbers = #tpu.dot_dimension_numbers<[1], [0], [0], [1], [0, 0, 1, 1], [], []>} : vector<4x4xf32>, vector<4x2xf32>, vector<4x2xf32> -> vector<4x2xf32>
    %100 = arith.addf %95, %99 : vector<4x2xf32>
    %c0_87 = arith.constant 0 : index
    %c0_88 = arith.constant 0 : index
    %c3_89 = arith.constant 3 : index
    %c0_90 = arith.constant 0 : index
    %101 = vector.load %arg1[%c0_87, %c0_88, %c3_89, %c0_90] : memref<1x4x4x4xf32, #tpu.memory_space<vmem>>, vector<1x4x1x4xf32>
    %102 = vector.shape_cast %101 : vector<1x4x1x4xf32> to vector<4x4xf32>
    %c6_91 = arith.constant 6 : index
    %c0_92 = arith.constant 0 : index
    %c0_93 = arith.constant 0 : index
    %103 = vector.load %arg2[%c6_91, %c0_92, %c0_93] : memref<9x4x4xf32, #tpu.memory_space<vmem>>, vector<1x4x4xf32>
    %104 = vector.shape_cast %103 : vector<1x4x4xf32> to vector<4x4xf32>
    %105 = vector.extract_strided_slice %102 {offsets = [0, 0], sizes = [4, 2], strides = [1, 1]} : vector<4x4xf32> to vector<4x2xf32>
    %cst_94 = arith.constant dense<0.000000e+00> : vector<4x2xf32>
    %106 = tpu.matmul %104, %105, %cst_94 {dimension_numbers = #tpu.dot_dimension_numbers<[1], [0], [0], [1], [0, 0, 1, 1], [], []>} : vector<4x4xf32>, vector<4x2xf32>, vector<4x2xf32> -> vector<4x2xf32>
    %107 = arith.addf %100, %106 : vector<4x2xf32>
    %c7_95 = arith.constant 7 : index
    %c0_96 = arith.constant 0 : index
    %c0_97 = arith.constant 0 : index
    %108 = vector.load %arg2[%c7_95, %c0_96, %c0_97] : memref<9x4x4xf32, #tpu.memory_space<vmem>>, vector<1x4x4xf32>
    %109 = vector.shape_cast %108 : vector<1x4x4xf32> to vector<4x4xf32>
    %110 = vector.extract_strided_slice %102 {offsets = [0, 1], sizes = [4, 2], strides = [1, 1]} : vector<4x4xf32> to vector<4x2xf32>
    %cst_98 = arith.constant dense<0.000000e+00> : vector<4x2xf32>
    %111 = tpu.matmul %109, %110, %cst_98 {dimension_numbers = #tpu.dot_dimension_numbers<[1], [0], [0], [1], [0, 0, 1, 1], [], []>} : vector<4x4xf32>, vector<4x2xf32>, vector<4x2xf32> -> vector<4x2xf32>
    %112 = arith.addf %107, %111 : vector<4x2xf32>
    %c8_99 = arith.constant 8 : index
    %c0_100 = arith.constant 0 : index
    %c0_101 = arith.constant 0 : index
    %113 = vector.load %arg2[%c8_99, %c0_100, %c0_101] : memref<9x4x4xf32, #tpu.memory_space<vmem>>, vector<1x4x4xf32>
    %114 = vector.shape_cast %113 : vector<1x4x4xf32> to vector<4x4xf32>
    %115 = vector.extract_strided_slice %102 {offsets = [0, 2], sizes = [4, 2], strides = [1, 1]} : vector<4x4xf32> to vector<4x2xf32>
    %cst_102 = arith.constant dense<0.000000e+00> : vector<4x2xf32>
    %116 = tpu.matmul %114, %115, %cst_102 {dimension_numbers = #tpu.dot_dimension_numbers<[1], [0], [0], [1], [0, 0, 1, 1], [], []>} : vector<4x4xf32>, vector<4x2xf32>, vector<4x2xf32> -> vector<4x2xf32>
    %117 = arith.addf %112, %116 : vector<4x2xf32>
    %c0_103 = arith.constant 0 : index
    %c0_104 = arith.constant 0 : index
    %118 = vector.load %arg3[%c0_103, %c0_104] : memref<4x1xf32, #tpu.memory_space<vmem>>, vector<4x1xf32>
    %119 = vector.broadcast %118 : vector<4x1xf32> to vector<4x2xf32>
    %120 = arith.addf %117, %119 : vector<4x2xf32>
    %cst_105 = arith.constant 0.000000e+00 : f32
    %121 = vector.broadcast %cst_105 : f32 to vector<4x2xf32>
    %122 = arith.maximumf %120, %121 : vector<4x2xf32>
    %123 = tpu.concatenate %0, %122, %0 in 1 : vector<4x1xf32>, vector<4x2xf32>, vector<4x1xf32> -> vector<4x4xf32>
    %c0_106 = arith.constant 0 : index
    %c2_107 = arith.constant 2 : index
    %c0_108 = arith.constant 0 : index
    %124 = vector.load %arg9[%c0_106, %c2_107, %c0_108] : memref<4x4x4xf32, #tpu.memory_space<vmem>>, vector<4x1x4xf32>
    %125 = vector.shape_cast %124 : vector<4x1x4xf32> to vector<4x4xf32>
    %126 = vector.shape_cast %123 : vector<4x4xf32> to vector<4x1x4xf32>
    tpu.vector_store %arg9[%c0_106, %c2_107, %c0_108], %126 {strides = array<i32>} : memref<4x4x4xf32, #tpu.memory_space<vmem>>, vector<4x1x4xf32>,
    %cst_109 = arith.constant 0.000000e+00 : f32
    %127 = vector.broadcast %cst_109 : f32 to vector<4x2xf32>
    %c0_110 = arith.constant 0 : index
    %c0_111 = arith.constant 0 : index
    %c0_112 = arith.constant 0 : index
    %128 = vector.load %arg9[%c0_110, %c0_111, %c0_112] : memref<4x4x4xf32, #tpu.memory_space<vmem>>, vector<4x1x4xf32>
    %129 = vector.shape_cast %128 : vector<4x1x4xf32> to vector<4x4xf32>
    %c0_113 = arith.constant 0 : index
    %c0_114 = arith.constant 0 : index
    %c0_115 = arith.constant 0 : index
    %130 = vector.load %arg4[%c0_113, %c0_114, %c0_115] : memref<9x4x4xf32, #tpu.memory_space<vmem>>, vector<1x4x4xf32>
    %131 = vector.shape_cast %130 : vector<1x4x4xf32> to vector<4x4xf32>
    %132 = vector.extract_strided_slice %129 {offsets = [0, 0], sizes = [4, 2], strides = [1, 1]} : vector<4x4xf32> to vector<4x2xf32>
    %cst_116 = arith.constant dense<0.000000e+00> : vector<4x2xf32>
    %133 = tpu.matmul %131, %132, %cst_116 {dimension_numbers = #tpu.dot_dimension_numbers<[1], [0], [0], [1], [0, 0, 1, 1], [], []>} : vector<4x4xf32>, vector<4x2xf32>, vector<4x2xf32> -> vector<4x2xf32>
    %134 = arith.addf %127, %133 : vector<4x2xf32>
    %c1_117 = arith.constant 1 : index
    %c0_118 = arith.constant 0 : index
    %c0_119 = arith.constant 0 : index
    %135 = vector.load %arg4[%c1_117, %c0_118, %c0_119] : memref<9x4x4xf32, #tpu.memory_space<vmem>>, vector<1x4x4xf32>
    %136 = vector.shape_cast %135 : vector<1x4x4xf32> to vector<4x4xf32>
    %137 = vector.extract_strided_slice %129 {offsets = [0, 1], sizes = [4, 2], strides = [1, 1]} : vector<4x4xf32> to vector<4x2xf32>
    %cst_120 = arith.constant dense<0.000000e+00> : vector<4x2xf32>
    %138 = tpu.matmul %136, %137, %cst_120 {dimension_numbers = #tpu.dot_dimension_numbers<[1], [0], [0], [1], [0, 0, 1, 1], [], []>} : vector<4x4xf32>, vector<4x2xf32>, vector<4x2xf32> -> vector<4x2xf32>
    %139 = arith.addf %134, %138 : vector<4x2xf32>
    %c2_121 = arith.constant 2 : index
    %c0_122 = arith.constant 0 : index
    %c0_123 = arith.constant 0 : index
    %140 = vector.load %arg4[%c2_121, %c0_122, %c0_123] : memref<9x4x4xf32, #tpu.memory_space<vmem>>, vector<1x4x4xf32>
    %141 = vector.shape_cast %140 : vector<1x4x4xf32> to vector<4x4xf32>
    %142 = vector.extract_strided_slice %129 {offsets = [0, 2], sizes = [4, 2], strides = [1, 1]} : vector<4x4xf32> to vector<4x2xf32>
    %cst_124 = arith.constant dense<0.000000e+00> : vector<4x2xf32>
    %143 = tpu.matmul %141, %142, %cst_124 {dimension_numbers = #tpu.dot_dimension_numbers<[1], [0], [0], [1], [0, 0, 1, 1], [], []>} : vector<4x4xf32>, vector<4x2xf32>, vector<4x2xf32> -> vector<4x2xf32>
    %144 = arith.addf %139, %143 : vector<4x2xf32>
    %c0_125 = arith.constant 0 : index
    %c1_126 = arith.constant 1 : index
    %c0_127 = arith.constant 0 : index
    %145 = vector.load %arg9[%c0_125, %c1_126, %c0_127] : memref<4x4x4xf32, #tpu.memory_space<vmem>>, vector<4x1x4xf32>
    %146 = vector.shape_cast %145 : vector<4x1x4xf32> to vector<4x4xf32>
    %c3_128 = arith.constant 3 : index
    %c0_129 = arith.constant 0 : index
    %c0_130 = arith.constant 0 : index
    %147 = vector.load %arg4[%c3_128, %c0_129, %c0_130] : memref<9x4x4xf32, #tpu.memory_space<vmem>>, vector<1x4x4xf32>
    %148 = vector.shape_cast %147 : vector<1x4x4xf32> to vector<4x4xf32>
    %149 = vector.extract_strided_slice %146 {offsets = [0, 0], sizes = [4, 2], strides = [1, 1]} : vector<4x4xf32> to vector<4x2xf32>
    %cst_131 = arith.constant dense<0.000000e+00> : vector<4x2xf32>
    %150 = tpu.matmul %148, %149, %cst_131 {dimension_numbers = #tpu.dot_dimension_numbers<[1], [0], [0], [1], [0, 0, 1, 1], [], []>} : vector<4x4xf32>, vector<4x2xf32>, vector<4x2xf32> -> vector<4x2xf32>
    %151 = arith.addf %144, %150 : vector<4x2xf32>
    %c4_132 = arith.constant 4 : index
    %c0_133 = arith.constant 0 : index
    %c0_134 = arith.constant 0 : index
    %152 = vector.load %arg4[%c4_132, %c0_133, %c0_134] : memref<9x4x4xf32, #tpu.memory_space<vmem>>, vector<1x4x4xf32>
    %153 = vector.shape_cast %152 : vector<1x4x4xf32> to vector<4x4xf32>
    %154 = vector.extract_strided_slice %146 {offsets = [0, 1], sizes = [4, 2], strides = [1, 1]} : vector<4x4xf32> to vector<4x2xf32>
    %cst_135 = arith.constant dense<0.000000e+00> : vector<4x2xf32>
    %155 = tpu.matmul %153, %154, %cst_135 {dimension_numbers = #tpu.dot_dimension_numbers<[1], [0], [0], [1], [0, 0, 1, 1], [], []>} : vector<4x4xf32>, vector<4x2xf32>, vector<4x2xf32> -> vector<4x2xf32>
    %156 = arith.addf %151, %155 : vector<4x2xf32>
    %c5_136 = arith.constant 5 : index
    %c0_137 = arith.constant 0 : index
    %c0_138 = arith.constant 0 : index
    %157 = vector.load %arg4[%c5_136, %c0_137, %c0_138] : memref<9x4x4xf32, #tpu.memory_space<vmem>>, vector<1x4x4xf32>
    %158 = vector.shape_cast %157 : vector<1x4x4xf32> to vector<4x4xf32>
    %159 = vector.extract_strided_slice %146 {offsets = [0, 2], sizes = [4, 2], strides = [1, 1]} : vector<4x4xf32> to vector<4x2xf32>
    %cst_139 = arith.constant dense<0.000000e+00> : vector<4x2xf32>
    %160 = tpu.matmul %158, %159, %cst_139 {dimension_numbers = #tpu.dot_dimension_numbers<[1], [0], [0], [1], [0, 0, 1, 1], [], []>} : vector<4x4xf32>, vector<4x2xf32>, vector<4x2xf32> -> vector<4x2xf32>
    %161 = arith.addf %156, %160 : vector<4x2xf32>
    %c0_140 = arith.constant 0 : index
    %c2_141 = arith.constant 2 : index
    %c0_142 = arith.constant 0 : index
    %162 = vector.load %arg9[%c0_140, %c2_141, %c0_142] : memref<4x4x4xf32, #tpu.memory_space<vmem>>, vector<4x1x4xf32>
    %163 = vector.shape_cast %162 : vector<4x1x4xf32> to vector<4x4xf32>
    %c6_143 = arith.constant 6 : index
    %c0_144 = arith.constant 0 : index
    %c0_145 = arith.constant 0 : index
    %164 = vector.load %arg4[%c6_143, %c0_144, %c0_145] : memref<9x4x4xf32, #tpu.memory_space<vmem>>, vector<1x4x4xf32>
    %165 = vector.shape_cast %164 : vector<1x4x4xf32> to vector<4x4xf32>
    %166 = vector.extract_strided_slice %163 {offsets = [0, 0], sizes = [4, 2], strides = [1, 1]} : vector<4x4xf32> to vector<4x2xf32>
    %cst_146 = arith.constant dense<0.000000e+00> : vector<4x2xf32>
    %167 = tpu.matmul %165, %166, %cst_146 {dimension_numbers = #tpu.dot_dimension_numbers<[1], [0], [0], [1], [0, 0, 1, 1], [], []>} : vector<4x4xf32>, vector<4x2xf32>, vector<4x2xf32> -> vector<4x2xf32>
    %168 = arith.addf %161, %167 : vector<4x2xf32>
    %c7_147 = arith.constant 7 : index
    %c0_148 = arith.constant 0 : index
    %c0_149 = arith.constant 0 : index
    %169 = vector.load %arg4[%c7_147, %c0_148, %c0_149] : memref<9x4x4xf32, #tpu.memory_space<vmem>>, vector<1x4x4xf32>
    %170 = vector.shape_cast %169 : vector<1x4x4xf32> to vector<4x4xf32>
    %171 = vector.extract_strided_slice %163 {offsets = [0, 1], sizes = [4, 2], strides = [1, 1]} : vector<4x4xf32> to vector<4x2xf32>
    %cst_150 = arith.constant dense<0.000000e+00> : vector<4x2xf32>
    %172 = tpu.matmul %170, %171, %cst_150 {dimension_numbers = #tpu.dot_dimension_numbers<[1], [0], [0], [1], [0, 0, 1, 1], [], []>} : vector<4x4xf32>, vector<4x2xf32>, vector<4x2xf32> -> vector<4x2xf32>
    %173 = arith.addf %168, %172 : vector<4x2xf32>
    %c8_151 = arith.constant 8 : index
    %c0_152 = arith.constant 0 : index
    %c0_153 = arith.constant 0 : index
    %174 = vector.load %arg4[%c8_151, %c0_152, %c0_153] : memref<9x4x4xf32, #tpu.memory_space<vmem>>, vector<1x4x4xf32>
    %175 = vector.shape_cast %174 : vector<1x4x4xf32> to vector<4x4xf32>
    %176 = vector.extract_strided_slice %163 {offsets = [0, 2], sizes = [4, 2], strides = [1, 1]} : vector<4x4xf32> to vector<4x2xf32>
    %cst_154 = arith.constant dense<0.000000e+00> : vector<4x2xf32>
    %177 = tpu.matmul %175, %176, %cst_154 {dimension_numbers = #tpu.dot_dimension_numbers<[1], [0], [0], [1], [0, 0, 1, 1], [], []>} : vector<4x4xf32>, vector<4x2xf32>, vector<4x2xf32> -> vector<4x2xf32>
    %178 = arith.addf %173, %177 : vector<4x2xf32>
    %c0_155 = arith.constant 0 : index
    %c0_156 = arith.constant 0 : index
    %179 = vector.load %arg5[%c0_155, %c0_156] : memref<4x1xf32, #tpu.memory_space<vmem>>, vector<4x1xf32>
    %180 = vector.broadcast %179 : vector<4x1xf32> to vector<4x2xf32>
    %181 = arith.addf %178, %180 : vector<4x2xf32>
    %cst_157 = arith.constant 0.000000e+00 : f32
    %182 = vector.broadcast %cst_157 : f32 to vector<4x2xf32>
    %183 = arith.maximumf %181, %182 : vector<4x2xf32>
    %184 = tpu.concatenate %0, %183, %0 in 1 : vector<4x1xf32>, vector<4x2xf32>, vector<4x1xf32> -> vector<4x4xf32>
    %c0_158 = arith.constant 0 : index
    %c1_159 = arith.constant 1 : index
    %c0_160 = arith.constant 0 : index
    %185 = vector.load %arg10[%c0_158, %c1_159, %c0_160] : memref<4x4x4xf32, #tpu.memory_space<vmem>>, vector<4x1x4xf32>
    %186 = vector.shape_cast %185 : vector<4x1x4xf32> to vector<4x4xf32>
    %187 = vector.shape_cast %184 : vector<4x4xf32> to vector<4x1x4xf32>
    tpu.vector_store %arg10[%c0_158, %c1_159, %c0_160], %187 {strides = array<i32>} : memref<4x4x4xf32, #tpu.memory_space<vmem>>, vector<4x1x4xf32>,
    %cst_161 = arith.constant 0.000000e+00 : f32
    %188 = vector.broadcast %cst_161 : f32 to vector<4x2xf32>
    %c0_162 = arith.constant 0 : index
    %c1_163 = arith.constant 1 : index
    %c0_164 = arith.constant 0 : index
    %189 = vector.load %arg9[%c0_162, %c1_163, %c0_164] : memref<4x4x4xf32, #tpu.memory_space<vmem>>, vector<4x1x4xf32>
    %190 = vector.shape_cast %189 : vector<4x1x4xf32> to vector<4x4xf32>
    %c0_165 = arith.constant 0 : index
    %c0_166 = arith.constant 0 : index
    %c0_167 = arith.constant 0 : index
    %191 = vector.load %arg4[%c0_165, %c0_166, %c0_167] : memref<9x4x4xf32, #tpu.memory_space<vmem>>, vector<1x4x4xf32>
    %192 = vector.shape_cast %191 : vector<1x4x4xf32> to vector<4x4xf32>
    %193 = vector.extract_strided_slice %190 {offsets = [0, 0], sizes = [4, 2], strides = [1, 1]} : vector<4x4xf32> to vector<4x2xf32>
    %cst_168 = arith.constant dense<0.000000e+00> : vector<4x2xf32>
    %194 = tpu.matmul %192, %193, %cst_168 {dimension_numbers = #tpu.dot_dimension_numbers<[1], [0], [0], [1], [0, 0, 1, 1], [], []>} : vector<4x4xf32>, vector<4x2xf32>, vector<4x2xf32> -> vector<4x2xf32>
    %195 = arith.addf %188, %194 : vector<4x2xf32>
    %c1_169 = arith.constant 1 : index
    %c0_170 = arith.constant 0 : index
    %c0_171 = arith.constant 0 : index
    %196 = vector.load %arg4[%c1_169, %c0_170, %c0_171] : memref<9x4x4xf32, #tpu.memory_space<vmem>>, vector<1x4x4xf32>
    %197 = vector.shape_cast %196 : vector<1x4x4xf32> to vector<4x4xf32>
    %198 = vector.extract_strided_slice %190 {offsets = [0, 1], sizes = [4, 2], strides = [1, 1]} : vector<4x4xf32> to vector<4x2xf32>
    %cst_172 = arith.constant dense<0.000000e+00> : vector<4x2xf32>
    %199 = tpu.matmul %197, %198, %cst_172 {dimension_numbers = #tpu.dot_dimension_numbers<[1], [0], [0], [1], [0, 0, 1, 1], [], []>} : vector<4x4xf32>, vector<4x2xf32>, vector<4x2xf32> -> vector<4x2xf32>
    %200 = arith.addf %195, %199 : vector<4x2xf32>
    %c2_173 = arith.constant 2 : index
    %c0_174 = arith.constant 0 : index
    %c0_175 = arith.constant 0 : index
    %201 = vector.load %arg4[%c2_173, %c0_174, %c0_175] : memref<9x4x4xf32, #tpu.memory_space<vmem>>, vector<1x4x4xf32>
    %202 = vector.shape_cast %201 : vector<1x4x4xf32> to vector<4x4xf32>
    %203 = vector.extract_strided_slice %190 {offsets = [0, 2], sizes = [4, 2], strides = [1, 1]} : vector<4x4xf32> to vector<4x2xf32>
    %cst_176 = arith.constant dense<0.000000e+00> : vector<4x2xf32>
    %204 = tpu.matmul %202, %203, %cst_176 {dimension_numbers = #tpu.dot_dimension_numbers<[1], [0], [0], [1], [0, 0, 1, 1], [], []>} : vector<4x4xf32>, vector<4x2xf32>, vector<4x2xf32> -> vector<4x2xf32>
    %205 = arith.addf %200, %204 : vector<4x2xf32>
    %c0_177 = arith.constant 0 : index
    %c2_178 = arith.constant 2 : index
    %c0_179 = arith.constant 0 : index
    %206 = vector.load %arg9[%c0_177, %c2_178, %c0_179] : memref<4x4x4xf32, #tpu.memory_space<vmem>>, vector<4x1x4xf32>
    %207 = vector.shape_cast %206 : vector<4x1x4xf32> to vector<4x4xf32>
    %c3_180 = arith.constant 3 : index
    %c0_181 = arith.constant 0 : index
    %c0_182 = arith.constant 0 : index
    %208 = vector.load %arg4[%c3_180, %c0_181, %c0_182] : memref<9x4x4xf32, #tpu.memory_space<vmem>>, vector<1x4x4xf32>
    %209 = vector.shape_cast %208 : vector<1x4x4xf32> to vector<4x4xf32>
    %210 = vector.extract_strided_slice %207 {offsets = [0, 0], sizes = [4, 2], strides = [1, 1]} : vector<4x4xf32> to vector<4x2xf32>
    %cst_183 = arith.constant dense<0.000000e+00> : vector<4x2xf32>
    %211 = tpu.matmul %209, %210, %cst_183 {dimension_numbers = #tpu.dot_dimension_numbers<[1], [0], [0], [1], [0, 0, 1, 1], [], []>} : vector<4x4xf32>, vector<4x2xf32>, vector<4x2xf32> -> vector<4x2xf32>
    %212 = arith.addf %205, %211 : vector<4x2xf32>
    %c4_184 = arith.constant 4 : index
    %c0_185 = arith.constant 0 : index
    %c0_186 = arith.constant 0 : index
    %213 = vector.load %arg4[%c4_184, %c0_185, %c0_186] : memref<9x4x4xf32, #tpu.memory_space<vmem>>, vector<1x4x4xf32>
    %214 = vector.shape_cast %213 : vector<1x4x4xf32> to vector<4x4xf32>
    %215 = vector.extract_strided_slice %207 {offsets = [0, 1], sizes = [4, 2], strides = [1, 1]} : vector<4x4xf32> to vector<4x2xf32>
    %cst_187 = arith.constant dense<0.000000e+00> : vector<4x2xf32>
    %216 = tpu.matmul %214, %215, %cst_187 {dimension_numbers = #tpu.dot_dimension_numbers<[1], [0], [0], [1], [0, 0, 1, 1], [], []>} : vector<4x4xf32>, vector<4x2xf32>, vector<4x2xf32> -> vector<4x2xf32>
    %217 = arith.addf %212, %216 : vector<4x2xf32>
    %c5_188 = arith.constant 5 : index
    %c0_189 = arith.constant 0 : index
    %c0_190 = arith.constant 0 : index
    %218 = vector.load %arg4[%c5_188, %c0_189, %c0_190] : memref<9x4x4xf32, #tpu.memory_space<vmem>>, vector<1x4x4xf32>
    %219 = vector.shape_cast %218 : vector<1x4x4xf32> to vector<4x4xf32>
    %220 = vector.extract_strided_slice %207 {offsets = [0, 2], sizes = [4, 2], strides = [1, 1]} : vector<4x4xf32> to vector<4x2xf32>
    %cst_191 = arith.constant dense<0.000000e+00> : vector<4x2xf32>
    %221 = tpu.matmul %219, %220, %cst_191 {dimension_numbers = #tpu.dot_dimension_numbers<[1], [0], [0], [1], [0, 0, 1, 1], [], []>} : vector<4x4xf32>, vector<4x2xf32>, vector<4x2xf32> -> vector<4x2xf32>
    %222 = arith.addf %217, %221 : vector<4x2xf32>
    %c0_192 = arith.constant 0 : index
    %c3_193 = arith.constant 3 : index
    %c0_194 = arith.constant 0 : index
    %223 = vector.load %arg9[%c0_192, %c3_193, %c0_194] : memref<4x4x4xf32, #tpu.memory_space<vmem>>, vector<4x1x4xf32>
    %224 = vector.shape_cast %223 : vector<4x1x4xf32> to vector<4x4xf32>
    %c6_195 = arith.constant 6 : index
    %c0_196 = arith.constant 0 : index
    %c0_197 = arith.constant 0 : index
    %225 = vector.load %arg4[%c6_195, %c0_196, %c0_197] : memref<9x4x4xf32, #tpu.memory_space<vmem>>, vector<1x4x4xf32>
    %226 = vector.shape_cast %225 : vector<1x4x4xf32> to vector<4x4xf32>
    %227 = vector.extract_strided_slice %224 {offsets = [0, 0], sizes = [4, 2], strides = [1, 1]} : vector<4x4xf32> to vector<4x2xf32>
    %cst_198 = arith.constant dense<0.000000e+00> : vector<4x2xf32>
    %228 = tpu.matmul %226, %227, %cst_198 {dimension_numbers = #tpu.dot_dimension_numbers<[1], [0], [0], [1], [0, 0, 1, 1], [], []>} : vector<4x4xf32>, vector<4x2xf32>, vector<4x2xf32> -> vector<4x2xf32>
    %229 = arith.addf %222, %228 : vector<4x2xf32>
    %c7_199 = arith.constant 7 : index
    %c0_200 = arith.constant 0 : index
    %c0_201 = arith.constant 0 : index
    %230 = vector.load %arg4[%c7_199, %c0_200, %c0_201] : memref<9x4x4xf32, #tpu.memory_space<vmem>>, vector<1x4x4xf32>
    %231 = vector.shape_cast %230 : vector<1x4x4xf32> to vector<4x4xf32>
    %232 = vector.extract_strided_slice %224 {offsets = [0, 1], sizes = [4, 2], strides = [1, 1]} : vector<4x4xf32> to vector<4x2xf32>
    %cst_202 = arith.constant dense<0.000000e+00> : vector<4x2xf32>
    %233 = tpu.matmul %231, %232, %cst_202 {dimension_numbers = #tpu.dot_dimension_numbers<[1], [0], [0], [1], [0, 0, 1, 1], [], []>} : vector<4x4xf32>, vector<4x2xf32>, vector<4x2xf32> -> vector<4x2xf32>
    %234 = arith.addf %229, %233 : vector<4x2xf32>
    %c8_203 = arith.constant 8 : index
    %c0_204 = arith.constant 0 : index
    %c0_205 = arith.constant 0 : index
    %235 = vector.load %arg4[%c8_203, %c0_204, %c0_205] : memref<9x4x4xf32, #tpu.memory_space<vmem>>, vector<1x4x4xf32>
    %236 = vector.shape_cast %235 : vector<1x4x4xf32> to vector<4x4xf32>
    %237 = vector.extract_strided_slice %224 {offsets = [0, 2], sizes = [4, 2], strides = [1, 1]} : vector<4x4xf32> to vector<4x2xf32>
    %cst_206 = arith.constant dense<0.000000e+00> : vector<4x2xf32>
    %238 = tpu.matmul %236, %237, %cst_206 {dimension_numbers = #tpu.dot_dimension_numbers<[1], [0], [0], [1], [0, 0, 1, 1], [], []>} : vector<4x4xf32>, vector<4x2xf32>, vector<4x2xf32> -> vector<4x2xf32>
    %239 = arith.addf %234, %238 : vector<4x2xf32>
    %c0_207 = arith.constant 0 : index
    %c0_208 = arith.constant 0 : index
    %240 = vector.load %arg5[%c0_207, %c0_208] : memref<4x1xf32, #tpu.memory_space<vmem>>, vector<4x1xf32>
    %241 = vector.broadcast %240 : vector<4x1xf32> to vector<4x2xf32>
    %242 = arith.addf %239, %241 : vector<4x2xf32>
    %cst_209 = arith.constant 0.000000e+00 : f32
    %243 = vector.broadcast %cst_209 : f32 to vector<4x2xf32>
    %244 = arith.maximumf %242, %243 : vector<4x2xf32>
    %245 = tpu.concatenate %0, %244, %0 in 1 : vector<4x1xf32>, vector<4x2xf32>, vector<4x1xf32> -> vector<4x4xf32>
    %c0_210 = arith.constant 0 : index
    %c2_211 = arith.constant 2 : index
    %c0_212 = arith.constant 0 : index
    %246 = vector.load %arg10[%c0_210, %c2_211, %c0_212] : memref<4x4x4xf32, #tpu.memory_space<vmem>>, vector<4x1x4xf32>
    %247 = vector.shape_cast %246 : vector<4x1x4xf32> to vector<4x4xf32>
    %248 = vector.shape_cast %245 : vector<4x4xf32> to vector<4x1x4xf32>
    tpu.vector_store %arg10[%c0_210, %c2_211, %c0_212], %248 {strides = array<i32>} : memref<4x4x4xf32, #tpu.memory_space<vmem>>, vector<4x1x4xf32>,
    %cst_213 = arith.constant 0.000000e+00 : f32
    %249 = vector.broadcast %cst_213 : f32 to vector<4x2xf32>
    %c0_214 = arith.constant 0 : index
    %c0_215 = arith.constant 0 : index
    %c0_216 = arith.constant 0 : index
    %250 = vector.load %arg10[%c0_214, %c0_215, %c0_216] : memref<4x4x4xf32, #tpu.memory_space<vmem>>, vector<4x1x4xf32>
    %251 = vector.shape_cast %250 : vector<4x1x4xf32> to vector<4x4xf32>
    %c0_217 = arith.constant 0 : index
    %c0_218 = arith.constant 0 : index
    %c0_219 = arith.constant 0 : index
    %252 = vector.load %arg6[%c0_217, %c0_218, %c0_219] : memref<9x4x4xf32, #tpu.memory_space<vmem>>, vector<1x4x4xf32>
    %253 = vector.shape_cast %252 : vector<1x4x4xf32> to vector<4x4xf32>
    %254 = vector.extract_strided_slice %251 {offsets = [0, 0], sizes = [4, 2], strides = [1, 1]} : vector<4x4xf32> to vector<4x2xf32>
    %cst_220 = arith.constant dense<0.000000e+00> : vector<4x2xf32>
    %255 = tpu.matmul %253, %254, %cst_220 {dimension_numbers = #tpu.dot_dimension_numbers<[1], [0], [0], [1], [0, 0, 1, 1], [], []>} : vector<4x4xf32>, vector<4x2xf32>, vector<4x2xf32> -> vector<4x2xf32>
    %256 = arith.addf %249, %255 : vector<4x2xf32>
    %c1_221 = arith.constant 1 : index
    %c0_222 = arith.constant 0 : index
    %c0_223 = arith.constant 0 : index
    %257 = vector.load %arg6[%c1_221, %c0_222, %c0_223] : memref<9x4x4xf32, #tpu.memory_space<vmem>>, vector<1x4x4xf32>
    %258 = vector.shape_cast %257 : vector<1x4x4xf32> to vector<4x4xf32>
    %259 = vector.extract_strided_slice %251 {offsets = [0, 1], sizes = [4, 2], strides = [1, 1]} : vector<4x4xf32> to vector<4x2xf32>
    %cst_224 = arith.constant dense<0.000000e+00> : vector<4x2xf32>
    %260 = tpu.matmul %258, %259, %cst_224 {dimension_numbers = #tpu.dot_dimension_numbers<[1], [0], [0], [1], [0, 0, 1, 1], [], []>} : vector<4x4xf32>, vector<4x2xf32>, vector<4x2xf32> -> vector<4x2xf32>
    %261 = arith.addf %256, %260 : vector<4x2xf32>
    %c2_225 = arith.constant 2 : index
    %c0_226 = arith.constant 0 : index
    %c0_227 = arith.constant 0 : index
    %262 = vector.load %arg6[%c2_225, %c0_226, %c0_227] : memref<9x4x4xf32, #tpu.memory_space<vmem>>, vector<1x4x4xf32>
    %263 = vector.shape_cast %262 : vector<1x4x4xf32> to vector<4x4xf32>
    %264 = vector.extract_strided_slice %251 {offsets = [0, 2], sizes = [4, 2], strides = [1, 1]} : vector<4x4xf32> to vector<4x2xf32>
    %cst_228 = arith.constant dense<0.000000e+00> : vector<4x2xf32>
    %265 = tpu.matmul %263, %264, %cst_228 {dimension_numbers = #tpu.dot_dimension_numbers<[1], [0], [0], [1], [0, 0, 1, 1], [], []>} : vector<4x4xf32>, vector<4x2xf32>, vector<4x2xf32> -> vector<4x2xf32>
    %266 = arith.addf %261, %265 : vector<4x2xf32>
    %c0_229 = arith.constant 0 : index
    %c1_230 = arith.constant 1 : index
    %c0_231 = arith.constant 0 : index
    %267 = vector.load %arg10[%c0_229, %c1_230, %c0_231] : memref<4x4x4xf32, #tpu.memory_space<vmem>>, vector<4x1x4xf32>
    %268 = vector.shape_cast %267 : vector<4x1x4xf32> to vector<4x4xf32>
    %c3_232 = arith.constant 3 : index
    %c0_233 = arith.constant 0 : index
    %c0_234 = arith.constant 0 : index
    %269 = vector.load %arg6[%c3_232, %c0_233, %c0_234] : memref<9x4x4xf32, #tpu.memory_space<vmem>>, vector<1x4x4xf32>
    %270 = vector.shape_cast %269 : vector<1x4x4xf32> to vector<4x4xf32>
    %271 = vector.extract_strided_slice %268 {offsets = [0, 0], sizes = [4, 2], strides = [1, 1]} : vector<4x4xf32> to vector<4x2xf32>
    %cst_235 = arith.constant dense<0.000000e+00> : vector<4x2xf32>
    %272 = tpu.matmul %270, %271, %cst_235 {dimension_numbers = #tpu.dot_dimension_numbers<[1], [0], [0], [1], [0, 0, 1, 1], [], []>} : vector<4x4xf32>, vector<4x2xf32>, vector<4x2xf32> -> vector<4x2xf32>
    %273 = arith.addf %266, %272 : vector<4x2xf32>
    %c4_236 = arith.constant 4 : index
    %c0_237 = arith.constant 0 : index
    %c0_238 = arith.constant 0 : index
    %274 = vector.load %arg6[%c4_236, %c0_237, %c0_238] : memref<9x4x4xf32, #tpu.memory_space<vmem>>, vector<1x4x4xf32>
    %275 = vector.shape_cast %274 : vector<1x4x4xf32> to vector<4x4xf32>
    %276 = vector.extract_strided_slice %268 {offsets = [0, 1], sizes = [4, 2], strides = [1, 1]} : vector<4x4xf32> to vector<4x2xf32>
    %cst_239 = arith.constant dense<0.000000e+00> : vector<4x2xf32>
    %277 = tpu.matmul %275, %276, %cst_239 {dimension_numbers = #tpu.dot_dimension_numbers<[1], [0], [0], [1], [0, 0, 1, 1], [], []>} : vector<4x4xf32>, vector<4x2xf32>, vector<4x2xf32> -> vector<4x2xf32>
    %278 = arith.addf %273, %277 : vector<4x2xf32>
    %c5_240 = arith.constant 5 : index
    %c0_241 = arith.constant 0 : index
    %c0_242 = arith.constant 0 : index
    %279 = vector.load %arg6[%c5_240, %c0_241, %c0_242] : memref<9x4x4xf32, #tpu.memory_space<vmem>>, vector<1x4x4xf32>
    %280 = vector.shape_cast %279 : vector<1x4x4xf32> to vector<4x4xf32>
    %281 = vector.extract_strided_slice %268 {offsets = [0, 2], sizes = [4, 2], strides = [1, 1]} : vector<4x4xf32> to vector<4x2xf32>
    %cst_243 = arith.constant dense<0.000000e+00> : vector<4x2xf32>
    %282 = tpu.matmul %280, %281, %cst_243 {dimension_numbers = #tpu.dot_dimension_numbers<[1], [0], [0], [1], [0, 0, 1, 1], [], []>} : vector<4x4xf32>, vector<4x2xf32>, vector<4x2xf32> -> vector<4x2xf32>
    %283 = arith.addf %278, %282 : vector<4x2xf32>
    %c0_244 = arith.constant 0 : index
    %c2_245 = arith.constant 2 : index
    %c0_246 = arith.constant 0 : index
    %284 = vector.load %arg10[%c0_244, %c2_245, %c0_246] : memref<4x4x4xf32, #tpu.memory_space<vmem>>, vector<4x1x4xf32>
    %285 = vector.shape_cast %284 : vector<4x1x4xf32> to vector<4x4xf32>
    %c6_247 = arith.constant 6 : index
    %c0_248 = arith.constant 0 : index
    %c0_249 = arith.constant 0 : index
    %286 = vector.load %arg6[%c6_247, %c0_248, %c0_249] : memref<9x4x4xf32, #tpu.memory_space<vmem>>, vector<1x4x4xf32>
    %287 = vector.shape_cast %286 : vector<1x4x4xf32> to vector<4x4xf32>
    %288 = vector.extract_strided_slice %285 {offsets = [0, 0], sizes = [4, 2], strides = [1, 1]} : vector<4x4xf32> to vector<4x2xf32>
    %cst_250 = arith.constant dense<0.000000e+00> : vector<4x2xf32>
    %289 = tpu.matmul %287, %288, %cst_250 {dimension_numbers = #tpu.dot_dimension_numbers<[1], [0], [0], [1], [0, 0, 1, 1], [], []>} : vector<4x4xf32>, vector<4x2xf32>, vector<4x2xf32> -> vector<4x2xf32>
    %290 = arith.addf %283, %289 : vector<4x2xf32>
    %c7_251 = arith.constant 7 : index
    %c0_252 = arith.constant 0 : index
    %c0_253 = arith.constant 0 : index
    %291 = vector.load %arg6[%c7_251, %c0_252, %c0_253] : memref<9x4x4xf32, #tpu.memory_space<vmem>>, vector<1x4x4xf32>
    %292 = vector.shape_cast %291 : vector<1x4x4xf32> to vector<4x4xf32>
    %293 = vector.extract_strided_slice %285 {offsets = [0, 1], sizes = [4, 2], strides = [1, 1]} : vector<4x4xf32> to vector<4x2xf32>
    %cst_254 = arith.constant dense<0.000000e+00> : vector<4x2xf32>
    %294 = tpu.matmul %292, %293, %cst_254 {dimension_numbers = #tpu.dot_dimension_numbers<[1], [0], [0], [1], [0, 0, 1, 1], [], []>} : vector<4x4xf32>, vector<4x2xf32>, vector<4x2xf32> -> vector<4x2xf32>
    %295 = arith.addf %290, %294 : vector<4x2xf32>
    %c8_255 = arith.constant 8 : index
    %c0_256 = arith.constant 0 : index
    %c0_257 = arith.constant 0 : index
    %296 = vector.load %arg6[%c8_255, %c0_256, %c0_257] : memref<9x4x4xf32, #tpu.memory_space<vmem>>, vector<1x4x4xf32>
    %297 = vector.shape_cast %296 : vector<1x4x4xf32> to vector<4x4xf32>
    %298 = vector.extract_strided_slice %285 {offsets = [0, 2], sizes = [4, 2], strides = [1, 1]} : vector<4x4xf32> to vector<4x2xf32>
    %cst_258 = arith.constant dense<0.000000e+00> : vector<4x2xf32>
    %299 = tpu.matmul %297, %298, %cst_258 {dimension_numbers = #tpu.dot_dimension_numbers<[1], [0], [0], [1], [0, 0, 1, 1], [], []>} : vector<4x4xf32>, vector<4x2xf32>, vector<4x2xf32> -> vector<4x2xf32>
    %300 = arith.addf %295, %299 : vector<4x2xf32>
    %c0_259 = arith.constant 0 : index
    %c0_260 = arith.constant 0 : index
    %301 = vector.load %arg7[%c0_259, %c0_260] : memref<4x1xf32, #tpu.memory_space<vmem>>, vector<4x1xf32>
    %302 = vector.broadcast %301 : vector<4x1xf32> to vector<4x2xf32>
    %303 = arith.addf %300, %302 : vector<4x2xf32>
    %c0_261 = arith.constant 0 : index
    %c0_262 = arith.constant 0 : index
    %c0_263 = arith.constant 0 : index
    %c0_264 = arith.constant 0 : index
    %304 = vector.load %arg8[%c0_261, %c0_262, %c0_263, %c0_264] : memref<1x4x2x2xf32, #tpu.memory_space<vmem>>, vector<1x4x1x2xf32>
    %305 = vector.shape_cast %304 : vector<1x4x1x2xf32> to vector<4x2xf32>
    %306 = vector.shape_cast %303 : vector<4x2xf32> to vector<1x4x1x2xf32>
    tpu.vector_store %arg8[%c0_261, %c0_262, %c0_263, %c0_264], %306 {strides = array<i32>} : memref<1x4x2x2xf32, #tpu.memory_space<vmem>>, vector<1x4x1x2xf32>,
    %cst_265 = arith.constant 0.000000e+00 : f32
    %307 = vector.broadcast %cst_265 : f32 to vector<4x2xf32>
    %c0_266 = arith.constant 0 : index
    %c1_267 = arith.constant 1 : index
    %c0_268 = arith.constant 0 : index
    %308 = vector.load %arg10[%c0_266, %c1_267, %c0_268] : memref<4x4x4xf32, #tpu.memory_space<vmem>>, vector<4x1x4xf32>
    %309 = vector.shape_cast %308 : vector<4x1x4xf32> to vector<4x4xf32>
    %c0_269 = arith.constant 0 : index
    %c0_270 = arith.constant 0 : index
    %c0_271 = arith.constant 0 : index
    %310 = vector.load %arg6[%c0_269, %c0_270, %c0_271] : memref<9x4x4xf32, #tpu.memory_space<vmem>>, vector<1x4x4xf32>
    %311 = vector.shape_cast %310 : vector<1x4x4xf32> to vector<4x4xf32>
    %312 = vector.extract_strided_slice %309 {offsets = [0, 0], sizes = [4, 2], strides = [1, 1]} : vector<4x4xf32> to vector<4x2xf32>
    %cst_272 = arith.constant dense<0.000000e+00> : vector<4x2xf32>
    %313 = tpu.matmul %311, %312, %cst_272 {dimension_numbers = #tpu.dot_dimension_numbers<[1], [0], [0], [1], [0, 0, 1, 1], [], []>} : vector<4x4xf32>, vector<4x2xf32>, vector<4x2xf32> -> vector<4x2xf32>
    %314 = arith.addf %307, %313 : vector<4x2xf32>
    %c1_273 = arith.constant 1 : index
    %c0_274 = arith.constant 0 : index
    %c0_275 = arith.constant 0 : index
    %315 = vector.load %arg6[%c1_273, %c0_274, %c0_275] : memref<9x4x4xf32, #tpu.memory_space<vmem>>, vector<1x4x4xf32>
    %316 = vector.shape_cast %315 : vector<1x4x4xf32> to vector<4x4xf32>
    %317 = vector.extract_strided_slice %309 {offsets = [0, 1], sizes = [4, 2], strides = [1, 1]} : vector<4x4xf32> to vector<4x2xf32>
    %cst_276 = arith.constant dense<0.000000e+00> : vector<4x2xf32>
    %318 = tpu.matmul %316, %317, %cst_276 {dimension_numbers = #tpu.dot_dimension_numbers<[1], [0], [0], [1], [0, 0, 1, 1], [], []>} : vector<4x4xf32>, vector<4x2xf32>, vector<4x2xf32> -> vector<4x2xf32>
    %319 = arith.addf %314, %318 : vector<4x2xf32>
    %c2_277 = arith.constant 2 : index
    %c0_278 = arith.constant 0 : index
    %c0_279 = arith.constant 0 : index
    %320 = vector.load %arg6[%c2_277, %c0_278, %c0_279] : memref<9x4x4xf32, #tpu.memory_space<vmem>>, vector<1x4x4xf32>
    %321 = vector.shape_cast %320 : vector<1x4x4xf32> to vector<4x4xf32>
    %322 = vector.extract_strided_slice %309 {offsets = [0, 2], sizes = [4, 2], strides = [1, 1]} : vector<4x4xf32> to vector<4x2xf32>
    %cst_280 = arith.constant dense<0.000000e+00> : vector<4x2xf32>
    %323 = tpu.matmul %321, %322, %cst_280 {dimension_numbers = #tpu.dot_dimension_numbers<[1], [0], [0], [1], [0, 0, 1, 1], [], []>} : vector<4x4xf32>, vector<4x2xf32>, vector<4x2xf32> -> vector<4x2xf32>
    %324 = arith.addf %319, %323 : vector<4x2xf32>
    %c0_281 = arith.constant 0 : index
    %c2_282 = arith.constant 2 : index
    %c0_283 = arith.constant 0 : index
    %325 = vector.load %arg10[%c0_281, %c2_282, %c0_283] : memref<4x4x4xf32, #tpu.memory_space<vmem>>, vector<4x1x4xf32>
    %326 = vector.shape_cast %325 : vector<4x1x4xf32> to vector<4x4xf32>
    %c3_284 = arith.constant 3 : index
    %c0_285 = arith.constant 0 : index
    %c0_286 = arith.constant 0 : index
    %327 = vector.load %arg6[%c3_284, %c0_285, %c0_286] : memref<9x4x4xf32, #tpu.memory_space<vmem>>, vector<1x4x4xf32>
    %328 = vector.shape_cast %327 : vector<1x4x4xf32> to vector<4x4xf32>
    %329 = vector.extract_strided_slice %326 {offsets = [0, 0], sizes = [4, 2], strides = [1, 1]} : vector<4x4xf32> to vector<4x2xf32>
    %cst_287 = arith.constant dense<0.000000e+00> : vector<4x2xf32>
    %330 = tpu.matmul %328, %329, %cst_287 {dimension_numbers = #tpu.dot_dimension_numbers<[1], [0], [0], [1], [0, 0, 1, 1], [], []>} : vector<4x4xf32>, vector<4x2xf32>, vector<4x2xf32> -> vector<4x2xf32>
    %331 = arith.addf %324, %330 : vector<4x2xf32>
    %c4_288 = arith.constant 4 : index
    %c0_289 = arith.constant 0 : index
    %c0_290 = arith.constant 0 : index
    %332 = vector.load %arg6[%c4_288, %c0_289, %c0_290] : memref<9x4x4xf32, #tpu.memory_space<vmem>>, vector<1x4x4xf32>
    %333 = vector.shape_cast %332 : vector<1x4x4xf32> to vector<4x4xf32>
    %334 = vector.extract_strided_slice %326 {offsets = [0, 1], sizes = [4, 2], strides = [1, 1]} : vector<4x4xf32> to vector<4x2xf32>
    %cst_291 = arith.constant dense<0.000000e+00> : vector<4x2xf32>
    %335 = tpu.matmul %333, %334, %cst_291 {dimension_numbers = #tpu.dot_dimension_numbers<[1], [0], [0], [1], [0, 0, 1, 1], [], []>} : vector<4x4xf32>, vector<4x2xf32>, vector<4x2xf32> -> vector<4x2xf32>
    %336 = arith.addf %331, %335 : vector<4x2xf32>
    %c5_292 = arith.constant 5 : index
    %c0_293 = arith.constant 0 : index
    %c0_294 = arith.constant 0 : index
    %337 = vector.load %arg6[%c5_292, %c0_293, %c0_294] : memref<9x4x4xf32, #tpu.memory_space<vmem>>, vector<1x4x4xf32>
    %338 = vector.shape_cast %337 : vector<1x4x4xf32> to vector<4x4xf32>
    %339 = vector.extract_strided_slice %326 {offsets = [0, 2], sizes = [4, 2], strides = [1, 1]} : vector<4x4xf32> to vector<4x2xf32>
    %cst_295 = arith.constant dense<0.000000e+00> : vector<4x2xf32>
    %340 = tpu.matmul %338, %339, %cst_295 {dimension_numbers = #tpu.dot_dimension_numbers<[1], [0], [0], [1], [0, 0, 1, 1], [], []>} : vector<4x4xf32>, vector<4x2xf32>, vector<4x2xf32> -> vector<4x2xf32>
    %341 = arith.addf %336, %340 : vector<4x2xf32>
    %c0_296 = arith.constant 0 : index
    %c3_297 = arith.constant 3 : index
    %c0_298 = arith.constant 0 : index
    %342 = vector.load %arg10[%c0_296, %c3_297, %c0_298] : memref<4x4x4xf32, #tpu.memory_space<vmem>>, vector<4x1x4xf32>
    %343 = vector.shape_cast %342 : vector<4x1x4xf32> to vector<4x4xf32>
    %c6_299 = arith.constant 6 : index
    %c0_300 = arith.constant 0 : index
    %c0_301 = arith.constant 0 : index
    %344 = vector.load %arg6[%c6_299, %c0_300, %c0_301] : memref<9x4x4xf32, #tpu.memory_space<vmem>>, vector<1x4x4xf32>
    %345 = vector.shape_cast %344 : vector<1x4x4xf32> to vector<4x4xf32>
    %346 = vector.extract_strided_slice %343 {offsets = [0, 0], sizes = [4, 2], strides = [1, 1]} : vector<4x4xf32> to vector<4x2xf32>
    %cst_302 = arith.constant dense<0.000000e+00> : vector<4x2xf32>
    %347 = tpu.matmul %345, %346, %cst_302 {dimension_numbers = #tpu.dot_dimension_numbers<[1], [0], [0], [1], [0, 0, 1, 1], [], []>} : vector<4x4xf32>, vector<4x2xf32>, vector<4x2xf32> -> vector<4x2xf32>
    %348 = arith.addf %341, %347 : vector<4x2xf32>
    %c7_303 = arith.constant 7 : index
    %c0_304 = arith.constant 0 : index
    %c0_305 = arith.constant 0 : index
    %349 = vector.load %arg6[%c7_303, %c0_304, %c0_305] : memref<9x4x4xf32, #tpu.memory_space<vmem>>, vector<1x4x4xf32>
    %350 = vector.shape_cast %349 : vector<1x4x4xf32> to vector<4x4xf32>
    %351 = vector.extract_strided_slice %343 {offsets = [0, 1], sizes = [4, 2], strides = [1, 1]} : vector<4x4xf32> to vector<4x2xf32>
    %cst_306 = arith.constant dense<0.000000e+00> : vector<4x2xf32>
    %352 = tpu.matmul %350, %351, %cst_306 {dimension_numbers = #tpu.dot_dimension_numbers<[1], [0], [0], [1], [0, 0, 1, 1], [], []>} : vector<4x4xf32>, vector<4x2xf32>, vector<4x2xf32> -> vector<4x2xf32>
    %353 = arith.addf %348, %352 : vector<4x2xf32>
    %c8_307 = arith.constant 8 : index
    %c0_308 = arith.constant 0 : index
    %c0_309 = arith.constant 0 : index
    %354 = vector.load %arg6[%c8_307, %c0_308, %c0_309] : memref<9x4x4xf32, #tpu.memory_space<vmem>>, vector<1x4x4xf32>
    %355 = vector.shape_cast %354 : vector<1x4x4xf32> to vector<4x4xf32>
    %356 = vector.extract_strided_slice %343 {offsets = [0, 2], sizes = [4, 2], strides = [1, 1]} : vector<4x4xf32> to vector<4x2xf32>
    %cst_310 = arith.constant dense<0.000000e+00> : vector<4x2xf32>
    %357 = tpu.matmul %355, %356, %cst_310 {dimension_numbers = #tpu.dot_dimension_numbers<[1], [0], [0], [1], [0, 0, 1, 1], [], []>} : vector<4x4xf32>, vector<4x2xf32>, vector<4x2xf32> -> vector<4x2xf32>
    %358 = arith.addf %353, %357 : vector<4x2xf32>
    %c0_311 = arith.constant 0 : index
    %c0_312 = arith.constant 0 : index
    %359 = vector.load %arg7[%c0_311, %c0_312] : memref<4x1xf32, #tpu.memory_space<vmem>>, vector<4x1xf32>
    %360 = vector.broadcast %359 : vector<4x1xf32> to vector<4x2xf32>
    %361 = arith.addf %358, %360 : vector<4x2xf32>
    %c0_313 = arith.constant 0 : index
    %c0_314 = arith.constant 0 : index
    %c1_315 = arith.constant 1 : index
    %c0_316 = arith.constant 0 : index
    %362 = vector.load %arg8[%c0_313, %c0_314, %c1_315, %c0_316] : memref<1x4x2x2xf32, #tpu.memory_space<vmem>>, vector<1x4x1x2xf32>
    %363 = vector.shape_cast %362 : vector<1x4x1x2xf32> to vector<4x2xf32>
    %364 = vector.shape_cast %361 : vector<4x2xf32> to vector<1x4x1x2xf32>
    tpu.vector_store %arg8[%c0_313, %c0_314, %c1_315, %c0_316], %364 {strides = array<i32>} : memref<1x4x2x2xf32, #tpu.memory_space<vmem>>, vector<1x4x1x2xf32>,
    return
  }
  func.func @transform_0(%arg0: i32) -> (i32, i32, i32, i32) {
    %c0_i32 = arith.constant 0 : i32
    %c0_i32_0 = arith.constant 0 : i32
    %c0_i32_1 = arith.constant 0 : i32
    %c0_i32_2 = arith.constant 0 : i32
    return %arg0, %c0_i32, %c0_i32_0, %c0_i32_1 : i32, i32, i32, i32
  }
  func.func @transform_1(%arg0: i32) -> (i32, i32, i32) {
    %c0_i32 = arith.constant 0 : i32
    %c0_i32_0 = arith.constant 0 : i32
    %c0_i32_1 = arith.constant 0 : i32
    %c0_i32_2 = arith.constant 0 : i32
    return %c0_i32, %c0_i32_0, %c0_i32_1 : i32, i32, i32
  }
  func.func @transform_2(%arg0: i32) -> (i32, i32) {
    %c0_i32 = arith.constant 0 : i32
    %c0_i32_0 = arith.constant 0 : i32
    %c0_i32_1 = arith.constant 0 : i32
    return %c0_i32, %c0_i32_0 : i32, i32
  }
  func.func @transform_3(%arg0: i32) -> (i32, i32, i32) {
    %c0_i32 = arith.constant 0 : i32
    %c0_i32_0 = arith.constant 0 : i32
    %c0_i32_1 = arith.constant 0 : i32
    %c0_i32_2 = arith.constant 0 : i32
    return %c0_i32, %c0_i32_0, %c0_i32_1 : i32, i32, i32
  }
  func.func @transform_4(%arg0: i32) -> (i32, i32) {
    %c0_i32 = arith.constant 0 : i32
    %c0_i32_0 = arith.constant 0 : i32
    %c0_i32_1 = arith.constant 0 : i32
    return %c0_i32, %c0_i32_0 : i32, i32
  }
  func.func @transform_5(%arg0: i32) -> (i32, i32, i32) {
    %c0_i32 = arith.constant 0 : i32
    %c0_i32_0 = arith.constant 0 : i32
    %c0_i32_1 = arith.constant 0 : i32
    %c0_i32_2 = arith.constant 0 : i32
    return %c0_i32, %c0_i32_0, %c0_i32_1 : i32, i32, i32
  }
  func.func @transform_6(%arg0: i32) -> (i32, i32) {
    %c0_i32 = arith.constant 0 : i32
    %c0_i32_0 = arith.constant 0 : i32
    %c0_i32_1 = arith.constant 0 : i32
    return %c0_i32, %c0_i32_0 : i32, i32
  }
  func.func @transform_7(%arg0: i32) -> (i32, i32, i32, i32) {
    %c0_i32 = arith.constant 0 : i32
    %c0_i32_0 = arith.constant 0 : i32
    %c0_i32_1 = arith.constant 0 : i32
    %c0_i32_2 = arith.constant 0 : i32
    return %arg0, %c0_i32, %c0_i32_0, %c0_i32_1 : i32, i32, i32, i32
  }
}

module attributes {stable_mosaic.version = 11 : i64} {
  func.func @_gate_kernel(%arg0: i32, %arg1: memref<16x1024xf32, #tpu.memory_space<vmem>>, %arg2: memref<4x1024xf32, #tpu.memory_space<vmem>>, %arg3: memref<4x1024xbf16, #tpu.memory_space<vmem>>, %arg4: memref<4x4xbf16, #tpu.memory_space<vmem>>, %arg5: memref<4x1xf32, #tpu.memory_space<vmem>>, %arg6: memref<16x4xbf16, #tpu.memory_space<vmem>>, %arg7: memref<16x1xf32, #tpu.memory_space<vmem>>, %arg8: memref<16x1024xf32, #tpu.memory_space<vmem>>) attributes {dimension_semantics = [#tpu.dimension_semantics<parallel>], iteration_bounds = array<i64: 2>, scalar_prefetch = 0 : i64, scratch_operands = 0 : i64, tpu.core_type = #tpu.core_type<tc>, window_params = [{transform_indices = @transform_0, window_bounds = array<i64: 16, 1024>}, {transform_indices = @transform_1, window_bounds = array<i64: 4, 1024>}, {transform_indices = @transform_2, window_bounds = array<i64: 4, 1024>}, {pipeline_mode = #tpu.pipeline_mode<synchronous>, transform_indices = @transform_3, window_bounds = array<i64: 4, 4>}, {pipeline_mode = #tpu.pipeline_mode<synchronous>, transform_indices = @transform_4, window_bounds = array<i64: 4, 1>}, {pipeline_mode = #tpu.pipeline_mode<synchronous>, transform_indices = @transform_5, window_bounds = array<i64: 16, 4>}, {pipeline_mode = #tpu.pipeline_mode<synchronous>, transform_indices = @transform_6, window_bounds = array<i64: 16, 1>}, {transform_indices = @transform_7, window_bounds = array<i64: 16, 1024>}]} {
    %c0 = arith.constant 0 : index
    %c0_0 = arith.constant 0 : index
    %0 = vector.load %arg4[%c0, %c0_0] : memref<4x4xbf16, #tpu.memory_space<vmem>>, vector<4x4xbf16>
    %c0_1 = arith.constant 0 : index
    %c0_2 = arith.constant 0 : index
    %1 = vector.load %arg3[%c0_1, %c0_2] : memref<4x1024xbf16, #tpu.memory_space<vmem>>, vector<4x1024xbf16>
    %cst = arith.constant dense<0.000000e+00> : vector<4x1024xf32>
    %2 = tpu.matmul %0, %1, %cst {dimension_numbers = #tpu.dot_dimension_numbers<[1], [0], [0], [1], [0, 0, 1, 1], [], []>} : vector<4x4xbf16>, vector<4x1024xbf16>, vector<4x1024xf32> -> vector<4x1024xf32>
    %c0_3 = arith.constant 0 : index
    %c0_4 = arith.constant 0 : index
    %3 = vector.load %arg5[%c0_3, %c0_4] : memref<4x1xf32, #tpu.memory_space<vmem>>, vector<4x1xf32>
    %4 = vector.broadcast %3 : vector<4x1xf32> to vector<4x1024xf32>
    %5 = arith.addf %2, %4 : vector<4x1024xf32>
    %c0_5 = arith.constant 0 : index
    %c0_6 = arith.constant 0 : index
    %6 = vector.load %arg2[%c0_5, %c0_6] : memref<4x1024xf32, #tpu.memory_space<vmem>>, vector<4x1024xf32>
    %7 = arith.addf %6, %5 : vector<4x1024xf32>
    %8 = arith.truncf %7 : vector<4x1024xf32> to vector<4x1024xbf16>
    %c0_7 = arith.constant 0 : index
    %c0_8 = arith.constant 0 : index
    %9 = vector.load %arg6[%c0_7, %c0_8] : memref<16x4xbf16, #tpu.memory_space<vmem>>, vector<16x4xbf16>
    %cst_9 = arith.constant dense<0.000000e+00> : vector<16x1024xf32>
    %10 = tpu.matmul %9, %8, %cst_9 {dimension_numbers = #tpu.dot_dimension_numbers<[1], [0], [0], [1], [0, 0, 1, 1], [], []>} : vector<16x4xbf16>, vector<4x1024xbf16>, vector<16x1024xf32> -> vector<16x1024xf32>
    %c0_10 = arith.constant 0 : index
    %c0_11 = arith.constant 0 : index
    %11 = vector.load %arg7[%c0_10, %c0_11] : memref<16x1xf32, #tpu.memory_space<vmem>>, vector<16x1xf32>
    %12 = vector.broadcast %11 : vector<16x1xf32> to vector<16x1024xf32>
    %13 = arith.addf %10, %12 : vector<16x1024xf32>
    %c0_12 = arith.constant 0 : index
    %c0_13 = arith.constant 0 : index
    %14 = vector.load %arg1[%c0_12, %c0_13] : memref<16x1024xf32, #tpu.memory_space<vmem>>, vector<16x1024xf32>
    %15 = arith.negf %13 : vector<16x1024xf32>
    %16 = math.exp %15 : vector<16x1024xf32>
    %cst_14 = arith.constant 1.000000e+00 : f32
    %17 = vector.broadcast %cst_14 : f32 to vector<16x1024xf32>
    %18 = arith.addf %17, %16 : vector<16x1024xf32>
    %19 = arith.divf %17, %18 : vector<16x1024xf32>
    %20 = arith.mulf %14, %19 : vector<16x1024xf32>
    %c0_15 = arith.constant 0 : index
    %c0_16 = arith.constant 0 : index
    %21 = vector.load %arg8[%c0_15, %c0_16] : memref<16x1024xf32, #tpu.memory_space<vmem>>, vector<16x1024xf32>
    tpu.vector_store %arg8[%c0_15, %c0_16], %20 {strides = array<i32>} : memref<16x1024xf32, #tpu.memory_space<vmem>>, vector<16x1024xf32>,
    return
  }
  func.func @transform_0(%arg0: i32) -> (i32, i32) {
    %c0_i32 = arith.constant 0 : i32
    %c0_i32_0 = arith.constant 0 : i32
    return %c0_i32, %arg0 : i32, i32
  }
  func.func @transform_1(%arg0: i32) -> (i32, i32) {
    %c0_i32 = arith.constant 0 : i32
    %c0_i32_0 = arith.constant 0 : i32
    return %c0_i32, %arg0 : i32, i32
  }
  func.func @transform_2(%arg0: i32) -> (i32, i32) {
    %c0_i32 = arith.constant 0 : i32
    %c0_i32_0 = arith.constant 0 : i32
    return %c0_i32, %arg0 : i32, i32
  }
  func.func @transform_3(%arg0: i32) -> (i32, i32) {
    %c0_i32 = arith.constant 0 : i32
    %c0_i32_0 = arith.constant 0 : i32
    %c0_i32_1 = arith.constant 0 : i32
    return %c0_i32, %c0_i32_0 : i32, i32
  }
  func.func @transform_4(%arg0: i32) -> (i32, i32) {
    %c0_i32 = arith.constant 0 : i32
    %c0_i32_0 = arith.constant 0 : i32
    %c0_i32_1 = arith.constant 0 : i32
    return %c0_i32, %c0_i32_0 : i32, i32
  }
  func.func @transform_5(%arg0: i32) -> (i32, i32) {
    %c0_i32 = arith.constant 0 : i32
    %c0_i32_0 = arith.constant 0 : i32
    %c0_i32_1 = arith.constant 0 : i32
    return %c0_i32, %c0_i32_0 : i32, i32
  }
  func.func @transform_6(%arg0: i32) -> (i32, i32) {
    %c0_i32 = arith.constant 0 : i32
    %c0_i32_0 = arith.constant 0 : i32
    %c0_i32_1 = arith.constant 0 : i32
    return %c0_i32, %c0_i32_0 : i32, i32
  }
  func.func @transform_7(%arg0: i32) -> (i32, i32) {
    %c0_i32 = arith.constant 0 : i32
    %c0_i32_0 = arith.constant 0 : i32
    return %c0_i32, %arg0 : i32, i32
  }
}

</mosaic_0001>

<llo_original>
// kernel: esa_forward.4
$region0: #{esa_forward.4}
  #allocation0 [shape = 'u32[]', space=smem, size = 0x4, offset = 0x4, fixed_abs, tag = 'smem constant byte address 0x4 - core index']
  #allocation1 [shape = 'u32[144,128]{1,0:T(1,128)}', space=vmem, size = 0x12000, scoped, tag = 'internal scratch']
  %s0 = inlined_call_operand.vmem [shape: f32[16,1152], index: 0, kind: input, shape index: {}]
  %s1 = inlined_call_operand.vmem [shape: bf16[4,16], index: 1, kind: input, shape index: {}]
  %s2 = inlined_call_operand.vmem [shape: f32[4,1], index: 2, kind: input, shape index: {}]
  %s3 = inlined_call_operand.vmem [shape: bf16[4,1152], index: 3, kind: output, shape index: {}]
  %s4 = sld [smem:[#allocation0]]
  $region173: #{esa_forward.4} parent=0
    _
  %s6 = ssub.s32 1, %s4
  %s7 = scalar_select 0, %s6, %s4
  $region1: #{esa_forward.4} parent=0
    #allocation2 [shape = 'u8[131072]{0}', space=vmem, size = 0x20000, scoped, tag = 'input window, operand 0']
    #allocation3 [shape = 'u8[16384]{0}', space=vmem, size = 0x4000, scoped, tag = 'output window, operand 0']
    loop: start=0, step=1, limit=4
    $region2: #{esa_forward.4} parent=1 // loop_pre_header
      _
    $region3: #{esa_forward.4} parent=1 // loop_header
      %s9 = sphi 0, %s13
      %p10 = scmp.ge.s32.totalorder %s9, 4
      %s19 = sphi 0, %s21
      %s22 = sphi 0, %s19
      %s23 = sphi 0, %s22
      %s39 = sphi 0, %s23
      %s43 = sphi 0, %s43
      %s45 = sphi 0, %s43
      %s46 = sphi 0, %s45
      %s60 = sphi 0, %s46
      %s64 = sphi 0, %s64
      %s66 = sphi 0, %s64
      %s67 = sphi 0, %s66
      %s81 = sphi 0, %s67
      %s87 = sphi 0, %s89
      %s90 = sphi 0, %s87
      %s91 = sphi 0, %s90
      %s107 = sphi 0, %s91
    $region4: #{esa_forward.4} parent=1 // loop_header_branch
      %12 = sbr.rel (%p10) target = $region8
    $region5: #{esa_forward.4} parent=1 // loop_body
      %s14 = ssub.s32 %s9, 1
      %s15 = ssub.s32 %s9, 2
      %s16 = sadd.s32 %s9, 1
      %s17 = ssub.s32 %s9, %s16
      %p18 = scmp.eq.s32.totalorder %s17, 0
      %s20 = sadd.s32 %s19, 1
      %s21 = scalar_select %p18, %s19, %s20
      %p24 = pneg %p18
      %p25 = scmp.eq.s32.totalorder %s9, 1
      %p26 = por %p24, %p25
      %p27 = scmp.ne.s32.totalorder %s19, %s22
      %p28 = scmp.eq.s32.totalorder %s9, 0
      %p29 = por %p27, %p28
      %p30 = scmp.ne.s32.totalorder %s19, %s22
      %p31 = scmp.eq.s32.totalorder %s14, 1
      %p32 = por %p30, %p31
      %p33 = scmp.ne.s32.totalorder %s22, %s23
      %p34 = scmp.eq.s32.totalorder %s14, 0
      %p35 = por %p33, %p34
      %p36 = scmp.ne.s32.totalorder %s22, %s23
      %p37 = scmp.eq.s32.totalorder %s15, 1
      %p38 = por %p36, %p37
      %p40 = scmp.ne.s32.totalorder %s23, %s39
      %p41 = scmp.eq.s32.totalorder %s15, 0
      %p42 = por %p40, %p41
      %s44 = sadd.s32 %s43, 1
      %p47 = scmp.eq.s32.totalorder %s9, 1
      %p48 = scmp.ne.s32.totalorder %s43, %s45
      %p49 = scmp.eq.s32.totalorder %s9, 0
      %p50 = por %p48, %p49
      %p51 = scmp.ne.s32.totalorder %s43, %s45
      %p52 = scmp.eq.s32.totalorder %s14, 1
      %p53 = por %p51, %p52
      %p54 = scmp.ne.s32.totalorder %s45, %s46
      %p55 = scmp.eq.s32.totalorder %s14, 0
      %p56 = por %p54, %p55
      %p57 = scmp.ne.s32.totalorder %s45, %s46
      %p58 = scmp.eq.s32.totalorder %s15, 1
      %p59 = por %p57, %p58
      %p61 = scmp.ne.s32.totalorder %s46, %s60
      %p62 = scmp.eq.s32.totalorder %s15, 0
      %p63 = por %p61, %p62
      %s65 = sadd.s32 %s64, 1
      %p68 = scmp.eq.s32.totalorder %s9, 1
      %p69 = scmp.ne.s32.totalorder %s64, %s66
      %p70 = scmp.eq.s32.totalorder %s9, 0
      %p71 = por %p69, %p70
      %p72 = scmp.ne.s32.totalorder %s64, %s66
      %p73 = scmp.eq.s32.totalorder %s14, 1
      %p74 = por %p72, %p73
      %p75 = scmp.ne.s32.totalorder %s66, %s67
      %p76 = scmp.eq.s32.totalorder %s14, 0
      %p77 = por %p75, %p76
      %p78 = scmp.ne.s32.totalorder %s66, %s67
      %p79 = scmp.eq.s32.totalorder %s15, 1
      %p80 = por %p78, %p79
      %p82 = scmp.ne.s32.totalorder %s67, %s81
      %p83 = scmp.eq.s32.totalorder %s15, 0
      %p84 = por %p82, %p83
      %s85 = ssub.s32 %s9, %s16
      %p86 = scmp.eq.s32.totalorder %s85, 0
      %s88 = sadd.s32 %s87, 1
      %s89 = scalar_select %p86, %s87, %s88
      %p92 = pneg %p86
      %p93 = scmp.eq.s32.totalorder %s9, 1
      %p94 = por %p92, %p93
      %p95 = scmp.ne.s32.totalorder %s87, %s90
      %p96 = scmp.eq.s32.totalorder %s9, 0
      %p97 = por %p95, %p96
      %p98 = scmp.ne.s32.totalorder %s87, %s90
      %p99 = scmp.eq.s32.totalorder %s14, 1
      %p100 = por %p98, %p99
      %p101 = scmp.ne.s32.totalorder %s90, %s91
      %p102 = scmp.eq.s32.totalorder %s14, 0
      %p103 = por %p101, %p102
      %p104 = scmp.ne.s32.totalorder %s90, %s91
      %p105 = scmp.eq.s32.totalorder %s15, 1
      %p106 = por %p104, %p105
      %p108 = scmp.ne.s32.totalorder %s91, %s107
      %p109 = scmp.eq.s32.totalorder %s15, 0
      %p110 = por %p108, %p109
      %p111 = scmp.le.s32.totalorder 1, %s9
      %p112 = scmp.lt.s32.totalorder %s9, 3
      %p113 = pnand %p111, %p112
      %p114 = pneg %p113
      // Predicated region
      $region9: #{esa_forward.4} parent=5 // pred_check
        _
      $region10: #{esa_forward.4} parent=5 // pred_check_branch
        %116 = sbr.rel (%p113) target = $region12
      $region11: #{esa_forward.4} parent=5 // pred_region
        %s117 = ssub.s32 %s9, 1
        // Predicated region
        $region13: #{esa_forward.4} parent=11 // pred_check
          %p118 = pneg %p56
        $region14: #{esa_forward.4} parent=11 // pred_check_branch
          %120 = sbr.rel (%p118) target = $region16
        $region15: #{esa_forward.4} parent=11 // pred_region
          _
        $region16: #{esa_forward.4} parent=11 // pred_fallthru
          _
        // Predicated region
        $region17: #{esa_forward.4} parent=11 // pred_check
          %p121 = pneg %p77
        $region18: #{esa_forward.4} parent=11 // pred_check_branch
          %123 = sbr.rel (%p121) target = $region20
        $region19: #{esa_forward.4} parent=11 // pred_region
          _
        $region20: #{esa_forward.4} parent=11 // pred_fallthru
          _
      $region12: #{esa_forward.4} parent=5 // pred_fallthru
        _
      %p124 = scmp.lt.s32.totalorder %s9, 2
      // Predicated region
      $region21: #{esa_forward.4} parent=5 // pred_check
        %p125 = pneg %p124
      $region22: #{esa_forward.4} parent=5 // pred_check_branch
        %127 = sbr.rel (%p125) target = $region24
      $region23: #{esa_forward.4} parent=5 // pred_region
        // Predicated region
        $region25: #{esa_forward.4} parent=23 // pred_check
          %p128 = pneg %p29
        $region26: #{esa_forward.4} parent=23 // pred_check_branch
          %130 = sbr.rel (%p128) target = $region28
        $region27: #{esa_forward.4} parent=23 // pred_region
          %s131 = sand.u32 %s19, 1
          %s132 = sand.u32 %s19, 1
          %s133 = smul.addr %s132, 128
          %s134 = scalar_lea.vmem [#allocation2], %s133
          %s135 = smul.u32 8, %s9
          %s136 = ssub.s32 9, %s135
          %p137 = scmp.lt.s32.totalorder %s136, 8
          %s138 = scalar_select %p137, %s136, 8
          %s139 = smul.u32 256, %s138
          %p140 = scmp.ne.s32.totalorder 0, %s139
          %s141 = smul.addr %s135, 8
          %s142 = scalar_lea.vmem %s0, %s141
          %s143 = smul.u32 %s138, 8
          // Predicated region
          $region29: #{esa_forward.4} parent=27 // pred_check
            %p144 = pneg %p140
          $region30: #{esa_forward.4} parent=27 // pred_check_branch
            %146 = sbr.rel (%p144) target = $region32
          $region31: #{esa_forward.4} parent=27 // pred_region
            %p147 = scmp.lt.u32.totalorder %s143, 8
            %p148 = pneg %p147
            // Predicated region
            $region33: #{esa_forward.4} parent=31 // pred_check
              _
            $region34: #{esa_forward.4} parent=31 // pred_check_branch
              %150 = sbr.rel (%p147) target = $region36
            $region35: #{esa_forward.4} parent=31 // pred_region
              %s168 = sand.u32 %s143, 7
              %p169 = scmp.eq.s32.totalorder %s168, 0
              // Predicated region
              $region48: #{esa_forward.4} parent=35 // pred_check
                %p170 = pneg %p169
              $region49: #{esa_forward.4} parent=35 // pred_check_branch
                %172 = sbr.rel (%p170) target = $region51
              $region50: #{esa_forward.4} parent=35 // pred_region
                %s173 = sshrl.u32 %s143, 3
                %s174 = sshrl.u32 %s173, 5
                // While loop
                $region52: #{esa_forward.4} parent=50 // loop_pre_header
                  _
                $region53: #{esa_forward.4} parent=50 // loop_header
                  %s178 = sphi 0, %s180
                  %p179 = scmp.ge.s32.totalorder %s178, %s174
                  %s183 = sphi 0, %s316
                  %s184 = sphi %s142, %s319
                  %s185 = sphi %s134, %s320
                $region54: #{esa_forward.4} parent=50 // loop_header_branch
                  %182 = sbr.rel (%p179) target = $region58
                $region55: #{esa_forward.4} parent=50 // loop_body
                  %v186 = vld [vmem:[%s184] sm:$0xff]
                  %187 = vst [vmem:[%s185] sm:$0xff] %v186
                  %v188 = vld [vmem:[%s184 + $0x8] sm:$0xff]
                  %189 = vst [vmem:[%s185 + $0x8] sm:$0xff] %v188
                  %v190 = vld [vmem:[%s184 + $0x10] sm:$0xff]
                  %191 = vst [vmem:[%s185 + $0x10] sm:$0xff] %v190
                  %v192 = vld [vmem:[%s184 + $0x18] sm:$0xff]
                  %193 = vst [vmem:[%s185 + $0x18] sm:$0xff] %v192
                  %v194 = vld [vmem:[%s184 + $0x20] sm:$0xff]
                  %195 = vst [vmem:[%s185 + $0x20] sm:$0xff] %v194
                  %v196 = vld [vmem:[%s184 + $0x28] sm:$0xff]
                  %197 = vst [vmem:[%s185 + $0x28] sm:$0xff] %v196
                  %v198 = vld [vmem:[%s184 + $0x30] sm:$0xff]
                  %199 = vst [vmem:[%s185 + $0x30] sm:$0xff] %v198
                  %v200 = vld [vmem:[%s184 + $0x38] sm:$0xff]
                  %201 = vst [vmem:[%s185 + $0x38] sm:$0xff] %v200
                  %v202 = vld [vmem:[%s184 + $0x40] sm:$0xff]
                  %203 = vst [vmem:[%s185 + $0x40] sm:$0xff] %v202
                  %v204 = vld [vmem:[%s184 + $0x48] sm:$0xff]
                  %205 = vst [vmem:[%s185 + $0x48] sm:$0xff] %v204
                  %v206 = vld [vmem:[%s184 + $0x50] sm:$0xff]
                  %207 = vst [vmem:[%s185 + $0x50] sm:$0xff] %v206
                  %v208 = vld [vmem:[%s184 + $0x58] sm:$0xff]
                  %209 = vst [vmem:[%s185 + $0x58] sm:$0xff] %v208
                  %v210 = vld [vmem:[%s184 + $0x60] sm:$0xff]
                  %211 = vst [vmem:[%s185 + $0x60] sm:$0xff] %v210
                  %v212 = vld [vmem:[%s184 + $0x68] sm:$0xff]
                  %213 = vst [vmem:[%s185 + $0x68] sm:$0xff] %v212
                  %v214 = vld [vmem:[%s184 + $0x70] sm:$0xff]
                  %215 = vst [vmem:[%s185 + $0x70] sm:$0xff] %v214
                  %v216 = vld [vmem:[%s184 + $0x78] sm:$0xff]
                  %217 = vst [vmem:[%s185 + $0x78] sm:$0xff] %v216
                  %v218 = vld [vmem:[%s184 + $0x80] sm:$0xff]
                  %219 = vst [vmem:[%s185 + $0x80] sm:$0xff] %v218
                  %v220 = vld [vmem:[%s184 + $0x88] sm:$0xff]
                  %221 = vst [vmem:[%s185 + $0x88] sm:$0xff] %v220
                  %v222 = vld [vmem:[%s184 + $0x90] sm:$0xff]
                  %223 = vst [vmem:[%s185 + $0x90] sm:$0xff] %v222
                  %v224 = vld [vmem:[%s184 + $0x98] sm:$0xff]
                  %225 = vst [vmem:[%s185 + $0x98] sm:$0xff] %v224
                  %v226 = vld [vmem:[%s184 + $0xa0] sm:$0xff]
                  %227 = vst [vmem:[%s185 + $0xa0] sm:$0xff] %v226
                  %v228 = vld [vmem:[%s184 + $0xa8] sm:$0xff]
                  %229 = vst [vmem:[%s185 + $0xa8] sm:$0xff] %v228
                  %v230 = vld [vmem:[%s184 + $0xb0] sm:$0xff]
                  %231 = vst [vmem:[%s185 + $0xb0] sm:$0xff] %v230
                  %v232 = vld [vmem:[%s184 + $0xb8] sm:$0xff]
                  %233 = vst [vmem:[%s185 + $0xb8] sm:$0xff] %v232
                  %v234 = vld [vmem:[%s184 + $0xc0] sm:$0xff]
                  %235 = vst [vmem:[%s185 + $0xc0] sm:$0xff] %v234
                  %v236 = vld [vmem:[%s184 + $0xc8] sm:$0xff]
                  %237 = vst [vmem:[%s185 + $0xc8] sm:$0xff] %v236
                  %v238 = vld [vmem:[%s184 + $0xd0] sm:$0xff]
                  %239 = vst [vmem:[%s185 + $0xd0] sm:$0xff] %v238
                  %v240 = vld [vmem:[%s184 + $0xd8] sm:$0xff]
                  %241 = vst [vmem:[%s185 + $0xd8] sm:$0xff] %v240
                  %v242 = vld [vmem:[%s184 + $0xe0] sm:$0xff]
                  %243 = vst [vmem:[%s185 + $0xe0] sm:$0xff] %v242
                  %v244 = vld [vmem:[%s184 + $0xe8] sm:$0xff]
                  %245 = vst [vmem:[%s185 + $0xe8] sm:$0xff] %v244
                  %v246 = vld [vmem:[%s184 + $0xf0] sm:$0xff]
                  %247 = vst [vmem:[%s185 + $0xf0] sm:$0xff] %v246
                  %v248 = vld [vmem:[%s184 + $0xf8] sm:$0xff]
                  %249 = vst [vmem:[%s185 + $0xf8] sm:$0xff] %v248
                  %v250 = vld [vmem:[%s184 + $0x48] sm:$0xff]
                  %251 = vst [vmem:[%s185 + $0x40] sm:$0xff] %v250
                  %v252 = vld [vmem:[%s184 + $0x50] sm:$0xff]
                  %253 = vst [vmem:[%s185 + $0x48] sm:$0xff] %v252
                  %v254 = vld [vmem:[%s184 + $0x58] sm:$0xff]
                  %255 = vst [vmem:[%s185 + $0x50] sm:$0xff] %v254
                  %v256 = vld [vmem:[%s184 + $0x60] sm:$0xff]
                  %257 = vst [vmem:[%s185 + $0x58] sm:$0xff] %v256
                  %v258 = vld [vmem:[%s184 + $0x68] sm:$0xff]
                  %259 = vst [vmem:[%s185 + $0x60] sm:$0xff] %v258
                  %v260 = vld [vmem:[%s184 + $0x70] sm:$0xff]
                  %261 = vst [vmem:[%s185 + $0x68] sm:$0xff] %v260
                  %v262 = vld [vmem:[%s184 + $0x78] sm:$0xff]
                  %263 = vst [vmem:[%s185 + $0x70] sm:$0xff] %v262
                  %v264 = vld [vmem:[%s184 + $0x80] sm:$0xff]
                  %265 = vst [vmem:[%s185 + $0x78] sm:$0xff] %v264
                  %v266 = vld [vmem:[%s184 + $0x88] sm:$0xff]
                  %267 = vst [vmem:[%s185 + $0x80] sm:$0xff] %v266
                  %v268 = vld [vmem:[%s184 + $0x90] sm:$0xff]
                  %269 = vst [vmem:[%s185 + $0x88] sm:$0xff] %v268
                  %v270 = vld [vmem:[%s184 + $0x98] sm:$0xff]
                  %271 = vst [vmem:[%s185 + $0x90] sm:$0xff] %v270
                  %v272 = vld [vmem:[%s184 + $0xa0] sm:$0xff]
                  %273 = vst [vmem:[%s185 + $0x98] sm:$0xff] %v272
                  %v274 = vld [vmem:[%s184 + $0xa8] sm:$0xff]
                  %275 = vst [vmem:[%s185 + $0xa0] sm:$0xff] %v274
                  %v276 = vld [vmem:[%s184 + $0xb0] sm:$0xff]
                  %277 = vst [vmem:[%s185 + $0xa8] sm:$0xff] %v276
                  %v278 = vld [vmem:[%s184 + $0xb8] sm:$0xff]
                  %279 = vst [vmem:[%s185 + $0xb0] sm:$0xff] %v278
                  %v280 = vld [vmem:[%s184 + $0xc0] sm:$0xff]
                  %281 = vst [vmem:[%s185 + $0xb8] sm:$0xff] %v280
                  %v282 = vld [vmem:[%s184 + $0xc8] sm:$0xff]
                  %283 = vst [vmem:[%s185 + $0xc0] sm:$0xff] %v282
                  %v284 = vld [vmem:[%s184 + $0xd0] sm:$0xff]
                  %285 = vst [vmem:[%s185 + $0xc8] sm:$0xff] %v284
                  %v286 = vld [vmem:[%s184 + $0xd8] sm:$0xff]
                  %287 = vst [vmem:[%s185 + $0xd0] sm:$0xff] %v286
                  %v288 = vld [vmem:[%s184 + $0xe0] sm:$0xff]
                  %289 = vst [vmem:[%s185 + $0xd8] sm:$0xff] %v288
                  %v290 = vld [vmem:[%s184 + $0xe8] sm:$0xff]
                  %291 = vst [vmem:[%s185 + $0xe0] sm:$0xff] %v290
                  %v292 = vld [vmem:[%s184 + $0xf0] sm:$0xff]
                  %293 = vst [vmem:[%s185 + $0xe8] sm:$0xff] %v292
                  %v294 = vld [vmem:[%s184 + $0xf8] sm:$0xff]
                  %295 = vst [vmem:[%s185 + $0xf0] sm:$0xff] %v294
                  %v296 = vld [vmem:[%s184 + $0x100] sm:$0xff]
                  %297 = vst [vmem:[%s185 + $0xf8] sm:$0xff] %v296
                  %v298 = vld [vmem:[%s184 + $0x108] sm:$0xff]
                  %299 = vst [vmem:[%s185 + $0x100] sm:$0xff] %v298
                  %v300 = vld [vmem:[%s184 + $0x110] sm:$0xff]
                  %301 = vst [vmem:[%s185 + $0x108] sm:$0xff] %v300
                  %v302 = vld [vmem:[%s184 + $0x118] sm:$0xff]
                  %303 = vst [vmem:[%s185 + $0x110] sm:$0xff] %v302
                  %v304 = vld [vmem:[%s184 + $0x120] sm:$0xff]
                  %305 = vst [vmem:[%s185 + $0x118] sm:$0xff] %v304
                  %v306 = vld [vmem:[%s184 + $0x128] sm:$0xff]
                  %307 = vst [vmem:[%s185 + $0x120] sm:$0xff] %v306
                  %v308 = vld [vmem:[%s184 + $0x130] sm:$0xff]
                  %309 = vst [vmem:[%s185 + $0x128] sm:$0xff] %v308
                  %v310 = vld [vmem:[%s184 + $0x138] sm:$0xff]
                  %311 = vst [vmem:[%s185 + $0x130] sm:$0xff] %v310
                  %v312 = vld [vmem:[%s184 + $0x140] sm:$0xff]
                  %313 = vst [vmem:[%s185 + $0x138] sm:$0xff] %v312
                  %s314 = sadd.s32 1, %s183
                  %p315 = scmp.ge.s32.totalorder %s314, %s174
                  %s316 = scalar_select %p315, 0, %s314
                  %s317 = smul.u32 %s316, 256
                  %s318 = smul.u32 %s316, 256
                  %s319 = scalar_lea.vmem %s142, %s317
                  %s320 = scalar_lea.vmem %s134, %s318 [#allocation2]
                $region56: #{esa_forward.4} parent=50 // loop_footer
                  %s180 = sadd.s32 %s178, 1
                $region57: #{esa_forward.4} parent=50 // loop_footer_branch
                  %177 = sbr.rel target = $region53
                $region58: #{esa_forward.4} parent=50 // loop_exit
                  _
                %s321 = sshrl.u32 %s173, 5
                %s322 = sand.u32 %s173, 31
                %s323 = smul.u32 %s321, 32
                %s324 = smul.u32 128, %s323
                %s325 = sshra.s32 %s324, 4
                %s326 = scalar_lea.vmem %s142, %s325
                %s327 = smul.u32 128, %s323
                %s328 = sshra.s32 %s327, 4
                %s329 = scalar_lea.vmem %s134, %s328 [#allocation2]
                // While loop
                $region59: #{esa_forward.4} parent=50 // loop_pre_header
                  _
                $region60: #{esa_forward.4} parent=50 // loop_header
                  %s333 = sphi 0, %s335
                  %p334 = scmp.ge.s32.totalorder %s333, %s322
                  %s338 = sphi 0, %s347
                  %s339 = sphi %s326, %s350
                  %s340 = sphi %s329, %s351
                $region61: #{esa_forward.4} parent=50 // loop_header_branch
                  %337 = sbr.rel (%p334) target = $region65
                $region62: #{esa_forward.4} parent=50 // loop_body
                  %v341 = vld [vmem:[%s339] sm:$0xff]
                  %342 = vst [vmem:[%s340] sm:$0xff] %v341
                  %v343 = vld [vmem:[%s339 + $0x48] sm:$0xff]
                  %344 = vst [vmem:[%s340 + $0x40] sm:$0xff] %v343
                  %s345 = sadd.s32 1, %s338
                  %p346 = scmp.ge.s32.totalorder %s345, %s322
                  %s347 = scalar_select %p346, 0, %s345
                  %s348 = smul.u32 %s347, 8
                  %s349 = smul.u32 %s347, 8
                  %s350 = scalar_lea.vmem %s326, %s348
                  %s351 = scalar_lea.vmem %s329, %s349 [#allocation2]
                $region63: #{esa_forward.4} parent=50 // loop_footer
                  %s335 = sadd.s32 %s333, 1
                $region64: #{esa_forward.4} parent=50 // loop_footer_branch
                  %332 = sbr.rel target = $region60
                $region65: #{esa_forward.4} parent=50 // loop_exit
                  _
              $region51: #{esa_forward.4} parent=35 // pred_fallthru
                _
              %p352 = pneg %p169
              // Predicated region
              $region66: #{esa_forward.4} parent=35 // pred_check
                _
              $region67: #{esa_forward.4} parent=35 // pred_check_branch
                %354 = sbr.rel (%p169) target = $region69
              $region68: #{esa_forward.4} parent=35 // pred_region
                %s355 = sand.u32 %s143, 7
                %s356 = ssub.s32 %s143, %s355
                %s357 = scalar_lea.vmem %s142, %s356
                %s358 = ssub.s32 %s143, %s355
                %s359 = scalar_lea.vmem %s134, %s358 [#allocation2]
                %s360 = sshrl.u32 %s143, 3
                %s361 = sshrl.u32 %s360, 5
                // While loop
                $region70: #{esa_forward.4} parent=68 // loop_pre_header
                  _
                $region71: #{esa_forward.4} parent=68 // loop_header
                  %s365 = sphi 0, %s367
                  %p366 = scmp.ge.s32.totalorder %s365, %s361
                  %s370 = sphi 0, %s503
                  %s371 = sphi %s142, %s506
                  %s372 = sphi %s134, %s507
                $region72: #{esa_forward.4} parent=68 // loop_header_branch
                  %369 = sbr.rel (%p366) target = $region76
                $region73: #{esa_forward.4} parent=68 // loop_body
                  %v373 = vld [vmem:[%s371] sm:$0xff]
                  %374 = vst [vmem:[%s372] sm:$0xff] %v373
                  %v375 = vld [vmem:[%s371 + $0x8] sm:$0xff]
                  %376 = vst [vmem:[%s372 + $0x8] sm:$0xff] %v375
                  %v377 = vld [vmem:[%s371 + $0x10] sm:$0xff]
                  %378 = vst [vmem:[%s372 + $0x10] sm:$0xff] %v377
                  %v379 = vld [vmem:[%s371 + $0x18] sm:$0xff]
                  %380 = vst [vmem:[%s372 + $0x18] sm:$0xff] %v379
                  %v381 = vld [vmem:[%s371 + $0x20] sm:$0xff]
                  %382 = vst [vmem:[%s372 + $0x20] sm:$0xff] %v381
                  %v383 = vld [vmem:[%s371 + $0x28] sm:$0xff]
                  %384 = vst [vmem:[%s372 + $0x28] sm:$0xff] %v383
                  %v385 = vld [vmem:[%s371 + $0x30] sm:$0xff]
                  %386 = vst [vmem:[%s372 + $0x30] sm:$0xff] %v385
                  %v387 = vld [vmem:[%s371 + $0x38] sm:$0xff]
                  %388 = vst [vmem:[%s372 + $0x38] sm:$0xff] %v387
                  %v389 = vld [vmem:[%s371 + $0x40] sm:$0xff]
                  %390 = vst [vmem:[%s372 + $0x40] sm:$0xff] %v389
                  %v391 = vld [vmem:[%s371 + $0x48] sm:$0xff]
                  %392 = vst [vmem:[%s372 + $0x48] sm:$0xff] %v391
                  %v393 = vld [vmem:[%s371 + $0x50] sm:$0xff]
                  %394 = vst [vmem:[%s372 + $0x50] sm:$0xff] %v393
                  %v395 = vld [vmem:[%s371 + $0x58] sm:$0xff]
                  %396 = vst [vmem:[%s372 + $0x58] sm:$0xff] %v395
                  %v397 = vld [vmem:[%s371 + $0x60] sm:$0xff]
                  %398 = vst [vmem:[%s372 + $0x60] sm:$0xff] %v397
                  %v399 = vld [vmem:[%s371 + $0x68] sm:$0xff]
                  %400 = vst [vmem:[%s372 + $0x68] sm:$0xff] %v399
                  %v401 = vld [vmem:[%s371 + $0x70] sm:$0xff]
                  %402 = vst [vmem:[%s372 + $0x70] sm:$0xff] %v401
                  %v403 = vld [vmem:[%s371 + $0x78] sm:$0xff]
                  %404 = vst [vmem:[%s372 + $0x78] sm:$0xff] %v403
                  %v405 = vld [vmem:[%s371 + $0x80] sm:$0xff]
                  %406 = vst [vmem:[%s372 + $0x80] sm:$0xff] %v405
                  %v407 = vld [vmem:[%s371 + $0x88] sm:$0xff]
                  %408 = vst [vmem:[%s372 + $0x88] sm:$0xff] %v407
                  %v409 = vld [vmem:[%s371 + $0x90] sm:$0xff]
                  %410 = vst [vmem:[%s372 + $0x90] sm:$0xff] %v409
                  %v411 = vld [vmem:[%s371 + $0x98] sm:$0xff]
                  %412 = vst [vmem:[%s372 + $0x98] sm:$0xff] %v411
                  %v413 = vld [vmem:[%s371 + $0xa0] sm:$0xff]
                  %414 = vst [vmem:[%s372 + $0xa0] sm:$0xff] %v413
                  %v415 = vld [vmem:[%s371 + $0xa8] sm:$0xff]
                  %416 = vst [vmem:[%s372 + $0xa8] sm:$0xff] %v415
                  %v417 = vld [vmem:[%s371 + $0xb0] sm:$0xff]
                  %418 = vst [vmem:[%s372 + $0xb0] sm:$0xff] %v417
                  %v419 = vld [vmem:[%s371 + $0xb8] sm:$0xff]
                  %420 = vst [vmem:[%s372 + $0xb8] sm:$0xff] %v419
                  %v421 = vld [vmem:[%s371 + $0xc0] sm:$0xff]
                  %422 = vst [vmem:[%s372 + $0xc0] sm:$0xff] %v421
                  %v423 = vld [vmem:[%s371 + $0xc8] sm:$0xff]
                  %424 = vst [vmem:[%s372 + $0xc8] sm:$0xff] %v423
                  %v425 = vld [vmem:[%s371 + $0xd0] sm:$0xff]
                  %426 = vst [vmem:[%s372 + $0xd0] sm:$0xff] %v425
                  %v427 = vld [vmem:[%s371 + $0xd8] sm:$0xff]
                  %428 = vst [vmem:[%s372 + $0xd8] sm:$0xff] %v427
                  %v429 = vld [vmem:[%s371 + $0xe0] sm:$0xff]
                  %430 = vst [vmem:[%s372 + $0xe0] sm:$0xff] %v429
                  %v431 = vld [vmem:[%s371 + $0xe8] sm:$0xff]
                  %432 = vst [vmem:[%s372 + $0xe8] sm:$0xff] %v431
                  %v433 = vld [vmem:[%s371 + $0xf0] sm:$0xff]
                  %434 = vst [vmem:[%s372 + $0xf0] sm:$0xff] %v433
                  %v435 = vld [vmem:[%s371 + $0xf8] sm:$0xff]
                  %436 = vst [vmem:[%s372 + $0xf8] sm:$0xff] %v435
                  %v437 = vld [vmem:[%s371 + $0x48] sm:$0xff]
                  %438 = vst [vmem:[%s372 + $0x40] sm:$0xff] %v437
                  %v439 = vld [vmem:[%s371 + $0x50] sm:$0xff]
                  %440 = vst [vmem:[%s372 + $0x48] sm:$0xff] %v439
                  %v441 = vld [vmem:[%s371 + $0x58] sm:$0xff]
                  %442 = vst [vmem:[%s372 + $0x50] sm:$0xff] %v441
                  %v443 = vld [vmem:[%s371 + $0x60] sm:$0xff]
                  %444 = vst [vmem:[%s372 + $0x58] sm:$0xff] %v443
                  %v445 = vld [vmem:[%s371 + $0x68] sm:$0xff]
                  %446 = vst [vmem:[%s372 + $0x60] sm:$0xff] %v445
                  %v447 = vld [vmem:[%s371 + $0x70] sm:$0xff]
                  %448 = vst [vmem:[%s372 + $0x68] sm:$0xff] %v447
                  %v449 = vld [vmem:[%s371 + $0x78] sm:$0xff]
                  %450 = vst [vmem:[%s372 + $0x70] sm:$0xff] %v449
                  %v451 = vld [vmem:[%s371 + $0x80] sm:$0xff]
                  %452 = vst [vmem:[%s372 + $0x78] sm:$0xff] %v451
                  %v453 = vld [vmem:[%s371 + $0x88] sm:$0xff]
                  %454 = vst [vmem:[%s372 + $0x80] sm:$0xff] %v453
                  %v455 = vld [vmem:[%s371 + $0x90] sm:$0xff]
                  %456 = vst [vmem:[%s372 + $0x88] sm:$0xff] %v455
                  %v457 = vld [vmem:[%s371 + $0x98] sm:$0xff]
                  %458 = vst [vmem:[%s372 + $0x90] sm:$0xff] %v457
                  %v459 = vld [vmem:[%s371 + $0xa0] sm:$0xff]
                  %460 = vst [vmem:[%s372 + $0x98] sm:$0xff] %v459
                  %v461 = vld [vmem:[%s371 + $0xa8] sm:$0xff]
                  %462 = vst [vmem:[%s372 + $0xa0] sm:$0xff] %v461
                  %v463 = vld [vmem:[%s371 + $0xb0] sm:$0xff]
                  %464 = vst [vmem:[%s372 + $0xa8] sm:$0xff] %v463
                  %v465 = vld [vmem:[%s371 + $0xb8] sm:$0xff]
                  %466 = vst [vmem:[%s372 + $0xb0] sm:$0xff] %v465
                  %v467 = vld [vmem:[%s371 + $0xc0] sm:$0xff]
                  %468 = vst [vmem:[%s372 + $0xb8] sm:$0xff] %v467
                  %v469 = vld [vmem:[%s371 + $0xc8] sm:$0xff]
                  %470 = vst [vmem:[%s372 + $0xc0] sm:$0xff] %v469
                  %v471 = vld [vmem:[%s371 + $0xd0] sm:$0xff]
                  %472 = vst [vmem:[%s372 + $0xc8] sm:$0xff] %v471
                  %v473 = vld [vmem:[%s371 + $0xd8] sm:$0xff]
                  %474 = vst [vmem:[%s372 + $0xd0] sm:$0xff] %v473
                  %v475 = vld [vmem:[%s371 + $0xe0] sm:$0xff]
                  %476 = vst [vmem:[%s372 + $0xd8] sm:$0xff] %v475
                  %v477 = vld [vmem:[%s371 + $0xe8] sm:$0xff]
                  %478 = vst [vmem:[%s372 + $0xe0] sm:$0xff] %v477
                  %v479 = vld [vmem:[%s371 + $0xf0] sm:$0xff]
                  %480 = vst [vmem:[%s372 + $0xe8] sm:$0xff] %v479
                  %v481 = vld [vmem:[%s371 + $0xf8] sm:$0xff]
                  %482 = vst [vmem:[%s372 + $0xf0] sm:$0xff] %v481
                  %v483 = vld [vmem:[%s371 + $0x100] sm:$0xff]
                  %484 = vst [vmem:[%s372 + $0xf8] sm:$0xff] %v483
                  %v485 = vld [vmem:[%s371 + $0x108] sm:$0xff]
                  %486 = vst [vmem:[%s372 + $0x100] sm:$0xff] %v485
                  %v487 = vld [vmem:[%s371 + $0x110] sm:$0xff]
                  %488 = vst [vmem:[%s372 + $0x108] sm:$0xff] %v487
                  %v489 = vld [vmem:[%s371 + $0x118] sm:$0xff]
                  %490 = vst [vmem:[%s372 + $0x110] sm:$0xff] %v489
                  %v491 = vld [vmem:[%s371 + $0x120] sm:$0xff]
                  %492 = vst [vmem:[%s372 + $0x118] sm:$0xff] %v491
                  %v493 = vld [vmem:[%s371 + $0x128] sm:$0xff]
                  %494 = vst [vmem:[%s372 + $0x120] sm:$0xff] %v493
                  %v495 = vld [vmem:[%s371 + $0x130] sm:$0xff]
                  %496 = vst [vmem:[%s372 + $0x128] sm:$0xff] %v495
                  %v497 = vld [vmem:[%s371 + $0x138] sm:$0xff]
                  %498 = vst [vmem:[%s372 + $0x130] sm:$0xff] %v497
                  %v499 = vld [vmem:[%s371 + $0x140] sm:$0xff]
                  %500 = vst [vmem:[%s372 + $0x138] sm:$0xff] %v499
                  %s501 = sadd.s32 1, %s370
                  %p502 = scmp.ge.s32.totalorder %s501, %s361
                  %s503 = scalar_select %p502, 0, %s501
                  %s504 = smul.u32 %s503, 256
                  %s505 = smul.u32 %s503, 256
                  %s506 = scalar_lea.vmem %s142, %s504
                  %s507 = scalar_lea.vmem %s134, %s505 [#allocation2]
                $region74: #{esa_forward.4} parent=68 // loop_footer
                  %s367 = sadd.s32 %s365, 1
                $region75: #{esa_forward.4} parent=68 // loop_footer_branch
                  %364 = sbr.rel target = $region71
                $region76: #{esa_forward.4} parent=68 // loop_exit
                  _
                %s508 = sshrl.u32 %s360, 5
                %s509 = sand.u32 %s360, 31
                %s510 = smul.u32 %s508, 32
                %s511 = smul.u32 128, %s510
                %s512 = sshra.s32 %s511, 4
                %s513 = scalar_lea.vmem %s142, %s512
                %s514 = smul.u32 128, %s510
                %s515 = sshra.s32 %s514, 4
                %s516 = scalar_lea.vmem %s134, %s515 [#allocation2]
                // While loop
                $region77: #{esa_forward.4} parent=68 // loop_pre_header
                  _
                $region78: #{esa_forward.4} parent=68 // loop_header
                  %s520 = sphi 0, %s522
                  %p521 = scmp.ge.s32.totalorder %s520, %s509
                  %s525 = sphi 0, %s534
                  %s526 = sphi %s513, %s537
                  %s527 = sphi %s516, %s538
                $region79: #{esa_forward.4} parent=68 // loop_header_branch
                  %524 = sbr.rel (%p521) target = $region83
                $region80: #{esa_forward.4} parent=68 // loop_body
                  %v528 = vld [vmem:[%s526] sm:$0xff]
                  %529 = vst [vmem:[%s527] sm:$0xff] %v528
                  %v530 = vld [vmem:[%s526 + $0x48] sm:$0xff]
                  %531 = vst [vmem:[%s527 + $0x40] sm:$0xff] %v530
                  %s532 = sadd.s32 1, %s525
                  %p533 = scmp.ge.s32.totalorder %s532, %s509
                  %s534 = scalar_select %p533, 0, %s532
                  %s535 = smul.u32 %s534, 8
                  %s536 = smul.u32 %s534, 8
                  %s537 = scalar_lea.vmem %s513, %s535
                  %s538 = scalar_lea.vmem %s516, %s536 [#allocation2]
                $region81: #{esa_forward.4} parent=68 // loop_footer
                  %s522 = sadd.s32 %s520, 1
                $region82: #{esa_forward.4} parent=68 // loop_footer_branch
                  %519 = sbr.rel target = $region78
                $region83: #{esa_forward.4} parent=68 // loop_exit
                  _
                %s539 = sshll.u32 1, %s355
                %s540 = ssub.s32 %s539, 1
                loop: start=0, step=1, limit=1
                $region84: #{esa_forward.4} parent=68 // loop_pre_header
                  _
                $region85: #{esa_forward.4} parent=68 // loop_header
                  %s542 = sphi 0, %s546
                  %p543 = scmp.ge.s32.totalorder %s542, 1
                  %s547 = sphi %s357, %s357
                  %s548 = sphi %s359, %s359
                $region86: #{esa_forward.4} parent=68 // loop_header_branch
                  %545 = sbr.rel (%p543) target = $region90
                $region87: #{esa_forward.4} parent=68 // loop_body
                  %v549 = vld [vmem:[%s547] sm:%s540]
                  %550 = vst [vmem:[%s548] sm:%s540] %v549
                  %v551 = vld [vmem:[%s547 + $0x48] sm:%s540]
                  %552 = vst [vmem:[%s548 + $0x40] sm:%s540] %v551
                $region88: #{esa_forward.4} parent=68 // loop_footer
                  %s546 = sadd.s32 1, %s542
                $region89: #{esa_forward.4} parent=68 // loop_footer_branch
                  %541 = sbr.rel target = $region85
                $region90: #{esa_forward.4} parent=68 // loop_exit
                  _
              $region69: #{esa_forward.4} parent=35 // pred_fallthru
                _
            $region36: #{esa_forward.4} parent=31 // pred_fallthru
              _
            // Predicated region
            $region37: #{esa_forward.4} parent=31 // pred_check
              %p151 = pneg %p147
            $region38: #{esa_forward.4} parent=31 // pred_check_branch
              %153 = sbr.rel (%p151) target = $region40
            $region39: #{esa_forward.4} parent=31 // pred_region
              %s154 = sshll.u32 1, %s143
              %s155 = ssub.s32 %s154, 1
              loop: start=0, step=1, limit=1
              $region41: #{esa_forward.4} parent=39 // loop_pre_header
                _
              $region42: #{esa_forward.4} parent=39 // loop_header
                %s157 = sphi 0, %s161
                %p158 = scmp.ge.s32.totalorder %s157, 1
                %s162 = sphi %s142, %s142
                %s163 = sphi %s134, %s134
              $region43: #{esa_forward.4} parent=39 // loop_header_branch
                %160 = sbr.rel (%p158) target = $region47
              $region44: #{esa_forward.4} parent=39 // loop_body
                %v164 = vld [vmem:[%s162] sm:%s155]
                %165 = vst [vmem:[%s163] sm:%s155] %v164
                %v166 = vld [vmem:[%s162 + $0x48] sm:%s155]
                %167 = vst [vmem:[%s163 + $0x40] sm:%s155] %v166
              $region45: #{esa_forward.4} parent=39 // loop_footer
                %s161 = sadd.s32 1, %s157
              $region46: #{esa_forward.4} parent=39 // loop_footer_branch
                %156 = sbr.rel target = $region42
              $region47: #{esa_forward.4} parent=39 // loop_exit
                _
            $region40: #{esa_forward.4} parent=31 // pred_fallthru
              _
          $region32: #{esa_forward.4} parent=27 // pred_fallthru
            _
          %553 = vnop
        $region28: #{esa_forward.4} parent=23 // pred_fallthru
          _
      $region24: #{esa_forward.4} parent=5 // pred_fallthru
        _
      %p554 = scmp.le.s32.totalorder 1, %s9
      %p555 = scmp.lt.s32.totalorder %s9, 3
      %p556 = pnand %p554, %p555
      %p557 = pneg %p556
      // Predicated region
      $region91: #{esa_forward.4} parent=5 // pred_check
        _
      $region92: #{esa_forward.4} parent=5 // pred_check_branch
        %559 = sbr.rel (%p556) target = $region94
      $region93: #{esa_forward.4} parent=5 // pred_region
        %s560 = ssub.s32 %s9, 1
        %s561 = sand.u32 %s22, 1
        %s562 = sand.u32 %s22, 1
        %s563 = smul.addr %s562, 128
        %s564 = scalar_lea.vmem [#allocation2], %s563
        // Predicated region
        $region95: #{esa_forward.4} parent=93 // pred_check
          %p565 = pneg %p35
        $region96: #{esa_forward.4} parent=93 // pred_check_branch
          %567 = sbr.rel (%p565) target = $region98
        $region97: #{esa_forward.4} parent=93 // pred_region
          _
        $region98: #{esa_forward.4} parent=93 // pred_fallthru
          _
        %s568 = sand.u32 %s22, 1
        %s569 = sand.u32 %s22, 1
        %s570 = smul.addr %s569, 128
        %s571 = scalar_lea.vmem [#allocation2], %s570
        %p572 = pneg %p35
        %p573 = pneg %p32
        %p574 = pneg %p56
        %p575 = pneg %p53
        %p576 = pneg %p77
        %p577 = pneg %p74
        %p578 = pneg %p103
        %p579 = pneg %p100
        %s580 = sand.u32 %s90, 1
        %s581 = sand.u32 %s90, 1
        %s582 = smul.addr %s581, 16
        %s583 = scalar_lea.vmem [#allocation3], %s582
        %s584 = smul.u32 8, %s14
        %s585 = ssub.s32 9, %s584
        %p586 = scmp.lt.s32.totalorder %s585, 8
        %s587 = scalar_select %p586, %s585, 8
        %s588 = smul.u32 256, %s587
        %s589 = smul.u32 8, %s14
        %s590 = ssub.s32 9, %s589
        %p591 = scmp.lt.s32.totalorder %s590, 8
        %s592 = scalar_select %p591, %s590, 8
        %s593 = smul.u32 32, %s592
        %v595 = vld [vmem:[%s564] sm:$0xff]
        %v596 = vld [vmem:[%s564 + $0x8] sm:$0xff]
        %v597 = vld [vmem:[%s564 + $0x10] sm:$0xff]
        %v598 = vld [vmem:[%s564 + $0x18] sm:$0xff]
        %v599 = vld [vmem:[%s564 + $0x20] sm:$0xff]
        %v600 = vld [vmem:[%s564 + $0x28] sm:$0xff]
        %v601 = vld [vmem:[%s564 + $0x30] sm:$0xff]
        %v602 = vld [vmem:[%s564 + $0x38] sm:$0xff]
        %v603 = vld [vmem:[%s564 + $0x40] sm:$0xff]
        %v604 = vld [vmem:[%s564 + $0x48] sm:$0xff]
        %v605 = vld [vmem:[%s564 + $0x50] sm:$0xff]
        %v606 = vld [vmem:[%s564 + $0x58] sm:$0xff]
        %v607 = vld [vmem:[%s564 + $0x60] sm:$0xff]
        %v608 = vld [vmem:[%s564 + $0x68] sm:$0xff]
        %v609 = vld [vmem:[%s564 + $0x70] sm:$0xff]
        %v610 = vld [vmem:[%s564 + $0x78] sm:$0xff]
        %v611 = vpack.c.bf16 %v603, %v595
        %v612 = vpack.c.bf16 %v604, %v596
        %v613 = vpack.c.bf16 %v605, %v597
        %v614 = vpack.c.bf16 %v606, %v598
        %v615 = vpack.c.bf16 %v607, %v599
        %v616 = vpack.c.bf16 %v608, %v600
        %v617 = vpack.c.bf16 %v609, %v601
        %v618 = vpack.c.bf16 %v610, %v602
        %v619 = vld [vmem:[%s1] sm:$0x3]
        %v620 = vld [vmem:[%s2] sm:$0xf]
        %622 = vset.pattern.permute.xlu0 0
        %623 = vperm.xlu0 %622, %v620
        %v624 = vpop.permute.xlu0 %623
        %vm626 = vcmask 130048
        %v628 = vsel %vm626, %v619, 0
        %630 = vmatprep.subr.bf16.mxu0 0
        %631 = vmatpush1.bf16.msra.mxu0 0
        %632 = vmatprep.subr.bf16.mxu0 0
        %633 = vmatpush1.bf16.msra.mxu0 0
        %634 = vmatprep.subr.bf16.mxu0 0
        %635 = vmatpush1.bf16.msra.mxu0 0
        %636 = vmatprep.subr.bf16.mxu0 0
        %637 = vmatpush1.bf16.msra.mxu0 0
        %638 = vmatprep.subr.bf16.mxu0 0
        %639 = vmatpush1.bf16.msra.mxu0 0
        %640 = vmatprep.subr.bf16.mxu0 0
        %641 = vmatpush1.bf16.msra.mxu0 0
        %642 = vmatprep.subr.bf16.mxu0 0
        %643 = vmatpush1.bf16.msra.mxu0 0
        %644 = vmatprep.subr.bf16.mxu0 %v612
        %645 = vmatpush1.bf16.msra.mxu0 %v611
        %646 = vmatprep.subr.bf16.mxu0 0
        %647 = vmatpush2.bf16.msra.mxu0 0
        %648 = vmatprep.subr.bf16.mxu0 0
        %649 = vmatpush2.bf16.msra.mxu0 0
        %650 = vmatprep.subr.bf16.mxu0 0
        %651 = vmatpush2.bf16.msra.mxu0 0
        %652 = vmatprep.subr.bf16.mxu0 0
        %653 = vmatpush2.bf16.msra.mxu0 0
        %654 = vmatprep.subr.bf16.mxu0 0
        %655 = vmatpush2.bf16.msra.mxu0 0
        %656 = vmatprep.subr.bf16.mxu0 0
        %657 = vmatpush2.bf16.msra.mxu0 0
        %658 = vmatprep.subr.bf16.mxu0 0
        %659 = vmatpush2.bf16.msra.mxu0 0
        %660 = vmatprep.subr.bf16.mxu0 0
        %661 = vmatpush2.bf16.msra.mxu0 0
        %662 = vmatprep.mubr.bf16.mxu0 0
        %663 = vmatmul.mubr.bf16.gmra.mxu0 %v628
        %v664 = vpop.f32.mrf.mxu0
        %v665 = vadd.f32 %v624, %v664
        %v666 = vpop.f32.mrf.mxu0
        %v667 = vadd.f32 %v624, %v666
        %v668 = vpop.f32.mrf.mxu0
        %v669 = vpop.f32.mrf.mxu0
        %670 = vdwg.mxu0
        %671 = vmatprep.subr.bf16.mxu0 0
        %672 = vmatpush1.bf16.msra.mxu0 0
        %673 = vmatprep.subr.bf16.mxu0 0
        %674 = vmatpush1.bf16.msra.mxu0 0
        %675 = vmatprep.subr.bf16.mxu0 0
        %676 = vmatpush1.bf16.msra.mxu0 0
        %677 = vmatprep.subr.bf16.mxu0 0
        %678 = vmatpush1.bf16.msra.mxu0 0
        %679 = vmatprep.subr.bf16.mxu0 0
        %680 = vmatpush1.bf16.msra.mxu0 0
        %681 = vmatprep.subr.bf16.mxu0 0
        %682 = vmatpush1.bf16.msra.mxu0 0
        %683 = vmatprep.subr.bf16.mxu0 0
        %684 = vmatpush1.bf16.msra.mxu0 0
        %685 = vmatprep.subr.bf16.mxu0 %v614
        %686 = vmatpush1.bf16.msra.mxu0 %v613
        %687 = vmatprep.subr.bf16.mxu0 0
        %688 = vmatpush2.bf16.msra.mxu0 0
        %689 = vmatprep.subr.bf16.mxu0 0
        %690 = vmatpush2.bf16.msra.mxu0 0
        %691 = vmatprep.subr.bf16.mxu0 0
        %692 = vmatpush2.bf16.msra.mxu0 0
        %693 = vmatprep.subr.bf16.mxu0 0
        %694 = vmatpush2.bf16.msra.mxu0 0
        %695 = vmatprep.subr.bf16.mxu0 0
        %696 = vmatpush2.bf16.msra.mxu0 0
        %697 = vmatprep.subr.bf16.mxu0 0
        %698 = vmatpush2.bf16.msra.mxu0 0
        %699 = vmatprep.subr.bf16.mxu0 0
        %700 = vmatpush2.bf16.msra.mxu0 0
        %701 = vmatprep.subr.bf16.mxu0 0
        %702 = vmatpush2.bf16.msra.mxu0 0
        %703 = vmatprep.mubr.bf16.mxu0 0
        %704 = vmatmul.mubr.bf16.gmra.mxu0 %v628
        %v705 = vpop.f32.mrf.mxu0
        %v706 = vadd.f32 %v624, %v705
        %v707 = vpop.f32.mrf.mxu0
        %v708 = vadd.f32 %v624, %v707
        %v709 = vpop.f32.mrf.mxu0
        %v710 = vpop.f32.mrf.mxu0
        %711 = vdwg.mxu0
        %712 = vmatprep.subr.bf16.mxu0 0
        %713 = vmatpush1.bf16.msra.mxu0 0
        %714 = vmatprep.subr.bf16.mxu0 0
        %715 = vmatpush1.bf16.msra.mxu0 0
        %716 = vmatprep.subr.bf16.mxu0 0
        %717 = vmatpush1.bf16.msra.mxu0 0
        %718 = vmatprep.subr.bf16.mxu0 0
        %719 = vmatpush1.bf16.msra.mxu0 0
        %720 = vmatprep.subr.bf16.mxu0 0
        %721 = vmatpush1.bf16.msra.mxu0 0
        %722 = vmatprep.subr.bf16.mxu0 0
        %723 = vmatpush1.bf16.msra.mxu0 0
        %724 = vmatprep.subr.bf16.mxu0 0
        %725 = vmatpush1.bf16.msra.mxu0 0
        %726 = vmatprep.subr.bf16.mxu0 %v616
        %727 = vmatpush1.bf16.msra.mxu0 %v615
        %728 = vmatprep.subr.bf16.mxu0 0
        %729 = vmatpush2.bf16.msra.mxu0 0
        %730 = vmatprep.subr.bf16.mxu0 0
        %731 = vmatpush2.bf16.msra.mxu0 0
        %732 = vmatprep.subr.bf16.mxu0 0
        %733 = vmatpush2.bf16.msra.mxu0 0
        %734 = vmatprep.subr.bf16.mxu0 0
        %735 = vmatpush2.bf16.msra.mxu0 0
        %736 = vmatprep.subr.bf16.mxu0 0
        %737 = vmatpush2.bf16.msra.mxu0 0
        %738 = vmatprep.subr.bf16.mxu0 0
        %739 = vmatpush2.bf16.msra.mxu0 0
        %740 = vmatprep.subr.bf16.mxu0 0
        %741 = vmatpush2.bf16.msra.mxu0 0
        %742 = vmatprep.subr.bf16.mxu0 0
        %743 = vmatpush2.bf16.msra.mxu0 0
        %744 = vmatprep.mubr.bf16.mxu0 0
        %745 = vmatmul.mubr.bf16.gmra.mxu0 %v628
        %v746 = vpop.f32.mrf.mxu0
        %v747 = vadd.f32 %v624, %v746
        %v748 = vpop.f32.mrf.mxu0
        %v749 = vadd.f32 %v624, %v748
        %v750 = vpop.f32.mrf.mxu0
        %v751 = vpop.f32.mrf.mxu0
        %752 = vdwg.mxu0
        %753 = vmatprep.subr.bf16.mxu0 0
        %754 = vmatpush1.bf16.msra.mxu0 0
        %755 = vmatprep.subr.bf16.mxu0 0
        %756 = vmatpush1.bf16.msra.mxu0 0
        %757 = vmatprep.subr.bf16.mxu0 0
        %758 = vmatpush1.bf16.msra.mxu0 0
        %759 = vmatprep.subr.bf16.mxu0 0
        %760 = vmatpush1.bf16.msra.mxu0 0
        %761 = vmatprep.subr.bf16.mxu0 0
        %762 = vmatpush1.bf16.msra.mxu0 0
        %763 = vmatprep.subr.bf16.mxu0 0
        %764 = vmatpush1.bf16.msra.mxu0 0
        %765 = vmatprep.subr.bf16.mxu0 0
        %766 = vmatpush1.bf16.msra.mxu0 0
        %767 = vmatprep.subr.bf16.mxu0 %v618
        %768 = vmatpush1.bf16.msra.mxu0 %v617
        %769 = vmatprep.subr.bf16.mxu0 0
        %770 = vmatpush2.bf16.msra.mxu0 0
        %771 = vmatprep.subr.bf16.mxu0 0
        %772 = vmatpush2.bf16.msra.mxu0 0
        %773 = vmatprep.subr.bf16.mxu0 0
        %774 = vmatpush2.bf16.msra.mxu0 0
        %775 = vmatprep.subr.bf16.mxu0 0
        %776 = vmatpush2.bf16.msra.mxu0 0
        %777 = vmatprep.subr.bf16.mxu0 0
        %778 = vmatpush2.bf16.msra.mxu0 0
        %779 = vmatprep.subr.bf16.mxu0 0
        %780 = vmatpush2.bf16.msra.mxu0 0
        %781 = vmatprep.subr.bf16.mxu0 0
        %782 = vmatpush2.bf16.msra.mxu0 0
        %783 = vmatprep.subr.bf16.mxu0 0
        %784 = vmatpush2.bf16.msra.mxu0 0
        %785 = vmatprep.mubr.bf16.mxu0 0
        %786 = vmatmul.mubr.bf16.gmra.mxu0 %v628
        %v787 = vpop.f32.mrf.mxu0
        %v788 = vadd.f32 %v624, %v787
        %v789 = vpop.f32.mrf.mxu0
        %v790 = vadd.f32 %v624, %v789
        %v791 = vpop.f32.mrf.mxu0
        %v792 = vpop.f32.mrf.mxu0
        %793 = vdwg.mxu0
        %v794 = vpack.c.bf16 %v665, %v665
        %v795 = vpack.c.bf16 %v667, %v667
        %v796 = vpack.c.bf16 %v706, %v706
        %v797 = vpack.c.bf16 %v708, %v708
        %v798 = vpack.c.bf16 %v747, %v747
        %v799 = vpack.c.bf16 %v749, %v749
        %v800 = vpack.c.bf16 %v788, %v788
        %v801 = vpack.c.bf16 %v790, %v790
        %v810 = vcombine.low %v794, %v795
        %v811 = vcombine.low %v796, %v797
        %v813 = vunpack.c.l.s4 1983009808
        %v814 = vunpack.c.0.s8 %v813
        %v815 = vlaneseq
        %v816 = vshrl.u32 %v815, 7
        %v817 = vsub.s32 %v814, %v816
        %v818 = vrot.slane %v810, %v817
        %v820 = vunpack.c.l.s4 1983009808
        %v821 = vunpack.c.0.s8 %v820
        %v822 = vlaneseq
        %v823 = vshrl.u32 %v822, 7
        %v824 = vsub.s32 %v821, %v823
        %v825 = vrot.slane %v811, %v824
        %v826 = vcombine.low %v818, %v825
        %v827 = vcombine.low %v798, %v799
        %v828 = vcombine.low %v800, %v801
        %v830 = vunpack.c.l.s4 1983009808
        %v831 = vunpack.c.0.s8 %v830
        %v832 = vlaneseq
        %v833 = vshrl.u32 %v832, 7
        %v834 = vsub.s32 %v831, %v833
        %v835 = vrot.slane %v827, %v834
        %v837 = vunpack.c.l.s4 1983009808
        %v838 = vunpack.c.0.s8 %v837
        %v839 = vlaneseq
        %v840 = vshrl.u32 %v839, 7
        %v841 = vsub.s32 %v838, %v840
        %v842 = vrot.slane %v828, %v841
        %v843 = vcombine.low %v835, %v842
        %846 = vst [vmem:[%s583] sm:$0xff] %v826
        %847 = vst [vmem:[%s583 + $0x8] sm:$0xff] %v843
        %s848 = sand.u32 %s90, 1
        %s849 = sand.u32 %s90, 1
        %s850 = smul.addr %s849, 16
        %s851 = scalar_lea.vmem [#allocation3], %s850
        // Predicated region
        $region99: #{esa_forward.4} parent=93 // pred_check
          %p852 = pneg %p100
        $region100: #{esa_forward.4} parent=93 // pred_check_branch
          %854 = sbr.rel (%p852) target = $region102
        $region101: #{esa_forward.4} parent=93 // pred_region
          %s855 = smul.u32 8, %s14
          %s856 = ssub.s32 9, %s855
          %p857 = scmp.lt.s32.totalorder %s856, 8
          %s858 = scalar_select %p857, %s856, 8
          %s859 = smul.u32 32, %s858
          %p860 = scmp.ne.s32.totalorder 0, %s859
          %s861 = smul.addr %s855, 2
          %s862 = scalar_lea.vmem %s3, %s861
          %s863 = smul.u32 %s858, 2
          // Predicated region
          $region103: #{esa_forward.4} parent=101 // pred_check
            %p864 = pneg %p860
          $region104: #{esa_forward.4} parent=101 // pred_check_branch
            %866 = sbr.rel (%p864) target = $region106
          $region105: #{esa_forward.4} parent=101 // pred_region
            %p867 = scmp.lt.u32.totalorder %s863, 8
            %p868 = pneg %p867
            // Predicated region
            $region107: #{esa_forward.4} parent=105 // pred_check
              _
            $region108: #{esa_forward.4} parent=105 // pred_check_branch
              %870 = sbr.rel (%p867) target = $region110
            $region109: #{esa_forward.4} parent=105 // pred_region
              %s886 = sand.u32 %s863, 7
              %p887 = scmp.eq.s32.totalorder %s886, 0
              // Predicated region
              $region122: #{esa_forward.4} parent=109 // pred_check
                %p888 = pneg %p887
              $region123: #{esa_forward.4} parent=109 // pred_check_branch
                %890 = sbr.rel (%p888) target = $region125
              $region124: #{esa_forward.4} parent=109 // pred_region
                %s891 = sshrl.u32 %s863, 3
                %s892 = sshrl.u32 %s891, 6
                // While loop
                $region126: #{esa_forward.4} parent=124 // loop_pre_header
                  _
                $region127: #{esa_forward.4} parent=124 // loop_header
                  %s896 = sphi 0, %s898
                  %p897 = scmp.ge.s32.totalorder %s896, %s892
                  %s901 = sphi 0, %s1034
                  %s902 = sphi %s851, %s1037
                  %s903 = sphi %s862, %s1038
                $region128: #{esa_forward.4} parent=124 // loop_header_branch
                  %900 = sbr.rel (%p897) target = $region132
                $region129: #{esa_forward.4} parent=124 // loop_body
                  %v904 = vld [vmem:[%s902] sm:$0xff]
                  %905 = vst [vmem:[%s903] sm:$0xff] %v904
                  %v906 = vld [vmem:[%s902 + $0x8] sm:$0xff]
                  %907 = vst [vmem:[%s903 + $0x8] sm:$0xff] %v906
                  %v908 = vld [vmem:[%s902 + $0x10] sm:$0xff]
                  %909 = vst [vmem:[%s903 + $0x10] sm:$0xff] %v908
                  %v910 = vld [vmem:[%s902 + $0x18] sm:$0xff]
                  %911 = vst [vmem:[%s903 + $0x18] sm:$0xff] %v910
                  %v912 = vld [vmem:[%s902 + $0x20] sm:$0xff]
                  %913 = vst [vmem:[%s903 + $0x20] sm:$0xff] %v912
                  %v914 = vld [vmem:[%s902 + $0x28] sm:$0xff]
                  %915 = vst [vmem:[%s903 + $0x28] sm:$0xff] %v914
                  %v916 = vld [vmem:[%s902 + $0x30] sm:$0xff]
                  %917 = vst [vmem:[%s903 + $0x30] sm:$0xff] %v916
                  %v918 = vld [vmem:[%s902 + $0x38] sm:$0xff]
                  %919 = vst [vmem:[%s903 + $0x38] sm:$0xff] %v918
                  %v920 = vld [vmem:[%s902 + $0x40] sm:$0xff]
                  %921 = vst [vmem:[%s903 + $0x40] sm:$0xff] %v920
                  %v922 = vld [vmem:[%s902 + $0x48] sm:$0xff]
                  %923 = vst [vmem:[%s903 + $0x48] sm:$0xff] %v922
                  %v924 = vld [vmem:[%s902 + $0x50] sm:$0xff]
                  %925 = vst [vmem:[%s903 + $0x50] sm:$0xff] %v924
                  %v926 = vld [vmem:[%s902 + $0x58] sm:$0xff]
                  %927 = vst [vmem:[%s903 + $0x58] sm:$0xff] %v926
                  %v928 = vld [vmem:[%s902 + $0x60] sm:$0xff]
                  %929 = vst [vmem:[%s903 + $0x60] sm:$0xff] %v928
                  %v930 = vld [vmem:[%s902 + $0x68] sm:$0xff]
                  %931 = vst [vmem:[%s903 + $0x68] sm:$0xff] %v930
                  %v932 = vld [vmem:[%s902 + $0x70] sm:$0xff]
                  %933 = vst [vmem:[%s903 + $0x70] sm:$0xff] %v932
                  %v934 = vld [vmem:[%s902 + $0x78] sm:$0xff]
                  %935 = vst [vmem:[%s903 + $0x78] sm:$0xff] %v934
                  %v936 = vld [vmem:[%s902 + $0x80] sm:$0xff]
                  %937 = vst [vmem:[%s903 + $0x80] sm:$0xff] %v936
                  %v938 = vld [vmem:[%s902 + $0x88] sm:$0xff]
                  %939 = vst [vmem:[%s903 + $0x88] sm:$0xff] %v938
                  %v940 = vld [vmem:[%s902 + $0x90] sm:$0xff]
                  %941 = vst [vmem:[%s903 + $0x90] sm:$0xff] %v940
                  %v942 = vld [vmem:[%s902 + $0x98] sm:$0xff]
                  %943 = vst [vmem:[%s903 + $0x98] sm:$0xff] %v942
                  %v944 = vld [vmem:[%s902 + $0xa0] sm:$0xff]
                  %945 = vst [vmem:[%s903 + $0xa0] sm:$0xff] %v944
                  %v946 = vld [vmem:[%s902 + $0xa8] sm:$0xff]
                  %947 = vst [vmem:[%s903 + $0xa8] sm:$0xff] %v946
                  %v948 = vld [vmem:[%s902 + $0xb0] sm:$0xff]
                  %949 = vst [vmem:[%s903 + $0xb0] sm:$0xff] %v948
                  %v950 = vld [vmem:[%s902 + $0xb8] sm:$0xff]
                  %951 = vst [vmem:[%s903 + $0xb8] sm:$0xff] %v950
                  %v952 = vld [vmem:[%s902 + $0xc0] sm:$0xff]
                  %953 = vst [vmem:[%s903 + $0xc0] sm:$0xff] %v952
                  %v954 = vld [vmem:[%s902 + $0xc8] sm:$0xff]
                  %955 = vst [vmem:[%s903 + $0xc8] sm:$0xff] %v954
                  %v956 = vld [vmem:[%s902 + $0xd0] sm:$0xff]
                  %957 = vst [vmem:[%s903 + $0xd0] sm:$0xff] %v956
                  %v958 = vld [vmem:[%s902 + $0xd8] sm:$0xff]
                  %959 = vst [vmem:[%s903 + $0xd8] sm:$0xff] %v958
                  %v960 = vld [vmem:[%s902 + $0xe0] sm:$0xff]
                  %961 = vst [vmem:[%s903 + $0xe0] sm:$0xff] %v960
                  %v962 = vld [vmem:[%s902 + $0xe8] sm:$0xff]
                  %963 = vst [vmem:[%s903 + $0xe8] sm:$0xff] %v962
                  %v964 = vld [vmem:[%s902 + $0xf0] sm:$0xff]
                  %965 = vst [vmem:[%s903 + $0xf0] sm:$0xff] %v964
                  %v966 = vld [vmem:[%s902 + $0xf8] sm:$0xff]
                  %967 = vst [vmem:[%s903 + $0xf8] sm:$0xff] %v966
                  %v968 = vld [vmem:[%s902 + $0x100] sm:$0xff]
                  %969 = vst [vmem:[%s903 + $0x100] sm:$0xff] %v968
                  %v970 = vld [vmem:[%s902 + $0x108] sm:$0xff]
                  %971 = vst [vmem:[%s903 + $0x108] sm:$0xff] %v970
                  %v972 = vld [vmem:[%s902 + $0x110] sm:$0xff]
                  %973 = vst [vmem:[%s903 + $0x110] sm:$0xff] %v972
                  %v974 = vld [vmem:[%s902 + $0x118] sm:$0xff]
                  %975 = vst [vmem:[%s903 + $0x118] sm:$0xff] %v974
                  %v976 = vld [vmem:[%s902 + $0x120] sm:$0xff]
                  %977 = vst [vmem:[%s903 + $0x120] sm:$0xff] %v976
                  %v978 = vld [vmem:[%s902 + $0x128] sm:$0xff]
                  %979 = vst [vmem:[%s903 + $0x128] sm:$0xff] %v978
                  %v980 = vld [vmem:[%s902 + $0x130] sm:$0xff]
                  %981 = vst [vmem:[%s903 + $0x130] sm:$0xff] %v980
                  %v982 = vld [vmem:[%s902 + $0x138] sm:$0xff]
                  %983 = vst [vmem:[%s903 + $0x138] sm:$0xff] %v982
                  %v984 = vld [vmem:[%s902 + $0x140] sm:$0xff]
                  %985 = vst [vmem:[%s903 + $0x140] sm:$0xff] %v984
                  %v986 = vld [vmem:[%s902 + $0x148] sm:$0xff]
                  %987 = vst [vmem:[%s903 + $0x148] sm:$0xff] %v986
                  %v988 = vld [vmem:[%s902 + $0x150] sm:$0xff]
                  %989 = vst [vmem:[%s903 + $0x150] sm:$0xff] %v988
                  %v990 = vld [vmem:[%s902 + $0x158] sm:$0xff]
                  %991 = vst [vmem:[%s903 + $0x158] sm:$0xff] %v990
                  %v992 = vld [vmem:[%s902 + $0x160] sm:$0xff]
                  %993 = vst [vmem:[%s903 + $0x160] sm:$0xff] %v992
                  %v994 = vld [vmem:[%s902 + $0x168] sm:$0xff]
                  %995 = vst [vmem:[%s903 + $0x168] sm:$0xff] %v994
                  %v996 = vld [vmem:[%s902 + $0x170] sm:$0xff]
                  %997 = vst [vmem:[%s903 + $0x170] sm:$0xff] %v996
                  %v998 = vld [vmem:[%s902 + $0x178] sm:$0xff]
                  %999 = vst [vmem:[%s903 + $0x178] sm:$0xff] %v998
                  %v1000 = vld [vmem:[%s902 + $0x180] sm:$0xff]
                  %1001 = vst [vmem:[%s903 + $0x180] sm:$0xff] %v1000
                  %v1002 = vld [vmem:[%s902 + $0x188] sm:$0xff]
                  %1003 = vst [vmem:[%s903 + $0x188] sm:$0xff] %v1002
                  %v1004 = vld [vmem:[%s902 + $0x190] sm:$0xff]
                  %1005 = vst [vmem:[%s903 + $0x190] sm:$0xff] %v1004
                  %v1006 = vld [vmem:[%s902 + $0x198] sm:$0xff]
                  %1007 = vst [vmem:[%s903 + $0x198] sm:$0xff] %v1006
                  %v1008 = vld [vmem:[%s902 + $0x1a0] sm:$0xff]
                  %1009 = vst [vmem:[%s903 + $0x1a0] sm:$0xff] %v1008
                  %v1010 = vld [vmem:[%s902 + $0x1a8] sm:$0xff]
                  %1011 = vst [vmem:[%s903 + $0x1a8] sm:$0xff] %v1010
                  %v1012 = vld [vmem:[%s902 + $0x1b0] sm:$0xff]
                  %1013 = vst [vmem:[%s903 + $0x1b0] sm:$0xff] %v1012
                  %v1014 = vld [vmem:[%s902 + $0x1b8] sm:$0xff]
                  %1015 = vst [vmem:[%s903 + $0x1b8] sm:$0xff] %v1014
                  %v1016 = vld [vmem:[%s902 + $0x1c0] sm:$0xff]
                  %1017 = vst [vmem:[%s903 + $0x1c0] sm:$0xff] %v1016
                  %v1018 = vld [vmem:[%s902 + $0x1c8] sm:$0xff]
                  %1019 = vst [vmem:[%s903 + $0x1c8] sm:$0xff] %v1018
                  %v1020 = vld [vmem:[%s902 + $0x1d0] sm:$0xff]
                  %1021 = vst [vmem:[%s903 + $0x1d0] sm:$0xff] %v1020
                  %v1022 = vld [vmem:[%s902 + $0x1d8] sm:$0xff]
                  %1023 = vst [vmem:[%s903 + $0x1d8] sm:$0xff] %v1022
                  %v1024 = vld [vmem:[%s902 + $0x1e0] sm:$0xff]
                  %1025 = vst [vmem:[%s903 + $0x1e0] sm:$0xff] %v1024
                  %v1026 = vld [vmem:[%s902 + $0x1e8] sm:$0xff]
                  %1027 = vst [vmem:[%s903 + $0x1e8] sm:$0xff] %v1026
                  %v1028 = vld [vmem:[%s902 + $0x1f0] sm:$0xff]
                  %1029 = vst [vmem:[%s903 + $0x1f0] sm:$0xff] %v1028
                  %v1030 = vld [vmem:[%s902 + $0x1f8] sm:$0xff]
                  %1031 = vst [vmem:[%s903 + $0x1f8] sm:$0xff] %v1030
                  %s1032 = sadd.s32 1, %s901
                  %p1033 = scmp.ge.s32.totalorder %s1032, %s892
                  %s1034 = scalar_select %p1033, 0, %s1032
                  %s1035 = smul.u32 %s1034, 512
                  %s1036 = smul.u32 %s1034, 512
                  %s1037 = scalar_lea.vmem %s851, %s1035 [#allocation3]
                  %s1038 = scalar_lea.vmem %s862, %s1036
                $region130: #{esa_forward.4} parent=124 // loop_footer
                  %s898 = sadd.s32 %s896, 1
                $region131: #{esa_forward.4} parent=124 // loop_footer_branch
                  %895 = sbr.rel target = $region127
                $region132: #{esa_forward.4} parent=124 // loop_exit
                  _
                %s1039 = sshrl.u32 %s891, 6
                %s1040 = sand.u32 %s891, 63
                %s1041 = smul.u32 %s1039, 64
                %s1042 = smul.u32 128, %s1041
                %s1043 = sshra.s32 %s1042, 4
                %s1044 = scalar_lea.vmem %s851, %s1043 [#allocation3]
                %s1045 = smul.u32 128, %s1041
                %s1046 = sshra.s32 %s1045, 4
                %s1047 = scalar_lea.vmem %s862, %s1046
                // While loop
                $region133: #{esa_forward.4} parent=124 // loop_pre_header
                  _
                $region134: #{esa_forward.4} parent=124 // loop_header
                  %s1051 = sphi 0, %s1053
                  %p1052 = scmp.ge.s32.totalorder %s1051, %s1040
                  %s1056 = sphi 0, %s1063
                  %s1057 = sphi %s1044, %s1066
                  %s1058 = sphi %s1047, %s1067
                $region135: #{esa_forward.4} parent=124 // loop_header_branch
                  %1055 = sbr.rel (%p1052) target = $region139
                $region136: #{esa_forward.4} parent=124 // loop_body
                  %v1059 = vld [vmem:[%s1057] sm:$0xff]
                  %1060 = vst [vmem:[%s1058] sm:$0xff] %v1059
                  %s1061 = sadd.s32 1, %s1056
                  %p1062 = scmp.ge.s32.totalorder %s1061, %s1040
                  %s1063 = scalar_select %p1062, 0, %s1061
                  %s1064 = smul.u32 %s1063, 8
                  %s1065 = smul.u32 %s1063, 8
                  %s1066 = scalar_lea.vmem %s1044, %s1064 [#allocation3]
                  %s1067 = scalar_lea.vmem %s1047, %s1065
                $region137: #{esa_forward.4} parent=124 // loop_footer
                  %s1053 = sadd.s32 %s1051, 1
                $region138: #{esa_forward.4} parent=124 // loop_footer_branch
                  %1050 = sbr.rel target = $region134
                $region139: #{esa_forward.4} parent=124 // loop_exit
                  _
              $region125: #{esa_forward.4} parent=109 // pred_fallthru
                _
              %p1068 = pneg %p887
              // Predicated region
              $region140: #{esa_forward.4} parent=109 // pred_check
                _
              $region141: #{esa_forward.4} parent=109 // pred_check_branch
                %1070 = sbr.rel (%p887) target = $region143
              $region142: #{esa_forward.4} parent=109 // pred_region
                %s1071 = sand.u32 %s863, 7
                %s1072 = ssub.s32 %s863, %s1071
                %s1073 = scalar_lea.vmem %s851, %s1072 [#allocation3]
                %s1074 = ssub.s32 %s863, %s1071
                %s1075 = scalar_lea.vmem %s862, %s1074
                %s1076 = sshrl.u32 %s863, 3
                %s1077 = sshrl.u32 %s1076, 6
                // While loop
                $region144: #{esa_forward.4} parent=142 // loop_pre_header
                  _
                $region145: #{esa_forward.4} parent=142 // loop_header
                  %s1081 = sphi 0, %s1083
                  %p1082 = scmp.ge.s32.totalorder %s1081, %s1077
                  %s1086 = sphi 0, %s1219
                  %s1087 = sphi %s851, %s1222
                  %s1088 = sphi %s862, %s1223
                $region146: #{esa_forward.4} parent=142 // loop_header_branch
                  %1085 = sbr.rel (%p1082) target = $region150
                $region147: #{esa_forward.4} parent=142 // loop_body
                  %v1089 = vld [vmem:[%s1087] sm:$0xff]
                  %1090 = vst [vmem:[%s1088] sm:$0xff] %v1089
                  %v1091 = vld [vmem:[%s1087 + $0x8] sm:$0xff]
                  %1092 = vst [vmem:[%s1088 + $0x8] sm:$0xff] %v1091
                  %v1093 = vld [vmem:[%s1087 + $0x10] sm:$0xff]
                  %1094 = vst [vmem:[%s1088 + $0x10] sm:$0xff] %v1093
                  %v1095 = vld [vmem:[%s1087 + $0x18] sm:$0xff]
                  %1096 = vst [vmem:[%s1088 + $0x18] sm:$0xff] %v1095
                  %v1097 = vld [vmem:[%s1087 + $0x20] sm:$0xff]
                  %1098 = vst [vmem:[%s1088 + $0x20] sm:$0xff] %v1097
                  %v1099 = vld [vmem:[%s1087 + $0x28] sm:$0xff]
                  %1100 = vst [vmem:[%s1088 + $0x28] sm:$0xff] %v1099
                  %v1101 = vld [vmem:[%s1087 + $0x30] sm:$0xff]
                  %1102 = vst [vmem:[%s1088 + $0x30] sm:$0xff] %v1101
                  %v1103 = vld [vmem:[%s1087 + $0x38] sm:$0xff]
                  %1104 = vst [vmem:[%s1088 + $0x38] sm:$0xff] %v1103
                  %v1105 = vld [vmem:[%s1087 + $0x40] sm:$0xff]
                  %1106 = vst [vmem:[%s1088 + $0x40] sm:$0xff] %v1105
                  %v1107 = vld [vmem:[%s1087 + $0x48] sm:$0xff]
                  %1108 = vst [vmem:[%s1088 + $0x48] sm:$0xff] %v1107
                  %v1109 = vld [vmem:[%s1087 + $0x50] sm:$0xff]
                  %1110 = vst [vmem:[%s1088 + $0x50] sm:$0xff] %v1109
                  %v1111 = vld [vmem:[%s1087 + $0x58] sm:$0xff]
                  %1112 = vst [vmem:[%s1088 + $0x58] sm:$0xff] %v1111
                  %v1113 = vld [vmem:[%s1087 + $0x60] sm:$0xff]
                  %1114 = vst [vmem:[%s1088 + $0x60] sm:$0xff] %v1113
                  %v1115 = vld [vmem:[%s1087 + $0x68] sm:$0xff]
                  %1116 = vst [vmem:[%s1088 + $0x68] sm:$0xff] %v1115
                  %v1117 = vld [vmem:[%s1087 + $0x70] sm:$0xff]
                  %1118 = vst [vmem:[%s1088 + $0x70] sm:$0xff] %v1117
                  %v1119 = vld [vmem:[%s1087 + $0x78] sm:$0xff]
                  %1120 = vst [vmem:[%s1088 + $0x78] sm:$0xff] %v1119
                  %v1121 = vld [vmem:[%s1087 + $0x80] sm:$0xff]
                  %1122 = vst [vmem:[%s1088 + $0x80] sm:$0xff] %v1121
                  %v1123 = vld [vmem:[%s1087 + $0x88] sm:$0xff]
                  %1124 = vst [vmem:[%s1088 + $0x88] sm:$0xff] %v1123
                  %v1125 = vld [vmem:[%s1087 + $0x90] sm:$0xff]
                  %1126 = vst [vmem:[%s1088 + $0x90] sm:$0xff] %v1125
                  %v1127 = vld [vmem:[%s1087 + $0x98] sm:$0xff]
                  %1128 = vst [vmem:[%s1088 + $0x98] sm:$0xff] %v1127
                  %v1129 = vld [vmem:[%s1087 + $0xa0] sm:$0xff]
                  %1130 = vst [vmem:[%s1088 + $0xa0] sm:$0xff] %v1129
                  %v1131 = vld [vmem:[%s1087 + $0xa8] sm:$0xff]
                  %1132 = vst [vmem:[%s1088 + $0xa8] sm:$0xff] %v1131
                  %v1133 = vld [vmem:[%s1087 + $0xb0] sm:$0xff]
                  %1134 = vst [vmem:[%s1088 + $0xb0] sm:$0xff] %v1133
                  %v1135 = vld [vmem:[%s1087 + $0xb8] sm:$0xff]
                  %1136 = vst [vmem:[%s1088 + $0xb8] sm:$0xff] %v1135
                  %v1137 = vld [vmem:[%s1087 + $0xc0] sm:$0xff]
                  %1138 = vst [vmem:[%s1088 + $0xc0] sm:$0xff] %v1137
                  %v1139 = vld [vmem:[%s1087 + $0xc8] sm:$0xff]
                  %1140 = vst [vmem:[%s1088 + $0xc8] sm:$0xff] %v1139
                  %v1141 = vld [vmem:[%s1087 + $0xd0] sm:$0xff]
                  %1142 = vst [vmem:[%s1088 + $0xd0] sm:$0xff] %v1141
                  %v1143 = vld [vmem:[%s1087 + $0xd8] sm:$0xff]
                  %1144 = vst [vmem:[%s1088 + $0xd8] sm:$0xff] %v1143
                  %v1145 = vld [vmem:[%s1087 + $0xe0] sm:$0xff]
                  %1146 = vst [vmem:[%s1088 + $0xe0] sm:$0xff] %v1145
                  %v1147 = vld [vmem:[%s1087 + $0xe8] sm:$0xff]
                  %1148 = vst [vmem:[%s1088 + $0xe8] sm:$0xff] %v1147
                  %v1149 = vld [vmem:[%s1087 + $0xf0] sm:$0xff]
                  %1150 = vst [vmem:[%s1088 + $0xf0] sm:$0xff] %v1149
                  %v1151 = vld [vmem:[%s1087 + $0xf8] sm:$0xff]
                  %1152 = vst [vmem:[%s1088 + $0xf8] sm:$0xff] %v1151
                  %v1153 = vld [vmem:[%s1087 + $0x100] sm:$0xff]
                  %1154 = vst [vmem:[%s1088 + $0x100] sm:$0xff] %v1153
                  %v1155 = vld [vmem:[%s1087 + $0x108] sm:$0xff]
                  %1156 = vst [vmem:[%s1088 + $0x108] sm:$0xff] %v1155
                  %v1157 = vld [vmem:[%s1087 + $0x110] sm:$0xff]
                  %1158 = vst [vmem:[%s1088 + $0x110] sm:$0xff] %v1157
                  %v1159 = vld [vmem:[%s1087 + $0x118] sm:$0xff]
                  %1160 = vst [vmem:[%s1088 + $0x118] sm:$0xff] %v1159
                  %v1161 = vld [vmem:[%s1087 + $0x120] sm:$0xff]
                  %1162 = vst [vmem:[%s1088 + $0x120] sm:$0xff] %v1161
                  %v1163 = vld [vmem:[%s1087 + $0x128] sm:$0xff]
                  %1164 = vst [vmem:[%s1088 + $0x128] sm:$0xff] %v1163
                  %v1165 = vld [vmem:[%s1087 + $0x130] sm:$0xff]
                  %1166 = vst [vmem:[%s1088 + $0x130] sm:$0xff] %v1165
                  %v1167 = vld [vmem:[%s1087 + $0x138] sm:$0xff]
                  %1168 = vst [vmem:[%s1088 + $0x138] sm:$0xff] %v1167
                  %v1169 = vld [vmem:[%s1087 + $0x140] sm:$0xff]
                  %1170 = vst [vmem:[%s1088 + $0x140] sm:$0xff] %v1169
                  %v1171 = vld [vmem:[%s1087 + $0x148] sm:$0xff]
                  %1172 = vst [vmem:[%s1088 + $0x148] sm:$0xff] %v1171
                  %v1173 = vld [vmem:[%s1087 + $0x150] sm:$0xff]
                  %1174 = vst [vmem:[%s1088 + $0x150] sm:$0xff] %v1173
                  %v1175 = vld [vmem:[%s1087 + $0x158] sm:$0xff]
                  %1176 = vst [vmem:[%s1088 + $0x158] sm:$0xff] %v1175
                  %v1177 = vld [vmem:[%s1087 + $0x160] sm:$0xff]
                  %1178 = vst [vmem:[%s1088 + $0x160] sm:$0xff] %v1177
                  %v1179 = vld [vmem:[%s1087 + $0x168] sm:$0xff]
                  %1180 = vst [vmem:[%s1088 + $0x168] sm:$0xff] %v1179
                  %v1181 = vld [vmem:[%s1087 + $0x170] sm:$0xff]
                  %1182 = vst [vmem:[%s1088 + $0x170] sm:$0xff] %v1181
                  %v1183 = vld [vmem:[%s1087 + $0x178] sm:$0xff]
                  %1184 = vst [vmem:[%s1088 + $0x178] sm:$0xff] %v1183
                  %v1185 = vld [vmem:[%s1087 + $0x180] sm:$0xff]
                  %1186 = vst [vmem:[%s1088 + $0x180] sm:$0xff] %v1185
                  %v1187 = vld [vmem:[%s1087 + $0x188] sm:$0xff]
                  %1188 = vst [vmem:[%s1088 + $0x188] sm:$0xff] %v1187
                  %v1189 = vld [vmem:[%s1087 + $0x190] sm:$0xff]
                  %1190 = vst [vmem:[%s1088 + $0x190] sm:$0xff] %v1189
                  %v1191 = vld [vmem:[%s1087 + $0x198] sm:$0xff]
                  %1192 = vst [vmem:[%s1088 + $0x198] sm:$0xff] %v1191
                  %v1193 = vld [vmem:[%s1087 + $0x1a0] sm:$0xff]
                  %1194 = vst [vmem:[%s1088 + $0x1a0] sm:$0xff] %v1193
                  %v1195 = vld [vmem:[%s1087 + $0x1a8] sm:$0xff]
                  %1196 = vst [vmem:[%s1088 + $0x1a8] sm:$0xff] %v1195
                  %v1197 = vld [vmem:[%s1087 + $0x1b0] sm:$0xff]
                  %1198 = vst [vmem:[%s1088 + $0x1b0] sm:$0xff] %v1197
                  %v1199 = vld [vmem:[%s1087 + $0x1b8] sm:$0xff]
                  %1200 = vst [vmem:[%s1088 + $0x1b8] sm:$0xff] %v1199
                  %v1201 = vld [vmem:[%s1087 + $0x1c0] sm:$0xff]
                  %1202 = vst [vmem:[%s1088 + $0x1c0] sm:$0xff] %v1201
                  %v1203 = vld [vmem:[%s1087 + $0x1c8] sm:$0xff]
                  %1204 = vst [vmem:[%s1088 + $0x1c8] sm:$0xff] %v1203
                  %v1205 = vld [vmem:[%s1087 + $0x1d0] sm:$0xff]
                  %1206 = vst [vmem:[%s1088 + $0x1d0] sm:$0xff] %v1205
                  %v1207 = vld [vmem:[%s1087 + $0x1d8] sm:$0xff]
                  %1208 = vst [vmem:[%s1088 + $0x1d8] sm:$0xff] %v1207
                  %v1209 = vld [vmem:[%s1087 + $0x1e0] sm:$0xff]
                  %1210 = vst [vmem:[%s1088 + $0x1e0] sm:$0xff] %v1209
                  %v1211 = vld [vmem:[%s1087 + $0x1e8] sm:$0xff]
                  %1212 = vst [vmem:[%s1088 + $0x1e8] sm:$0xff] %v1211
                  %v1213 = vld [vmem:[%s1087 + $0x1f0] sm:$0xff]
                  %1214 = vst [vmem:[%s1088 + $0x1f0] sm:$0xff] %v1213
                  %v1215 = vld [vmem:[%s1087 + $0x1f8] sm:$0xff]
                  %1216 = vst [vmem:[%s1088 + $0x1f8] sm:$0xff] %v1215
                  %s1217 = sadd.s32 1, %s1086
                  %p1218 = scmp.ge.s32.totalorder %s1217, %s1077
                  %s1219 = scalar_select %p1218, 0, %s1217
                  %s1220 = smul.u32 %s1219, 512
                  %s1221 = smul.u32 %s1219, 512
                  %s1222 = scalar_lea.vmem %s851, %s1220 [#allocation3]
                  %s1223 = scalar_lea.vmem %s862, %s1221
                $region148: #{esa_forward.4} parent=142 // loop_footer
                  %s1083 = sadd.s32 %s1081, 1
                $region149: #{esa_forward.4} parent=142 // loop_footer_branch
                  %1080 = sbr.rel target = $region145
                $region150: #{esa_forward.4} parent=142 // loop_exit
                  _
                %s1224 = sshrl.u32 %s1076, 6
                %s1225 = sand.u32 %s1076, 63
                %s1226 = smul.u32 %s1224, 64
                %s1227 = smul.u32 128, %s1226
                %s1228 = sshra.s32 %s1227, 4
                %s1229 = scalar_lea.vmem %s851, %s1228 [#allocation3]
                %s1230 = smul.u32 128, %s1226
                %s1231 = sshra.s32 %s1230, 4
                %s1232 = scalar_lea.vmem %s862, %s1231
                // While loop
                $region151: #{esa_forward.4} parent=142 // loop_pre_header
                  _
                $region152: #{esa_forward.4} parent=142 // loop_header
                  %s1236 = sphi 0, %s1238
                  %p1237 = scmp.ge.s32.totalorder %s1236, %s1225
                  %s1241 = sphi 0, %s1248
                  %s1242 = sphi %s1229, %s1251
                  %s1243 = sphi %s1232, %s1252
                $region153: #{esa_forward.4} parent=142 // loop_header_branch
                  %1240 = sbr.rel (%p1237) target = $region157
                $region154: #{esa_forward.4} parent=142 // loop_body
                  %v1244 = vld [vmem:[%s1242] sm:$0xff]
                  %1245 = vst [vmem:[%s1243] sm:$0xff] %v1244
                  %s1246 = sadd.s32 1, %s1241
                  %p1247 = scmp.ge.s32.totalorder %s1246, %s1225
                  %s1248 = scalar_select %p1247, 0, %s1246
                  %s1249 = smul.u32 %s1248, 8
                  %s1250 = smul.u32 %s1248, 8
                  %s1251 = scalar_lea.vmem %s1229, %s1249 [#allocation3]
                  %s1252 = scalar_lea.vmem %s1232, %s1250
                $region155: #{esa_forward.4} parent=142 // loop_footer
                  %s1238 = sadd.s32 %s1236, 1
                $region156: #{esa_forward.4} parent=142 // loop_footer_branch
                  %1235 = sbr.rel target = $region152
                $region157: #{esa_forward.4} parent=142 // loop_exit
                  _
                %s1253 = sshll.u32 1, %s1071
                %s1254 = ssub.s32 %s1253, 1
                loop: start=0, step=1, limit=1
                $region158: #{esa_forward.4} parent=142 // loop_pre_header
                  _
                $region159: #{esa_forward.4} parent=142 // loop_header
                  %s1256 = sphi 0, %s1260
                  %p1257 = scmp.ge.s32.totalorder %s1256, 1
                  %s1261 = sphi %s1073, %s1073
                  %s1262 = sphi %s1075, %s1075
                $region160: #{esa_forward.4} parent=142 // loop_header_branch
                  %1259 = sbr.rel (%p1257) target = $region164
                $region161: #{esa_forward.4} parent=142 // loop_body
                  %v1263 = vld [vmem:[%s1261] sm:%s1254]
                  %1264 = vst [vmem:[%s1262] sm:%s1254] %v1263
                $region162: #{esa_forward.4} parent=142 // loop_footer
                  %s1260 = sadd.s32 1, %s1256
                $region163: #{esa_forward.4} parent=142 // loop_footer_branch
                  %1255 = sbr.rel target = $region159
                $region164: #{esa_forward.4} parent=142 // loop_exit
                  _
              $region143: #{esa_forward.4} parent=109 // pred_fallthru
                _
            $region110: #{esa_forward.4} parent=105 // pred_fallthru
              _
            // Predicated region
            $region111: #{esa_forward.4} parent=105 // pred_check
              %p871 = pneg %p867
            $region112: #{esa_forward.4} parent=105 // pred_check_branch
              %873 = sbr.rel (%p871) target = $region114
            $region113: #{esa_forward.4} parent=105 // pred_region
              %s874 = sshll.u32 1, %s863
              %s875 = ssub.s32 %s874, 1
              loop: start=0, step=1, limit=1
              $region115: #{esa_forward.4} parent=113 // loop_pre_header
                _
              $region116: #{esa_forward.4} parent=113 // loop_header
                %s877 = sphi 0, %s881
                %p878 = scmp.ge.s32.totalorder %s877, 1
                %s882 = sphi %s851, %s851
                %s883 = sphi %s862, %s862
              $region117: #{esa_forward.4} parent=113 // loop_header_branch
                %880 = sbr.rel (%p878) target = $region121
              $region118: #{esa_forward.4} parent=113 // loop_body
                %v884 = vld [vmem:[%s882] sm:%s875]
                %885 = vst [vmem:[%s883] sm:%s875] %v884
              $region119: #{esa_forward.4} parent=113 // loop_footer
                %s881 = sadd.s32 1, %s877
              $region120: #{esa_forward.4} parent=113 // loop_footer_branch
                %876 = sbr.rel target = $region116
              $region121: #{esa_forward.4} parent=113 // loop_exit
                _
            $region114: #{esa_forward.4} parent=105 // pred_fallthru
              _
          $region106: #{esa_forward.4} parent=101 // pred_fallthru
            _
          %1265 = vnop
        $region102: #{esa_forward.4} parent=93 // pred_fallthru
          _
      $region94: #{esa_forward.4} parent=5 // pred_fallthru
        _
      %p1266 = scmp.le.s32.totalorder 2, %s9
      // Predicated region
      $region165: #{esa_forward.4} parent=5 // pred_check
        %p1267 = pneg %p1266
      $region166: #{esa_forward.4} parent=5 // pred_check_branch
        %1269 = sbr.rel (%p1267) target = $region168
      $region167: #{esa_forward.4} parent=5 // pred_region
        %s1270 = ssub.s32 %s9, 2
        // Predicated region
        $region169: #{esa_forward.4} parent=167 // pred_check
          %p1271 = pneg %p106
        $region170: #{esa_forward.4} parent=167 // pred_check_branch
          %1273 = sbr.rel (%p1271) target = $region172
        $region171: #{esa_forward.4} parent=167 // pred_region
          %s1274 = sand.u32 %s91, 1
          %s1275 = sand.u32 %s91, 1
          %s1276 = smul.addr %s1275, 16
          %s1277 = scalar_lea.vmem [#allocation3], %s1276
        $region172: #{esa_forward.4} parent=167 // pred_fallthru
          _
      $region168: #{esa_forward.4} parent=5 // pred_fallthru
        _
    $region6: #{esa_forward.4} parent=1 // loop_footer
      %s13 = sadd.s32 1, %s9
    $region7: #{esa_forward.4} parent=1 // loop_footer_branch
      %8 = sbr.rel target = $region3
    $region8: #{esa_forward.4} parent=1 // loop_exit
      _

// kernel: esa_forward.5
$region0: #{esa_forward.5}
  #allocation0 [shape = 'u32[]', space=smem, size = 0x4, offset = 0x4, fixed_abs, tag = 'smem constant byte address 0x4 - core index']
  #allocation1 [shape = 'u32[144,128]{1,0:T(1,128)}', space=vmem, size = 0x12000, scoped, tag = 'internal scratch']
  %s0 = inlined_call_operand.vmem [shape: bf16[36,242], index: 0, kind: input, shape index: {}]
  %s1 = inlined_call_operand.vmem [shape: bf16[4,36], index: 1, kind: input, shape index: {}]
  %s2 = inlined_call_operand.vmem [shape: f32[4,1], index: 2, kind: input, shape index: {}]
  %s3 = inlined_call_operand.vmem [shape: f32[4,242], index: 3, kind: output, shape index: {}]
  %s4 = sld [smem:[#allocation0]]
  $region22: #{esa_forward.5} parent=0
    _
  %s6 = ssub.s32 1, %s4
  %s7 = scalar_select 0, %s6, %s4
  // Predicated region
  $region2: #{esa_forward.5} parent=0 // pred_check
    _
  $region3: #{esa_forward.5} parent=0 // pred_check_branch
    %9 = sbr.rel (0) target = $region5
  $region4: #{esa_forward.5} parent=0 // pred_region
    _
  $region5: #{esa_forward.5} parent=0 // pred_fallthru
    _
  // Predicated region
  $region6: #{esa_forward.5} parent=0 // pred_check
    _
  $region7: #{esa_forward.5} parent=0 // pred_check_branch
    %11 = sbr.rel (0) target = $region9
  $region8: #{esa_forward.5} parent=0 // pred_region
    _
  $region9: #{esa_forward.5} parent=0 // pred_fallthru
    _
  // Predicated region
  $region10: #{esa_forward.5} parent=0 // pred_check
    _
  $region11: #{esa_forward.5} parent=0 // pred_check_branch
    %13 = sbr.rel (0) target = $region13
  $region12: #{esa_forward.5} parent=0 // pred_region
    _
  $region13: #{esa_forward.5} parent=0 // pred_fallthru
    _
  %v15 = vld [vmem:[%s0] sm:$0xff]
  %v16 = vld [vmem:[%s0 + $0x8] sm:$0xff]
  %v17 = vld [vmem:[%s0 + $0x10] sm:$0xff]
  %v18 = vld [vmem:[%s0 + $0x18] sm:$0xff]
  %v19 = vld [vmem:[%s0 + $0x20] sm:$0x33]
  %v20 = vld [vmem:[%s1] sm:$0x3]
  %v21 = vld [vmem:[%s2] sm:$0xf]
  %23 = vset.pattern.permute.xlu0 0
  %24 = vperm.xlu0 %23, %v21
  %v25 = vpop.permute.xlu0 %24
  %v32 = vunpack.c.l.b16 %v15
  %v33 = vunpack.c.h.b16 %v15
  %v34 = vunpack.c.l.b16 %v16
  %v35 = vunpack.c.h.b16 %v16
  %v36 = vunpack.c.l.b16 %v17
  %v37 = vunpack.c.h.b16 %v17
  %v38 = vunpack.c.l.b16 %v18
  %v39 = vunpack.c.h.b16 %v18
  %v40 = vunpack.c.l.b16 %v19
  %v41 = vunpack.c.h.b16 %v19
  %v42 = vpack.c.b16 %v34, %v32
  %v43 = vpack.c.b16 %v35, %v33
  %v44 = vpack.c.b16 %v38, %v36
  %v45 = vpack.c.b16 %v39, %v37
  %v46 = vpack.c.b16 %v40, %v40
  %v47 = vpack.c.b16 %v41, %v41
  %vm52 = vcmask 293888
  %v54 = vsel %vm52, %v20, 0
  %vm56 = vcmask 1041408
  %v58 = vsel %vm56, %v46, 0
  %v61 = vsel %vm56, %v47, 0
  %63 = vmatprep.subr.bf16.mxu0 0
  %64 = vmatpush1.bf16.msra.mxu0 0
  %65 = vmatprep.subr.bf16.mxu0 0
  %66 = vmatpush1.bf16.msra.mxu0 0
  %67 = vmatprep.subr.bf16.mxu0 0
  %68 = vmatpush1.bf16.msra.mxu0 0
  %69 = vmatprep.subr.bf16.mxu0 0
  %70 = vmatpush1.bf16.msra.mxu0 0
  %71 = vmatprep.subr.bf16.mxu0 0
  %72 = vmatpush1.bf16.msra.mxu0 0
  %73 = vmatprep.subr.bf16.mxu0 %v61
  %74 = vmatpush1.bf16.msra.mxu0 %v58
  %75 = vmatprep.subr.bf16.mxu0 %v45
  %76 = vmatpush1.bf16.msra.mxu0 %v44
  %77 = vmatprep.subr.bf16.mxu0 %v43
  %78 = vmatpush1.bf16.msra.mxu0 %v42
  %79 = vmatprep.subr.bf16.mxu0 0
  %80 = vmatpush2.bf16.msra.mxu0 0
  %81 = vmatprep.subr.bf16.mxu0 0
  %82 = vmatpush2.bf16.msra.mxu0 0
  %83 = vmatprep.subr.bf16.mxu0 0
  %84 = vmatpush2.bf16.msra.mxu0 0
  %85 = vmatprep.subr.bf16.mxu0 0
  %86 = vmatpush2.bf16.msra.mxu0 0
  %87 = vmatprep.subr.bf16.mxu0 0
  %88 = vmatpush2.bf16.msra.mxu0 0
  %89 = vmatprep.subr.bf16.mxu0 0
  %90 = vmatpush2.bf16.msra.mxu0 0
  %91 = vmatprep.subr.bf16.mxu0 0
  %92 = vmatpush2.bf16.msra.mxu0 0
  %93 = vmatprep.subr.bf16.mxu0 0
  %94 = vmatpush2.bf16.msra.mxu0 0
  %95 = vmatprep.mubr.bf16.mxu0 0
  %96 = vmatmul.mubr.bf16.gmra.mxu0 %v54
  %v97 = vpop.f32.mrf.mxu0
  %v98 = vadd.f32 %v25, %v97
  %v99 = vpop.f32.mrf.mxu0
  %v100 = vadd.f32 %v25, %v99
  %v101 = vpop.f32.mrf.mxu0
  %v102 = vpop.f32.mrf.mxu0
  %103 = vdwg.mxu0
  %v106 = vcombine.low %v98, %v100
  %vm108 = vcmask 1043456
  %vm109 = vcmask 932868
  %vm110 = vmor %vm109, %vm108
  %111 = vst.msk [vmem:[%s3] sm:$0xff] %vm110, %v106
  // Predicated region
  $region14: #{esa_forward.5} parent=0 // pred_check
    _
  $region15: #{esa_forward.5} parent=0 // pred_check_branch
    %113 = sbr.rel (0) target = $region17
  $region16: #{esa_forward.5} parent=0 // pred_region
    _
  $region17: #{esa_forward.5} parent=0 // pred_fallthru
    _
  // Predicated region
  $region18: #{esa_forward.5} parent=0 // pred_check
    _
  $region19: #{esa_forward.5} parent=0 // pred_check_branch
    %115 = sbr.rel (0) target = $region21
  $region20: #{esa_forward.5} parent=0 // pred_region
    _
  $region21: #{esa_forward.5} parent=0 // pred_fallthru
    _

// kernel: esa_forward.7
$region0: #{esa_forward.7}
  #allocation0 [shape = 'u32[]', space=smem, size = 0x4, offset = 0x4, fixed_abs, tag = 'smem constant byte address 0x4 - core index']
  #allocation1 [shape = 'u32[144,128]{1,0:T(1,128)}', space=vmem, size = 0x12000, scoped, tag = 'internal scratch']
  %s0 = inlined_call_operand.vmem [shape: f32[16,1152], index: 0, kind: input, shape index: {}, may-alias: {0,7}]
  %s1 = inlined_call_operand.vmem [shape: f32[4,1152], index: 1, kind: input, shape index: {}]
  %s2 = inlined_call_operand.vmem [shape: bf16[4,1152], index: 2, kind: input, shape index: {}]
  %s3 = inlined_call_operand.vmem [shape: bf16[4,4], index: 3, kind: input, shape index: {}]
  %s4 = inlined_call_operand.vmem [shape: f32[4,1], index: 4, kind: input, shape index: {}]
  %s5 = inlined_call_operand.vmem [shape: bf16[16,4], index: 5, kind: input, shape index: {}]
  %s6 = inlined_call_operand.vmem [shape: f32[16,1], index: 6, kind: input, shape index: {}]
  %s7 = inlined_call_operand.vmem [shape: f32[16,1152], index: 7, kind: output, shape index: {}, may-alias: {0,7}]
  %s8 = sld [smem:[#allocation0]]
  $region189: #{esa_forward.7} parent=0
    _
  %s10 = ssub.s32 1, %s8
  %s11 = scalar_select 0, %s10, %s8
  $region1: #{esa_forward.7} parent=0
    #allocation2 [shape = 'u8[131072]{0}', space=vmem, size = 0x20000, scoped, tag = 'input window, operand 0']
    #allocation3 [shape = 'u8[131072]{0}', space=vmem, size = 0x20000, scoped, tag = 'output window, operand 0']
    loop: start=0, step=1, limit=4
    $region2: #{esa_forward.7} parent=1 // loop_pre_header
      _
    $region3: #{esa_forward.7} parent=1 // loop_header
      %s13 = sphi 0, %s17
      %p14 = scmp.ge.s32.totalorder %s13, 4
      %s23 = sphi 0, %s25
      %s26 = sphi 0, %s23
      %s27 = sphi 0, %s26
      %s43 = sphi 0, %s27
      %s49 = sphi 0, %s51
      %s52 = sphi 0, %s49
      %s53 = sphi 0, %s52
      %s69 = sphi 0, %s53
      %s75 = sphi 0, %s77
      %s78 = sphi 0, %s75
      %s79 = sphi 0, %s78
      %s95 = sphi 0, %s79
      %s99 = sphi 0, %s99
      %s101 = sphi 0, %s99
      %s102 = sphi 0, %s101
      %s116 = sphi 0, %s102
      %s120 = sphi 0, %s120
      %s122 = sphi 0, %s120
      %s123 = sphi 0, %s122
      %s137 = sphi 0, %s123
      %s141 = sphi 0, %s141
      %s143 = sphi 0, %s141
      %s144 = sphi 0, %s143
      %s158 = sphi 0, %s144
      %s162 = sphi 0, %s162
      %s164 = sphi 0, %s162
      %s165 = sphi 0, %s164
      %s179 = sphi 0, %s165
      %s185 = sphi 0, %s187
      %s188 = sphi 0, %s185
      %s189 = sphi 0, %s188
      %s205 = sphi 0, %s189
    $region4: #{esa_forward.7} parent=1 // loop_header_branch
      %16 = sbr.rel (%p14) target = $region8
    $region5: #{esa_forward.7} parent=1 // loop_body
      %s18 = ssub.s32 %s13, 1
      %s19 = ssub.s32 %s13, 2
      %s20 = sadd.s32 %s13, 1
      %s21 = ssub.s32 %s13, %s20
      %p22 = scmp.eq.s32.totalorder %s21, 0
      %s24 = sadd.s32 %s23, 1
      %s25 = scalar_select %p22, %s23, %s24
      %p28 = pneg %p22
      %p29 = scmp.eq.s32.totalorder %s13, 1
      %p30 = por %p28, %p29
      %p31 = scmp.ne.s32.totalorder %s23, %s26
      %p32 = scmp.eq.s32.totalorder %s13, 0
      %p33 = por %p31, %p32
      %p34 = scmp.ne.s32.totalorder %s23, %s26
      %p35 = scmp.eq.s32.totalorder %s18, 1
      %p36 = por %p34, %p35
      %p37 = scmp.ne.s32.totalorder %s26, %s27
      %p38 = scmp.eq.s32.totalorder %s18, 0
      %p39 = por %p37, %p38
      %p40 = scmp.ne.s32.totalorder %s26, %s27
      %p41 = scmp.eq.s32.totalorder %s19, 1
      %p42 = por %p40, %p41
      %p44 = scmp.ne.s32.totalorder %s27, %s43
      %p45 = scmp.eq.s32.totalorder %s19, 0
      %p46 = por %p44, %p45
      %s47 = ssub.s32 %s13, %s20
      %p48 = scmp.eq.s32.totalorder %s47, 0
      %s50 = sadd.s32 %s49, 1
      %s51 = scalar_select %p48, %s49, %s50
      %p54 = pneg %p48
      %p55 = scmp.eq.s32.totalorder %s13, 1
      %p56 = por %p54, %p55
      %p57 = scmp.ne.s32.totalorder %s49, %s52
      %p58 = scmp.eq.s32.totalorder %s13, 0
      %p59 = por %p57, %p58
      %p60 = scmp.ne.s32.totalorder %s49, %s52
      %p61 = scmp.eq.s32.totalorder %s18, 1
      %p62 = por %p60, %p61
      %p63 = scmp.ne.s32.totalorder %s52, %s53
      %p64 = scmp.eq.s32.totalorder %s18, 0
      %p65 = por %p63, %p64
      %p66 = scmp.ne.s32.totalorder %s52, %s53
      %p67 = scmp.eq.s32.totalorder %s19, 1
      %p68 = por %p66, %p67
      %p70 = scmp.ne.s32.totalorder %s53, %s69
      %p71 = scmp.eq.s32.totalorder %s19, 0
      %p72 = por %p70, %p71
      %s73 = ssub.s32 %s13, %s20
      %p74 = scmp.eq.s32.totalorder %s73, 0
      %s76 = sadd.s32 %s75, 1
      %s77 = scalar_select %p74, %s75, %s76
      %p80 = pneg %p74
      %p81 = scmp.eq.s32.totalorder %s13, 1
      %p82 = por %p80, %p81
      %p83 = scmp.ne.s32.totalorder %s75, %s78
      %p84 = scmp.eq.s32.totalorder %s13, 0
      %p85 = por %p83, %p84
      %p86 = scmp.ne.s32.totalorder %s75, %s78
      %p87 = scmp.eq.s32.totalorder %s18, 1
      %p88 = por %p86, %p87
      %p89 = scmp.ne.s32.totalorder %s78, %s79
      %p90 = scmp.eq.s32.totalorder %s18, 0
      %p91 = por %p89, %p90
      %p92 = scmp.ne.s32.totalorder %s78, %s79
      %p93 = scmp.eq.s32.totalorder %s19, 1
      %p94 = por %p92, %p93
      %p96 = scmp.ne.s32.totalorder %s79, %s95
      %p97 = scmp.eq.s32.totalorder %s19, 0
      %p98 = por %p96, %p97
      %s100 = sadd.s32 %s99, 1
      %p103 = scmp.eq.s32.totalorder %s13, 1
      %p104 = scmp.ne.s32.totalorder %s99, %s101
      %p105 = scmp.eq.s32.totalorder %s13, 0
      %p106 = por %p104, %p105
      %p107 = scmp.ne.s32.totalorder %s99, %s101
      %p108 = scmp.eq.s32.totalorder %s18, 1
      %p109 = por %p107, %p108
      %p110 = scmp.ne.s32.totalorder %s101, %s102
      %p111 = scmp.eq.s32.totalorder %s18, 0
      %p112 = por %p110, %p111
      %p113 = scmp.ne.s32.totalorder %s101, %s102
      %p114 = scmp.eq.s32.totalorder %s19, 1
      %p115 = por %p113, %p114
      %p117 = scmp.ne.s32.totalorder %s102, %s116
      %p118 = scmp.eq.s32.totalorder %s19, 0
      %p119 = por %p117, %p118
      %s121 = sadd.s32 %s120, 1
      %p124 = scmp.eq.s32.totalorder %s13, 1
      %p125 = scmp.ne.s32.totalorder %s120, %s122
      %p126 = scmp.eq.s32.totalorder %s13, 0
      %p127 = por %p125, %p126
      %p128 = scmp.ne.s32.totalorder %s120, %s122
      %p129 = scmp.eq.s32.totalorder %s18, 1
      %p130 = por %p128, %p129
      %p131 = scmp.ne.s32.totalorder %s122, %s123
      %p132 = scmp.eq.s32.totalorder %s18, 0
      %p133 = por %p131, %p132
      %p134 = scmp.ne.s32.totalorder %s122, %s123
      %p135 = scmp.eq.s32.totalorder %s19, 1
      %p136 = por %p134, %p135
      %p138 = scmp.ne.s32.totalorder %s123, %s137
      %p139 = scmp.eq.s32.totalorder %s19, 0
      %p140 = por %p138, %p139
      %s142 = sadd.s32 %s141, 1
      %p145 = scmp.eq.s32.totalorder %s13, 1
      %p146 = scmp.ne.s32.totalorder %s141, %s143
      %p147 = scmp.eq.s32.totalorder %s13, 0
      %p148 = por %p146, %p147
      %p149 = scmp.ne.s32.totalorder %s141, %s143
      %p150 = scmp.eq.s32.totalorder %s18, 1
      %p151 = por %p149, %p150
      %p152 = scmp.ne.s32.totalorder %s143, %s144
      %p153 = scmp.eq.s32.totalorder %s18, 0
      %p154 = por %p152, %p153
      %p155 = scmp.ne.s32.totalorder %s143, %s144
      %p156 = scmp.eq.s32.totalorder %s19, 1
      %p157 = por %p155, %p156
      %p159 = scmp.ne.s32.totalorder %s144, %s158
      %p160 = scmp.eq.s32.totalorder %s19, 0
      %p161 = por %p159, %p160
      %s163 = sadd.s32 %s162, 1
      %p166 = scmp.eq.s32.totalorder %s13, 1
      %p167 = scmp.ne.s32.totalorder %s162, %s164
      %p168 = scmp.eq.s32.totalorder %s13, 0
      %p169 = por %p167, %p168
      %p170 = scmp.ne.s32.totalorder %s162, %s164
      %p171 = scmp.eq.s32.totalorder %s18, 1
      %p172 = por %p170, %p171
      %p173 = scmp.ne.s32.totalorder %s164, %s165
      %p174 = scmp.eq.s32.totalorder %s18, 0
      %p175 = por %p173, %p174
      %p176 = scmp.ne.s32.totalorder %s164, %s165
      %p177 = scmp.eq.s32.totalorder %s19, 1
      %p178 = por %p176, %p177
      %p180 = scmp.ne.s32.totalorder %s165, %s179
      %p181 = scmp.eq.s32.totalorder %s19, 0
      %p182 = por %p180, %p181
      %s183 = ssub.s32 %s13, %s20
      %p184 = scmp.eq.s32.totalorder %s183, 0
      %s186 = sadd.s32 %s185, 1
      %s187 = scalar_select %p184, %s185, %s186
      %p190 = pneg %p184
      %p191 = scmp.eq.s32.totalorder %s13, 1
      %p192 = por %p190, %p191
      %p193 = scmp.ne.s32.totalorder %s185, %s188
      %p194 = scmp.eq.s32.totalorder %s13, 0
      %p195 = por %p193, %p194
      %p196 = scmp.ne.s32.totalorder %s185, %s188
      %p197 = scmp.eq.s32.totalorder %s18, 1
      %p198 = por %p196, %p197
      %p199 = scmp.ne.s32.totalorder %s188, %s189
      %p200 = scmp.eq.s32.totalorder %s18, 0
      %p201 = por %p199, %p200
      %p202 = scmp.ne.s32.totalorder %s188, %s189
      %p203 = scmp.eq.s32.totalorder %s19, 1
      %p204 = por %p202, %p203
      %p206 = scmp.ne.s32.totalorder %s189, %s205
      %p207 = scmp.eq.s32.totalorder %s19, 0
      %p208 = por %p206, %p207
      %p209 = scmp.le.s32.totalorder 1, %s13
      %p210 = scmp.lt.s32.totalorder %s13, 3
      %p211 = pnand %p209, %p210
      %p212 = pneg %p211
      // Predicated region
      $region9: #{esa_forward.7} parent=5 // pred_check
        _
      $region10: #{esa_forward.7} parent=5 // pred_check_branch
        %214 = sbr.rel (%p211) target = $region12
      $region11: #{esa_forward.7} parent=5 // pred_region
        %s215 = ssub.s32 %s13, 1
        // Predicated region
        $region13: #{esa_forward.7} parent=11 // pred_check
          %p216 = pneg %p112
        $region14: #{esa_forward.7} parent=11 // pred_check_branch
          %218 = sbr.rel (%p216) target = $region16
        $region15: #{esa_forward.7} parent=11 // pred_region
          _
        $region16: #{esa_forward.7} parent=11 // pred_fallthru
          _
        // Predicated region
        $region17: #{esa_forward.7} parent=11 // pred_check
          %p219 = pneg %p133
        $region18: #{esa_forward.7} parent=11 // pred_check_branch
          %221 = sbr.rel (%p219) target = $region20
        $region19: #{esa_forward.7} parent=11 // pred_region
          _
        $region20: #{esa_forward.7} parent=11 // pred_fallthru
          _
        // Predicated region
        $region21: #{esa_forward.7} parent=11 // pred_check
          %p222 = pneg %p154
        $region22: #{esa_forward.7} parent=11 // pred_check_branch
          %224 = sbr.rel (%p222) target = $region24
        $region23: #{esa_forward.7} parent=11 // pred_region
          _
        $region24: #{esa_forward.7} parent=11 // pred_fallthru
          _
        // Predicated region
        $region25: #{esa_forward.7} parent=11 // pred_check
          %p225 = pneg %p175
        $region26: #{esa_forward.7} parent=11 // pred_check_branch
          %227 = sbr.rel (%p225) target = $region28
        $region27: #{esa_forward.7} parent=11 // pred_region
          _
        $region28: #{esa_forward.7} parent=11 // pred_fallthru
          _
      $region12: #{esa_forward.7} parent=5 // pred_fallthru
        _
      %p228 = scmp.lt.s32.totalorder %s13, 2
      // Predicated region
      $region29: #{esa_forward.7} parent=5 // pred_check
        %p229 = pneg %p228
      $region30: #{esa_forward.7} parent=5 // pred_check_branch
        %231 = sbr.rel (%p229) target = $region32
      $region31: #{esa_forward.7} parent=5 // pred_region
        // Predicated region
        $region33: #{esa_forward.7} parent=31 // pred_check
          %p232 = pneg %p33
        $region34: #{esa_forward.7} parent=31 // pred_check_branch
          %234 = sbr.rel (%p232) target = $region36
        $region35: #{esa_forward.7} parent=31 // pred_region
          %s235 = sand.u32 %s23, 1
          %s236 = sand.u32 %s23, 1
          %s237 = smul.addr %s236, 128
          %s238 = scalar_lea.vmem [#allocation2], %s237
          %s239 = smul.u32 8, %s13
          %s240 = ssub.s32 9, %s239
          %p241 = scmp.lt.s32.totalorder %s240, 8
          %s242 = scalar_select %p241, %s240, 8
          %s243 = smul.u32 256, %s242
          %p244 = scmp.ne.s32.totalorder 0, %s243
          %s245 = smul.addr %s239, 8
          %s246 = scalar_lea.vmem %s0, %s245
          %s247 = smul.u32 %s242, 8
          // Predicated region
          $region37: #{esa_forward.7} parent=35 // pred_check
            %p248 = pneg %p244
          $region38: #{esa_forward.7} parent=35 // pred_check_branch
            %250 = sbr.rel (%p248) target = $region40
          $region39: #{esa_forward.7} parent=35 // pred_region
            %p251 = scmp.lt.u32.totalorder %s247, 8
            %p252 = pneg %p251
            // Predicated region
            $region41: #{esa_forward.7} parent=39 // pred_check
              _
            $region42: #{esa_forward.7} parent=39 // pred_check_branch
              %254 = sbr.rel (%p251) target = $region44
            $region43: #{esa_forward.7} parent=39 // pred_region
              %s272 = sand.u32 %s247, 7
              %p273 = scmp.eq.s32.totalorder %s272, 0
              // Predicated region
              $region56: #{esa_forward.7} parent=43 // pred_check
                %p274 = pneg %p273
              $region57: #{esa_forward.7} parent=43 // pred_check_branch
                %276 = sbr.rel (%p274) target = $region59
              $region58: #{esa_forward.7} parent=43 // pred_region
                %s277 = sshrl.u32 %s247, 3
                %s278 = sshrl.u32 %s277, 5
                // While loop
                $region60: #{esa_forward.7} parent=58 // loop_pre_header
                  _
                $region61: #{esa_forward.7} parent=58 // loop_header
                  %s282 = sphi 0, %s284
                  %p283 = scmp.ge.s32.totalorder %s282, %s278
                  %s287 = sphi 0, %s420
                  %s288 = sphi %s246, %s423
                  %s289 = sphi %s238, %s424
                $region62: #{esa_forward.7} parent=58 // loop_header_branch
                  %286 = sbr.rel (%p283) target = $region66
                $region63: #{esa_forward.7} parent=58 // loop_body
                  %v290 = vld [vmem:[%s288] sm:$0xff]
                  %291 = vst [vmem:[%s289] sm:$0xff] %v290
                  %v292 = vld [vmem:[%s288 + $0x8] sm:$0xff]
                  %293 = vst [vmem:[%s289 + $0x8] sm:$0xff] %v292
                  %v294 = vld [vmem:[%s288 + $0x10] sm:$0xff]
                  %295 = vst [vmem:[%s289 + $0x10] sm:$0xff] %v294
                  %v296 = vld [vmem:[%s288 + $0x18] sm:$0xff]
                  %297 = vst [vmem:[%s289 + $0x18] sm:$0xff] %v296
                  %v298 = vld [vmem:[%s288 + $0x20] sm:$0xff]
                  %299 = vst [vmem:[%s289 + $0x20] sm:$0xff] %v298
                  %v300 = vld [vmem:[%s288 + $0x28] sm:$0xff]
                  %301 = vst [vmem:[%s289 + $0x28] sm:$0xff] %v300
                  %v302 = vld [vmem:[%s288 + $0x30] sm:$0xff]
                  %303 = vst [vmem:[%s289 + $0x30] sm:$0xff] %v302
                  %v304 = vld [vmem:[%s288 + $0x38] sm:$0xff]
                  %305 = vst [vmem:[%s289 + $0x38] sm:$0xff] %v304
                  %v306 = vld [vmem:[%s288 + $0x40] sm:$0xff]
                  %307 = vst [vmem:[%s289 + $0x40] sm:$0xff] %v306
                  %v308 = vld [vmem:[%s288 + $0x48] sm:$0xff]
                  %309 = vst [vmem:[%s289 + $0x48] sm:$0xff] %v308
                  %v310 = vld [vmem:[%s288 + $0x50] sm:$0xff]
                  %311 = vst [vmem:[%s289 + $0x50] sm:$0xff] %v310
                  %v312 = vld [vmem:[%s288 + $0x58] sm:$0xff]
                  %313 = vst [vmem:[%s289 + $0x58] sm:$0xff] %v312
                  %v314 = vld [vmem:[%s288 + $0x60] sm:$0xff]
                  %315 = vst [vmem:[%s289 + $0x60] sm:$0xff] %v314
                  %v316 = vld [vmem:[%s288 + $0x68] sm:$0xff]
                  %317 = vst [vmem:[%s289 + $0x68] sm:$0xff] %v316
                  %v318 = vld [vmem:[%s288 + $0x70] sm:$0xff]
                  %319 = vst [vmem:[%s289 + $0x70] sm:$0xff] %v318
                  %v320 = vld [vmem:[%s288 + $0x78] sm:$0xff]
                  %321 = vst [vmem:[%s289 + $0x78] sm:$0xff] %v320
                  %v322 = vld [vmem:[%s288 + $0x80] sm:$0xff]
                  %323 = vst [vmem:[%s289 + $0x80] sm:$0xff] %v322
                  %v324 = vld [vmem:[%s288 + $0x88] sm:$0xff]
                  %325 = vst [vmem:[%s289 + $0x88] sm:$0xff] %v324
                  %v326 = vld [vmem:[%s288 + $0x90] sm:$0xff]
                  %327 = vst [vmem:[%s289 + $0x90] sm:$0xff] %v326
                  %v328 = vld [vmem:[%s288 + $0x98] sm:$0xff]
                  %329 = vst [vmem:[%s289 + $0x98] sm:$0xff] %v328
                  %v330 = vld [vmem:[%s288 + $0xa0] sm:$0xff]
                  %331 = vst [vmem:[%s289 + $0xa0] sm:$0xff] %v330
                  %v332 = vld [vmem:[%s288 + $0xa8] sm:$0xff]
                  %333 = vst [vmem:[%s289 + $0xa8] sm:$0xff] %v332
                  %v334 = vld [vmem:[%s288 + $0xb0] sm:$0xff]
                  %335 = vst [vmem:[%s289 + $0xb0] sm:$0xff] %v334
                  %v336 = vld [vmem:[%s288 + $0xb8] sm:$0xff]
                  %337 = vst [vmem:[%s289 + $0xb8] sm:$0xff] %v336
                  %v338 = vld [vmem:[%s288 + $0xc0] sm:$0xff]
                  %339 = vst [vmem:[%s289 + $0xc0] sm:$0xff] %v338
                  %v340 = vld [vmem:[%s288 + $0xc8] sm:$0xff]
                  %341 = vst [vmem:[%s289 + $0xc8] sm:$0xff] %v340
                  %v342 = vld [vmem:[%s288 + $0xd0] sm:$0xff]
                  %343 = vst [vmem:[%s289 + $0xd0] sm:$0xff] %v342
                  %v344 = vld [vmem:[%s288 + $0xd8] sm:$0xff]
                  %345 = vst [vmem:[%s289 + $0xd8] sm:$0xff] %v344
                  %v346 = vld [vmem:[%s288 + $0xe0] sm:$0xff]
                  %347 = vst [vmem:[%s289 + $0xe0] sm:$0xff] %v346
                  %v348 = vld [vmem:[%s288 + $0xe8] sm:$0xff]
                  %349 = vst [vmem:[%s289 + $0xe8] sm:$0xff] %v348
                  %v350 = vld [vmem:[%s288 + $0xf0] sm:$0xff]
                  %351 = vst [vmem:[%s289 + $0xf0] sm:$0xff] %v350
                  %v352 = vld [vmem:[%s288 + $0xf8] sm:$0xff]
                  %353 = vst [vmem:[%s289 + $0xf8] sm:$0xff] %v352
                  %v354 = vld [vmem:[%s288 + $0x48] sm:$0xff]
                  %355 = vst [vmem:[%s289 + $0x40] sm:$0xff] %v354
                  %v356 = vld [vmem:[%s288 + $0x50] sm:$0xff]
                  %357 = vst [vmem:[%s289 + $0x48] sm:$0xff] %v356
                  %v358 = vld [vmem:[%s288 + $0x58] sm:$0xff]
                  %359 = vst [vmem:[%s289 + $0x50] sm:$0xff] %v358
                  %v360 = vld [vmem:[%s288 + $0x60] sm:$0xff]
                  %361 = vst [vmem:[%s289 + $0x58] sm:$0xff] %v360
                  %v362 = vld [vmem:[%s288 + $0x68] sm:$0xff]
                  %363 = vst [vmem:[%s289 + $0x60] sm:$0xff] %v362
                  %v364 = vld [vmem:[%s288 + $0x70] sm:$0xff]
                  %365 = vst [vmem:[%s289 + $0x68] sm:$0xff] %v364
                  %v366 = vld [vmem:[%s288 + $0x78] sm:$0xff]
                  %367 = vst [vmem:[%s289 + $0x70] sm:$0xff] %v366
                  %v368 = vld [vmem:[%s288 + $0x80] sm:$0xff]
                  %369 = vst [vmem:[%s289 + $0x78] sm:$0xff] %v368
                  %v370 = vld [vmem:[%s288 + $0x88] sm:$0xff]
                  %371 = vst [vmem:[%s289 + $0x80] sm:$0xff] %v370
                  %v372 = vld [vmem:[%s288 + $0x90] sm:$0xff]
                  %373 = vst [vmem:[%s289 + $0x88] sm:$0xff] %v372
                  %v374 = vld [vmem:[%s288 + $0x98] sm:$0xff]
                  %375 = vst [vmem:[%s289 + $0x90] sm:$0xff] %v374
                  %v376 = vld [vmem:[%s288 + $0xa0] sm:$0xff]
                  %377 = vst [vmem:[%s289 + $0x98] sm:$0xff] %v376
                  %v378 = vld [vmem:[%s288 + $0xa8] sm:$0xff]
                  %379 = vst [vmem:[%s289 + $0xa0] sm:$0xff] %v378
                  %v380 = vld [vmem:[%s288 + $0xb0] sm:$0xff]
                  %381 = vst [vmem:[%s289 + $0xa8] sm:$0xff] %v380
                  %v382 = vld [vmem:[%s288 + $0xb8] sm:$0xff]
                  %383 = vst [vmem:[%s289 + $0xb0] sm:$0xff] %v382
                  %v384 = vld [vmem:[%s288 + $0xc0] sm:$0xff]
                  %385 = vst [vmem:[%s289 + $0xb8] sm:$0xff] %v384
                  %v386 = vld [vmem:[%s288 + $0xc8] sm:$0xff]
                  %387 = vst [vmem:[%s289 + $0xc0] sm:$0xff] %v386
                  %v388 = vld [vmem:[%s288 + $0xd0] sm:$0xff]
                  %389 = vst [vmem:[%s289 + $0xc8] sm:$0xff] %v388
                  %v390 = vld [vmem:[%s288 + $0xd8] sm:$0xff]
                  %391 = vst [vmem:[%s289 + $0xd0] sm:$0xff] %v390
                  %v392 = vld [vmem:[%s288 + $0xe0] sm:$0xff]
                  %393 = vst [vmem:[%s289 + $0xd8] sm:$0xff] %v392
                  %v394 = vld [vmem:[%s288 + $0xe8] sm:$0xff]
                  %395 = vst [vmem:[%s289 + $0xe0] sm:$0xff] %v394
                  %v396 = vld [vmem:[%s288 + $0xf0] sm:$0xff]
                  %397 = vst [vmem:[%s289 + $0xe8] sm:$0xff] %v396
                  %v398 = vld [vmem:[%s288 + $0xf8] sm:$0xff]
                  %399 = vst [vmem:[%s289 + $0xf0] sm:$0xff] %v398
                  %v400 = vld [vmem:[%s288 + $0x100] sm:$0xff]
                  %401 = vst [vmem:[%s289 + $0xf8] sm:$0xff] %v400
                  %v402 = vld [vmem:[%s288 + $0x108] sm:$0xff]
                  %403 = vst [vmem:[%s289 + $0x100] sm:$0xff] %v402
                  %v404 = vld [vmem:[%s288 + $0x110] sm:$0xff]
                  %405 = vst [vmem:[%s289 + $0x108] sm:$0xff] %v404
                  %v406 = vld [vmem:[%s288 + $0x118] sm:$0xff]
                  %407 = vst [vmem:[%s289 + $0x110] sm:$0xff] %v406
                  %v408 = vld [vmem:[%s288 + $0x120] sm:$0xff]
                  %409 = vst [vmem:[%s289 + $0x118] sm:$0xff] %v408
                  %v410 = vld [vmem:[%s288 + $0x128] sm:$0xff]
                  %411 = vst [vmem:[%s289 + $0x120] sm:$0xff] %v410
                  %v412 = vld [vmem:[%s288 + $0x130] sm:$0xff]
                  %413 = vst [vmem:[%s289 + $0x128] sm:$0xff] %v412
                  %v414 = vld [vmem:[%s288 + $0x138] sm:$0xff]
                  %415 = vst [vmem:[%s289 + $0x130] sm:$0xff] %v414
                  %v416 = vld [vmem:[%s288 + $0x140] sm:$0xff]
                  %417 = vst [vmem:[%s289 + $0x138] sm:$0xff] %v416
                  %s418 = sadd.s32 1, %s287
                  %p419 = scmp.ge.s32.totalorder %s418, %s278
                  %s420 = scalar_select %p419, 0, %s418
                  %s421 = smul.u32 %s420, 256
                  %s422 = smul.u32 %s420, 256
                  %s423 = scalar_lea.vmem %s246, %s421
                  %s424 = scalar_lea.vmem %s238, %s422 [#allocation2]
                $region64: #{esa_forward.7} parent=58 // loop_footer
                  %s284 = sadd.s32 %s282, 1
                $region65: #{esa_forward.7} parent=58 // loop_footer_branch
                  %281 = sbr.rel target = $region61
                $region66: #{esa_forward.7} parent=58 // loop_exit
                  _
                %s425 = sshrl.u32 %s277, 5
                %s426 = sand.u32 %s277, 31
                %s427 = smul.u32 %s425, 32
                %s428 = smul.u32 128, %s427
                %s429 = sshra.s32 %s428, 4
                %s430 = scalar_lea.vmem %s246, %s429
                %s431 = smul.u32 128, %s427
                %s432 = sshra.s32 %s431, 4
                %s433 = scalar_lea.vmem %s238, %s432 [#allocation2]
                // While loop
                $region67: #{esa_forward.7} parent=58 // loop_pre_header
                  _
                $region68: #{esa_forward.7} parent=58 // loop_header
                  %s437 = sphi 0, %s439
                  %p438 = scmp.ge.s32.totalorder %s437, %s426
                  %s442 = sphi 0, %s451
                  %s443 = sphi %s430, %s454
                  %s444 = sphi %s433, %s455
                $region69: #{esa_forward.7} parent=58 // loop_header_branch
                  %441 = sbr.rel (%p438) target = $region73
                $region70: #{esa_forward.7} parent=58 // loop_body
                  %v445 = vld [vmem:[%s443] sm:$0xff]
                  %446 = vst [vmem:[%s444] sm:$0xff] %v445
                  %v447 = vld [vmem:[%s443 + $0x48] sm:$0xff]
                  %448 = vst [vmem:[%s444 + $0x40] sm:$0xff] %v447
                  %s449 = sadd.s32 1, %s442
                  %p450 = scmp.ge.s32.totalorder %s449, %s426
                  %s451 = scalar_select %p450, 0, %s449
                  %s452 = smul.u32 %s451, 8
                  %s453 = smul.u32 %s451, 8
                  %s454 = scalar_lea.vmem %s430, %s452
                  %s455 = scalar_lea.vmem %s433, %s453 [#allocation2]
                $region71: #{esa_forward.7} parent=58 // loop_footer
                  %s439 = sadd.s32 %s437, 1
                $region72: #{esa_forward.7} parent=58 // loop_footer_branch
                  %436 = sbr.rel target = $region68
                $region73: #{esa_forward.7} parent=58 // loop_exit
                  _
              $region59: #{esa_forward.7} parent=43 // pred_fallthru
                _
              %p456 = pneg %p273
              // Predicated region
              $region74: #{esa_forward.7} parent=43 // pred_check
                _
              $region75: #{esa_forward.7} parent=43 // pred_check_branch
                %458 = sbr.rel (%p273) target = $region77
              $region76: #{esa_forward.7} parent=43 // pred_region
                %s459 = sand.u32 %s247, 7
                %s460 = ssub.s32 %s247, %s459
                %s461 = scalar_lea.vmem %s246, %s460
                %s462 = ssub.s32 %s247, %s459
                %s463 = scalar_lea.vmem %s238, %s462 [#allocation2]
                %s464 = sshrl.u32 %s247, 3
                %s465 = sshrl.u32 %s464, 5
                // While loop
                $region78: #{esa_forward.7} parent=76 // loop_pre_header
                  _
                $region79: #{esa_forward.7} parent=76 // loop_header
                  %s469 = sphi 0, %s471
                  %p470 = scmp.ge.s32.totalorder %s469, %s465
                  %s474 = sphi 0, %s607
                  %s475 = sphi %s246, %s610
                  %s476 = sphi %s238, %s611
                $region80: #{esa_forward.7} parent=76 // loop_header_branch
                  %473 = sbr.rel (%p470) target = $region84
                $region81: #{esa_forward.7} parent=76 // loop_body
                  %v477 = vld [vmem:[%s475] sm:$0xff]
                  %478 = vst [vmem:[%s476] sm:$0xff] %v477
                  %v479 = vld [vmem:[%s475 + $0x8] sm:$0xff]
                  %480 = vst [vmem:[%s476 + $0x8] sm:$0xff] %v479
                  %v481 = vld [vmem:[%s475 + $0x10] sm:$0xff]
                  %482 = vst [vmem:[%s476 + $0x10] sm:$0xff] %v481
                  %v483 = vld [vmem:[%s475 + $0x18] sm:$0xff]
                  %484 = vst [vmem:[%s476 + $0x18] sm:$0xff] %v483
                  %v485 = vld [vmem:[%s475 + $0x20] sm:$0xff]
                  %486 = vst [vmem:[%s476 + $0x20] sm:$0xff] %v485
                  %v487 = vld [vmem:[%s475 + $0x28] sm:$0xff]
                  %488 = vst [vmem:[%s476 + $0x28] sm:$0xff] %v487
                  %v489 = vld [vmem:[%s475 + $0x30] sm:$0xff]
                  %490 = vst [vmem:[%s476 + $0x30] sm:$0xff] %v489
                  %v491 = vld [vmem:[%s475 + $0x38] sm:$0xff]
                  %492 = vst [vmem:[%s476 + $0x38] sm:$0xff] %v491
                  %v493 = vld [vmem:[%s475 + $0x40] sm:$0xff]
                  %494 = vst [vmem:[%s476 + $0x40] sm:$0xff] %v493
                  %v495 = vld [vmem:[%s475 + $0x48] sm:$0xff]
                  %496 = vst [vmem:[%s476 + $0x48] sm:$0xff] %v495
                  %v497 = vld [vmem:[%s475 + $0x50] sm:$0xff]
                  %498 = vst [vmem:[%s476 + $0x50] sm:$0xff] %v497
                  %v499 = vld [vmem:[%s475 + $0x58] sm:$0xff]
                  %500 = vst [vmem:[%s476 + $0x58] sm:$0xff] %v499
                  %v501 = vld [vmem:[%s475 + $0x60] sm:$0xff]
                  %502 = vst [vmem:[%s476 + $0x60] sm:$0xff] %v501
                  %v503 = vld [vmem:[%s475 + $0x68] sm:$0xff]
                  %504 = vst [vmem:[%s476 + $0x68] sm:$0xff] %v503
                  %v505 = vld [vmem:[%s475 + $0x70] sm:$0xff]
                  %506 = vst [vmem:[%s476 + $0x70] sm:$0xff] %v505
                  %v507 = vld [vmem:[%s475 + $0x78] sm:$0xff]
                  %508 = vst [vmem:[%s476 + $0x78] sm:$0xff] %v507
                  %v509 = vld [vmem:[%s475 + $0x80] sm:$0xff]
                  %510 = vst [vmem:[%s476 + $0x80] sm:$0xff] %v509
                  %v511 = vld [vmem:[%s475 + $0x88] sm:$0xff]
                  %512 = vst [vmem:[%s476 + $0x88] sm:$0xff] %v511
                  %v513 = vld [vmem:[%s475 + $0x90] sm:$0xff]
                  %514 = vst [vmem:[%s476 + $0x90] sm:$0xff] %v513
                  %v515 = vld [vmem:[%s475 + $0x98] sm:$0xff]
                  %516 = vst [vmem:[%s476 + $0x98] sm:$0xff] %v515
                  %v517 = vld [vmem:[%s475 + $0xa0] sm:$0xff]
                  %518 = vst [vmem:[%s476 + $0xa0] sm:$0xff] %v517
                  %v519 = vld [vmem:[%s475 + $0xa8] sm:$0xff]
                  %520 = vst [vmem:[%s476 + $0xa8] sm:$0xff] %v519
                  %v521 = vld [vmem:[%s475 + $0xb0] sm:$0xff]
                  %522 = vst [vmem:[%s476 + $0xb0] sm:$0xff] %v521
                  %v523 = vld [vmem:[%s475 + $0xb8] sm:$0xff]
                  %524 = vst [vmem:[%s476 + $0xb8] sm:$0xff] %v523
                  %v525 = vld [vmem:[%s475 + $0xc0] sm:$0xff]
                  %526 = vst [vmem:[%s476 + $0xc0] sm:$0xff] %v525
                  %v527 = vld [vmem:[%s475 + $0xc8] sm:$0xff]
                  %528 = vst [vmem:[%s476 + $0xc8] sm:$0xff] %v527
                  %v529 = vld [vmem:[%s475 + $0xd0] sm:$0xff]
                  %530 = vst [vmem:[%s476 + $0xd0] sm:$0xff] %v529
                  %v531 = vld [vmem:[%s475 + $0xd8] sm:$0xff]
                  %532 = vst [vmem:[%s476 + $0xd8] sm:$0xff] %v531
                  %v533 = vld [vmem:[%s475 + $0xe0] sm:$0xff]
                  %534 = vst [vmem:[%s476 + $0xe0] sm:$0xff] %v533
                  %v535 = vld [vmem:[%s475 + $0xe8] sm:$0xff]
                  %536 = vst [vmem:[%s476 + $0xe8] sm:$0xff] %v535
                  %v537 = vld [vmem:[%s475 + $0xf0] sm:$0xff]
                  %538 = vst [vmem:[%s476 + $0xf0] sm:$0xff] %v537
                  %v539 = vld [vmem:[%s475 + $0xf8] sm:$0xff]
                  %540 = vst [vmem:[%s476 + $0xf8] sm:$0xff] %v539
                  %v541 = vld [vmem:[%s475 + $0x48] sm:$0xff]
                  %542 = vst [vmem:[%s476 + $0x40] sm:$0xff] %v541
                  %v543 = vld [vmem:[%s475 + $0x50] sm:$0xff]
                  %544 = vst [vmem:[%s476 + $0x48] sm:$0xff] %v543
                  %v545 = vld [vmem:[%s475 + $0x58] sm:$0xff]
                  %546 = vst [vmem:[%s476 + $0x50] sm:$0xff] %v545
                  %v547 = vld [vmem:[%s475 + $0x60] sm:$0xff]
                  %548 = vst [vmem:[%s476 + $0x58] sm:$0xff] %v547
                  %v549 = vld [vmem:[%s475 + $0x68] sm:$0xff]
                  %550 = vst [vmem:[%s476 + $0x60] sm:$0xff] %v549
                  %v551 = vld [vmem:[%s475 + $0x70] sm:$0xff]
                  %552 = vst [vmem:[%s476 + $0x68] sm:$0xff] %v551
                  %v553 = vld [vmem:[%s475 + $0x78] sm:$0xff]
                  %554 = vst [vmem:[%s476 + $0x70] sm:$0xff] %v553
                  %v555 = vld [vmem:[%s475 + $0x80] sm:$0xff]
                  %556 = vst [vmem:[%s476 + $0x78] sm:$0xff] %v555
                  %v557 = vld [vmem:[%s475 + $0x88] sm:$0xff]
                  %558 = vst [vmem:[%s476 + $0x80] sm:$0xff] %v557
                  %v559 = vld [vmem:[%s475 + $0x90] sm:$0xff]
                  %560 = vst [vmem:[%s476 + $0x88] sm:$0xff] %v559
                  %v561 = vld [vmem:[%s475 + $0x98] sm:$0xff]
                  %562 = vst [vmem:[%s476 + $0x90] sm:$0xff] %v561
                  %v563 = vld [vmem:[%s475 + $0xa0] sm:$0xff]
                  %564 = vst [vmem:[%s476 + $0x98] sm:$0xff] %v563
                  %v565 = vld [vmem:[%s475 + $0xa8] sm:$0xff]
                  %566 = vst [vmem:[%s476 + $0xa0] sm:$0xff] %v565
                  %v567 = vld [vmem:[%s475 + $0xb0] sm:$0xff]
                  %568 = vst [vmem:[%s476 + $0xa8] sm:$0xff] %v567
                  %v569 = vld [vmem:[%s475 + $0xb8] sm:$0xff]
                  %570 = vst [vmem:[%s476 + $0xb0] sm:$0xff] %v569
                  %v571 = vld [vmem:[%s475 + $0xc0] sm:$0xff]
                  %572 = vst [vmem:[%s476 + $0xb8] sm:$0xff] %v571
                  %v573 = vld [vmem:[%s475 + $0xc8] sm:$0xff]
                  %574 = vst [vmem:[%s476 + $0xc0] sm:$0xff] %v573
                  %v575 = vld [vmem:[%s475 + $0xd0] sm:$0xff]
                  %576 = vst [vmem:[%s476 + $0xc8] sm:$0xff] %v575
                  %v577 = vld [vmem:[%s475 + $0xd8] sm:$0xff]
                  %578 = vst [vmem:[%s476 + $0xd0] sm:$0xff] %v577
                  %v579 = vld [vmem:[%s475 + $0xe0] sm:$0xff]
                  %580 = vst [vmem:[%s476 + $0xd8] sm:$0xff] %v579
                  %v581 = vld [vmem:[%s475 + $0xe8] sm:$0xff]
                  %582 = vst [vmem:[%s476 + $0xe0] sm:$0xff] %v581
                  %v583 = vld [vmem:[%s475 + $0xf0] sm:$0xff]
                  %584 = vst [vmem:[%s476 + $0xe8] sm:$0xff] %v583
                  %v585 = vld [vmem:[%s475 + $0xf8] sm:$0xff]
                  %586 = vst [vmem:[%s476 + $0xf0] sm:$0xff] %v585
                  %v587 = vld [vmem:[%s475 + $0x100] sm:$0xff]
                  %588 = vst [vmem:[%s476 + $0xf8] sm:$0xff] %v587
                  %v589 = vld [vmem:[%s475 + $0x108] sm:$0xff]
                  %590 = vst [vmem:[%s476 + $0x100] sm:$0xff] %v589
                  %v591 = vld [vmem:[%s475 + $0x110] sm:$0xff]
                  %592 = vst [vmem:[%s476 + $0x108] sm:$0xff] %v591
                  %v593 = vld [vmem:[%s475 + $0x118] sm:$0xff]
                  %594 = vst [vmem:[%s476 + $0x110] sm:$0xff] %v593
                  %v595 = vld [vmem:[%s475 + $0x120] sm:$0xff]
                  %596 = vst [vmem:[%s476 + $0x118] sm:$0xff] %v595
                  %v597 = vld [vmem:[%s475 + $0x128] sm:$0xff]
                  %598 = vst [vmem:[%s476 + $0x120] sm:$0xff] %v597
                  %v599 = vld [vmem:[%s475 + $0x130] sm:$0xff]
                  %600 = vst [vmem:[%s476 + $0x128] sm:$0xff] %v599
                  %v601 = vld [vmem:[%s475 + $0x138] sm:$0xff]
                  %602 = vst [vmem:[%s476 + $0x130] sm:$0xff] %v601
                  %v603 = vld [vmem:[%s475 + $0x140] sm:$0xff]
                  %604 = vst [vmem:[%s476 + $0x138] sm:$0xff] %v603
                  %s605 = sadd.s32 1, %s474
                  %p606 = scmp.ge.s32.totalorder %s605, %s465
                  %s607 = scalar_select %p606, 0, %s605
                  %s608 = smul.u32 %s607, 256
                  %s609 = smul.u32 %s607, 256
                  %s610 = scalar_lea.vmem %s246, %s608
                  %s611 = scalar_lea.vmem %s238, %s609 [#allocation2]
                $region82: #{esa_forward.7} parent=76 // loop_footer
                  %s471 = sadd.s32 %s469, 1
                $region83: #{esa_forward.7} parent=76 // loop_footer_branch
                  %468 = sbr.rel target = $region79
                $region84: #{esa_forward.7} parent=76 // loop_exit
                  _
                %s612 = sshrl.u32 %s464, 5
                %s613 = sand.u32 %s464, 31
                %s614 = smul.u32 %s612, 32
                %s615 = smul.u32 128, %s614
                %s616 = sshra.s32 %s615, 4
                %s617 = scalar_lea.vmem %s246, %s616
                %s618 = smul.u32 128, %s614
                %s619 = sshra.s32 %s618, 4
                %s620 = scalar_lea.vmem %s238, %s619 [#allocation2]
                // While loop
                $region85: #{esa_forward.7} parent=76 // loop_pre_header
                  _
                $region86: #{esa_forward.7} parent=76 // loop_header
                  %s624 = sphi 0, %s626
                  %p625 = scmp.ge.s32.totalorder %s624, %s613
                  %s629 = sphi 0, %s638
                  %s630 = sphi %s617, %s641
                  %s631 = sphi %s620, %s642
                $region87: #{esa_forward.7} parent=76 // loop_header_branch
                  %628 = sbr.rel (%p625) target = $region91
                $region88: #{esa_forward.7} parent=76 // loop_body
                  %v632 = vld [vmem:[%s630] sm:$0xff]
                  %633 = vst [vmem:[%s631] sm:$0xff] %v632
                  %v634 = vld [vmem:[%s630 + $0x48] sm:$0xff]
                  %635 = vst [vmem:[%s631 + $0x40] sm:$0xff] %v634
                  %s636 = sadd.s32 1, %s629
                  %p637 = scmp.ge.s32.totalorder %s636, %s613
                  %s638 = scalar_select %p637, 0, %s636
                  %s639 = smul.u32 %s638, 8
                  %s640 = smul.u32 %s638, 8
                  %s641 = scalar_lea.vmem %s617, %s639
                  %s642 = scalar_lea.vmem %s620, %s640 [#allocation2]
                $region89: #{esa_forward.7} parent=76 // loop_footer
                  %s626 = sadd.s32 %s624, 1
                $region90: #{esa_forward.7} parent=76 // loop_footer_branch
                  %623 = sbr.rel target = $region86
                $region91: #{esa_forward.7} parent=76 // loop_exit
                  _
                %s643 = sshll.u32 1, %s459
                %s644 = ssub.s32 %s643, 1
                loop: start=0, step=1, limit=1
                $region92: #{esa_forward.7} parent=76 // loop_pre_header
                  _
                $region93: #{esa_forward.7} parent=76 // loop_header
                  %s646 = sphi 0, %s650
                  %p647 = scmp.ge.s32.totalorder %s646, 1
                  %s651 = sphi %s461, %s461
                  %s652 = sphi %s463, %s463
                $region94: #{esa_forward.7} parent=76 // loop_header_branch
                  %649 = sbr.rel (%p647) target = $region98
                $region95: #{esa_forward.7} parent=76 // loop_body
                  %v653 = vld [vmem:[%s651] sm:%s644]
                  %654 = vst [vmem:[%s652] sm:%s644] %v653
                  %v655 = vld [vmem:[%s651 + $0x48] sm:%s644]
                  %656 = vst [vmem:[%s652 + $0x40] sm:%s644] %v655
                $region96: #{esa_forward.7} parent=76 // loop_footer
                  %s650 = sadd.s32 1, %s646
                $region97: #{esa_forward.7} parent=76 // loop_footer_branch
                  %645 = sbr.rel target = $region93
                $region98: #{esa_forward.7} parent=76 // loop_exit
                  _
              $region77: #{esa_forward.7} parent=43 // pred_fallthru
                _
            $region44: #{esa_forward.7} parent=39 // pred_fallthru
              _
            // Predicated region
            $region45: #{esa_forward.7} parent=39 // pred_check
              %p255 = pneg %p251
            $region46: #{esa_forward.7} parent=39 // pred_check_branch
              %257 = sbr.rel (%p255) target = $region48
            $region47: #{esa_forward.7} parent=39 // pred_region
              %s258 = sshll.u32 1, %s247
              %s259 = ssub.s32 %s258, 1
              loop: start=0, step=1, limit=1
              $region49: #{esa_forward.7} parent=47 // loop_pre_header
                _
              $region50: #{esa_forward.7} parent=47 // loop_header
                %s261 = sphi 0, %s265
                %p262 = scmp.ge.s32.totalorder %s261, 1
                %s266 = sphi %s246, %s246
                %s267 = sphi %s238, %s238
              $region51: #{esa_forward.7} parent=47 // loop_header_branch
                %264 = sbr.rel (%p262) target = $region55
              $region52: #{esa_forward.7} parent=47 // loop_body
                %v268 = vld [vmem:[%s266] sm:%s259]
                %269 = vst [vmem:[%s267] sm:%s259] %v268
                %v270 = vld [vmem:[%s266 + $0x48] sm:%s259]
                %271 = vst [vmem:[%s267 + $0x40] sm:%s259] %v270
              $region53: #{esa_forward.7} parent=47 // loop_footer
                %s265 = sadd.s32 1, %s261
              $region54: #{esa_forward.7} parent=47 // loop_footer_branch
                %260 = sbr.rel target = $region50
              $region55: #{esa_forward.7} parent=47 // loop_exit
                _
            $region48: #{esa_forward.7} parent=39 // pred_fallthru
              _
          $region40: #{esa_forward.7} parent=35 // pred_fallthru
            _
          %657 = vnop
        $region36: #{esa_forward.7} parent=31 // pred_fallthru
          _
        // Predicated region
        $region99: #{esa_forward.7} parent=31 // pred_check
          %p658 = pneg %p59
        $region100: #{esa_forward.7} parent=31 // pred_check_branch
          %660 = sbr.rel (%p658) target = $region102
        $region101: #{esa_forward.7} parent=31 // pred_region
          %s661 = smul.u32 8, %s13
          %s662 = ssub.s32 9, %s661
          %p663 = scmp.lt.s32.totalorder %s662, 8
          %s664 = scalar_select %p663, %s662, 8
          %s665 = smul.u32 64, %s664
          %p666 = scmp.lt.s32.totalorder %s661, 8
          %s667 = scalar_select %p666, %s661, 8
          %s668 = smul.addr %s667, 4
          %s669 = scalar_lea.vmem %s1, %s668
          %s670 = smul.u32 8, %s13
          %s671 = ssub.s32 9, %s670
          %p672 = scmp.lt.s32.totalorder %s671, 8
          %s673 = scalar_select %p672, %s671, 8
          %s674 = smul.u32 64, %s673
        $region102: #{esa_forward.7} parent=31 // pred_fallthru
          _
        // Predicated region
        $region103: #{esa_forward.7} parent=31 // pred_check
          %p675 = pneg %p85
        $region104: #{esa_forward.7} parent=31 // pred_check_branch
          %677 = sbr.rel (%p675) target = $region106
        $region105: #{esa_forward.7} parent=31 // pred_region
          %s678 = smul.u32 8, %s13
          %s679 = ssub.s32 9, %s678
          %p680 = scmp.lt.s32.totalorder %s679, 8
          %s681 = scalar_select %p680, %s679, 8
          %s682 = smul.u32 32, %s681
          %p683 = scmp.lt.s32.totalorder %s678, 8
          %s684 = scalar_select %p683, %s678, 8
          %s685 = smul.addr %s684, 2
          %s686 = scalar_lea.vmem %s2, %s685
          %s687 = smul.u32 8, %s13
          %s688 = ssub.s32 9, %s687
          %p689 = scmp.lt.s32.totalorder %s688, 8
          %s690 = scalar_select %p689, %s688, 8
          %s691 = smul.u32 32, %s690
        $region106: #{esa_forward.7} parent=31 // pred_fallthru
          _
      $region32: #{esa_forward.7} parent=5 // pred_fallthru
        _
      %p692 = scmp.le.s32.totalorder 1, %s13
      %p693 = scmp.lt.s32.totalorder %s13, 3
      %p694 = pnand %p692, %p693
      %p695 = pneg %p694
      // Predicated region
      $region107: #{esa_forward.7} parent=5 // pred_check
        _
      $region108: #{esa_forward.7} parent=5 // pred_check_branch
        %697 = sbr.rel (%p694) target = $region110
      $region109: #{esa_forward.7} parent=5 // pred_region
        %s698 = ssub.s32 %s13, 1
        %s699 = sand.u32 %s26, 1
        %s700 = sand.u32 %s26, 1
        %s701 = smul.addr %s700, 128
        %s702 = scalar_lea.vmem [#allocation2], %s701
        // Predicated region
        $region111: #{esa_forward.7} parent=109 // pred_check
          %p703 = pneg %p39
        $region112: #{esa_forward.7} parent=109 // pred_check_branch
          %705 = sbr.rel (%p703) target = $region114
        $region113: #{esa_forward.7} parent=109 // pred_region
          _
        $region114: #{esa_forward.7} parent=109 // pred_fallthru
          _
        %s706 = sand.u32 %s26, 1
        %s707 = sand.u32 %s26, 1
        %s708 = smul.addr %s707, 128
        %s709 = scalar_lea.vmem [#allocation2], %s708
        %p710 = pneg %p39
        %p711 = pneg %p36
        %s712 = smul.u32 8, %s18
        %s713 = ssub.s32 9, %s712
        %p714 = scmp.lt.s32.totalorder %s713, 8
        %s715 = scalar_select %p714, %s713, 8
        %s716 = smul.u32 64, %s715
        %p717 = scmp.lt.s32.totalorder %s712, 8
        %s718 = scalar_select %p717, %s712, 8
        %s719 = smul.addr %s718, 4
        %s720 = scalar_lea.vmem %s1, %s719
        %p721 = pneg %p65
        %p722 = pneg %p62
        %s723 = smul.u32 8, %s18
        %s724 = ssub.s32 9, %s723
        %p725 = scmp.lt.s32.totalorder %s724, 8
        %s726 = scalar_select %p725, %s724, 8
        %s727 = smul.u32 32, %s726
        %p728 = scmp.lt.s32.totalorder %s723, 8
        %s729 = scalar_select %p728, %s723, 8
        %s730 = smul.addr %s729, 2
        %s731 = scalar_lea.vmem %s2, %s730
        %p732 = pneg %p91
        %p733 = pneg %p88
        %p734 = pneg %p112
        %p735 = pneg %p109
        %p736 = pneg %p133
        %p737 = pneg %p130
        %p738 = pneg %p154
        %p739 = pneg %p151
        %p740 = pneg %p175
        %p741 = pneg %p172
        %p742 = pneg %p201
        %p743 = pneg %p198
        %s744 = sand.u32 %s188, 1
        %s745 = sand.u32 %s188, 1
        %s746 = smul.addr %s745, 128
        %s747 = scalar_lea.vmem [#allocation3], %s746
        %s748 = smul.u32 8, %s18
        %s749 = ssub.s32 9, %s748
        %p750 = scmp.lt.s32.totalorder %s749, 8
        %s751 = scalar_select %p750, %s749, 8
        %s752 = smul.u32 256, %s751
        %s753 = smul.u32 8, %s18
        %s754 = ssub.s32 9, %s753
        %p755 = scmp.lt.s32.totalorder %s754, 8
        %s756 = scalar_select %p755, %s754, 8
        %s757 = smul.u32 64, %s756
        %p758 = scmp.lt.s32.totalorder %s753, 8
        %s759 = scalar_select %p758, %s753, 8
        %s760 = smul.addr %s759, 4
        %s761 = scalar_lea.vmem %s1, %s760
        %s762 = smul.u32 8, %s18
        %s763 = ssub.s32 9, %s762
        %p764 = scmp.lt.s32.totalorder %s763, 8
        %s765 = scalar_select %p764, %s763, 8
        %s766 = smul.u32 64, %s765
        %s767 = smul.u32 8, %s18
        %s768 = ssub.s32 9, %s767
        %p769 = scmp.lt.s32.totalorder %s768, 8
        %s770 = scalar_select %p769, %s768, 8
        %s771 = smul.u32 32, %s770
        %p772 = scmp.lt.s32.totalorder %s767, 8
        %s773 = scalar_select %p772, %s767, 8
        %s774 = smul.addr %s773, 2
        %s775 = scalar_lea.vmem %s2, %s774
        %s776 = smul.u32 8, %s18
        %s777 = ssub.s32 9, %s776
        %p778 = scmp.lt.s32.totalorder %s777, 8
        %s779 = scalar_select %p778, %s777, 8
        %s780 = smul.u32 32, %s779
        %s781 = smul.u32 8, %s18
        %s782 = ssub.s32 9, %s781
        %p783 = scmp.lt.s32.totalorder %s782, 8
        %s784 = scalar_select %p783, %s782, 8
        %s785 = smul.u32 256, %s784
        %v787 = vld [vmem:[%s3] sm:$0x3]
        %v788 = vld [vmem:[%s775] sm:$0xff]
        %v789 = vld [vmem:[%s775 + $0x8] sm:$0xff]
        %v790 = vld [vmem:[%s4] sm:$0xf]
        %792 = vset.pattern.permute.xlu0 0
        %793 = vperm.xlu0 %792, %v790
        %v794 = vpop.permute.xlu0 %793
        %v798 = vcombine.high %v788, %v788
        %v800 = vunpack.c.l.s4 1983009808
        %v801 = vunpack.c.0.s8 %v800
        %v802 = vlaneseq
        %v803 = vshrl.u32 %v802, 7
        %v804 = vsub.s32 %v801, %v803
        %v805 = vrot.slane %v788, %v804
        %v807 = vunpack.c.l.s4 1983009808
        %v808 = vunpack.c.0.s8 %v807
        %v809 = vlaneseq
        %v810 = vshrl.u32 %v809, 7
        %v811 = vsub.s32 %v808, %v810
        %v812 = vrot.slane %v798, %v811
        %v813 = vcombine.high %v805, %v805
        %v814 = vcombine.high %v812, %v812
        %v815 = vcombine.high %v789, %v789
        %v817 = vunpack.c.l.s4 1983009808
        %v818 = vunpack.c.0.s8 %v817
        %v819 = vlaneseq
        %v820 = vshrl.u32 %v819, 7
        %v821 = vsub.s32 %v818, %v820
        %v822 = vrot.slane %v789, %v821
        %v824 = vunpack.c.l.s4 1983009808
        %v825 = vunpack.c.0.s8 %v824
        %v826 = vlaneseq
        %v827 = vshrl.u32 %v826, 7
        %v828 = vsub.s32 %v825, %v827
        %v829 = vrot.slane %v815, %v828
        %v830 = vcombine.high %v822, %v822
        %v831 = vcombine.high %v829, %v829
        %vm832 = vcmask 31744
        %v834 = vsel %vm832, %v787, 0
        %vm836 = vcmask 1041408
        %v838 = vsel %vm836, %v805, 0
        %v841 = vsel %vm836, %v813, 0
        %v844 = vsel %vm836, %v812, 0
        %v847 = vsel %vm836, %v814, 0
        %v850 = vsel %vm836, %v822, 0
        %v853 = vsel %vm836, %v830, 0
        %v856 = vsel %vm836, %v829, 0
        %v859 = vsel %vm836, %v831, 0
        %861 = vmatprep.subr.bf16.mxu0 0
        %862 = vmatpush1.bf16.msra.mxu0 0
        %863 = vmatprep.subr.bf16.mxu0 0
        %864 = vmatpush1.bf16.msra.mxu0 0
        %865 = vmatprep.subr.bf16.mxu0 0
        %866 = vmatpush1.bf16.msra.mxu0 0
        %867 = vmatprep.subr.bf16.mxu0 0
        %868 = vmatpush1.bf16.msra.mxu0 0
        %869 = vmatprep.subr.bf16.mxu0 0
        %870 = vmatpush1.bf16.msra.mxu0 0
        %871 = vmatprep.subr.bf16.mxu0 0
        %872 = vmatpush1.bf16.msra.mxu0 0
        %873 = vmatprep.subr.bf16.mxu0 0
        %874 = vmatpush1.bf16.msra.mxu0 0
        %875 = vmatprep.subr.bf16.mxu0 %v841
        %876 = vmatpush1.bf16.msra.mxu0 %v838
        %877 = vmatprep.subr.bf16.mxu0 0
        %878 = vmatpush2.bf16.msra.mxu0 0
        %879 = vmatprep.subr.bf16.mxu0 0
        %880 = vmatpush2.bf16.msra.mxu0 0
        %881 = vmatprep.subr.bf16.mxu0 0
        %882 = vmatpush2.bf16.msra.mxu0 0
        %883 = vmatprep.subr.bf16.mxu0 0
        %884 = vmatpush2.bf16.msra.mxu0 0
        %885 = vmatprep.subr.bf16.mxu0 0
        %886 = vmatpush2.bf16.msra.mxu0 0
        %887 = vmatprep.subr.bf16.mxu0 0
        %888 = vmatpush2.bf16.msra.mxu0 0
        %889 = vmatprep.subr.bf16.mxu0 0
        %890 = vmatpush2.bf16.msra.mxu0 0
        %891 = vmatprep.subr.bf16.mxu0 0
        %892 = vmatpush2.bf16.msra.mxu0 0
        %893 = vmatprep.mubr.bf16.mxu0 0
        %894 = vmatmul.mubr.bf16.gmra.mxu0 %v834
        %v895 = vpop.f32.mrf.mxu0
        %v896 = vadd.f32 %v794, %v895
        %v897 = vpop.f32.mrf.mxu0
        %v898 = vadd.f32 %v794, %v897
        %v899 = vpop.f32.mrf.mxu0
        %v900 = vpop.f32.mrf.mxu0
        %901 = vdwg.mxu0
        %902 = vmatprep.subr.bf16.mxu0 0
        %903 = vmatpush1.bf16.msra.mxu0 0
        %904 = vmatprep.subr.bf16.mxu0 0
        %905 = vmatpush1.bf16.msra.mxu0 0
        %906 = vmatprep.subr.bf16.mxu0 0
        %907 = vmatpush1.bf16.msra.mxu0 0
        %908 = vmatprep.subr.bf16.mxu0 0
        %909 = vmatpush1.bf16.msra.mxu0 0
        %910 = vmatprep.subr.bf16.mxu0 0
        %911 = vmatpush1.bf16.msra.mxu0 0
        %912 = vmatprep.subr.bf16.mxu0 0
        %913 = vmatpush1.bf16.msra.mxu0 0
        %914 = vmatprep.subr.bf16.mxu0 0
        %915 = vmatpush1.bf16.msra.mxu0 0
        %916 = vmatprep.subr.bf16.mxu0 %v847
        %917 = vmatpush1.bf16.msra.mxu0 %v844
        %918 = vmatprep.subr.bf16.mxu0 0
        %919 = vmatpush2.bf16.msra.mxu0 0
        %920 = vmatprep.subr.bf16.mxu0 0
        %921 = vmatpush2.bf16.msra.mxu0 0
        %922 = vmatprep.subr.bf16.mxu0 0
        %923 = vmatpush2.bf16.msra.mxu0 0
        %924 = vmatprep.subr.bf16.mxu0 0
        %925 = vmatpush2.bf16.msra.mxu0 0
        %926 = vmatprep.subr.bf16.mxu0 0
        %927 = vmatpush2.bf16.msra.mxu0 0
        %928 = vmatprep.subr.bf16.mxu0 0
        %929 = vmatpush2.bf16.msra.mxu0 0
        %930 = vmatprep.subr.bf16.mxu0 0
        %931 = vmatpush2.bf16.msra.mxu0 0
        %932 = vmatprep.subr.bf16.mxu0 0
        %933 = vmatpush2.bf16.msra.mxu0 0
        %934 = vmatprep.mubr.bf16.mxu0 0
        %935 = vmatmul.mubr.bf16.gmra.mxu0 %v834
        %v936 = vpop.f32.mrf.mxu0
        %v937 = vadd.f32 %v794, %v936
        %v938 = vpop.f32.mrf.mxu0
        %v939 = vadd.f32 %v794, %v938
        %v940 = vpop.f32.mrf.mxu0
        %v941 = vpop.f32.mrf.mxu0
        %942 = vdwg.mxu0
        %943 = vmatprep.subr.bf16.mxu0 0
        %944 = vmatpush1.bf16.msra.mxu0 0
        %945 = vmatprep.subr.bf16.mxu0 0
        %946 = vmatpush1.bf16.msra.mxu0 0
        %947 = vmatprep.subr.bf16.mxu0 0
        %948 = vmatpush1.bf16.msra.mxu0 0
        %949 = vmatprep.subr.bf16.mxu0 0
        %950 = vmatpush1.bf16.msra.mxu0 0
        %951 = vmatprep.subr.bf16.mxu0 0
        %952 = vmatpush1.bf16.msra.mxu0 0
        %953 = vmatprep.subr.bf16.mxu0 0
        %954 = vmatpush1.bf16.msra.mxu0 0
        %955 = vmatprep.subr.bf16.mxu0 0
        %956 = vmatpush1.bf16.msra.mxu0 0
        %957 = vmatprep.subr.bf16.mxu0 %v853
        %958 = vmatpush1.bf16.msra.mxu0 %v850
        %959 = vmatprep.subr.bf16.mxu0 0
        %960 = vmatpush2.bf16.msra.mxu0 0
        %961 = vmatprep.subr.bf16.mxu0 0
        %962 = vmatpush2.bf16.msra.mxu0 0
        %963 = vmatprep.subr.bf16.mxu0 0
        %964 = vmatpush2.bf16.msra.mxu0 0
        %965 = vmatprep.subr.bf16.mxu0 0
        %966 = vmatpush2.bf16.msra.mxu0 0
        %967 = vmatprep.subr.bf16.mxu0 0
        %968 = vmatpush2.bf16.msra.mxu0 0
        %969 = vmatprep.subr.bf16.mxu0 0
        %970 = vmatpush2.bf16.msra.mxu0 0
        %971 = vmatprep.subr.bf16.mxu0 0
        %972 = vmatpush2.bf16.msra.mxu0 0
        %973 = vmatprep.subr.bf16.mxu0 0
        %974 = vmatpush2.bf16.msra.mxu0 0
        %975 = vmatprep.mubr.bf16.mxu0 0
        %976 = vmatmul.mubr.bf16.gmra.mxu0 %v834
        %v977 = vpop.f32.mrf.mxu0
        %v978 = vadd.f32 %v794, %v977
        %v979 = vpop.f32.mrf.mxu0
        %v980 = vadd.f32 %v794, %v979
        %v981 = vpop.f32.mrf.mxu0
        %v982 = vpop.f32.mrf.mxu0
        %983 = vdwg.mxu0
        %984 = vmatprep.subr.bf16.mxu0 0
        %985 = vmatpush1.bf16.msra.mxu0 0
        %986 = vmatprep.subr.bf16.mxu0 0
        %987 = vmatpush1.bf16.msra.mxu0 0
        %988 = vmatprep.subr.bf16.mxu0 0
        %989 = vmatpush1.bf16.msra.mxu0 0
        %990 = vmatprep.subr.bf16.mxu0 0
        %991 = vmatpush1.bf16.msra.mxu0 0
        %992 = vmatprep.subr.bf16.mxu0 0
        %993 = vmatpush1.bf16.msra.mxu0 0
        %994 = vmatprep.subr.bf16.mxu0 0
        %995 = vmatpush1.bf16.msra.mxu0 0
        %996 = vmatprep.subr.bf16.mxu0 0
        %997 = vmatpush1.bf16.msra.mxu0 0
        %998 = vmatprep.subr.bf16.mxu0 %v859
        %999 = vmatpush1.bf16.msra.mxu0 %v856
        %1000 = vmatprep.subr.bf16.mxu0 0
        %1001 = vmatpush2.bf16.msra.mxu0 0
        %1002 = vmatprep.subr.bf16.mxu0 0
        %1003 = vmatpush2.bf16.msra.mxu0 0
        %1004 = vmatprep.subr.bf16.mxu0 0
        %1005 = vmatpush2.bf16.msra.mxu0 0
        %1006 = vmatprep.subr.bf16.mxu0 0
        %1007 = vmatpush2.bf16.msra.mxu0 0
        %1008 = vmatprep.subr.bf16.mxu0 0
        %1009 = vmatpush2.bf16.msra.mxu0 0
        %1010 = vmatprep.subr.bf16.mxu0 0
        %1011 = vmatpush2.bf16.msra.mxu0 0
        %1012 = vmatprep.subr.bf16.mxu0 0
        %1013 = vmatpush2.bf16.msra.mxu0 0
        %1014 = vmatprep.subr.bf16.mxu0 0
        %1015 = vmatpush2.bf16.msra.mxu0 0
        %1016 = vmatprep.mubr.bf16.mxu0 0
        %1017 = vmatmul.mubr.bf16.gmra.mxu0 %v834
        %v1018 = vpop.f32.mrf.mxu0
        %v1019 = vadd.f32 %v794, %v1018
        %v1020 = vpop.f32.mrf.mxu0
        %v1021 = vadd.f32 %v794, %v1020
        %v1022 = vpop.f32.mrf.mxu0
        %v1023 = vpop.f32.mrf.mxu0
        %1024 = vdwg.mxu0
        %v1025 = vld [vmem:[%s761] sm:$0xff]
        %v1026 = vld [vmem:[%s761 + $0x8] sm:$0xff]
        %v1027 = vld [vmem:[%s761 + $0x10] sm:$0xff]
        %v1028 = vld [vmem:[%s761 + $0x18] sm:$0xff]
        %v1037 = vcombine.low %v896, %v898
        %v1038 = vcombine.low %v937, %v939
        %v1039 = vcombine.low %v978, %v980
        %v1040 = vcombine.low %v1019, %v1021
        %v1045 = vadd.f32 %v1025, %v1037
        %v1046 = vadd.f32 %v1026, %v1038
        %v1047 = vadd.f32 %v1027, %v1039
        %v1048 = vadd.f32 %v1028, %v1040
        %v1053 = vcombine.high %v1045, %v1045
        %v1054 = vcombine.high %v1046, %v1046
        %v1055 = vcombine.high %v1047, %v1047
        %v1056 = vcombine.high %v1048, %v1048
        %v1061 = vpack.c.bf16 %v1045, %v1045
        %v1062 = vpack.c.bf16 %v1053, %v1053
        %v1063 = vpack.c.bf16 %v1046, %v1046
        %v1064 = vpack.c.bf16 %v1054, %v1054
        %v1065 = vpack.c.bf16 %v1047, %v1047
        %v1066 = vpack.c.bf16 %v1055, %v1055
        %v1067 = vpack.c.bf16 %v1048, %v1048
        %v1068 = vpack.c.bf16 %v1056, %v1056
        %v1069 = vld [vmem:[%s5] sm:$0xf]
        %v1070 = vld [vmem:[%s5 + $0x4] sm:$0xf]
        %v1071 = vld [vmem:[%s6] sm:$0xff]
        %v1072 = vld [vmem:[%s6 + $0x8] sm:$0xff]
        %1074 = vset.pattern.permute.xlu0 0
        %1075 = vperm.xlu0 %1074, %v1071
        %v1076 = vpop.permute.xlu0 %1075
        %1079 = vset.pattern.permute.xlu0 0
        %1080 = vperm.xlu0 %1079, %v1072
        %v1081 = vpop.permute.xlu0 %1080
        %v1085 = vunpack.c.l.b16 %v1069
        %v1086 = vunpack.c.l.b16 %v1070
        %v1087 = vpack.c.b16 %v1086, %v1085
        %v1089 = vsel %vm832, %v1087, 0
        %v1092 = vsel %vm836, %v1061, 0
        %v1095 = vsel %vm836, %v1062, 0
        %v1098 = vsel %vm836, %v1063, 0
        %v1101 = vsel %vm836, %v1064, 0
        %v1104 = vsel %vm836, %v1065, 0
        %v1107 = vsel %vm836, %v1066, 0
        %v1110 = vsel %vm836, %v1067, 0
        %v1113 = vsel %vm836, %v1068, 0
        %1115 = vmatprep.subr.bf16.mxu0 0
        %1116 = vmatpush1.bf16.msra.mxu0 0
        %1117 = vmatprep.subr.bf16.mxu0 0
        %1118 = vmatpush1.bf16.msra.mxu0 0
        %1119 = vmatprep.subr.bf16.mxu0 0
        %1120 = vmatpush1.bf16.msra.mxu0 0
        %1121 = vmatprep.subr.bf16.mxu0 0
        %1122 = vmatpush1.bf16.msra.mxu0 0
        %1123 = vmatprep.subr.bf16.mxu0 0
        %1124 = vmatpush1.bf16.msra.mxu0 0
        %1125 = vmatprep.subr.bf16.mxu0 0
        %1126 = vmatpush1.bf16.msra.mxu0 0
        %1127 = vmatprep.subr.bf16.mxu0 0
        %1128 = vmatpush1.bf16.msra.mxu0 0
        %1129 = vmatprep.subr.bf16.mxu0 %v1095
        %1130 = vmatpush1.bf16.msra.mxu0 %v1092
        %1131 = vmatprep.subr.bf16.mxu0 0
        %1132 = vmatpush2.bf16.msra.mxu0 0
        %1133 = vmatprep.subr.bf16.mxu0 0
        %1134 = vmatpush2.bf16.msra.mxu0 0
        %1135 = vmatprep.subr.bf16.mxu0 0
        %1136 = vmatpush2.bf16.msra.mxu0 0
        %1137 = vmatprep.subr.bf16.mxu0 0
        %1138 = vmatpush2.bf16.msra.mxu0 0
        %1139 = vmatprep.subr.bf16.mxu0 0
        %1140 = vmatpush2.bf16.msra.mxu0 0
        %1141 = vmatprep.subr.bf16.mxu0 0
        %1142 = vmatpush2.bf16.msra.mxu0 0
        %1143 = vmatprep.subr.bf16.mxu0 0
        %1144 = vmatpush2.bf16.msra.mxu0 0
        %1145 = vmatprep.subr.bf16.mxu0 0
        %1146 = vmatpush2.bf16.msra.mxu0 0
        %1147 = vmatprep.mubr.bf16.mxu0 0
        %1148 = vmatmul.mubr.bf16.gmra.mxu0 %v1089
        %v1149 = vpop.f32.mrf.mxu0
        %v1150 = vadd.f32 %v1076, %v1149
        %v1151 = vpop.f32.mrf.mxu0
        %v1152 = vadd.f32 %v1076, %v1151
        %v1153 = vpop.f32.mrf.mxu0
        %v1154 = vadd.f32 %v1081, %v1153
        %v1155 = vpop.f32.mrf.mxu0
        %v1156 = vadd.f32 %v1081, %v1155
        %1157 = vdwg.mxu0
        %1158 = vmatprep.subr.bf16.mxu0 0
        %1159 = vmatpush1.bf16.msra.mxu0 0
        %1160 = vmatprep.subr.bf16.mxu0 0
        %1161 = vmatpush1.bf16.msra.mxu0 0
        %1162 = vmatprep.subr.bf16.mxu0 0
        %1163 = vmatpush1.bf16.msra.mxu0 0
        %1164 = vmatprep.subr.bf16.mxu0 0
        %1165 = vmatpush1.bf16.msra.mxu0 0
        %1166 = vmatprep.subr.bf16.mxu0 0
        %1167 = vmatpush1.bf16.msra.mxu0 0
        %1168 = vmatprep.subr.bf16.mxu0 0
        %1169 = vmatpush1.bf16.msra.mxu0 0
        %1170 = vmatprep.subr.bf16.mxu0 0
        %1171 = vmatpush1.bf16.msra.mxu0 0
        %1172 = vmatprep.subr.bf16.mxu0 %v1101
        %1173 = vmatpush1.bf16.msra.mxu0 %v1098
        %1174 = vmatprep.subr.bf16.mxu0 0
        %1175 = vmatpush2.bf16.msra.mxu0 0
        %1176 = vmatprep.subr.bf16.mxu0 0
        %1177 = vmatpush2.bf16.msra.mxu0 0
        %1178 = vmatprep.subr.bf16.mxu0 0
        %1179 = vmatpush2.bf16.msra.mxu0 0
        %1180 = vmatprep.subr.bf16.mxu0 0
        %1181 = vmatpush2.bf16.msra.mxu0 0
        %1182 = vmatprep.subr.bf16.mxu0 0
        %1183 = vmatpush2.bf16.msra.mxu0 0
        %1184 = vmatprep.subr.bf16.mxu0 0
        %1185 = vmatpush2.bf16.msra.mxu0 0
        %1186 = vmatprep.subr.bf16.mxu0 0
        %1187 = vmatpush2.bf16.msra.mxu0 0
        %1188 = vmatprep.subr.bf16.mxu0 0
        %1189 = vmatpush2.bf16.msra.mxu0 0
        %1190 = vmatprep.mubr.bf16.mxu0 0
        %1191 = vmatmul.mubr.bf16.gmra.mxu0 %v1089
        %v1192 = vpop.f32.mrf.mxu0
        %v1193 = vadd.f32 %v1076, %v1192
        %v1194 = vpop.f32.mrf.mxu0
        %v1195 = vadd.f32 %v1076, %v1194
        %v1196 = vpop.f32.mrf.mxu0
        %v1197 = vadd.f32 %v1081, %v1196
        %v1198 = vpop.f32.mrf.mxu0
        %v1199 = vadd.f32 %v1081, %v1198
        %1200 = vdwg.mxu0
        %1201 = vmatprep.subr.bf16.mxu0 0
        %1202 = vmatpush1.bf16.msra.mxu0 0
        %1203 = vmatprep.subr.bf16.mxu0 0
        %1204 = vmatpush1.bf16.msra.mxu0 0
        %1205 = vmatprep.subr.bf16.mxu0 0
        %1206 = vmatpush1.bf16.msra.mxu0 0
        %1207 = vmatprep.subr.bf16.mxu0 0
        %1208 = vmatpush1.bf16.msra.mxu0 0
        %1209 = vmatprep.subr.bf16.mxu0 0
        %1210 = vmatpush1.bf16.msra.mxu0 0
        %1211 = vmatprep.subr.bf16.mxu0 0
        %1212 = vmatpush1.bf16.msra.mxu0 0
        %1213 = vmatprep.subr.bf16.mxu0 0
        %1214 = vmatpush1.bf16.msra.mxu0 0
        %1215 = vmatprep.subr.bf16.mxu0 %v1107
        %1216 = vmatpush1.bf16.msra.mxu0 %v1104
        %1217 = vmatprep.subr.bf16.mxu0 0
        %1218 = vmatpush2.bf16.msra.mxu0 0
        %1219 = vmatprep.subr.bf16.mxu0 0
        %1220 = vmatpush2.bf16.msra.mxu0 0
        %1221 = vmatprep.subr.bf16.mxu0 0
        %1222 = vmatpush2.bf16.msra.mxu0 0
        %1223 = vmatprep.subr.bf16.mxu0 0
        %1224 = vmatpush2.bf16.msra.mxu0 0
        %1225 = vmatprep.subr.bf16.mxu0 0
        %1226 = vmatpush2.bf16.msra.mxu0 0
        %1227 = vmatprep.subr.bf16.mxu0 0
        %1228 = vmatpush2.bf16.msra.mxu0 0
        %1229 = vmatprep.subr.bf16.mxu0 0
        %1230 = vmatpush2.bf16.msra.mxu0 0
        %1231 = vmatprep.subr.bf16.mxu0 0
        %1232 = vmatpush2.bf16.msra.mxu0 0
        %1233 = vmatprep.mubr.bf16.mxu0 0
        %1234 = vmatmul.mubr.bf16.gmra.mxu0 %v1089
        %v1235 = vpop.f32.mrf.mxu0
        %v1236 = vadd.f32 %v1076, %v1235
        %v1237 = vpop.f32.mrf.mxu0
        %v1238 = vadd.f32 %v1076, %v1237
        %v1239 = vpop.f32.mrf.mxu0
        %v1240 = vadd.f32 %v1081, %v1239
        %v1241 = vpop.f32.mrf.mxu0
        %v1242 = vadd.f32 %v1081, %v1241
        %1243 = vdwg.mxu0
        %1244 = vmatprep.subr.bf16.mxu0 0
        %1245 = vmatpush1.bf16.msra.mxu0 0
        %1246 = vmatprep.subr.bf16.mxu0 0
        %1247 = vmatpush1.bf16.msra.mxu0 0
        %1248 = vmatprep.subr.bf16.mxu0 0
        %1249 = vmatpush1.bf16.msra.mxu0 0
        %1250 = vmatprep.subr.bf16.mxu0 0
        %1251 = vmatpush1.bf16.msra.mxu0 0
        %1252 = vmatprep.subr.bf16.mxu0 0
        %1253 = vmatpush1.bf16.msra.mxu0 0
        %1254 = vmatprep.subr.bf16.mxu0 0
        %1255 = vmatpush1.bf16.msra.mxu0 0
        %1256 = vmatprep.subr.bf16.mxu0 0
        %1257 = vmatpush1.bf16.msra.mxu0 0
        %1258 = vmatprep.subr.bf16.mxu0 %v1113
        %1259 = vmatpush1.bf16.msra.mxu0 %v1110
        %1260 = vmatprep.subr.bf16.mxu0 0
        %1261 = vmatpush2.bf16.msra.mxu0 0
        %1262 = vmatprep.subr.bf16.mxu0 0
        %1263 = vmatpush2.bf16.msra.mxu0 0
        %1264 = vmatprep.subr.bf16.mxu0 0
        %1265 = vmatpush2.bf16.msra.mxu0 0
        %1266 = vmatprep.subr.bf16.mxu0 0
        %1267 = vmatpush2.bf16.msra.mxu0 0
        %1268 = vmatprep.subr.bf16.mxu0 0
        %1269 = vmatpush2.bf16.msra.mxu0 0
        %1270 = vmatprep.subr.bf16.mxu0 0
        %1271 = vmatpush2.bf16.msra.mxu0 0
        %1272 = vmatprep.subr.bf16.mxu0 0
        %1273 = vmatpush2.bf16.msra.mxu0 0
        %1274 = vmatprep.subr.bf16.mxu0 0
        %1275 = vmatpush2.bf16.msra.mxu0 0
        %1276 = vmatprep.mubr.bf16.mxu0 0
        %1277 = vmatmul.mubr.bf16.gmra.mxu0 %v1089
        %v1278 = vpop.f32.mrf.mxu0
        %v1279 = vadd.f32 %v1076, %v1278
        %v1280 = vpop.f32.mrf.mxu0
        %v1281 = vadd.f32 %v1076, %v1280
        %v1282 = vpop.f32.mrf.mxu0
        %v1283 = vadd.f32 %v1081, %v1282
        %v1284 = vpop.f32.mrf.mxu0
        %v1285 = vadd.f32 %v1081, %v1284
        %1286 = vdwg.mxu0
        %v1287 = vld [vmem:[%s702] sm:$0xff]
        %v1288 = vld [vmem:[%s702 + $0x8] sm:$0xff]
        %v1289 = vld [vmem:[%s702 + $0x10] sm:$0xff]
        %v1290 = vld [vmem:[%s702 + $0x18] sm:$0xff]
        %v1291 = vld [vmem:[%s702 + $0x20] sm:$0xff]
        %v1292 = vld [vmem:[%s702 + $0x28] sm:$0xff]
        %v1293 = vld [vmem:[%s702 + $0x30] sm:$0xff]
        %v1294 = vld [vmem:[%s702 + $0x38] sm:$0xff]
        %v1295 = vld [vmem:[%s702 + $0x40] sm:$0xff]
        %v1296 = vld [vmem:[%s702 + $0x48] sm:$0xff]
        %v1297 = vld [vmem:[%s702 + $0x50] sm:$0xff]
        %v1298 = vld [vmem:[%s702 + $0x58] sm:$0xff]
        %v1299 = vld [vmem:[%s702 + $0x60] sm:$0xff]
        %v1300 = vld [vmem:[%s702 + $0x68] sm:$0xff]
        %v1301 = vld [vmem:[%s702 + $0x70] sm:$0xff]
        %v1302 = vld [vmem:[%s702 + $0x78] sm:$0xff]
        %v1303 = vxor.u32 %v1150, 2147483648
        %v1304 = vxor.u32 %v1152, 2147483648
        %v1305 = vxor.u32 %v1193, 2147483648
        %v1306 = vxor.u32 %v1195, 2147483648
        %v1307 = vxor.u32 %v1236, 2147483648
        %v1308 = vxor.u32 %v1238, 2147483648
        %v1309 = vxor.u32 %v1279, 2147483648
        %v1310 = vxor.u32 %v1281, 2147483648
        %v1311 = vxor.u32 %v1154, 2147483648
        %v1312 = vxor.u32 %v1156, 2147483648
        %v1313 = vxor.u32 %v1197, 2147483648
        %v1314 = vxor.u32 %v1199, 2147483648
        %v1315 = vxor.u32 %v1240, 2147483648
        %v1316 = vxor.u32 %v1242, 2147483648
        %v1317 = vxor.u32 %v1283, 2147483648
        %v1318 = vxor.u32 %v1285, 2147483648
        %v1319 = vmul.f32 %v1303, 1.442695
        %v1320 = vpow.pop %v1319
        %v1321 = vmul.f32 %v1304, 1.442695
        %v1322 = vpow.pop %v1321
        %v1323 = vmul.f32 %v1305, 1.442695
        %v1324 = vpow.pop %v1323
        %v1325 = vmul.f32 %v1306, 1.442695
        %v1326 = vpow.pop %v1325
        %v1327 = vmul.f32 %v1307, 1.442695
        %v1328 = vpow.pop %v1327
        %v1329 = vmul.f32 %v1308, 1.442695
        %v1330 = vpow.pop %v1329
        %v1331 = vmul.f32 %v1309, 1.442695
        %v1332 = vpow.pop %v1331
        %v1333 = vmul.f32 %v1310, 1.442695
        %v1334 = vpow.pop %v1333
        %v1335 = vmul.f32 %v1311, 1.442695
        %v1336 = vpow.pop %v1335
        %v1337 = vmul.f32 %v1312, 1.442695
        %v1338 = vpow.pop %v1337
        %v1339 = vmul.f32 %v1313, 1.442695
        %v1340 = vpow.pop %v1339
        %v1341 = vmul.f32 %v1314, 1.442695
        %v1342 = vpow.pop %v1341
        %v1343 = vmul.f32 %v1315, 1.442695
        %v1344 = vpow.pop %v1343
        %v1345 = vmul.f32 %v1316, 1.442695
        %v1346 = vpow.pop %v1345
        %v1347 = vmul.f32 %v1317, 1.442695
        %v1348 = vpow.pop %v1347
        %v1349 = vmul.f32 %v1318, 1.442695
        %v1350 = vpow.pop %v1349
        %v1351 = vadd.f32 %v1320, 1.0
        %v1352 = vadd.f32 %v1322, 1.0
        %v1353 = vadd.f32 %v1324, 1.0
        %v1354 = vadd.f32 %v1326, 1.0
        %v1355 = vadd.f32 %v1328, 1.0
        %v1356 = vadd.f32 %v1330, 1.0
        %v1357 = vadd.f32 %v1332, 1.0
        %v1358 = vadd.f32 %v1334, 1.0
        %v1359 = vadd.f32 %v1336, 1.0
        %v1360 = vadd.f32 %v1338, 1.0
        %v1361 = vadd.f32 %v1340, 1.0
        %v1362 = vadd.f32 %v1342, 1.0
        %v1363 = vadd.f32 %v1344, 1.0
        %v1364 = vadd.f32 %v1346, 1.0
        %v1365 = vadd.f32 %v1348, 1.0
        %v1366 = vadd.f32 %v1350, 1.0
        %v1367 = vrcp.pop %v1351
        %v1368 = vmul.f32 1.0, %v1367
        %v1369 = vrcp.pop %v1352
        %v1370 = vmul.f32 1.0, %v1369
        %v1371 = vrcp.pop %v1353
        %v1372 = vmul.f32 1.0, %v1371
        %v1373 = vrcp.pop %v1354
        %v1374 = vmul.f32 1.0, %v1373
        %v1375 = vrcp.pop %v1355
        %v1376 = vmul.f32 1.0, %v1375
        %v1377 = vrcp.pop %v1356
        %v1378 = vmul.f32 1.0, %v1377
        %v1379 = vrcp.pop %v1357
        %v1380 = vmul.f32 1.0, %v1379
        %v1381 = vrcp.pop %v1358
        %v1382 = vmul.f32 1.0, %v1381
        %v1383 = vrcp.pop %v1359
        %v1384 = vmul.f32 1.0, %v1383
        %v1385 = vrcp.pop %v1360
        %v1386 = vmul.f32 1.0, %v1385
        %v1387 = vrcp.pop %v1361
        %v1388 = vmul.f32 1.0, %v1387
        %v1389 = vrcp.pop %v1362
        %v1390 = vmul.f32 1.0, %v1389
        %v1391 = vrcp.pop %v1363
        %v1392 = vmul.f32 1.0, %v1391
        %v1393 = vrcp.pop %v1364
        %v1394 = vmul.f32 1.0, %v1393
        %v1395 = vrcp.pop %v1365
        %v1396 = vmul.f32 1.0, %v1395
        %v1397 = vrcp.pop %v1366
        %v1398 = vmul.f32 1.0, %v1397
        %v1399 = vmul.f32 %v1287, %v1368
        %v1400 = vmul.f32 %v1288, %v1370
        %v1401 = vmul.f32 %v1289, %v1372
        %v1402 = vmul.f32 %v1290, %v1374
        %v1403 = vmul.f32 %v1291, %v1376
        %v1404 = vmul.f32 %v1292, %v1378
        %v1405 = vmul.f32 %v1293, %v1380
        %v1406 = vmul.f32 %v1294, %v1382
        %v1407 = vmul.f32 %v1295, %v1384
        %v1408 = vmul.f32 %v1296, %v1386
        %v1409 = vmul.f32 %v1297, %v1388
        %v1410 = vmul.f32 %v1298, %v1390
        %v1411 = vmul.f32 %v1299, %v1392
        %v1412 = vmul.f32 %v1300, %v1394
        %v1413 = vmul.f32 %v1301, %v1396
        %v1414 = vmul.f32 %v1302, %v1398
        %1415 = vst [vmem:[%s747] sm:$0xff] %v1399
        %1416 = vst [vmem:[%s747 + $0x8] sm:$0xff] %v1400
        %1417 = vst [vmem:[%s747 + $0x10] sm:$0xff] %v1401
        %1418 = vst [vmem:[%s747 + $0x18] sm:$0xff] %v1402
        %1419 = vst [vmem:[%s747 + $0x20] sm:$0xff] %v1403
        %1420 = vst [vmem:[%s747 + $0x28] sm:$0xff] %v1404
        %1421 = vst [vmem:[%s747 + $0x30] sm:$0xff] %v1405
        %1422 = vst [vmem:[%s747 + $0x38] sm:$0xff] %v1406
        %1423 = vst [vmem:[%s747 + $0x40] sm:$0xff] %v1407
        %1424 = vst [vmem:[%s747 + $0x48] sm:$0xff] %v1408
        %1425 = vst [vmem:[%s747 + $0x50] sm:$0xff] %v1409
        %1426 = vst [vmem:[%s747 + $0x58] sm:$0xff] %v1410
        %1427 = vst [vmem:[%s747 + $0x60] sm:$0xff] %v1411
        %1428 = vst [vmem:[%s747 + $0x68] sm:$0xff] %v1412
        %1429 = vst [vmem:[%s747 + $0x70] sm:$0xff] %v1413
        %1430 = vst [vmem:[%s747 + $0x78] sm:$0xff] %v1414
        %s1431 = sand.u32 %s188, 1
        %s1432 = sand.u32 %s188, 1
        %s1433 = smul.addr %s1432, 128
        %s1434 = scalar_lea.vmem [#allocation3], %s1433
        // Predicated region
        $region115: #{esa_forward.7} parent=109 // pred_check
          %p1435 = pneg %p198
        $region116: #{esa_forward.7} parent=109 // pred_check_branch
          %1437 = sbr.rel (%p1435) target = $region118
        $region117: #{esa_forward.7} parent=109 // pred_region
          %s1438 = smul.u32 8, %s18
          %s1439 = ssub.s32 9, %s1438
          %p1440 = scmp.lt.s32.totalorder %s1439, 8
          %s1441 = scalar_select %p1440, %s1439, 8
          %s1442 = smul.u32 256, %s1441
          %p1443 = scmp.ne.s32.totalorder 0, %s1442
          %s1444 = smul.addr %s1438, 8
          %s1445 = scalar_lea.vmem %s7, %s1444
          %s1446 = smul.u32 %s1441, 8
          // Predicated region
          $region119: #{esa_forward.7} parent=117 // pred_check
            %p1447 = pneg %p1443
          $region120: #{esa_forward.7} parent=117 // pred_check_branch
            %1449 = sbr.rel (%p1447) target = $region122
          $region121: #{esa_forward.7} parent=117 // pred_region
            %p1450 = scmp.lt.u32.totalorder %s1446, 8
            %p1451 = pneg %p1450
            // Predicated region
            $region123: #{esa_forward.7} parent=121 // pred_check
              _
            $region124: #{esa_forward.7} parent=121 // pred_check_branch
              %1453 = sbr.rel (%p1450) target = $region126
            $region125: #{esa_forward.7} parent=121 // pred_region
              %s1471 = sand.u32 %s1446, 7
              %p1472 = scmp.eq.s32.totalorder %s1471, 0
              // Predicated region
              $region138: #{esa_forward.7} parent=125 // pred_check
                %p1473 = pneg %p1472
              $region139: #{esa_forward.7} parent=125 // pred_check_branch
                %1475 = sbr.rel (%p1473) target = $region141
              $region140: #{esa_forward.7} parent=125 // pred_region
                %s1476 = sshrl.u32 %s1446, 3
                %s1477 = sshrl.u32 %s1476, 5
                // While loop
                $region142: #{esa_forward.7} parent=140 // loop_pre_header
                  _
                $region143: #{esa_forward.7} parent=140 // loop_header
                  %s1481 = sphi 0, %s1483
                  %p1482 = scmp.ge.s32.totalorder %s1481, %s1477
                  %s1486 = sphi 0, %s1619
                  %s1487 = sphi %s1434, %s1622
                  %s1488 = sphi %s1445, %s1623
                $region144: #{esa_forward.7} parent=140 // loop_header_branch
                  %1485 = sbr.rel (%p1482) target = $region148
                $region145: #{esa_forward.7} parent=140 // loop_body
                  %v1489 = vld [vmem:[%s1487] sm:$0xff]
                  %1490 = vst [vmem:[%s1488] sm:$0xff] %v1489
                  %v1491 = vld [vmem:[%s1487 + $0x8] sm:$0xff]
                  %1492 = vst [vmem:[%s1488 + $0x8] sm:$0xff] %v1491
                  %v1493 = vld [vmem:[%s1487 + $0x10] sm:$0xff]
                  %1494 = vst [vmem:[%s1488 + $0x10] sm:$0xff] %v1493
                  %v1495 = vld [vmem:[%s1487 + $0x18] sm:$0xff]
                  %1496 = vst [vmem:[%s1488 + $0x18] sm:$0xff] %v1495
                  %v1497 = vld [vmem:[%s1487 + $0x20] sm:$0xff]
                  %1498 = vst [vmem:[%s1488 + $0x20] sm:$0xff] %v1497
                  %v1499 = vld [vmem:[%s1487 + $0x28] sm:$0xff]
                  %1500 = vst [vmem:[%s1488 + $0x28] sm:$0xff] %v1499
                  %v1501 = vld [vmem:[%s1487 + $0x30] sm:$0xff]
                  %1502 = vst [vmem:[%s1488 + $0x30] sm:$0xff] %v1501
                  %v1503 = vld [vmem:[%s1487 + $0x38] sm:$0xff]
                  %1504 = vst [vmem:[%s1488 + $0x38] sm:$0xff] %v1503
                  %v1505 = vld [vmem:[%s1487 + $0x40] sm:$0xff]
                  %1506 = vst [vmem:[%s1488 + $0x40] sm:$0xff] %v1505
                  %v1507 = vld [vmem:[%s1487 + $0x48] sm:$0xff]
                  %1508 = vst [vmem:[%s1488 + $0x48] sm:$0xff] %v1507
                  %v1509 = vld [vmem:[%s1487 + $0x50] sm:$0xff]
                  %1510 = vst [vmem:[%s1488 + $0x50] sm:$0xff] %v1509
                  %v1511 = vld [vmem:[%s1487 + $0x58] sm:$0xff]
                  %1512 = vst [vmem:[%s1488 + $0x58] sm:$0xff] %v1511
                  %v1513 = vld [vmem:[%s1487 + $0x60] sm:$0xff]
                  %1514 = vst [vmem:[%s1488 + $0x60] sm:$0xff] %v1513
                  %v1515 = vld [vmem:[%s1487 + $0x68] sm:$0xff]
                  %1516 = vst [vmem:[%s1488 + $0x68] sm:$0xff] %v1515
                  %v1517 = vld [vmem:[%s1487 + $0x70] sm:$0xff]
                  %1518 = vst [vmem:[%s1488 + $0x70] sm:$0xff] %v1517
                  %v1519 = vld [vmem:[%s1487 + $0x78] sm:$0xff]
                  %1520 = vst [vmem:[%s1488 + $0x78] sm:$0xff] %v1519
                  %v1521 = vld [vmem:[%s1487 + $0x80] sm:$0xff]
                  %1522 = vst [vmem:[%s1488 + $0x80] sm:$0xff] %v1521
                  %v1523 = vld [vmem:[%s1487 + $0x88] sm:$0xff]
                  %1524 = vst [vmem:[%s1488 + $0x88] sm:$0xff] %v1523
                  %v1525 = vld [vmem:[%s1487 + $0x90] sm:$0xff]
                  %1526 = vst [vmem:[%s1488 + $0x90] sm:$0xff] %v1525
                  %v1527 = vld [vmem:[%s1487 + $0x98] sm:$0xff]
                  %1528 = vst [vmem:[%s1488 + $0x98] sm:$0xff] %v1527
                  %v1529 = vld [vmem:[%s1487 + $0xa0] sm:$0xff]
                  %1530 = vst [vmem:[%s1488 + $0xa0] sm:$0xff] %v1529
                  %v1531 = vld [vmem:[%s1487 + $0xa8] sm:$0xff]
                  %1532 = vst [vmem:[%s1488 + $0xa8] sm:$0xff] %v1531
                  %v1533 = vld [vmem:[%s1487 + $0xb0] sm:$0xff]
                  %1534 = vst [vmem:[%s1488 + $0xb0] sm:$0xff] %v1533
                  %v1535 = vld [vmem:[%s1487 + $0xb8] sm:$0xff]
                  %1536 = vst [vmem:[%s1488 + $0xb8] sm:$0xff] %v1535
                  %v1537 = vld [vmem:[%s1487 + $0xc0] sm:$0xff]
                  %1538 = vst [vmem:[%s1488 + $0xc0] sm:$0xff] %v1537
                  %v1539 = vld [vmem:[%s1487 + $0xc8] sm:$0xff]
                  %1540 = vst [vmem:[%s1488 + $0xc8] sm:$0xff] %v1539
                  %v1541 = vld [vmem:[%s1487 + $0xd0] sm:$0xff]
                  %1542 = vst [vmem:[%s1488 + $0xd0] sm:$0xff] %v1541
                  %v1543 = vld [vmem:[%s1487 + $0xd8] sm:$0xff]
                  %1544 = vst [vmem:[%s1488 + $0xd8] sm:$0xff] %v1543
                  %v1545 = vld [vmem:[%s1487 + $0xe0] sm:$0xff]
                  %1546 = vst [vmem:[%s1488 + $0xe0] sm:$0xff] %v1545
                  %v1547 = vld [vmem:[%s1487 + $0xe8] sm:$0xff]
                  %1548 = vst [vmem:[%s1488 + $0xe8] sm:$0xff] %v1547
                  %v1549 = vld [vmem:[%s1487 + $0xf0] sm:$0xff]
                  %1550 = vst [vmem:[%s1488 + $0xf0] sm:$0xff] %v1549
                  %v1551 = vld [vmem:[%s1487 + $0xf8] sm:$0xff]
                  %1552 = vst [vmem:[%s1488 + $0xf8] sm:$0xff] %v1551
                  %v1553 = vld [vmem:[%s1487 + $0x40] sm:$0xff]
                  %1554 = vst [vmem:[%s1488 + $0x48] sm:$0xff] %v1553
                  %v1555 = vld [vmem:[%s1487 + $0x48] sm:$0xff]
                  %1556 = vst [vmem:[%s1488 + $0x50] sm:$0xff] %v1555
                  %v1557 = vld [vmem:[%s1487 + $0x50] sm:$0xff]
                  %1558 = vst [vmem:[%s1488 + $0x58] sm:$0xff] %v1557
                  %v1559 = vld [vmem:[%s1487 + $0x58] sm:$0xff]
                  %1560 = vst [vmem:[%s1488 + $0x60] sm:$0xff] %v1559
                  %v1561 = vld [vmem:[%s1487 + $0x60] sm:$0xff]
                  %1562 = vst [vmem:[%s1488 + $0x68] sm:$0xff] %v1561
                  %v1563 = vld [vmem:[%s1487 + $0x68] sm:$0xff]
                  %1564 = vst [vmem:[%s1488 + $0x70] sm:$0xff] %v1563
                  %v1565 = vld [vmem:[%s1487 + $0x70] sm:$0xff]
                  %1566 = vst [vmem:[%s1488 + $0x78] sm:$0xff] %v1565
                  %v1567 = vld [vmem:[%s1487 + $0x78] sm:$0xff]
                  %1568 = vst [vmem:[%s1488 + $0x80] sm:$0xff] %v1567
                  %v1569 = vld [vmem:[%s1487 + $0x80] sm:$0xff]
                  %1570 = vst [vmem:[%s1488 + $0x88] sm:$0xff] %v1569
                  %v1571 = vld [vmem:[%s1487 + $0x88] sm:$0xff]
                  %1572 = vst [vmem:[%s1488 + $0x90] sm:$0xff] %v1571
                  %v1573 = vld [vmem:[%s1487 + $0x90] sm:$0xff]
                  %1574 = vst [vmem:[%s1488 + $0x98] sm:$0xff] %v1573
                  %v1575 = vld [vmem:[%s1487 + $0x98] sm:$0xff]
                  %1576 = vst [vmem:[%s1488 + $0xa0] sm:$0xff] %v1575
                  %v1577 = vld [vmem:[%s1487 + $0xa0] sm:$0xff]
                  %1578 = vst [vmem:[%s1488 + $0xa8] sm:$0xff] %v1577
                  %v1579 = vld [vmem:[%s1487 + $0xa8] sm:$0xff]
                  %1580 = vst [vmem:[%s1488 + $0xb0] sm:$0xff] %v1579
                  %v1581 = vld [vmem:[%s1487 + $0xb0] sm:$0xff]
                  %1582 = vst [vmem:[%s1488 + $0xb8] sm:$0xff] %v1581
                  %v1583 = vld [vmem:[%s1487 + $0xb8] sm:$0xff]
                  %1584 = vst [vmem:[%s1488 + $0xc0] sm:$0xff] %v1583
                  %v1585 = vld [vmem:[%s1487 + $0xc0] sm:$0xff]
                  %1586 = vst [vmem:[%s1488 + $0xc8] sm:$0xff] %v1585
                  %v1587 = vld [vmem:[%s1487 + $0xc8] sm:$0xff]
                  %1588 = vst [vmem:[%s1488 + $0xd0] sm:$0xff] %v1587
                  %v1589 = vld [vmem:[%s1487 + $0xd0] sm:$0xff]
                  %1590 = vst [vmem:[%s1488 + $0xd8] sm:$0xff] %v1589
                  %v1591 = vld [vmem:[%s1487 + $0xd8] sm:$0xff]
                  %1592 = vst [vmem:[%s1488 + $0xe0] sm:$0xff] %v1591
                  %v1593 = vld [vmem:[%s1487 + $0xe0] sm:$0xff]
                  %1594 = vst [vmem:[%s1488 + $0xe8] sm:$0xff] %v1593
                  %v1595 = vld [vmem:[%s1487 + $0xe8] sm:$0xff]
                  %1596 = vst [vmem:[%s1488 + $0xf0] sm:$0xff] %v1595
                  %v1597 = vld [vmem:[%s1487 + $0xf0] sm:$0xff]
                  %1598 = vst [vmem:[%s1488 + $0xf8] sm:$0xff] %v1597
                  %v1599 = vld [vmem:[%s1487 + $0xf8] sm:$0xff]
                  %1600 = vst [vmem:[%s1488 + $0x100] sm:$0xff] %v1599
                  %v1601 = vld [vmem:[%s1487 + $0x100] sm:$0xff]
                  %1602 = vst [vmem:[%s1488 + $0x108] sm:$0xff] %v1601
                  %v1603 = vld [vmem:[%s1487 + $0x108] sm:$0xff]
                  %1604 = vst [vmem:[%s1488 + $0x110] sm:$0xff] %v1603
                  %v1605 = vld [vmem:[%s1487 + $0x110] sm:$0xff]
                  %1606 = vst [vmem:[%s1488 + $0x118] sm:$0xff] %v1605
                  %v1607 = vld [vmem:[%s1487 + $0x118] sm:$0xff]
                  %1608 = vst [vmem:[%s1488 + $0x120] sm:$0xff] %v1607
                  %v1609 = vld [vmem:[%s1487 + $0x120] sm:$0xff]
                  %1610 = vst [vmem:[%s1488 + $0x128] sm:$0xff] %v1609
                  %v1611 = vld [vmem:[%s1487 + $0x128] sm:$0xff]
                  %1612 = vst [vmem:[%s1488 + $0x130] sm:$0xff] %v1611
                  %v1613 = vld [vmem:[%s1487 + $0x130] sm:$0xff]
                  %1614 = vst [vmem:[%s1488 + $0x138] sm:$0xff] %v1613
                  %v1615 = vld [vmem:[%s1487 + $0x138] sm:$0xff]
                  %1616 = vst [vmem:[%s1488 + $0x140] sm:$0xff] %v1615
                  %s1617 = sadd.s32 1, %s1486
                  %p1618 = scmp.ge.s32.totalorder %s1617, %s1477
                  %s1619 = scalar_select %p1618, 0, %s1617
                  %s1620 = smul.u32 %s1619, 256
                  %s1621 = smul.u32 %s1619, 256
                  %s1622 = scalar_lea.vmem %s1434, %s1620 [#allocation3]
                  %s1623 = scalar_lea.vmem %s1445, %s1621
                $region146: #{esa_forward.7} parent=140 // loop_footer
                  %s1483 = sadd.s32 %s1481, 1
                $region147: #{esa_forward.7} parent=140 // loop_footer_branch
                  %1480 = sbr.rel target = $region143
                $region148: #{esa_forward.7} parent=140 // loop_exit
                  _
                %s1624 = sshrl.u32 %s1476, 5
                %s1625 = sand.u32 %s1476, 31
                %s1626 = smul.u32 %s1624, 32
                %s1627 = smul.u32 128, %s1626
                %s1628 = sshra.s32 %s1627, 4
                %s1629 = scalar_lea.vmem %s1434, %s1628 [#allocation3]
                %s1630 = smul.u32 128, %s1626
                %s1631 = sshra.s32 %s1630, 4
                %s1632 = scalar_lea.vmem %s1445, %s1631
                // While loop
                $region149: #{esa_forward.7} parent=140 // loop_pre_header
                  _
                $region150: #{esa_forward.7} parent=140 // loop_header
                  %s1636 = sphi 0, %s1638
                  %p1637 = scmp.ge.s32.totalorder %s1636, %s1625
                  %s1641 = sphi 0, %s1650
                  %s1642 = sphi %s1629, %s1653
                  %s1643 = sphi %s1632, %s1654
                $region151: #{esa_forward.7} parent=140 // loop_header_branch
                  %1640 = sbr.rel (%p1637) target = $region155
                $region152: #{esa_forward.7} parent=140 // loop_body
                  %v1644 = vld [vmem:[%s1642] sm:$0xff]
                  %1645 = vst [vmem:[%s1643] sm:$0xff] %v1644
                  %v1646 = vld [vmem:[%s1642 + $0x40] sm:$0xff]
                  %1647 = vst [vmem:[%s1643 + $0x48] sm:$0xff] %v1646
                  %s1648 = sadd.s32 1, %s1641
                  %p1649 = scmp.ge.s32.totalorder %s1648, %s1625
                  %s1650 = scalar_select %p1649, 0, %s1648
                  %s1651 = smul.u32 %s1650, 8
                  %s1652 = smul.u32 %s1650, 8
                  %s1653 = scalar_lea.vmem %s1629, %s1651 [#allocation3]
                  %s1654 = scalar_lea.vmem %s1632, %s1652
                $region153: #{esa_forward.7} parent=140 // loop_footer
                  %s1638 = sadd.s32 %s1636, 1
                $region154: #{esa_forward.7} parent=140 // loop_footer_branch
                  %1635 = sbr.rel target = $region150
                $region155: #{esa_forward.7} parent=140 // loop_exit
                  _
              $region141: #{esa_forward.7} parent=125 // pred_fallthru
                _
              %p1655 = pneg %p1472
              // Predicated region
              $region156: #{esa_forward.7} parent=125 // pred_check
                _
              $region157: #{esa_forward.7} parent=125 // pred_check_branch
                %1657 = sbr.rel (%p1472) target = $region159
              $region158: #{esa_forward.7} parent=125 // pred_region
                %s1658 = sand.u32 %s1446, 7
                %s1659 = ssub.s32 %s1446, %s1658
                %s1660 = scalar_lea.vmem %s1434, %s1659 [#allocation3]
                %s1661 = ssub.s32 %s1446, %s1658
                %s1662 = scalar_lea.vmem %s1445, %s1661
                %s1663 = sshrl.u32 %s1446, 3
                %s1664 = sshrl.u32 %s1663, 5
                // While loop
                $region160: #{esa_forward.7} parent=158 // loop_pre_header
                  _
                $region161: #{esa_forward.7} parent=158 // loop_header
                  %s1668 = sphi 0, %s1670
                  %p1669 = scmp.ge.s32.totalorder %s1668, %s1664
                  %s1673 = sphi 0, %s1806
                  %s1674 = sphi %s1434, %s1809
                  %s1675 = sphi %s1445, %s1810
                $region162: #{esa_forward.7} parent=158 // loop_header_branch
                  %1672 = sbr.rel (%p1669) target = $region166
                $region163: #{esa_forward.7} parent=158 // loop_body
                  %v1676 = vld [vmem:[%s1674] sm:$0xff]
                  %1677 = vst [vmem:[%s1675] sm:$0xff] %v1676
                  %v1678 = vld [vmem:[%s1674 + $0x8] sm:$0xff]
                  %1679 = vst [vmem:[%s1675 + $0x8] sm:$0xff] %v1678
                  %v1680 = vld [vmem:[%s1674 + $0x10] sm:$0xff]
                  %1681 = vst [vmem:[%s1675 + $0x10] sm:$0xff] %v1680
                  %v1682 = vld [vmem:[%s1674 + $0x18] sm:$0xff]
                  %1683 = vst [vmem:[%s1675 + $0x18] sm:$0xff] %v1682
                  %v1684 = vld [vmem:[%s1674 + $0x20] sm:$0xff]
                  %1685 = vst [vmem:[%s1675 + $0x20] sm:$0xff] %v1684
                  %v1686 = vld [vmem:[%s1674 + $0x28] sm:$0xff]
                  %1687 = vst [vmem:[%s1675 + $0x28] sm:$0xff] %v1686
                  %v1688 = vld [vmem:[%s1674 + $0x30] sm:$0xff]
                  %1689 = vst [vmem:[%s1675 + $0x30] sm:$0xff] %v1688
                  %v1690 = vld [vmem:[%s1674 + $0x38] sm:$0xff]
                  %1691 = vst [vmem:[%s1675 + $0x38] sm:$0xff] %v1690
                  %v1692 = vld [vmem:[%s1674 + $0x40] sm:$0xff]
                  %1693 = vst [vmem:[%s1675 + $0x40] sm:$0xff] %v1692
                  %v1694 = vld [vmem:[%s1674 + $0x48] sm:$0xff]
                  %1695 = vst [vmem:[%s1675 + $0x48] sm:$0xff] %v1694
                  %v1696 = vld [vmem:[%s1674 + $0x50] sm:$0xff]
                  %1697 = vst [vmem:[%s1675 + $0x50] sm:$0xff] %v1696
                  %v1698 = vld [vmem:[%s1674 + $0x58] sm:$0xff]
                  %1699 = vst [vmem:[%s1675 + $0x58] sm:$0xff] %v1698
                  %v1700 = vld [vmem:[%s1674 + $0x60] sm:$0xff]
                  %1701 = vst [vmem:[%s1675 + $0x60] sm:$0xff] %v1700
                  %v1702 = vld [vmem:[%s1674 + $0x68] sm:$0xff]
                  %1703 = vst [vmem:[%s1675 + $0x68] sm:$0xff] %v1702
                  %v1704 = vld [vmem:[%s1674 + $0x70] sm:$0xff]
                  %1705 = vst [vmem:[%s1675 + $0x70] sm:$0xff] %v1704
                  %v1706 = vld [vmem:[%s1674 + $0x78] sm:$0xff]
                  %1707 = vst [vmem:[%s1675 + $0x78] sm:$0xff] %v1706
                  %v1708 = vld [vmem:[%s1674 + $0x80] sm:$0xff]
                  %1709 = vst [vmem:[%s1675 + $0x80] sm:$0xff] %v1708
                  %v1710 = vld [vmem:[%s1674 + $0x88] sm:$0xff]
                  %1711 = vst [vmem:[%s1675 + $0x88] sm:$0xff] %v1710
                  %v1712 = vld [vmem:[%s1674 + $0x90] sm:$0xff]
                  %1713 = vst [vmem:[%s1675 + $0x90] sm:$0xff] %v1712
                  %v1714 = vld [vmem:[%s1674 + $0x98] sm:$0xff]
                  %1715 = vst [vmem:[%s1675 + $0x98] sm:$0xff] %v1714
                  %v1716 = vld [vmem:[%s1674 + $0xa0] sm:$0xff]
                  %1717 = vst [vmem:[%s1675 + $0xa0] sm:$0xff] %v1716
                  %v1718 = vld [vmem:[%s1674 + $0xa8] sm:$0xff]
                  %1719 = vst [vmem:[%s1675 + $0xa8] sm:$0xff] %v1718
                  %v1720 = vld [vmem:[%s1674 + $0xb0] sm:$0xff]
                  %1721 = vst [vmem:[%s1675 + $0xb0] sm:$0xff] %v1720
                  %v1722 = vld [vmem:[%s1674 + $0xb8] sm:$0xff]
                  %1723 = vst [vmem:[%s1675 + $0xb8] sm:$0xff] %v1722
                  %v1724 = vld [vmem:[%s1674 + $0xc0] sm:$0xff]
                  %1725 = vst [vmem:[%s1675 + $0xc0] sm:$0xff] %v1724
                  %v1726 = vld [vmem:[%s1674 + $0xc8] sm:$0xff]
                  %1727 = vst [vmem:[%s1675 + $0xc8] sm:$0xff] %v1726
                  %v1728 = vld [vmem:[%s1674 + $0xd0] sm:$0xff]
                  %1729 = vst [vmem:[%s1675 + $0xd0] sm:$0xff] %v1728
                  %v1730 = vld [vmem:[%s1674 + $0xd8] sm:$0xff]
                  %1731 = vst [vmem:[%s1675 + $0xd8] sm:$0xff] %v1730
                  %v1732 = vld [vmem:[%s1674 + $0xe0] sm:$0xff]
                  %1733 = vst [vmem:[%s1675 + $0xe0] sm:$0xff] %v1732
                  %v1734 = vld [vmem:[%s1674 + $0xe8] sm:$0xff]
                  %1735 = vst [vmem:[%s1675 + $0xe8] sm:$0xff] %v1734
                  %v1736 = vld [vmem:[%s1674 + $0xf0] sm:$0xff]
                  %1737 = vst [vmem:[%s1675 + $0xf0] sm:$0xff] %v1736
                  %v1738 = vld [vmem:[%s1674 + $0xf8] sm:$0xff]
                  %1739 = vst [vmem:[%s1675 + $0xf8] sm:$0xff] %v1738
                  %v1740 = vld [vmem:[%s1674 + $0x40] sm:$0xff]
                  %1741 = vst [vmem:[%s1675 + $0x48] sm:$0xff] %v1740
                  %v1742 = vld [vmem:[%s1674 + $0x48] sm:$0xff]
                  %1743 = vst [vmem:[%s1675 + $0x50] sm:$0xff] %v1742
                  %v1744 = vld [vmem:[%s1674 + $0x50] sm:$0xff]
                  %1745 = vst [vmem:[%s1675 + $0x58] sm:$0xff] %v1744
                  %v1746 = vld [vmem:[%s1674 + $0x58] sm:$0xff]
                  %1747 = vst [vmem:[%s1675 + $0x60] sm:$0xff] %v1746
                  %v1748 = vld [vmem:[%s1674 + $0x60] sm:$0xff]
                  %1749 = vst [vmem:[%s1675 + $0x68] sm:$0xff] %v1748
                  %v1750 = vld [vmem:[%s1674 + $0x68] sm:$0xff]
                  %1751 = vst [vmem:[%s1675 + $0x70] sm:$0xff] %v1750
                  %v1752 = vld [vmem:[%s1674 + $0x70] sm:$0xff]
                  %1753 = vst [vmem:[%s1675 + $0x78] sm:$0xff] %v1752
                  %v1754 = vld [vmem:[%s1674 + $0x78] sm:$0xff]
                  %1755 = vst [vmem:[%s1675 + $0x80] sm:$0xff] %v1754
                  %v1756 = vld [vmem:[%s1674 + $0x80] sm:$0xff]
                  %1757 = vst [vmem:[%s1675 + $0x88] sm:$0xff] %v1756
                  %v1758 = vld [vmem:[%s1674 + $0x88] sm:$0xff]
                  %1759 = vst [vmem:[%s1675 + $0x90] sm:$0xff] %v1758
                  %v1760 = vld [vmem:[%s1674 + $0x90] sm:$0xff]
                  %1761 = vst [vmem:[%s1675 + $0x98] sm:$0xff] %v1760
                  %v1762 = vld [vmem:[%s1674 + $0x98] sm:$0xff]
                  %1763 = vst [vmem:[%s1675 + $0xa0] sm:$0xff] %v1762
                  %v1764 = vld [vmem:[%s1674 + $0xa0] sm:$0xff]
                  %1765 = vst [vmem:[%s1675 + $0xa8] sm:$0xff] %v1764
                  %v1766 = vld [vmem:[%s1674 + $0xa8] sm:$0xff]
                  %1767 = vst [vmem:[%s1675 + $0xb0] sm:$0xff] %v1766
                  %v1768 = vld [vmem:[%s1674 + $0xb0] sm:$0xff]
                  %1769 = vst [vmem:[%s1675 + $0xb8] sm:$0xff] %v1768
                  %v1770 = vld [vmem:[%s1674 + $0xb8] sm:$0xff]
                  %1771 = vst [vmem:[%s1675 + $0xc0] sm:$0xff] %v1770
                  %v1772 = vld [vmem:[%s1674 + $0xc0] sm:$0xff]
                  %1773 = vst [vmem:[%s1675 + $0xc8] sm:$0xff] %v1772
                  %v1774 = vld [vmem:[%s1674 + $0xc8] sm:$0xff]
                  %1775 = vst [vmem:[%s1675 + $0xd0] sm:$0xff] %v1774
                  %v1776 = vld [vmem:[%s1674 + $0xd0] sm:$0xff]
                  %1777 = vst [vmem:[%s1675 + $0xd8] sm:$0xff] %v1776
                  %v1778 = vld [vmem:[%s1674 + $0xd8] sm:$0xff]
                  %1779 = vst [vmem:[%s1675 + $0xe0] sm:$0xff] %v1778
                  %v1780 = vld [vmem:[%s1674 + $0xe0] sm:$0xff]
                  %1781 = vst [vmem:[%s1675 + $0xe8] sm:$0xff] %v1780
                  %v1782 = vld [vmem:[%s1674 + $0xe8] sm:$0xff]
                  %1783 = vst [vmem:[%s1675 + $0xf0] sm:$0xff] %v1782
                  %v1784 = vld [vmem:[%s1674 + $0xf0] sm:$0xff]
                  %1785 = vst [vmem:[%s1675 + $0xf8] sm:$0xff] %v1784
                  %v1786 = vld [vmem:[%s1674 + $0xf8] sm:$0xff]
                  %1787 = vst [vmem:[%s1675 + $0x100] sm:$0xff] %v1786
                  %v1788 = vld [vmem:[%s1674 + $0x100] sm:$0xff]
                  %1789 = vst [vmem:[%s1675 + $0x108] sm:$0xff] %v1788
                  %v1790 = vld [vmem:[%s1674 + $0x108] sm:$0xff]
                  %1791 = vst [vmem:[%s1675 + $0x110] sm:$0xff] %v1790
                  %v1792 = vld [vmem:[%s1674 + $0x110] sm:$0xff]
                  %1793 = vst [vmem:[%s1675 + $0x118] sm:$0xff] %v1792
                  %v1794 = vld [vmem:[%s1674 + $0x118] sm:$0xff]
                  %1795 = vst [vmem:[%s1675 + $0x120] sm:$0xff] %v1794
                  %v1796 = vld [vmem:[%s1674 + $0x120] sm:$0xff]
                  %1797 = vst [vmem:[%s1675 + $0x128] sm:$0xff] %v1796
                  %v1798 = vld [vmem:[%s1674 + $0x128] sm:$0xff]
                  %1799 = vst [vmem:[%s1675 + $0x130] sm:$0xff] %v1798
                  %v1800 = vld [vmem:[%s1674 + $0x130] sm:$0xff]
                  %1801 = vst [vmem:[%s1675 + $0x138] sm:$0xff] %v1800
                  %v1802 = vld [vmem:[%s1674 + $0x138] sm:$0xff]
                  %1803 = vst [vmem:[%s1675 + $0x140] sm:$0xff] %v1802
                  %s1804 = sadd.s32 1, %s1673
                  %p1805 = scmp.ge.s32.totalorder %s1804, %s1664
                  %s1806 = scalar_select %p1805, 0, %s1804
                  %s1807 = smul.u32 %s1806, 256
                  %s1808 = smul.u32 %s1806, 256
                  %s1809 = scalar_lea.vmem %s1434, %s1807 [#allocation3]
                  %s1810 = scalar_lea.vmem %s1445, %s1808
                $region164: #{esa_forward.7} parent=158 // loop_footer
                  %s1670 = sadd.s32 %s1668, 1
                $region165: #{esa_forward.7} parent=158 // loop_footer_branch
                  %1667 = sbr.rel target = $region161
                $region166: #{esa_forward.7} parent=158 // loop_exit
                  _
                %s1811 = sshrl.u32 %s1663, 5
                %s1812 = sand.u32 %s1663, 31
                %s1813 = smul.u32 %s1811, 32
                %s1814 = smul.u32 128, %s1813
                %s1815 = sshra.s32 %s1814, 4
                %s1816 = scalar_lea.vmem %s1434, %s1815 [#allocation3]
                %s1817 = smul.u32 128, %s1813
                %s1818 = sshra.s32 %s1817, 4
                %s1819 = scalar_lea.vmem %s1445, %s1818
                // While loop
                $region167: #{esa_forward.7} parent=158 // loop_pre_header
                  _
                $region168: #{esa_forward.7} parent=158 // loop_header
                  %s1823 = sphi 0, %s1825
                  %p1824 = scmp.ge.s32.totalorder %s1823, %s1812
                  %s1828 = sphi 0, %s1837
                  %s1829 = sphi %s1816, %s1840
                  %s1830 = sphi %s1819, %s1841
                $region169: #{esa_forward.7} parent=158 // loop_header_branch
                  %1827 = sbr.rel (%p1824) target = $region173
                $region170: #{esa_forward.7} parent=158 // loop_body
                  %v1831 = vld [vmem:[%s1829] sm:$0xff]
                  %1832 = vst [vmem:[%s1830] sm:$0xff] %v1831
                  %v1833 = vld [vmem:[%s1829 + $0x40] sm:$0xff]
                  %1834 = vst [vmem:[%s1830 + $0x48] sm:$0xff] %v1833
                  %s1835 = sadd.s32 1, %s1828
                  %p1836 = scmp.ge.s32.totalorder %s1835, %s1812
                  %s1837 = scalar_select %p1836, 0, %s1835
                  %s1838 = smul.u32 %s1837, 8
                  %s1839 = smul.u32 %s1837, 8
                  %s1840 = scalar_lea.vmem %s1816, %s1838 [#allocation3]
                  %s1841 = scalar_lea.vmem %s1819, %s1839
                $region171: #{esa_forward.7} parent=158 // loop_footer
                  %s1825 = sadd.s32 %s1823, 1
                $region172: #{esa_forward.7} parent=158 // loop_footer_branch
                  %1822 = sbr.rel target = $region168
                $region173: #{esa_forward.7} parent=158 // loop_exit
                  _
                %s1842 = sshll.u32 1, %s1658
                %s1843 = ssub.s32 %s1842, 1
                loop: start=0, step=1, limit=1
                $region174: #{esa_forward.7} parent=158 // loop_pre_header
                  _
                $region175: #{esa_forward.7} parent=158 // loop_header
                  %s1845 = sphi 0, %s1849
                  %p1846 = scmp.ge.s32.totalorder %s1845, 1
                  %s1850 = sphi %s1660, %s1660
                  %s1851 = sphi %s1662, %s1662
                $region176: #{esa_forward.7} parent=158 // loop_header_branch
                  %1848 = sbr.rel (%p1846) target = $region180
                $region177: #{esa_forward.7} parent=158 // loop_body
                  %v1852 = vld [vmem:[%s1850] sm:%s1843]
                  %1853 = vst [vmem:[%s1851] sm:%s1843] %v1852
                  %v1854 = vld [vmem:[%s1850 + $0x40] sm:%s1843]
                  %1855 = vst [vmem:[%s1851 + $0x48] sm:%s1843] %v1854
                $region178: #{esa_forward.7} parent=158 // loop_footer
                  %s1849 = sadd.s32 1, %s1845
                $region179: #{esa_forward.7} parent=158 // loop_footer_branch
                  %1844 = sbr.rel target = $region175
                $region180: #{esa_forward.7} parent=158 // loop_exit
                  _
              $region159: #{esa_forward.7} parent=125 // pred_fallthru
                _
            $region126: #{esa_forward.7} parent=121 // pred_fallthru
              _
            // Predicated region
            $region127: #{esa_forward.7} parent=121 // pred_check
              %p1454 = pneg %p1450
            $region128: #{esa_forward.7} parent=121 // pred_check_branch
              %1456 = sbr.rel (%p1454) target = $region130
            $region129: #{esa_forward.7} parent=121 // pred_region
              %s1457 = sshll.u32 1, %s1446
              %s1458 = ssub.s32 %s1457, 1
              loop: start=0, step=1, limit=1
              $region131: #{esa_forward.7} parent=129 // loop_pre_header
                _
              $region132: #{esa_forward.7} parent=129 // loop_header
                %s1460 = sphi 0, %s1464
                %p1461 = scmp.ge.s32.totalorder %s1460, 1
                %s1465 = sphi %s1434, %s1434
                %s1466 = sphi %s1445, %s1445
              $region133: #{esa_forward.7} parent=129 // loop_header_branch
                %1463 = sbr.rel (%p1461) target = $region137
              $region134: #{esa_forward.7} parent=129 // loop_body
                %v1467 = vld [vmem:[%s1465] sm:%s1458]
                %1468 = vst [vmem:[%s1466] sm:%s1458] %v1467
                %v1469 = vld [vmem:[%s1465 + $0x40] sm:%s1458]
                %1470 = vst [vmem:[%s1466 + $0x48] sm:%s1458] %v1469
              $region135: #{esa_forward.7} parent=129 // loop_footer
                %s1464 = sadd.s32 1, %s1460
              $region136: #{esa_forward.7} parent=129 // loop_footer_branch
                %1459 = sbr.rel target = $region132
              $region137: #{esa_forward.7} parent=129 // loop_exit
                _
            $region130: #{esa_forward.7} parent=121 // pred_fallthru
              _
          $region122: #{esa_forward.7} parent=117 // pred_fallthru
            _
          %1856 = vnop
        $region118: #{esa_forward.7} parent=109 // pred_fallthru
          _
      $region110: #{esa_forward.7} parent=5 // pred_fallthru
        _
      %p1857 = scmp.le.s32.totalorder 2, %s13
      // Predicated region
      $region181: #{esa_forward.7} parent=5 // pred_check
        %p1858 = pneg %p1857
      $region182: #{esa_forward.7} parent=5 // pred_check_branch
        %1860 = sbr.rel (%p1858) target = $region184
      $region183: #{esa_forward.7} parent=5 // pred_region
        %s1861 = ssub.s32 %s13, 2
        // Predicated region
        $region185: #{esa_forward.7} parent=183 // pred_check
          %p1862 = pneg %p204
        $region186: #{esa_forward.7} parent=183 // pred_check_branch
          %1864 = sbr.rel (%p1862) target = $region188
        $region187: #{esa_forward.7} parent=183 // pred_region
          %s1865 = sand.u32 %s189, 1
          %s1866 = sand.u32 %s189, 1
          %s1867 = smul.addr %s1866, 128
          %s1868 = scalar_lea.vmem [#allocation3], %s1867
        $region188: #{esa_forward.7} parent=183 // pred_fallthru
          _
      $region184: #{esa_forward.7} parent=5 // pred_fallthru
        _
    $region6: #{esa_forward.7} parent=1 // loop_footer
      %s17 = sadd.s32 1, %s13
    $region7: #{esa_forward.7} parent=1 // loop_footer_branch
      %12 = sbr.rel target = $region3
    $region8: #{esa_forward.7} parent=1 // loop_exit
      _

// kernel: esa_forward.6
$region0: #{esa_forward.6}
  #allocation0 [shape = 'u32[]', space=smem, size = 0x4, offset = 0x4, fixed_abs, tag = 'smem constant byte address 0x4 - core index']
  #allocation1 [shape = 'u32[144,128]{1,0:T(1,128)}', space=vmem, size = 0x12000, scoped, tag = 'internal scratch']
  #allocation2 [shape = 'f32[4,4,4]{2,1,0:T(4,128)}', space=vmem, size = 0x2000, scoped, tag = 'scratch operand']
  #allocation3 [shape = 'f32[4,4,4]{2,1,0:T(4,128)}', space=vmem, size = 0x2000, scoped, tag = 'scratch operand']
  %s0 = inlined_call_operand.vmem [shape: f32[2,4,4,4], index: 0, kind: input, shape index: {}]
  %s1 = inlined_call_operand.vmem [shape: f32[9,4,4], index: 1, kind: input, shape index: {}]
  %s2 = inlined_call_operand.vmem [shape: f32[4,1], index: 2, kind: input, shape index: {}]
  %s3 = inlined_call_operand.vmem [shape: f32[9,4,4], index: 3, kind: input, shape index: {}]
  %s4 = inlined_call_operand.vmem [shape: f32[4,1], index: 4, kind: input, shape index: {}]
  %s5 = inlined_call_operand.vmem [shape: f32[9,4,4], index: 5, kind: input, shape index: {}]
  %s6 = inlined_call_operand.vmem [shape: f32[4,1], index: 6, kind: input, shape index: {}]
  %s7 = inlined_call_operand.vmem [shape: f32[2,4,2,2], index: 7, kind: output, shape index: {}]
  %s8 = sld [smem:[#allocation0]]
  $region61: #{esa_forward.6} parent=0
    _
  %s10 = ssub.s32 1, %s8
  %s11 = scalar_select 0, %s10, %s8
  loop: start=0, step=1, limit=4
  $region2: #{esa_forward.6} parent=0 // loop_pre_header
    _
  $region3: #{esa_forward.6} parent=0 // loop_header
    %s13 = sphi 0, %s17
    %p14 = scmp.ge.s32.totalorder %s13, 4
    %s23 = sphi 0, %s25
    %s26 = sphi 0, %s23
    %s27 = sphi 0, %s26
    %s43 = sphi 0, %s27
    %s47 = sphi 0, %s47
    %s49 = sphi 0, %s47
    %s50 = sphi 0, %s49
    %s64 = sphi 0, %s50
    %s68 = sphi 0, %s68
    %s70 = sphi 0, %s68
    %s71 = sphi 0, %s70
    %s85 = sphi 0, %s71
    %s89 = sphi 0, %s89
    %s91 = sphi 0, %s89
    %s92 = sphi 0, %s91
    %s106 = sphi 0, %s92
    %s110 = sphi 0, %s110
    %s112 = sphi 0, %s110
    %s113 = sphi 0, %s112
    %s127 = sphi 0, %s113
    %s131 = sphi 0, %s131
    %s133 = sphi 0, %s131
    %s134 = sphi 0, %s133
    %s148 = sphi 0, %s134
    %s152 = sphi 0, %s152
    %s154 = sphi 0, %s152
    %s155 = sphi 0, %s154
    %s169 = sphi 0, %s155
    %s175 = sphi 0, %s177
    %s178 = sphi 0, %s175
    %s179 = sphi 0, %s178
    %s195 = sphi 0, %s179
  $region4: #{esa_forward.6} parent=0 // loop_header_branch
    %16 = sbr.rel (%p14) target = $region8
  $region5: #{esa_forward.6} parent=0 // loop_body
    %s18 = ssub.s32 %s13, 1
    %s19 = ssub.s32 %s13, 2
    %s20 = sadd.s32 %s13, 1
    %s21 = ssub.s32 %s13, %s20
    %p22 = scmp.eq.s32.totalorder %s21, 0
    %s24 = sadd.s32 %s23, 1
    %s25 = scalar_select %p22, %s23, %s24
    %p28 = pneg %p22
    %p29 = scmp.eq.s32.totalorder %s13, 1
    %p30 = por %p28, %p29
    %p31 = scmp.ne.s32.totalorder %s23, %s26
    %p32 = scmp.eq.s32.totalorder %s13, 0
    %p33 = por %p31, %p32
    %p34 = scmp.ne.s32.totalorder %s23, %s26
    %p35 = scmp.eq.s32.totalorder %s18, 1
    %p36 = por %p34, %p35
    %p37 = scmp.ne.s32.totalorder %s26, %s27
    %p38 = scmp.eq.s32.totalorder %s18, 0
    %p39 = por %p37, %p38
    %p40 = scmp.ne.s32.totalorder %s26, %s27
    %p41 = scmp.eq.s32.totalorder %s19, 1
    %p42 = por %p40, %p41
    %p44 = scmp.ne.s32.totalorder %s27, %s43
    %p45 = scmp.eq.s32.totalorder %s19, 0
    %p46 = por %p44, %p45
    %s48 = sadd.s32 %s47, 1
    %p51 = scmp.eq.s32.totalorder %s13, 1
    %p52 = scmp.ne.s32.totalorder %s47, %s49
    %p53 = scmp.eq.s32.totalorder %s13, 0
    %p54 = por %p52, %p53
    %p55 = scmp.ne.s32.totalorder %s47, %s49
    %p56 = scmp.eq.s32.totalorder %s18, 1
    %p57 = por %p55, %p56
    %p58 = scmp.ne.s32.totalorder %s49, %s50
    %p59 = scmp.eq.s32.totalorder %s18, 0
    %p60 = por %p58, %p59
    %p61 = scmp.ne.s32.totalorder %s49, %s50
    %p62 = scmp.eq.s32.totalorder %s19, 1
    %p63 = por %p61, %p62
    %p65 = scmp.ne.s32.totalorder %s50, %s64
    %p66 = scmp.eq.s32.totalorder %s19, 0
    %p67 = por %p65, %p66
    %s69 = sadd.s32 %s68, 1
    %p72 = scmp.eq.s32.totalorder %s13, 1
    %p73 = scmp.ne.s32.totalorder %s68, %s70
    %p74 = scmp.eq.s32.totalorder %s13, 0
    %p75 = por %p73, %p74
    %p76 = scmp.ne.s32.totalorder %s68, %s70
    %p77 = scmp.eq.s32.totalorder %s18, 1
    %p78 = por %p76, %p77
    %p79 = scmp.ne.s32.totalorder %s70, %s71
    %p80 = scmp.eq.s32.totalorder %s18, 0
    %p81 = por %p79, %p80
    %p82 = scmp.ne.s32.totalorder %s70, %s71
    %p83 = scmp.eq.s32.totalorder %s19, 1
    %p84 = por %p82, %p83
    %p86 = scmp.ne.s32.totalorder %s71, %s85
    %p87 = scmp.eq.s32.totalorder %s19, 0
    %p88 = por %p86, %p87
    %s90 = sadd.s32 %s89, 1
    %p93 = scmp.eq.s32.totalorder %s13, 1
    %p94 = scmp.ne.s32.totalorder %s89, %s91
    %p95 = scmp.eq.s32.totalorder %s13, 0
    %p96 = por %p94, %p95
    %p97 = scmp.ne.s32.totalorder %s89, %s91
    %p98 = scmp.eq.s32.totalorder %s18, 1
    %p99 = por %p97, %p98
    %p100 = scmp.ne.s32.totalorder %s91, %s92
    %p101 = scmp.eq.s32.totalorder %s18, 0
    %p102 = por %p100, %p101
    %p103 = scmp.ne.s32.totalorder %s91, %s92
    %p104 = scmp.eq.s32.totalorder %s19, 1
    %p105 = por %p103, %p104
    %p107 = scmp.ne.s32.totalorder %s92, %s106
    %p108 = scmp.eq.s32.totalorder %s19, 0
    %p109 = por %p107, %p108
    %s111 = sadd.s32 %s110, 1
    %p114 = scmp.eq.s32.totalorder %s13, 1
    %p115 = scmp.ne.s32.totalorder %s110, %s112
    %p116 = scmp.eq.s32.totalorder %s13, 0
    %p117 = por %p115, %p116
    %p118 = scmp.ne.s32.totalorder %s110, %s112
    %p119 = scmp.eq.s32.totalorder %s18, 1
    %p120 = por %p118, %p119
    %p121 = scmp.ne.s32.totalorder %s112, %s113
    %p122 = scmp.eq.s32.totalorder %s18, 0
    %p123 = por %p121, %p122
    %p124 = scmp.ne.s32.totalorder %s112, %s113
    %p125 = scmp.eq.s32.totalorder %s19, 1
    %p126 = por %p124, %p125
    %p128 = scmp.ne.s32.totalorder %s113, %s127
    %p129 = scmp.eq.s32.totalorder %s19, 0
    %p130 = por %p128, %p129
    %s132 = sadd.s32 %s131, 1
    %p135 = scmp.eq.s32.totalorder %s13, 1
    %p136 = scmp.ne.s32.totalorder %s131, %s133
    %p137 = scmp.eq.s32.totalorder %s13, 0
    %p138 = por %p136, %p137
    %p139 = scmp.ne.s32.totalorder %s131, %s133
    %p140 = scmp.eq.s32.totalorder %s18, 1
    %p141 = por %p139, %p140
    %p142 = scmp.ne.s32.totalorder %s133, %s134
    %p143 = scmp.eq.s32.totalorder %s18, 0
    %p144 = por %p142, %p143
    %p145 = scmp.ne.s32.totalorder %s133, %s134
    %p146 = scmp.eq.s32.totalorder %s19, 1
    %p147 = por %p145, %p146
    %p149 = scmp.ne.s32.totalorder %s134, %s148
    %p150 = scmp.eq.s32.totalorder %s19, 0
    %p151 = por %p149, %p150
    %s153 = sadd.s32 %s152, 1
    %p156 = scmp.eq.s32.totalorder %s13, 1
    %p157 = scmp.ne.s32.totalorder %s152, %s154
    %p158 = scmp.eq.s32.totalorder %s13, 0
    %p159 = por %p157, %p158
    %p160 = scmp.ne.s32.totalorder %s152, %s154
    %p161 = scmp.eq.s32.totalorder %s18, 1
    %p162 = por %p160, %p161
    %p163 = scmp.ne.s32.totalorder %s154, %s155
    %p164 = scmp.eq.s32.totalorder %s18, 0
    %p165 = por %p163, %p164
    %p166 = scmp.ne.s32.totalorder %s154, %s155
    %p167 = scmp.eq.s32.totalorder %s19, 1
    %p168 = por %p166, %p167
    %p170 = scmp.ne.s32.totalorder %s155, %s169
    %p171 = scmp.eq.s32.totalorder %s19, 0
    %p172 = por %p170, %p171
    %s173 = ssub.s32 %s13, %s20
    %p174 = scmp.eq.s32.totalorder %s173, 0
    %s176 = sadd.s32 %s175, 1
    %s177 = scalar_select %p174, %s175, %s176
    %p180 = pneg %p174
    %p181 = scmp.eq.s32.totalorder %s13, 1
    %p182 = por %p180, %p181
    %p183 = scmp.ne.s32.totalorder %s175, %s178
    %p184 = scmp.eq.s32.totalorder %s13, 0
    %p185 = por %p183, %p184
    %p186 = scmp.ne.s32.totalorder %s175, %s178
    %p187 = scmp.eq.s32.totalorder %s18, 1
    %p188 = por %p186, %p187
    %p189 = scmp.ne.s32.totalorder %s178, %s179
    %p190 = scmp.eq.s32.totalorder %s18, 0
    %p191 = por %p189, %p190
    %p192 = scmp.ne.s32.totalorder %s178, %s179
    %p193 = scmp.eq.s32.totalorder %s19, 1
    %p194 = por %p192, %p193
    %p196 = scmp.ne.s32.totalorder %s179, %s195
    %p197 = scmp.eq.s32.totalorder %s19, 0
    %p198 = por %p196, %p197
    %p199 = scmp.le.s32.totalorder 1, %s13
    %p200 = scmp.lt.s32.totalorder %s13, 3
    %p201 = pnand %p199, %p200
    %p202 = pneg %p201
    // Predicated region
    $region9: #{esa_forward.6} parent=5 // pred_check
      _
    $region10: #{esa_forward.6} parent=5 // pred_check_branch
      %204 = sbr.rel (%p201) target = $region12
    $region11: #{esa_forward.6} parent=5 // pred_region
      %s205 = ssub.s32 %s13, 1
      // Predicated region
      $region13: #{esa_forward.6} parent=11 // pred_check
        %p206 = pneg %p60
      $region14: #{esa_forward.6} parent=11 // pred_check_branch
        %208 = sbr.rel (%p206) target = $region16
      $region15: #{esa_forward.6} parent=11 // pred_region
        _
      $region16: #{esa_forward.6} parent=11 // pred_fallthru
        _
      // Predicated region
      $region17: #{esa_forward.6} parent=11 // pred_check
        %p209 = pneg %p81
      $region18: #{esa_forward.6} parent=11 // pred_check_branch
        %211 = sbr.rel (%p209) target = $region20
      $region19: #{esa_forward.6} parent=11 // pred_region
        _
      $region20: #{esa_forward.6} parent=11 // pred_fallthru
        _
      // Predicated region
      $region21: #{esa_forward.6} parent=11 // pred_check
        %p212 = pneg %p102
      $region22: #{esa_forward.6} parent=11 // pred_check_branch
        %214 = sbr.rel (%p212) target = $region24
      $region23: #{esa_forward.6} parent=11 // pred_region
        _
      $region24: #{esa_forward.6} parent=11 // pred_fallthru
        _
      // Predicated region
      $region25: #{esa_forward.6} parent=11 // pred_check
        %p215 = pneg %p123
      $region26: #{esa_forward.6} parent=11 // pred_check_branch
        %217 = sbr.rel (%p215) target = $region28
      $region27: #{esa_forward.6} parent=11 // pred_region
        _
      $region28: #{esa_forward.6} parent=11 // pred_fallthru
        _
      // Predicated region
      $region29: #{esa_forward.6} parent=11 // pred_check
        %p218 = pneg %p144
      $region30: #{esa_forward.6} parent=11 // pred_check_branch
        %220 = sbr.rel (%p218) target = $region32
      $region31: #{esa_forward.6} parent=11 // pred_region
        _
      $region32: #{esa_forward.6} parent=11 // pred_fallthru
        _
      // Predicated region
      $region33: #{esa_forward.6} parent=11 // pred_check
        %p221 = pneg %p165
      $region34: #{esa_forward.6} parent=11 // pred_check_branch
        %223 = sbr.rel (%p221) target = $region36
      $region35: #{esa_forward.6} parent=11 // pred_region
        _
      $region36: #{esa_forward.6} parent=11 // pred_fallthru
        _
    $region12: #{esa_forward.6} parent=5 // pred_fallthru
      _
    %p224 = scmp.lt.s32.totalorder %s13, 2
    // Predicated region
    $region37: #{esa_forward.6} parent=5 // pred_check
      %p225 = pneg %p224
    $region38: #{esa_forward.6} parent=5 // pred_check_branch
      %227 = sbr.rel (%p225) target = $region40
    $region39: #{esa_forward.6} parent=5 // pred_region
      // Predicated region
      $region41: #{esa_forward.6} parent=39 // pred_check
        %p228 = pneg %p33
      $region42: #{esa_forward.6} parent=39 // pred_check_branch
        %230 = sbr.rel (%p228) target = $region44
      $region43: #{esa_forward.6} parent=39 // pred_region
        %p231 = scmp.lt.s32.totalorder %s13, 1
        %s232 = scalar_select %p231, %s13, 1
        %s233 = smul.addr %s232, 4
        %s234 = smul.addr %s233, 4
        %s235 = scalar_lea.vmem %s0, %s234
      $region44: #{esa_forward.6} parent=39 // pred_fallthru
        _
    $region40: #{esa_forward.6} parent=5 // pred_fallthru
      _
    %p236 = scmp.le.s32.totalorder 1, %s13
    %p237 = scmp.lt.s32.totalorder %s13, 3
    %p238 = pnand %p236, %p237
    %p239 = pneg %p238
    // Predicated region
    $region45: #{esa_forward.6} parent=5 // pred_check
      _
    $region46: #{esa_forward.6} parent=5 // pred_check_branch
      %241 = sbr.rel (%p238) target = $region48
    $region47: #{esa_forward.6} parent=5 // pred_region
      %s242 = ssub.s32 %s13, 1
      %p243 = scmp.lt.s32.totalorder %s18, 1
      %s244 = scalar_select %p243, %s18, 1
      %s245 = smul.addr %s244, 4
      %s246 = smul.addr %s245, 4
      %s247 = scalar_lea.vmem %s0, %s246
      %p248 = pneg %p39
      %p249 = pneg %p36
      %p250 = pneg %p60
      %p251 = pneg %p57
      %p252 = pneg %p81
      %p253 = pneg %p78
      %p254 = pneg %p102
      %p255 = pneg %p99
      %p256 = pneg %p123
      %p257 = pneg %p120
      %p258 = pneg %p144
      %p259 = pneg %p141
      %p260 = pneg %p165
      %p261 = pneg %p162
      %p262 = pneg %p191
      %p263 = pneg %p188
      %p264 = scmp.lt.s32.totalorder %s18, 1
      %s265 = scalar_select %p264, %s18, 1
      %s266 = smul.addr %s265, 4
      %s267 = smul.addr %s266, 2
      %s268 = scalar_lea.vmem %s7, %s267
      %p269 = scmp.lt.s32.totalorder %s18, 1
      %s270 = scalar_select %p269, %s18, 1
      %s271 = smul.addr %s270, 4
      %s272 = smul.addr %s271, 4
      %s273 = scalar_lea.vmem %s0, %s272
      %p274 = scmp.lt.s32.totalorder %s18, 1
      %s275 = scalar_select %p274, %s18, 1
      %s276 = smul.addr %s275, 4
      %s277 = smul.addr %s276, 2
      %s278 = scalar_lea.vmem %s7, %s277
      %vm279 = vcmask 27648
      %280 = vst.msk [vmem:[#allocation2] sm:$0xf] %vm279, 0.0
      %281 = vst.msk [vmem:[#allocation2 + $0x4] sm:$0xf] %vm279, 0.0
      %282 = vst.msk [vmem:[#allocation2 + $0x8] sm:$0xf] %vm279, 0.0
      %283 = vst.msk [vmem:[#allocation2 + $0xc] sm:$0xf] %vm279, 0.0
      %284 = vst.msk [vmem:[#allocation3] sm:$0xf] %vm279, 0.0
      %285 = vst.msk [vmem:[#allocation3 + $0x4] sm:$0xf] %vm279, 0.0
      %286 = vst.msk [vmem:[#allocation3 + $0x8] sm:$0xf] %vm279, 0.0
      %287 = vst.msk [vmem:[#allocation3 + $0xc] sm:$0xf] %vm279, 0.0
      %v288 = vld [vmem:[%s273] sm:$0x1]
      %v289 = vld [vmem:[%s273 + $0x4] sm:$0x1]
      %v290 = vld [vmem:[%s273 + $0x8] sm:$0x1]
      %v291 = vld [vmem:[%s273 + $0xc] sm:$0x1]
      %v292 = vld [vmem:[%s1] sm:$0xf]
      %s293 = scalar_lea.vmem %s1, 4
      %v294 = vld [vmem:[%s293] sm:$0xf]
      %v299 = vrot.slane %v289, 7
      %vm300 = vcmask 1041409
      %v301 = vsel %vm300, %v299, %v288
      %v302 = vrot.slane %v290, 6
      %vm303 = vcmask 1042434
      %v304 = vsel %vm303, %v302, %v301
      %v305 = vrot.slane %v291, 5
      %vm306 = vcmask 1043459
      %v307 = vsel %vm306, %v305, %v304
      %308 = vrot.lane.b32.xlu0 %v307, 127
      %v309 = vpop.permute.xlu0 %308
      %vm310 = vcmask 31744
      %v312 = vsel %vm310, %v294, 0
      %vm314 = vcmask 1043456
      %v315 = vsel %vm314, %v309, 0
      %317 = vmatprep.subr.mxu0 0.0
      %318 = vmatpush1.msra.mxu0 0.0
      %319 = vmatprep.subr.mxu0 0.0
      %320 = vmatpush1.msra.mxu0 0.0
      %321 = vmatprep.subr.mxu0 0.0
      %322 = vmatpush1.msra.mxu0 0.0
      %323 = vmatprep.subr.mxu0 0.0
      %324 = vmatpush1.msra.mxu0 0.0
      %325 = vmatprep.subr.mxu0 0.0
      %326 = vmatpush1.msra.mxu0 0.0
      %327 = vmatprep.subr.mxu0 0.0
      %328 = vmatpush1.msra.mxu0 0.0
      %329 = vmatprep.subr.mxu0 0.0
      %330 = vmatpush1.msra.mxu0 0.0
      %331 = vmatprep.subr.mxu0 0.0
      %332 = vmatpush1.msra.mxu0 0.0
      %333 = vmatprep.subr.mxu0 0.0
      %334 = vmatpush1.msra.mxu0 0.0
      %335 = vmatprep.subr.mxu0 0.0
      %336 = vmatpush1.msra.mxu0 0.0
      %337 = vmatprep.subr.mxu0 0.0
      %338 = vmatpush1.msra.mxu0 0.0
      %339 = vmatprep.subr.mxu0 0.0
      %340 = vmatpush1.msra.mxu0 0.0
      %341 = vmatprep.subr.mxu0 0.0
      %342 = vmatpush1.msra.mxu0 0.0
      %343 = vmatprep.subr.mxu0 0.0
      %344 = vmatpush1.msra.mxu0 0.0
      %345 = vmatprep.subr.mxu0 0.0
      %346 = vmatpush1.msra.mxu0 0.0
      %347 = vmatprep.subr.mxu0 0.0
      %348 = vmatpush1.msra.mxu0 %v315
      %349 = vmatprep.subr.mxu0 0.0
      %350 = vmatpush2.msra.mxu0 0.0
      %351 = vmatprep.subr.mxu0 0.0
      %352 = vmatpush2.msra.mxu0 0.0
      %353 = vmatprep.subr.mxu0 0.0
      %354 = vmatpush2.msra.mxu0 0.0
      %355 = vmatprep.subr.mxu0 0.0
      %356 = vmatpush2.msra.mxu0 0.0
      %357 = vmatprep.subr.mxu0 0.0
      %358 = vmatpush2.msra.mxu0 0.0
      %359 = vmatprep.subr.mxu0 0.0
      %360 = vmatpush2.msra.mxu0 0.0
      %361 = vmatprep.subr.mxu0 0.0
      %362 = vmatpush2.msra.mxu0 0.0
      %363 = vmatprep.subr.mxu0 0.0
      %364 = vmatpush2.msra.mxu0 0.0
      %365 = vmatprep.subr.mxu0 0.0
      %366 = vmatpush2.msra.mxu0 0.0
      %367 = vmatprep.subr.mxu0 0.0
      %368 = vmatpush2.msra.mxu0 0.0
      %369 = vmatprep.subr.mxu0 0.0
      %370 = vmatpush2.msra.mxu0 0.0
      %371 = vmatprep.subr.mxu0 0.0
      %372 = vmatpush2.msra.mxu0 0.0
      %373 = vmatprep.subr.mxu0 0.0
      %374 = vmatpush2.msra.mxu0 0.0
      %375 = vmatprep.subr.mxu0 0.0
      %376 = vmatpush2.msra.mxu0 0.0
      %377 = vmatprep.subr.mxu0 0.0
      %378 = vmatpush2.msra.mxu0 0.0
      %379 = vmatprep.subr.mxu0 0.0
      %380 = vmatpush2.msra.mxu0 0.0
      %381 = vmatprep.mubr.f32.mxu0 0.0
      %382 = vmatmul.mubr.f32.gmra.mxu0 %v312
      %v383 = vpop.f32.mrf.mxu0
      %v384 = vadd.f32 0.0, %v383
      %v385 = vpop.f32.mrf.mxu0
      %386 = vdwg.mxu0
      %v388 = vsel %vm310, %v292, 0
      %v390 = vsel %vm314, %v307, 0
      %392 = vmatprep.subr.mxu0 0.0
      %393 = vmatpush1.msra.mxu0 0.0
      %394 = vmatprep.subr.mxu0 0.0
      %395 = vmatpush1.msra.mxu0 0.0
      %396 = vmatprep.subr.mxu0 0.0
      %397 = vmatpush1.msra.mxu0 0.0
      %398 = vmatprep.subr.mxu0 0.0
      %399 = vmatpush1.msra.mxu0 0.0
      %400 = vmatprep.subr.mxu0 0.0
      %401 = vmatpush1.msra.mxu0 0.0
      %402 = vmatprep.subr.mxu0 0.0
      %403 = vmatpush1.msra.mxu0 0.0
      %404 = vmatprep.subr.mxu0 0.0
      %405 = vmatpush1.msra.mxu0 0.0
      %406 = vmatprep.subr.mxu0 0.0
      %407 = vmatpush1.msra.mxu0 0.0
      %408 = vmatprep.subr.mxu0 0.0
      %409 = vmatpush1.msra.mxu0 0.0
      %410 = vmatprep.subr.mxu0 0.0
      %411 = vmatpush1.msra.mxu0 0.0
      %412 = vmatprep.subr.mxu0 0.0
      %413 = vmatpush1.msra.mxu0 0.0
      %414 = vmatprep.subr.mxu0 0.0
      %415 = vmatpush1.msra.mxu0 0.0
      %416 = vmatprep.subr.mxu0 0.0
      %417 = vmatpush1.msra.mxu0 0.0
      %418 = vmatprep.subr.mxu0 0.0
      %419 = vmatpush1.msra.mxu0 0.0
      %420 = vmatprep.subr.mxu0 0.0
      %421 = vmatpush1.msra.mxu0 0.0
      %422 = vmatprep.subr.mxu0 0.0
      %423 = vmatpush1.msra.mxu0 %v390
      %424 = vmatprep.subr.mxu0 0.0
      %425 = vmatpush2.msra.mxu0 0.0
      %426 = vmatprep.subr.mxu0 0.0
      %427 = vmatpush2.msra.mxu0 0.0
      %428 = vmatprep.subr.mxu0 0.0
      %429 = vmatpush2.msra.mxu0 0.0
      %430 = vmatprep.subr.mxu0 0.0
      %431 = vmatpush2.msra.mxu0 0.0
      %432 = vmatprep.subr.mxu0 0.0
      %433 = vmatpush2.msra.mxu0 0.0
      %434 = vmatprep.subr.mxu0 0.0
      %435 = vmatpush2.msra.mxu0 0.0
      %436 = vmatprep.subr.mxu0 0.0
      %437 = vmatpush2.msra.mxu0 0.0
      %438 = vmatprep.subr.mxu0 0.0
      %439 = vmatpush2.msra.mxu0 0.0
      %440 = vmatprep.subr.mxu0 0.0
      %441 = vmatpush2.msra.mxu0 0.0
      %442 = vmatprep.subr.mxu0 0.0
      %443 = vmatpush2.msra.mxu0 0.0
      %444 = vmatprep.subr.mxu0 0.0
      %445 = vmatpush2.msra.mxu0 0.0
      %446 = vmatprep.subr.mxu0 0.0
      %447 = vmatpush2.msra.mxu0 0.0
      %448 = vmatprep.subr.mxu0 0.0
      %449 = vmatpush2.msra.mxu0 0.0
      %450 = vmatprep.subr.mxu0 0.0
      %451 = vmatpush2.msra.mxu0 0.0
      %452 = vmatprep.subr.mxu0 0.0
      %453 = vmatpush2.msra.mxu0 0.0
      %454 = vmatprep.subr.mxu0 0.0
      %455 = vmatpush2.msra.mxu0 0.0
      %456 = vmatprep.mubr.f32.mxu0 0.0
      %457 = vmatmul.mubr.f32.gmra.mxu0 %v388
      %v458 = vpop.f32.mrf.mxu0
      %v459 = vadd.f32 %v384, %v458
      %v460 = vpop.f32.mrf.mxu0
      %461 = vdwg.mxu0
      %s462 = scalar_lea.vmem %s1, 8
      %v463 = vld [vmem:[%s462] sm:$0xf]
      %464 = vrot.lane.b32.xlu0 %v307, 126
      %v465 = vpop.permute.xlu0 %464
      %v467 = vsel %vm310, %v463, 0
      %v469 = vsel %vm314, %v465, 0
      %471 = vmatprep.subr.mxu0 0.0
      %472 = vmatpush1.msra.mxu0 0.0
      %473 = vmatprep.subr.mxu0 0.0
      %474 = vmatpush1.msra.mxu0 0.0
      %475 = vmatprep.subr.mxu0 0.0
      %476 = vmatpush1.msra.mxu0 0.0
      %477 = vmatprep.subr.mxu0 0.0
      %478 = vmatpush1.msra.mxu0 0.0
      %479 = vmatprep.subr.mxu0 0.0
      %480 = vmatpush1.msra.mxu0 0.0
      %481 = vmatprep.subr.mxu0 0.0
      %482 = vmatpush1.msra.mxu0 0.0
      %483 = vmatprep.subr.mxu0 0.0
      %484 = vmatpush1.msra.mxu0 0.0
      %485 = vmatprep.subr.mxu0 0.0
      %486 = vmatpush1.msra.mxu0 0.0
      %487 = vmatprep.subr.mxu0 0.0
      %488 = vmatpush1.msra.mxu0 0.0
      %489 = vmatprep.subr.mxu0 0.0
      %490 = vmatpush1.msra.mxu0 0.0
      %491 = vmatprep.subr.mxu0 0.0
      %492 = vmatpush1.msra.mxu0 0.0
      %493 = vmatprep.subr.mxu0 0.0
      %494 = vmatpush1.msra.mxu0 0.0
      %495 = vmatprep.subr.mxu0 0.0
      %496 = vmatpush1.msra.mxu0 0.0
      %497 = vmatprep.subr.mxu0 0.0
      %498 = vmatpush1.msra.mxu0 0.0
      %499 = vmatprep.subr.mxu0 0.0
      %500 = vmatpush1.msra.mxu0 0.0
      %501 = vmatprep.subr.mxu0 0.0
      %502 = vmatpush1.msra.mxu0 %v469
      %503 = vmatprep.subr.mxu0 0.0
      %504 = vmatpush2.msra.mxu0 0.0
      %505 = vmatprep.subr.mxu0 0.0
      %506 = vmatpush2.msra.mxu0 0.0
      %507 = vmatprep.subr.mxu0 0.0
      %508 = vmatpush2.msra.mxu0 0.0
      %509 = vmatprep.subr.mxu0 0.0
      %510 = vmatpush2.msra.mxu0 0.0
      %511 = vmatprep.subr.mxu0 0.0
      %512 = vmatpush2.msra.mxu0 0.0
      %513 = vmatprep.subr.mxu0 0.0
      %514 = vmatpush2.msra.mxu0 0.0
      %515 = vmatprep.subr.mxu0 0.0
      %516 = vmatpush2.msra.mxu0 0.0
      %517 = vmatprep.subr.mxu0 0.0
      %518 = vmatpush2.msra.mxu0 0.0
      %519 = vmatprep.subr.mxu0 0.0
      %520 = vmatpush2.msra.mxu0 0.0
      %521 = vmatprep.subr.mxu0 0.0
      %522 = vmatpush2.msra.mxu0 0.0
      %523 = vmatprep.subr.mxu0 0.0
      %524 = vmatpush2.msra.mxu0 0.0
      %525 = vmatprep.subr.mxu0 0.0
      %526 = vmatpush2.msra.mxu0 0.0
      %527 = vmatprep.subr.mxu0 0.0
      %528 = vmatpush2.msra.mxu0 0.0
      %529 = vmatprep.subr.mxu0 0.0
      %530 = vmatpush2.msra.mxu0 0.0
      %531 = vmatprep.subr.mxu0 0.0
      %532 = vmatpush2.msra.mxu0 0.0
      %533 = vmatprep.subr.mxu0 0.0
      %534 = vmatpush2.msra.mxu0 0.0
      %535 = vmatprep.mubr.f32.mxu0 0.0
      %536 = vmatmul.mubr.f32.gmra.mxu0 %v467
      %v537 = vpop.f32.mrf.mxu0
      %v538 = vadd.f32 0.0, %v537
      %v539 = vpop.f32.mrf.mxu0
      %540 = vdwg.mxu0
      %v541 = vadd.f32 %v459, %v538
      %v542 = vld [vmem:[%s273 + $0x1] sm:$0x1]
      %v543 = vld [vmem:[%s273 + $0x5] sm:$0x1]
      %v544 = vld [vmem:[%s273 + $0x9] sm:$0x1]
      %v545 = vld [vmem:[%s273 + $0xd] sm:$0x1]
      %s546 = scalar_lea.vmem %s1, 12
      %v547 = vld [vmem:[%s546] sm:$0xf]
      %v552 = vrot.slane %v543, 7
      %v553 = vsel %vm300, %v552, %v542
      %v554 = vrot.slane %v544, 6
      %v555 = vsel %vm303, %v554, %v553
      %v556 = vrot.slane %v545, 5
      %v557 = vsel %vm306, %v556, %v555
      %v559 = vsel %vm310, %v547, 0
      %v561 = vsel %vm314, %v557, 0
      %563 = vmatprep.subr.mxu0 0.0
      %564 = vmatpush1.msra.mxu0 0.0
      %565 = vmatprep.subr.mxu0 0.0
      %566 = vmatpush1.msra.mxu0 0.0
      %567 = vmatprep.subr.mxu0 0.0
      %568 = vmatpush1.msra.mxu0 0.0
      %569 = vmatprep.subr.mxu0 0.0
      %570 = vmatpush1.msra.mxu0 0.0
      %571 = vmatprep.subr.mxu0 0.0
      %572 = vmatpush1.msra.mxu0 0.0
      %573 = vmatprep.subr.mxu0 0.0
      %574 = vmatpush1.msra.mxu0 0.0
      %575 = vmatprep.subr.mxu0 0.0
      %576 = vmatpush1.msra.mxu0 0.0
      %577 = vmatprep.subr.mxu0 0.0
      %578 = vmatpush1.msra.mxu0 0.0
      %579 = vmatprep.subr.mxu0 0.0
      %580 = vmatpush1.msra.mxu0 0.0
      %581 = vmatprep.subr.mxu0 0.0
      %582 = vmatpush1.msra.mxu0 0.0
      %583 = vmatprep.subr.mxu0 0.0
      %584 = vmatpush1.msra.mxu0 0.0
      %585 = vmatprep.subr.mxu0 0.0
      %586 = vmatpush1.msra.mxu0 0.0
      %587 = vmatprep.subr.mxu0 0.0
      %588 = vmatpush1.msra.mxu0 0.0
      %589 = vmatprep.subr.mxu0 0.0
      %590 = vmatpush1.msra.mxu0 0.0
      %591 = vmatprep.subr.mxu0 0.0
      %592 = vmatpush1.msra.mxu0 0.0
      %593 = vmatprep.subr.mxu0 0.0
      %594 = vmatpush1.msra.mxu0 %v561
      %595 = vmatprep.subr.mxu0 0.0
      %596 = vmatpush2.msra.mxu0 0.0
      %597 = vmatprep.subr.mxu0 0.0
      %598 = vmatpush2.msra.mxu0 0.0
      %599 = vmatprep.subr.mxu0 0.0
      %600 = vmatpush2.msra.mxu0 0.0
      %601 = vmatprep.subr.mxu0 0.0
      %602 = vmatpush2.msra.mxu0 0.0
      %603 = vmatprep.subr.mxu0 0.0
      %604 = vmatpush2.msra.mxu0 0.0
      %605 = vmatprep.subr.mxu0 0.0
      %606 = vmatpush2.msra.mxu0 0.0
      %607 = vmatprep.subr.mxu0 0.0
      %608 = vmatpush2.msra.mxu0 0.0
      %609 = vmatprep.subr.mxu0 0.0
      %610 = vmatpush2.msra.mxu0 0.0
      %611 = vmatprep.subr.mxu0 0.0
      %612 = vmatpush2.msra.mxu0 0.0
      %613 = vmatprep.subr.mxu0 0.0
      %614 = vmatpush2.msra.mxu0 0.0
      %615 = vmatprep.subr.mxu0 0.0
      %616 = vmatpush2.msra.mxu0 0.0
      %617 = vmatprep.subr.mxu0 0.0
      %618 = vmatpush2.msra.mxu0 0.0
      %619 = vmatprep.subr.mxu0 0.0
      %620 = vmatpush2.msra.mxu0 0.0
      %621 = vmatprep.subr.mxu0 0.0
      %622 = vmatpush2.msra.mxu0 0.0
      %623 = vmatprep.subr.mxu0 0.0
      %624 = vmatpush2.msra.mxu0 0.0
      %625 = vmatprep.subr.mxu0 0.0
      %626 = vmatpush2.msra.mxu0 0.0
      %627 = vmatprep.mubr.f32.mxu0 0.0
      %628 = vmatmul.mubr.f32.gmra.mxu0 %v559
      %v629 = vpop.f32.mrf.mxu0
      %v630 = vadd.f32 0.0, %v629
      %v631 = vpop.f32.mrf.mxu0
      %632 = vdwg.mxu0
      %v633 = vadd.f32 %v541, %v630
      %s634 = scalar_lea.vmem %s1, 16
      %v635 = vld [vmem:[%s634] sm:$0xf]
      %636 = vrot.lane.b32.xlu0 %v557, 127
      %v637 = vpop.permute.xlu0 %636
      %v639 = vsel %vm310, %v635, 0
      %v641 = vsel %vm314, %v637, 0
      %643 = vmatprep.subr.mxu0 0.0
      %644 = vmatpush1.msra.mxu0 0.0
      %645 = vmatprep.subr.mxu0 0.0
      %646 = vmatpush1.msra.mxu0 0.0
      %647 = vmatprep.subr.mxu0 0.0
      %648 = vmatpush1.msra.mxu0 0.0
      %649 = vmatprep.subr.mxu0 0.0
      %650 = vmatpush1.msra.mxu0 0.0
      %651 = vmatprep.subr.mxu0 0.0
      %652 = vmatpush1.msra.mxu0 0.0
      %653 = vmatprep.subr.mxu0 0.0
      %654 = vmatpush1.msra.mxu0 0.0
      %655 = vmatprep.subr.mxu0 0.0
      %656 = vmatpush1.msra.mxu0 0.0
      %657 = vmatprep.subr.mxu0 0.0
      %658 = vmatpush1.msra.mxu0 0.0
      %659 = vmatprep.subr.mxu0 0.0
      %660 = vmatpush1.msra.mxu0 0.0
      %661 = vmatprep.subr.mxu0 0.0
      %662 = vmatpush1.msra.mxu0 0.0
      %663 = vmatprep.subr.mxu0 0.0
      %664 = vmatpush1.msra.mxu0 0.0
      %665 = vmatprep.subr.mxu0 0.0
      %666 = vmatpush1.msra.mxu0 0.0
      %667 = vmatprep.subr.mxu0 0.0
      %668 = vmatpush1.msra.mxu0 0.0
      %669 = vmatprep.subr.mxu0 0.0
      %670 = vmatpush1.msra.mxu0 0.0
      %671 = vmatprep.subr.mxu0 0.0
      %672 = vmatpush1.msra.mxu0 0.0
      %673 = vmatprep.subr.mxu0 0.0
      %674 = vmatpush1.msra.mxu0 %v641
      %675 = vmatprep.subr.mxu0 0.0
      %676 = vmatpush2.msra.mxu0 0.0
      %677 = vmatprep.subr.mxu0 0.0
      %678 = vmatpush2.msra.mxu0 0.0
      %679 = vmatprep.subr.mxu0 0.0
      %680 = vmatpush2.msra.mxu0 0.0
      %681 = vmatprep.subr.mxu0 0.0
      %682 = vmatpush2.msra.mxu0 0.0
      %683 = vmatprep.subr.mxu0 0.0
      %684 = vmatpush2.msra.mxu0 0.0
      %685 = vmatprep.subr.mxu0 0.0
      %686 = vmatpush2.msra.mxu0 0.0
      %687 = vmatprep.subr.mxu0 0.0
      %688 = vmatpush2.msra.mxu0 0.0
      %689 = vmatprep.subr.mxu0 0.0
      %690 = vmatpush2.msra.mxu0 0.0
      %691 = vmatprep.subr.mxu0 0.0
      %692 = vmatpush2.msra.mxu0 0.0
      %693 = vmatprep.subr.mxu0 0.0
      %694 = vmatpush2.msra.mxu0 0.0
      %695 = vmatprep.subr.mxu0 0.0
      %696 = vmatpush2.msra.mxu0 0.0
      %697 = vmatprep.subr.mxu0 0.0
      %698 = vmatpush2.msra.mxu0 0.0
      %699 = vmatprep.subr.mxu0 0.0
      %700 = vmatpush2.msra.mxu0 0.0
      %701 = vmatprep.subr.mxu0 0.0
      %702 = vmatpush2.msra.mxu0 0.0
      %703 = vmatprep.subr.mxu0 0.0
      %704 = vmatpush2.msra.mxu0 0.0
      %705 = vmatprep.subr.mxu0 0.0
      %706 = vmatpush2.msra.mxu0 0.0
      %707 = vmatprep.mubr.f32.mxu0 0.0
      %708 = vmatmul.mubr.f32.gmra.mxu0 %v639
      %v709 = vpop.f32.mrf.mxu0
      %v710 = vadd.f32 0.0, %v709
      %v711 = vpop.f32.mrf.mxu0
      %712 = vdwg.mxu0
      %v713 = vadd.f32 %v633, %v710
      %s714 = scalar_lea.vmem %s1, 20
      %v715 = vld [vmem:[%s714] sm:$0xf]
      %716 = vrot.lane.b32.xlu0 %v557, 126
      %v717 = vpop.permute.xlu0 %716
      %v719 = vsel %vm310, %v715, 0
      %v721 = vsel %vm314, %v717, 0
      %723 = vmatprep.subr.mxu0 0.0
      %724 = vmatpush1.msra.mxu0 0.0
      %725 = vmatprep.subr.mxu0 0.0
      %726 = vmatpush1.msra.mxu0 0.0
      %727 = vmatprep.subr.mxu0 0.0
      %728 = vmatpush1.msra.mxu0 0.0
      %729 = vmatprep.subr.mxu0 0.0
      %730 = vmatpush1.msra.mxu0 0.0
      %731 = vmatprep.subr.mxu0 0.0
      %732 = vmatpush1.msra.mxu0 0.0
      %733 = vmatprep.subr.mxu0 0.0
      %734 = vmatpush1.msra.mxu0 0.0
      %735 = vmatprep.subr.mxu0 0.0
      %736 = vmatpush1.msra.mxu0 0.0
      %737 = vmatprep.subr.mxu0 0.0
      %738 = vmatpush1.msra.mxu0 0.0
      %739 = vmatprep.subr.mxu0 0.0
      %740 = vmatpush1.msra.mxu0 0.0
      %741 = vmatprep.subr.mxu0 0.0
      %742 = vmatpush1.msra.mxu0 0.0
      %743 = vmatprep.subr.mxu0 0.0
      %744 = vmatpush1.msra.mxu0 0.0
      %745 = vmatprep.subr.mxu0 0.0
      %746 = vmatpush1.msra.mxu0 0.0
      %747 = vmatprep.subr.mxu0 0.0
      %748 = vmatpush1.msra.mxu0 0.0
      %749 = vmatprep.subr.mxu0 0.0
      %750 = vmatpush1.msra.mxu0 0.0
      %751 = vmatprep.subr.mxu0 0.0
      %752 = vmatpush1.msra.mxu0 0.0
      %753 = vmatprep.subr.mxu0 0.0
      %754 = vmatpush1.msra.mxu0 %v721
      %755 = vmatprep.subr.mxu0 0.0
      %756 = vmatpush2.msra.mxu0 0.0
      %757 = vmatprep.subr.mxu0 0.0
      %758 = vmatpush2.msra.mxu0 0.0
      %759 = vmatprep.subr.mxu0 0.0
      %760 = vmatpush2.msra.mxu0 0.0
      %761 = vmatprep.subr.mxu0 0.0
      %762 = vmatpush2.msra.mxu0 0.0
      %763 = vmatprep.subr.mxu0 0.0
      %764 = vmatpush2.msra.mxu0 0.0
      %765 = vmatprep.subr.mxu0 0.0
      %766 = vmatpush2.msra.mxu0 0.0
      %767 = vmatprep.subr.mxu0 0.0
      %768 = vmatpush2.msra.mxu0 0.0
      %769 = vmatprep.subr.mxu0 0.0
      %770 = vmatpush2.msra.mxu0 0.0
      %771 = vmatprep.subr.mxu0 0.0
      %772 = vmatpush2.msra.mxu0 0.0
      %773 = vmatprep.subr.mxu0 0.0
      %774 = vmatpush2.msra.mxu0 0.0
      %775 = vmatprep.subr.mxu0 0.0
      %776 = vmatpush2.msra.mxu0 0.0
      %777 = vmatprep.subr.mxu0 0.0
      %778 = vmatpush2.msra.mxu0 0.0
      %779 = vmatprep.subr.mxu0 0.0
      %780 = vmatpush2.msra.mxu0 0.0
      %781 = vmatprep.subr.mxu0 0.0
      %782 = vmatpush2.msra.mxu0 0.0
      %783 = vmatprep.subr.mxu0 0.0
      %784 = vmatpush2.msra.mxu0 0.0
      %785 = vmatprep.subr.mxu0 0.0
      %786 = vmatpush2.msra.mxu0 0.0
      %787 = vmatprep.mubr.f32.mxu0 0.0
      %788 = vmatmul.mubr.f32.gmra.mxu0 %v719
      %v789 = vpop.f32.mrf.mxu0
      %v790 = vadd.f32 0.0, %v789
      %v791 = vpop.f32.mrf.mxu0
      %792 = vdwg.mxu0
      %v793 = vadd.f32 %v713, %v790
      %v794 = vld [vmem:[%s273 + $0x2] sm:$0x1]
      %v795 = vld [vmem:[%s273 + $0x6] sm:$0x1]
      %v796 = vld [vmem:[%s273 + $0xa] sm:$0x1]
      %v797 = vld [vmem:[%s273 + $0xe] sm:$0x1]
      %s798 = scalar_lea.vmem %s1, 24
      %v799 = vld [vmem:[%s798] sm:$0xf]
      %v804 = vrot.slane %v795, 7
      %v805 = vsel %vm300, %v804, %v794
      %v806 = vrot.slane %v796, 6
      %v807 = vsel %vm303, %v806, %v805
      %v808 = vrot.slane %v797, 5
      %v809 = vsel %vm306, %v808, %v807
      %v811 = vsel %vm310, %v799, 0
      %v813 = vsel %vm314, %v809, 0
      %815 = vmatprep.subr.mxu0 0.0
      %816 = vmatpush1.msra.mxu0 0.0
      %817 = vmatprep.subr.mxu0 0.0
      %818 = vmatpush1.msra.mxu0 0.0
      %819 = vmatprep.subr.mxu0 0.0
      %820 = vmatpush1.msra.mxu0 0.0
      %821 = vmatprep.subr.mxu0 0.0
      %822 = vmatpush1.msra.mxu0 0.0
      %823 = vmatprep.subr.mxu0 0.0
      %824 = vmatpush1.msra.mxu0 0.0
      %825 = vmatprep.subr.mxu0 0.0
      %826 = vmatpush1.msra.mxu0 0.0
      %827 = vmatprep.subr.mxu0 0.0
      %828 = vmatpush1.msra.mxu0 0.0
      %829 = vmatprep.subr.mxu0 0.0
      %830 = vmatpush1.msra.mxu0 0.0
      %831 = vmatprep.subr.mxu0 0.0
      %832 = vmatpush1.msra.mxu0 0.0
      %833 = vmatprep.subr.mxu0 0.0
      %834 = vmatpush1.msra.mxu0 0.0
      %835 = vmatprep.subr.mxu0 0.0
      %836 = vmatpush1.msra.mxu0 0.0
      %837 = vmatprep.subr.mxu0 0.0
      %838 = vmatpush1.msra.mxu0 0.0
      %839 = vmatprep.subr.mxu0 0.0
      %840 = vmatpush1.msra.mxu0 0.0
      %841 = vmatprep.subr.mxu0 0.0
      %842 = vmatpush1.msra.mxu0 0.0
      %843 = vmatprep.subr.mxu0 0.0
      %844 = vmatpush1.msra.mxu0 0.0
      %845 = vmatprep.subr.mxu0 0.0
      %846 = vmatpush1.msra.mxu0 %v813
      %847 = vmatprep.subr.mxu0 0.0
      %848 = vmatpush2.msra.mxu0 0.0
      %849 = vmatprep.subr.mxu0 0.0
      %850 = vmatpush2.msra.mxu0 0.0
      %851 = vmatprep.subr.mxu0 0.0
      %852 = vmatpush2.msra.mxu0 0.0
      %853 = vmatprep.subr.mxu0 0.0
      %854 = vmatpush2.msra.mxu0 0.0
      %855 = vmatprep.subr.mxu0 0.0
      %856 = vmatpush2.msra.mxu0 0.0
      %857 = vmatprep.subr.mxu0 0.0
      %858 = vmatpush2.msra.mxu0 0.0
      %859 = vmatprep.subr.mxu0 0.0
      %860 = vmatpush2.msra.mxu0 0.0
      %861 = vmatprep.subr.mxu0 0.0
      %862 = vmatpush2.msra.mxu0 0.0
      %863 = vmatprep.subr.mxu0 0.0
      %864 = vmatpush2.msra.mxu0 0.0
      %865 = vmatprep.subr.mxu0 0.0
      %866 = vmatpush2.msra.mxu0 0.0
      %867 = vmatprep.subr.mxu0 0.0
      %868 = vmatpush2.msra.mxu0 0.0
      %869 = vmatprep.subr.mxu0 0.0
      %870 = vmatpush2.msra.mxu0 0.0
      %871 = vmatprep.subr.mxu0 0.0
      %872 = vmatpush2.msra.mxu0 0.0
      %873 = vmatprep.subr.mxu0 0.0
      %874 = vmatpush2.msra.mxu0 0.0
      %875 = vmatprep.subr.mxu0 0.0
      %876 = vmatpush2.msra.mxu0 0.0
      %877 = vmatprep.subr.mxu0 0.0
      %878 = vmatpush2.msra.mxu0 0.0
      %879 = vmatprep.mubr.f32.mxu0 0.0
      %880 = vmatmul.mubr.f32.gmra.mxu0 %v811
      %v881 = vpop.f32.mrf.mxu0
      %v882 = vadd.f32 0.0, %v881
      %v883 = vpop.f32.mrf.mxu0
      %884 = vdwg.mxu0
      %v885 = vadd.f32 %v793, %v882
      %s886 = scalar_lea.vmem %s1, 28
      %v887 = vld [vmem:[%s886] sm:$0xf]
      %888 = vrot.lane.b32.xlu0 %v809, 127
      %v889 = vpop.permute.xlu0 %888
      %v891 = vsel %vm310, %v887, 0
      %v893 = vsel %vm314, %v889, 0
      %895 = vmatprep.subr.mxu0 0.0
      %896 = vmatpush1.msra.mxu0 0.0
      %897 = vmatprep.subr.mxu0 0.0
      %898 = vmatpush1.msra.mxu0 0.0
      %899 = vmatprep.subr.mxu0 0.0
      %900 = vmatpush1.msra.mxu0 0.0
      %901 = vmatprep.subr.mxu0 0.0
      %902 = vmatpush1.msra.mxu0 0.0
      %903 = vmatprep.subr.mxu0 0.0
      %904 = vmatpush1.msra.mxu0 0.0
      %905 = vmatprep.subr.mxu0 0.0
      %906 = vmatpush1.msra.mxu0 0.0
      %907 = vmatprep.subr.mxu0 0.0
      %908 = vmatpush1.msra.mxu0 0.0
      %909 = vmatprep.subr.mxu0 0.0
      %910 = vmatpush1.msra.mxu0 0.0
      %911 = vmatprep.subr.mxu0 0.0
      %912 = vmatpush1.msra.mxu0 0.0
      %913 = vmatprep.subr.mxu0 0.0
      %914 = vmatpush1.msra.mxu0 0.0
      %915 = vmatprep.subr.mxu0 0.0
      %916 = vmatpush1.msra.mxu0 0.0
      %917 = vmatprep.subr.mxu0 0.0
      %918 = vmatpush1.msra.mxu0 0.0
      %919 = vmatprep.subr.mxu0 0.0
      %920 = vmatpush1.msra.mxu0 0.0
      %921 = vmatprep.subr.mxu0 0.0
      %922 = vmatpush1.msra.mxu0 0.0
      %923 = vmatprep.subr.mxu0 0.0
      %924 = vmatpush1.msra.mxu0 0.0
      %925 = vmatprep.subr.mxu0 0.0
      %926 = vmatpush1.msra.mxu0 %v893
      %927 = vmatprep.subr.mxu0 0.0
      %928 = vmatpush2.msra.mxu0 0.0
      %929 = vmatprep.subr.mxu0 0.0
      %930 = vmatpush2.msra.mxu0 0.0
      %931 = vmatprep.subr.mxu0 0.0
      %932 = vmatpush2.msra.mxu0 0.0
      %933 = vmatprep.subr.mxu0 0.0
      %934 = vmatpush2.msra.mxu0 0.0
      %935 = vmatprep.subr.mxu0 0.0
      %936 = vmatpush2.msra.mxu0 0.0
      %937 = vmatprep.subr.mxu0 0.0
      %938 = vmatpush2.msra.mxu0 0.0
      %939 = vmatprep.subr.mxu0 0.0
      %940 = vmatpush2.msra.mxu0 0.0
      %941 = vmatprep.subr.mxu0 0.0
      %942 = vmatpush2.msra.mxu0 0.0
      %943 = vmatprep.subr.mxu0 0.0
      %944 = vmatpush2.msra.mxu0 0.0
      %945 = vmatprep.subr.mxu0 0.0
      %946 = vmatpush2.msra.mxu0 0.0
      %947 = vmatprep.subr.mxu0 0.0
      %948 = vmatpush2.msra.mxu0 0.0
      %949 = vmatprep.subr.mxu0 0.0
      %950 = vmatpush2.msra.mxu0 0.0
      %951 = vmatprep.subr.mxu0 0.0
      %952 = vmatpush2.msra.mxu0 0.0
      %953 = vmatprep.subr.mxu0 0.0
      %954 = vmatpush2.msra.mxu0 0.0
      %955 = vmatprep.subr.mxu0 0.0
      %956 = vmatpush2.msra.mxu0 0.0
      %957 = vmatprep.subr.mxu0 0.0
      %958 = vmatpush2.msra.mxu0 0.0
      %959 = vmatprep.mubr.f32.mxu0 0.0
      %960 = vmatmul.mubr.f32.gmra.mxu0 %v891
      %v961 = vpop.f32.mrf.mxu0
      %v962 = vadd.f32 0.0, %v961
      %v963 = vpop.f32.mrf.mxu0
      %964 = vdwg.mxu0
      %v965 = vadd.f32 %v885, %v962
      %s966 = scalar_lea.vmem %s1, 32
      %v967 = vld [vmem:[%s966] sm:$0xf]
      %968 = vrot.lane.b32.xlu0 %v809, 126
      %v969 = vpop.permute.xlu0 %968
      %v971 = vsel %vm310, %v967, 0
      %v973 = vsel %vm314, %v969, 0
      %975 = vmatprep.subr.mxu0 0.0
      %976 = vmatpush1.msra.mxu0 0.0
      %977 = vmatprep.subr.mxu0 0.0
      %978 = vmatpush1.msra.mxu0 0.0
      %979 = vmatprep.subr.mxu0 0.0
      %980 = vmatpush1.msra.mxu0 0.0
      %981 = vmatprep.subr.mxu0 0.0
      %982 = vmatpush1.msra.mxu0 0.0
      %983 = vmatprep.subr.mxu0 0.0
      %984 = vmatpush1.msra.mxu0 0.0
      %985 = vmatprep.subr.mxu0 0.0
      %986 = vmatpush1.msra.mxu0 0.0
      %987 = vmatprep.subr.mxu0 0.0
      %988 = vmatpush1.msra.mxu0 0.0
      %989 = vmatprep.subr.mxu0 0.0
      %990 = vmatpush1.msra.mxu0 0.0
      %991 = vmatprep.subr.mxu0 0.0
      %992 = vmatpush1.msra.mxu0 0.0
      %993 = vmatprep.subr.mxu0 0.0
      %994 = vmatpush1.msra.mxu0 0.0
      %995 = vmatprep.subr.mxu0 0.0
      %996 = vmatpush1.msra.mxu0 0.0
      %997 = vmatprep.subr.mxu0 0.0
      %998 = vmatpush1.msra.mxu0 0.0
      %999 = vmatprep.subr.mxu0 0.0
      %1000 = vmatpush1.msra.mxu0 0.0
      %1001 = vmatprep.subr.mxu0 0.0
      %1002 = vmatpush1.msra.mxu0 0.0
      %1003 = vmatprep.subr.mxu0 0.0
      %1004 = vmatpush1.msra.mxu0 0.0
      %1005 = vmatprep.subr.mxu0 0.0
      %1006 = vmatpush1.msra.mxu0 %v973
      %1007 = vmatprep.subr.mxu0 0.0
      %1008 = vmatpush2.msra.mxu0 0.0
      %1009 = vmatprep.subr.mxu0 0.0
      %1010 = vmatpush2.msra.mxu0 0.0
      %1011 = vmatprep.subr.mxu0 0.0
      %1012 = vmatpush2.msra.mxu0 0.0
      %1013 = vmatprep.subr.mxu0 0.0
      %1014 = vmatpush2.msra.mxu0 0.0
      %1015 = vmatprep.subr.mxu0 0.0
      %1016 = vmatpush2.msra.mxu0 0.0
      %1017 = vmatprep.subr.mxu0 0.0
      %1018 = vmatpush2.msra.mxu0 0.0
      %1019 = vmatprep.subr.mxu0 0.0
      %1020 = vmatpush2.msra.mxu0 0.0
      %1021 = vmatprep.subr.mxu0 0.0
      %1022 = vmatpush2.msra.mxu0 0.0
      %1023 = vmatprep.subr.mxu0 0.0
      %1024 = vmatpush2.msra.mxu0 0.0
      %1025 = vmatprep.subr.mxu0 0.0
      %1026 = vmatpush2.msra.mxu0 0.0
      %1027 = vmatprep.subr.mxu0 0.0
      %1028 = vmatpush2.msra.mxu0 0.0
      %1029 = vmatprep.subr.mxu0 0.0
      %1030 = vmatpush2.msra.mxu0 0.0
      %1031 = vmatprep.subr.mxu0 0.0
      %1032 = vmatpush2.msra.mxu0 0.0
      %1033 = vmatprep.subr.mxu0 0.0
      %1034 = vmatpush2.msra.mxu0 0.0
      %1035 = vmatprep.subr.mxu0 0.0
      %1036 = vmatpush2.msra.mxu0 0.0
      %1037 = vmatprep.subr.mxu0 0.0
      %1038 = vmatpush2.msra.mxu0 0.0
      %1039 = vmatprep.mubr.f32.mxu0 0.0
      %1040 = vmatmul.mubr.f32.gmra.mxu0 %v971
      %v1041 = vpop.f32.mrf.mxu0
      %v1042 = vadd.f32 0.0, %v1041
      %v1043 = vpop.f32.mrf.mxu0
      %1044 = vdwg.mxu0
      %v1045 = vadd.f32 %v965, %v1042
      %v1046 = vld [vmem:[%s2] sm:$0xf]
      %1048 = vset.pattern.permute.xlu0 0
      %1049 = vperm.xlu0 %1048, %v1046
      %v1050 = vpop.permute.xlu0 %1049
      %v1052 = vadd.f32 %v1045, %v1050
      %v1053 = vmax.f32 %v1052, 0.0
      %1055 = vrot.lane.b32.xlu0 %v1053, 1
      %v1056 = vpop.permute.xlu0 %1055
      %vm1058 = vcmask 7168
      %v1059 = vsel %vm1058, 0.0, %v1056
      %vm1060 = vcmask 23552
      %v1061 = vsel %vm1060, %v1059, 0.0
      %v1064 = vunpack.c.l.s4 1966171168
      %v1065 = vunpack.c.0.s8 %v1064
      %v1066 = vlaneseq
      %v1067 = vshrl.u32 %v1066, 7
      %v1068 = vsub.s32 %v1065, %v1067
      %v1069 = vrot.slane %v1061, %v1068
      %v1070 = vcombine.high %v1069, %v1069
      %v1072 = vunpack.c.l.s4 1966171168
      %v1073 = vunpack.c.0.s8 %v1072
      %v1074 = vlaneseq
      %v1075 = vshrl.u32 %v1074, 7
      %v1076 = vsub.s32 %v1073, %v1075
      %v1077 = vrot.slane %v1069, %v1076
      %v1079 = vunpack.c.l.s4 1966171168
      %v1080 = vunpack.c.0.s8 %v1079
      %v1081 = vlaneseq
      %v1082 = vshrl.u32 %v1081, 7
      %v1083 = vsub.s32 %v1080, %v1082
      %v1084 = vrot.slane %v1070, %v1083
      %v1085 = vcombine.high %v1077, %v1077
      %v1086 = vcombine.high %v1084, %v1084
      %vm1091 = vcmask 24576
      %1092 = vst.msk [vmem:[#allocation2 + $0x1] sm:$0x1] %vm1091, %v1077
      %1093 = vst.msk [vmem:[#allocation2 + $0x5] sm:$0x1] %vm1091, %v1084
      %1094 = vst.msk [vmem:[#allocation2 + $0x9] sm:$0x1] %vm1091, %v1085
      %1095 = vst.msk [vmem:[#allocation2 + $0xd] sm:$0x1] %vm1091, %v1086
      %v1096 = vld [vmem:[%s273 + $0x1] sm:$0x1]
      %v1097 = vld [vmem:[%s273 + $0x5] sm:$0x1]
      %v1098 = vld [vmem:[%s273 + $0x9] sm:$0x1]
      %v1099 = vld [vmem:[%s273 + $0xd] sm:$0x1]
      %v1100 = vld [vmem:[%s1] sm:$0xf]
      %v1101 = vld [vmem:[%s293] sm:$0xf]
      %v1106 = vrot.slane %v1097, 7
      %v1107 = vsel %vm300, %v1106, %v1096
      %v1108 = vrot.slane %v1098, 6
      %v1109 = vsel %vm303, %v1108, %v1107
      %v1110 = vrot.slane %v1099, 5
      %v1111 = vsel %vm306, %v1110, %v1109
      %1112 = vrot.lane.b32.xlu0 %v1111, 127
      %v1113 = vpop.permute.xlu0 %1112
      %v1115 = vsel %vm310, %v1101, 0
      %v1117 = vsel %vm314, %v1113, 0
      %1119 = vmatprep.subr.mxu0 0.0
      %1120 = vmatpush1.msra.mxu0 0.0
      %1121 = vmatprep.subr.mxu0 0.0
      %1122 = vmatpush1.msra.mxu0 0.0
      %1123 = vmatprep.subr.mxu0 0.0
      %1124 = vmatpush1.msra.mxu0 0.0
      %1125 = vmatprep.subr.mxu0 0.0
      %1126 = vmatpush1.msra.mxu0 0.0
      %1127 = vmatprep.subr.mxu0 0.0
      %1128 = vmatpush1.msra.mxu0 0.0
      %1129 = vmatprep.subr.mxu0 0.0
      %1130 = vmatpush1.msra.mxu0 0.0
      %1131 = vmatprep.subr.mxu0 0.0
      %1132 = vmatpush1.msra.mxu0 0.0
      %1133 = vmatprep.subr.mxu0 0.0
      %1134 = vmatpush1.msra.mxu0 0.0
      %1135 = vmatprep.subr.mxu0 0.0
      %1136 = vmatpush1.msra.mxu0 0.0
      %1137 = vmatprep.subr.mxu0 0.0
      %1138 = vmatpush1.msra.mxu0 0.0
      %1139 = vmatprep.subr.mxu0 0.0
      %1140 = vmatpush1.msra.mxu0 0.0
      %1141 = vmatprep.subr.mxu0 0.0
      %1142 = vmatpush1.msra.mxu0 0.0
      %1143 = vmatprep.subr.mxu0 0.0
      %1144 = vmatpush1.msra.mxu0 0.0
      %1145 = vmatprep.subr.mxu0 0.0
      %1146 = vmatpush1.msra.mxu0 0.0
      %1147 = vmatprep.subr.mxu0 0.0
      %1148 = vmatpush1.msra.mxu0 0.0
      %1149 = vmatprep.subr.mxu0 0.0
      %1150 = vmatpush1.msra.mxu0 %v1117
      %1151 = vmatprep.subr.mxu0 0.0
      %1152 = vmatpush2.msra.mxu0 0.0
      %1153 = vmatprep.subr.mxu0 0.0
      %1154 = vmatpush2.msra.mxu0 0.0
      %1155 = vmatprep.subr.mxu0 0.0
      %1156 = vmatpush2.msra.mxu0 0.0
      %1157 = vmatprep.subr.mxu0 0.0
      %1158 = vmatpush2.msra.mxu0 0.0
      %1159 = vmatprep.subr.mxu0 0.0
      %1160 = vmatpush2.msra.mxu0 0.0
      %1161 = vmatprep.subr.mxu0 0.0
      %1162 = vmatpush2.msra.mxu0 0.0
      %1163 = vmatprep.subr.mxu0 0.0
      %1164 = vmatpush2.msra.mxu0 0.0
      %1165 = vmatprep.subr.mxu0 0.0
      %1166 = vmatpush2.msra.mxu0 0.0
      %1167 = vmatprep.subr.mxu0 0.0
      %1168 = vmatpush2.msra.mxu0 0.0
      %1169 = vmatprep.subr.mxu0 0.0
      %1170 = vmatpush2.msra.mxu0 0.0
      %1171 = vmatprep.subr.mxu0 0.0
      %1172 = vmatpush2.msra.mxu0 0.0
      %1173 = vmatprep.subr.mxu0 0.0
      %1174 = vmatpush2.msra.mxu0 0.0
      %1175 = vmatprep.subr.mxu0 0.0
      %1176 = vmatpush2.msra.mxu0 0.0
      %1177 = vmatprep.subr.mxu0 0.0
      %1178 = vmatpush2.msra.mxu0 0.0
      %1179 = vmatprep.subr.mxu0 0.0
      %1180 = vmatpush2.msra.mxu0 0.0
      %1181 = vmatprep.subr.mxu0 0.0
      %1182 = vmatpush2.msra.mxu0 0.0
      %1183 = vmatprep.mubr.f32.mxu0 0.0
      %1184 = vmatmul.mubr.f32.gmra.mxu0 %v1115
      %v1185 = vpop.f32.mrf.mxu0
      %v1186 = vadd.f32 0.0, %v1185
      %v1187 = vpop.f32.mrf.mxu0
      %1188 = vdwg.mxu0
      %v1190 = vsel %vm310, %v1100, 0
      %v1192 = vsel %vm314, %v1111, 0
      %1194 = vmatprep.subr.mxu0 0.0
      %1195 = vmatpush1.msra.mxu0 0.0
      %1196 = vmatprep.subr.mxu0 0.0
      %1197 = vmatpush1.msra.mxu0 0.0
      %1198 = vmatprep.subr.mxu0 0.0
      %1199 = vmatpush1.msra.mxu0 0.0
      %1200 = vmatprep.subr.mxu0 0.0
      %1201 = vmatpush1.msra.mxu0 0.0
      %1202 = vmatprep.subr.mxu0 0.0
      %1203 = vmatpush1.msra.mxu0 0.0
      %1204 = vmatprep.subr.mxu0 0.0
      %1205 = vmatpush1.msra.mxu0 0.0
      %1206 = vmatprep.subr.mxu0 0.0
      %1207 = vmatpush1.msra.mxu0 0.0
      %1208 = vmatprep.subr.mxu0 0.0
      %1209 = vmatpush1.msra.mxu0 0.0
      %1210 = vmatprep.subr.mxu0 0.0
      %1211 = vmatpush1.msra.mxu0 0.0
      %1212 = vmatprep.subr.mxu0 0.0
      %1213 = vmatpush1.msra.mxu0 0.0
      %1214 = vmatprep.subr.mxu0 0.0
      %1215 = vmatpush1.msra.mxu0 0.0
      %1216 = vmatprep.subr.mxu0 0.0
      %1217 = vmatpush1.msra.mxu0 0.0
      %1218 = vmatprep.subr.mxu0 0.0
      %1219 = vmatpush1.msra.mxu0 0.0
      %1220 = vmatprep.subr.mxu0 0.0
      %1221 = vmatpush1.msra.mxu0 0.0
      %1222 = vmatprep.subr.mxu0 0.0
      %1223 = vmatpush1.msra.mxu0 0.0
      %1224 = vmatprep.subr.mxu0 0.0
      %1225 = vmatpush1.msra.mxu0 %v1192
      %1226 = vmatprep.subr.mxu0 0.0
      %1227 = vmatpush2.msra.mxu0 0.0
      %1228 = vmatprep.subr.mxu0 0.0
      %1229 = vmatpush2.msra.mxu0 0.0
      %1230 = vmatprep.subr.mxu0 0.0
      %1231 = vmatpush2.msra.mxu0 0.0
      %1232 = vmatprep.subr.mxu0 0.0
      %1233 = vmatpush2.msra.mxu0 0.0
      %1234 = vmatprep.subr.mxu0 0.0
      %1235 = vmatpush2.msra.mxu0 0.0
      %1236 = vmatprep.subr.mxu0 0.0
      %1237 = vmatpush2.msra.mxu0 0.0
      %1238 = vmatprep.subr.mxu0 0.0
      %1239 = vmatpush2.msra.mxu0 0.0
      %1240 = vmatprep.subr.mxu0 0.0
      %1241 = vmatpush2.msra.mxu0 0.0
      %1242 = vmatprep.subr.mxu0 0.0
      %1243 = vmatpush2.msra.mxu0 0.0
      %1244 = vmatprep.subr.mxu0 0.0
      %1245 = vmatpush2.msra.mxu0 0.0
      %1246 = vmatprep.subr.mxu0 0.0
      %1247 = vmatpush2.msra.mxu0 0.0
      %1248 = vmatprep.subr.mxu0 0.0
      %1249 = vmatpush2.msra.mxu0 0.0
      %1250 = vmatprep.subr.mxu0 0.0
      %1251 = vmatpush2.msra.mxu0 0.0
      %1252 = vmatprep.subr.mxu0 0.0
      %1253 = vmatpush2.msra.mxu0 0.0
      %1254 = vmatprep.subr.mxu0 0.0
      %1255 = vmatpush2.msra.mxu0 0.0
      %1256 = vmatprep.subr.mxu0 0.0
      %1257 = vmatpush2.msra.mxu0 0.0
      %1258 = vmatprep.mubr.f32.mxu0 0.0
      %1259 = vmatmul.mubr.f32.gmra.mxu0 %v1190
      %v1260 = vpop.f32.mrf.mxu0
      %v1261 = vadd.f32 %v1186, %v1260
      %v1262 = vpop.f32.mrf.mxu0
      %1263 = vdwg.mxu0
      %v1264 = vld [vmem:[%s462] sm:$0xf]
      %1265 = vrot.lane.b32.xlu0 %v1111, 126
      %v1266 = vpop.permute.xlu0 %1265
      %v1268 = vsel %vm310, %v1264, 0
      %v1270 = vsel %vm314, %v1266, 0
      %1272 = vmatprep.subr.mxu0 0.0
      %1273 = vmatpush1.msra.mxu0 0.0
      %1274 = vmatprep.subr.mxu0 0.0
      %1275 = vmatpush1.msra.mxu0 0.0
      %1276 = vmatprep.subr.mxu0 0.0
      %1277 = vmatpush1.msra.mxu0 0.0
      %1278 = vmatprep.subr.mxu0 0.0
      %1279 = vmatpush1.msra.mxu0 0.0
      %1280 = vmatprep.subr.mxu0 0.0
      %1281 = vmatpush1.msra.mxu0 0.0
      %1282 = vmatprep.subr.mxu0 0.0
      %1283 = vmatpush1.msra.mxu0 0.0
      %1284 = vmatprep.subr.mxu0 0.0
      %1285 = vmatpush1.msra.mxu0 0.0
      %1286 = vmatprep.subr.mxu0 0.0
      %1287 = vmatpush1.msra.mxu0 0.0
      %1288 = vmatprep.subr.mxu0 0.0
      %1289 = vmatpush1.msra.mxu0 0.0
      %1290 = vmatprep.subr.mxu0 0.0
      %1291 = vmatpush1.msra.mxu0 0.0
      %1292 = vmatprep.subr.mxu0 0.0
      %1293 = vmatpush1.msra.mxu0 0.0
      %1294 = vmatprep.subr.mxu0 0.0
      %1295 = vmatpush1.msra.mxu0 0.0
      %1296 = vmatprep.subr.mxu0 0.0
      %1297 = vmatpush1.msra.mxu0 0.0
      %1298 = vmatprep.subr.mxu0 0.0
      %1299 = vmatpush1.msra.mxu0 0.0
      %1300 = vmatprep.subr.mxu0 0.0
      %1301 = vmatpush1.msra.mxu0 0.0
      %1302 = vmatprep.subr.mxu0 0.0
      %1303 = vmatpush1.msra.mxu0 %v1270
      %1304 = vmatprep.subr.mxu0 0.0
      %1305 = vmatpush2.msra.mxu0 0.0
      %1306 = vmatprep.subr.mxu0 0.0
      %1307 = vmatpush2.msra.mxu0 0.0
      %1308 = vmatprep.subr.mxu0 0.0
      %1309 = vmatpush2.msra.mxu0 0.0
      %1310 = vmatprep.subr.mxu0 0.0
      %1311 = vmatpush2.msra.mxu0 0.0
      %1312 = vmatprep.subr.mxu0 0.0
      %1313 = vmatpush2.msra.mxu0 0.0
      %1314 = vmatprep.subr.mxu0 0.0
      %1315 = vmatpush2.msra.mxu0 0.0
      %1316 = vmatprep.subr.mxu0 0.0
      %1317 = vmatpush2.msra.mxu0 0.0
      %1318 = vmatprep.subr.mxu0 0.0
      %1319 = vmatpush2.msra.mxu0 0.0
      %1320 = vmatprep.subr.mxu0 0.0
      %1321 = vmatpush2.msra.mxu0 0.0
      %1322 = vmatprep.subr.mxu0 0.0
      %1323 = vmatpush2.msra.mxu0 0.0
      %1324 = vmatprep.subr.mxu0 0.0
      %1325 = vmatpush2.msra.mxu0 0.0
      %1326 = vmatprep.subr.mxu0 0.0
      %1327 = vmatpush2.msra.mxu0 0.0
      %1328 = vmatprep.subr.mxu0 0.0
      %1329 = vmatpush2.msra.mxu0 0.0
      %1330 = vmatprep.subr.mxu0 0.0
      %1331 = vmatpush2.msra.mxu0 0.0
      %1332 = vmatprep.subr.mxu0 0.0
      %1333 = vmatpush2.msra.mxu0 0.0
      %1334 = vmatprep.subr.mxu0 0.0
      %1335 = vmatpush2.msra.mxu0 0.0
      %1336 = vmatprep.mubr.f32.mxu0 0.0
      %1337 = vmatmul.mubr.f32.gmra.mxu0 %v1268
      %v1338 = vpop.f32.mrf.mxu0
      %v1339 = vadd.f32 0.0, %v1338
      %v1340 = vpop.f32.mrf.mxu0
      %1341 = vdwg.mxu0
      %v1342 = vadd.f32 %v1261, %v1339
      %v1343 = vld [vmem:[%s273 + $0x2] sm:$0x1]
      %v1344 = vld [vmem:[%s273 + $0x6] sm:$0x1]
      %v1345 = vld [vmem:[%s273 + $0xa] sm:$0x1]
      %v1346 = vld [vmem:[%s273 + $0xe] sm:$0x1]
      %v1347 = vld [vmem:[%s546] sm:$0xf]
      %v1352 = vrot.slane %v1344, 7
      %v1353 = vsel %vm300, %v1352, %v1343
      %v1354 = vrot.slane %v1345, 6
      %v1355 = vsel %vm303, %v1354, %v1353
      %v1356 = vrot.slane %v1346, 5
      %v1357 = vsel %vm306, %v1356, %v1355
      %v1359 = vsel %vm310, %v1347, 0
      %v1361 = vsel %vm314, %v1357, 0
      %1363 = vmatprep.subr.mxu0 0.0
      %1364 = vmatpush1.msra.mxu0 0.0
      %1365 = vmatprep.subr.mxu0 0.0
      %1366 = vmatpush1.msra.mxu0 0.0
      %1367 = vmatprep.subr.mxu0 0.0
      %1368 = vmatpush1.msra.mxu0 0.0
      %1369 = vmatprep.subr.mxu0 0.0
      %1370 = vmatpush1.msra.mxu0 0.0
      %1371 = vmatprep.subr.mxu0 0.0
      %1372 = vmatpush1.msra.mxu0 0.0
      %1373 = vmatprep.subr.mxu0 0.0
      %1374 = vmatpush1.msra.mxu0 0.0
      %1375 = vmatprep.subr.mxu0 0.0
      %1376 = vmatpush1.msra.mxu0 0.0
      %1377 = vmatprep.subr.mxu0 0.0
      %1378 = vmatpush1.msra.mxu0 0.0
      %1379 = vmatprep.subr.mxu0 0.0
      %1380 = vmatpush1.msra.mxu0 0.0
      %1381 = vmatprep.subr.mxu0 0.0
      %1382 = vmatpush1.msra.mxu0 0.0
      %1383 = vmatprep.subr.mxu0 0.0
      %1384 = vmatpush1.msra.mxu0 0.0
      %1385 = vmatprep.subr.mxu0 0.0
      %1386 = vmatpush1.msra.mxu0 0.0
      %1387 = vmatprep.subr.mxu0 0.0
      %1388 = vmatpush1.msra.mxu0 0.0
      %1389 = vmatprep.subr.mxu0 0.0
      %1390 = vmatpush1.msra.mxu0 0.0
      %1391 = vmatprep.subr.mxu0 0.0
      %1392 = vmatpush1.msra.mxu0 0.0
      %1393 = vmatprep.subr.mxu0 0.0
      %1394 = vmatpush1.msra.mxu0 %v1361
      %1395 = vmatprep.subr.mxu0 0.0
      %1396 = vmatpush2.msra.mxu0 0.0
      %1397 = vmatprep.subr.mxu0 0.0
      %1398 = vmatpush2.msra.mxu0 0.0
      %1399 = vmatprep.subr.mxu0 0.0
      %1400 = vmatpush2.msra.mxu0 0.0
      %1401 = vmatprep.subr.mxu0 0.0
      %1402 = vmatpush2.msra.mxu0 0.0
      %1403 = vmatprep.subr.mxu0 0.0
      %1404 = vmatpush2.msra.mxu0 0.0
      %1405 = vmatprep.subr.mxu0 0.0
      %1406 = vmatpush2.msra.mxu0 0.0
      %1407 = vmatprep.subr.mxu0 0.0
      %1408 = vmatpush2.msra.mxu0 0.0
      %1409 = vmatprep.subr.mxu0 0.0
      %1410 = vmatpush2.msra.mxu0 0.0
      %1411 = vmatprep.subr.mxu0 0.0
      %1412 = vmatpush2.msra.mxu0 0.0
      %1413 = vmatprep.subr.mxu0 0.0
      %1414 = vmatpush2.msra.mxu0 0.0
      %1415 = vmatprep.subr.mxu0 0.0
      %1416 = vmatpush2.msra.mxu0 0.0
      %1417 = vmatprep.subr.mxu0 0.0
      %1418 = vmatpush2.msra.mxu0 0.0
      %1419 = vmatprep.subr.mxu0 0.0
      %1420 = vmatpush2.msra.mxu0 0.0
      %1421 = vmatprep.subr.mxu0 0.0
      %1422 = vmatpush2.msra.mxu0 0.0
      %1423 = vmatprep.subr.mxu0 0.0
      %1424 = vmatpush2.msra.mxu0 0.0
      %1425 = vmatprep.subr.mxu0 0.0
      %1426 = vmatpush2.msra.mxu0 0.0
      %1427 = vmatprep.mubr.f32.mxu0 0.0
      %1428 = vmatmul.mubr.f32.gmra.mxu0 %v1359
      %v1429 = vpop.f32.mrf.mxu0
      %v1430 = vadd.f32 0.0, %v1429
      %v1431 = vpop.f32.mrf.mxu0
      %1432 = vdwg.mxu0
      %v1433 = vadd.f32 %v1342, %v1430
      %v1434 = vld [vmem:[%s634] sm:$0xf]
      %1435 = vrot.lane.b32.xlu0 %v1357, 127
      %v1436 = vpop.permute.xlu0 %1435
      %v1438 = vsel %vm310, %v1434, 0
      %v1440 = vsel %vm314, %v1436, 0
      %1442 = vmatprep.subr.mxu0 0.0
      %1443 = vmatpush1.msra.mxu0 0.0
      %1444 = vmatprep.subr.mxu0 0.0
      %1445 = vmatpush1.msra.mxu0 0.0
      %1446 = vmatprep.subr.mxu0 0.0
      %1447 = vmatpush1.msra.mxu0 0.0
      %1448 = vmatprep.subr.mxu0 0.0
      %1449 = vmatpush1.msra.mxu0 0.0
      %1450 = vmatprep.subr.mxu0 0.0
      %1451 = vmatpush1.msra.mxu0 0.0
      %1452 = vmatprep.subr.mxu0 0.0
      %1453 = vmatpush1.msra.mxu0 0.0
      %1454 = vmatprep.subr.mxu0 0.0
      %1455 = vmatpush1.msra.mxu0 0.0
      %1456 = vmatprep.subr.mxu0 0.0
      %1457 = vmatpush1.msra.mxu0 0.0
      %1458 = vmatprep.subr.mxu0 0.0
      %1459 = vmatpush1.msra.mxu0 0.0
      %1460 = vmatprep.subr.mxu0 0.0
      %1461 = vmatpush1.msra.mxu0 0.0
      %1462 = vmatprep.subr.mxu0 0.0
      %1463 = vmatpush1.msra.mxu0 0.0
      %1464 = vmatprep.subr.mxu0 0.0
      %1465 = vmatpush1.msra.mxu0 0.0
      %1466 = vmatprep.subr.mxu0 0.0
      %1467 = vmatpush1.msra.mxu0 0.0
      %1468 = vmatprep.subr.mxu0 0.0
      %1469 = vmatpush1.msra.mxu0 0.0
      %1470 = vmatprep.subr.mxu0 0.0
      %1471 = vmatpush1.msra.mxu0 0.0
      %1472 = vmatprep.subr.mxu0 0.0
      %1473 = vmatpush1.msra.mxu0 %v1440
      %1474 = vmatprep.subr.mxu0 0.0
      %1475 = vmatpush2.msra.mxu0 0.0
      %1476 = vmatprep.subr.mxu0 0.0
      %1477 = vmatpush2.msra.mxu0 0.0
      %1478 = vmatprep.subr.mxu0 0.0
      %1479 = vmatpush2.msra.mxu0 0.0
      %1480 = vmatprep.subr.mxu0 0.0
      %1481 = vmatpush2.msra.mxu0 0.0
      %1482 = vmatprep.subr.mxu0 0.0
      %1483 = vmatpush2.msra.mxu0 0.0
      %1484 = vmatprep.subr.mxu0 0.0
      %1485 = vmatpush2.msra.mxu0 0.0
      %1486 = vmatprep.subr.mxu0 0.0
      %1487 = vmatpush2.msra.mxu0 0.0
      %1488 = vmatprep.subr.mxu0 0.0
      %1489 = vmatpush2.msra.mxu0 0.0
      %1490 = vmatprep.subr.mxu0 0.0
      %1491 = vmatpush2.msra.mxu0 0.0
      %1492 = vmatprep.subr.mxu0 0.0
      %1493 = vmatpush2.msra.mxu0 0.0
      %1494 = vmatprep.subr.mxu0 0.0
      %1495 = vmatpush2.msra.mxu0 0.0
      %1496 = vmatprep.subr.mxu0 0.0
      %1497 = vmatpush2.msra.mxu0 0.0
      %1498 = vmatprep.subr.mxu0 0.0
      %1499 = vmatpush2.msra.mxu0 0.0
      %1500 = vmatprep.subr.mxu0 0.0
      %1501 = vmatpush2.msra.mxu0 0.0
      %1502 = vmatprep.subr.mxu0 0.0
      %1503 = vmatpush2.msra.mxu0 0.0
      %1504 = vmatprep.subr.mxu0 0.0
      %1505 = vmatpush2.msra.mxu0 0.0
      %1506 = vmatprep.mubr.f32.mxu0 0.0
      %1507 = vmatmul.mubr.f32.gmra.mxu0 %v1438
      %v1508 = vpop.f32.mrf.mxu0
      %v1509 = vadd.f32 0.0, %v1508
      %v1510 = vpop.f32.mrf.mxu0
      %1511 = vdwg.mxu0
      %v1512 = vadd.f32 %v1433, %v1509
      %v1513 = vld [vmem:[%s714] sm:$0xf]
      %1514 = vrot.lane.b32.xlu0 %v1357, 126
      %v1515 = vpop.permute.xlu0 %1514
      %v1517 = vsel %vm310, %v1513, 0
      %v1519 = vsel %vm314, %v1515, 0
      %1521 = vmatprep.subr.mxu0 0.0
      %1522 = vmatpush1.msra.mxu0 0.0
      %1523 = vmatprep.subr.mxu0 0.0
      %1524 = vmatpush1.msra.mxu0 0.0
      %1525 = vmatprep.subr.mxu0 0.0
      %1526 = vmatpush1.msra.mxu0 0.0
      %1527 = vmatprep.subr.mxu0 0.0
      %1528 = vmatpush1.msra.mxu0 0.0
      %1529 = vmatprep.subr.mxu0 0.0
      %1530 = vmatpush1.msra.mxu0 0.0
      %1531 = vmatprep.subr.mxu0 0.0
      %1532 = vmatpush1.msra.mxu0 0.0
      %1533 = vmatprep.subr.mxu0 0.0
      %1534 = vmatpush1.msra.mxu0 0.0
      %1535 = vmatprep.subr.mxu0 0.0
      %1536 = vmatpush1.msra.mxu0 0.0
      %1537 = vmatprep.subr.mxu0 0.0
      %1538 = vmatpush1.msra.mxu0 0.0
      %1539 = vmatprep.subr.mxu0 0.0
      %1540 = vmatpush1.msra.mxu0 0.0
      %1541 = vmatprep.subr.mxu0 0.0
      %1542 = vmatpush1.msra.mxu0 0.0
      %1543 = vmatprep.subr.mxu0 0.0
      %1544 = vmatpush1.msra.mxu0 0.0
      %1545 = vmatprep.subr.mxu0 0.0
      %1546 = vmatpush1.msra.mxu0 0.0
      %1547 = vmatprep.subr.mxu0 0.0
      %1548 = vmatpush1.msra.mxu0 0.0
      %1549 = vmatprep.subr.mxu0 0.0
      %1550 = vmatpush1.msra.mxu0 0.0
      %1551 = vmatprep.subr.mxu0 0.0
      %1552 = vmatpush1.msra.mxu0 %v1519
      %1553 = vmatprep.subr.mxu0 0.0
      %1554 = vmatpush2.msra.mxu0 0.0
      %1555 = vmatprep.subr.mxu0 0.0
      %1556 = vmatpush2.msra.mxu0 0.0
      %1557 = vmatprep.subr.mxu0 0.0
      %1558 = vmatpush2.msra.mxu0 0.0
      %1559 = vmatprep.subr.mxu0 0.0
      %1560 = vmatpush2.msra.mxu0 0.0
      %1561 = vmatprep.subr.mxu0 0.0
      %1562 = vmatpush2.msra.mxu0 0.0
      %1563 = vmatprep.subr.mxu0 0.0
      %1564 = vmatpush2.msra.mxu0 0.0
      %1565 = vmatprep.subr.mxu0 0.0
      %1566 = vmatpush2.msra.mxu0 0.0
      %1567 = vmatprep.subr.mxu0 0.0
      %1568 = vmatpush2.msra.mxu0 0.0
      %1569 = vmatprep.subr.mxu0 0.0
      %1570 = vmatpush2.msra.mxu0 0.0
      %1571 = vmatprep.subr.mxu0 0.0
      %1572 = vmatpush2.msra.mxu0 0.0
      %1573 = vmatprep.subr.mxu0 0.0
      %1574 = vmatpush2.msra.mxu0 0.0
      %1575 = vmatprep.subr.mxu0 0.0
      %1576 = vmatpush2.msra.mxu0 0.0
      %1577 = vmatprep.subr.mxu0 0.0
      %1578 = vmatpush2.msra.mxu0 0.0
      %1579 = vmatprep.subr.mxu0 0.0
      %1580 = vmatpush2.msra.mxu0 0.0
      %1581 = vmatprep.subr.mxu0 0.0
      %1582 = vmatpush2.msra.mxu0 0.0
      %1583 = vmatprep.subr.mxu0 0.0
      %1584 = vmatpush2.msra.mxu0 0.0
      %1585 = vmatprep.mubr.f32.mxu0 0.0
      %1586 = vmatmul.mubr.f32.gmra.mxu0 %v1517
      %v1587 = vpop.f32.mrf.mxu0
      %v1588 = vadd.f32 0.0, %v1587
      %v1589 = vpop.f32.mrf.mxu0
      %1590 = vdwg.mxu0
      %v1591 = vadd.f32 %v1512, %v1588
      %v1592 = vld [vmem:[%s273 + $0x3] sm:$0x1]
      %v1593 = vld [vmem:[%s273 + $0x7] sm:$0x1]
      %v1594 = vld [vmem:[%s273 + $0xb] sm:$0x1]
      %v1595 = vld [vmem:[%s273 + $0xf] sm:$0x1]
      %v1596 = vld [vmem:[%s798] sm:$0xf]
      %v1601 = vrot.slane %v1593, 7
      %v1602 = vsel %vm300, %v1601, %v1592
      %v1603 = vrot.slane %v1594, 6
      %v1604 = vsel %vm303, %v1603, %v1602
      %v1605 = vrot.slane %v1595, 5
      %v1606 = vsel %vm306, %v1605, %v1604
      %v1608 = vsel %vm310, %v1596, 0
      %v1610 = vsel %vm314, %v1606, 0
      %1612 = vmatprep.subr.mxu0 0.0
      %1613 = vmatpush1.msra.mxu0 0.0
      %1614 = vmatprep.subr.mxu0 0.0
      %1615 = vmatpush1.msra.mxu0 0.0
      %1616 = vmatprep.subr.mxu0 0.0
      %1617 = vmatpush1.msra.mxu0 0.0
      %1618 = vmatprep.subr.mxu0 0.0
      %1619 = vmatpush1.msra.mxu0 0.0
      %1620 = vmatprep.subr.mxu0 0.0
      %1621 = vmatpush1.msra.mxu0 0.0
      %1622 = vmatprep.subr.mxu0 0.0
      %1623 = vmatpush1.msra.mxu0 0.0
      %1624 = vmatprep.subr.mxu0 0.0
      %1625 = vmatpush1.msra.mxu0 0.0
      %1626 = vmatprep.subr.mxu0 0.0
      %1627 = vmatpush1.msra.mxu0 0.0
      %1628 = vmatprep.subr.mxu0 0.0
      %1629 = vmatpush1.msra.mxu0 0.0
      %1630 = vmatprep.subr.mxu0 0.0
      %1631 = vmatpush1.msra.mxu0 0.0
      %1632 = vmatprep.subr.mxu0 0.0
      %1633 = vmatpush1.msra.mxu0 0.0
      %1634 = vmatprep.subr.mxu0 0.0
      %1635 = vmatpush1.msra.mxu0 0.0
      %1636 = vmatprep.subr.mxu0 0.0
      %1637 = vmatpush1.msra.mxu0 0.0
      %1638 = vmatprep.subr.mxu0 0.0
      %1639 = vmatpush1.msra.mxu0 0.0
      %1640 = vmatprep.subr.mxu0 0.0
      %1641 = vmatpush1.msra.mxu0 0.0
      %1642 = vmatprep.subr.mxu0 0.0
      %1643 = vmatpush1.msra.mxu0 %v1610
      %1644 = vmatprep.subr.mxu0 0.0
      %1645 = vmatpush2.msra.mxu0 0.0
      %1646 = vmatprep.subr.mxu0 0.0
      %1647 = vmatpush2.msra.mxu0 0.0
      %1648 = vmatprep.subr.mxu0 0.0
      %1649 = vmatpush2.msra.mxu0 0.0
      %1650 = vmatprep.subr.mxu0 0.0
      %1651 = vmatpush2.msra.mxu0 0.0
      %1652 = vmatprep.subr.mxu0 0.0
      %1653 = vmatpush2.msra.mxu0 0.0
      %1654 = vmatprep.subr.mxu0 0.0
      %1655 = vmatpush2.msra.mxu0 0.0
      %1656 = vmatprep.subr.mxu0 0.0
      %1657 = vmatpush2.msra.mxu0 0.0
      %1658 = vmatprep.subr.mxu0 0.0
      %1659 = vmatpush2.msra.mxu0 0.0
      %1660 = vmatprep.subr.mxu0 0.0
      %1661 = vmatpush2.msra.mxu0 0.0
      %1662 = vmatprep.subr.mxu0 0.0
      %1663 = vmatpush2.msra.mxu0 0.0
      %1664 = vmatprep.subr.mxu0 0.0
      %1665 = vmatpush2.msra.mxu0 0.0
      %1666 = vmatprep.subr.mxu0 0.0
      %1667 = vmatpush2.msra.mxu0 0.0
      %1668 = vmatprep.subr.mxu0 0.0
      %1669 = vmatpush2.msra.mxu0 0.0
      %1670 = vmatprep.subr.mxu0 0.0
      %1671 = vmatpush2.msra.mxu0 0.0
      %1672 = vmatprep.subr.mxu0 0.0
      %1673 = vmatpush2.msra.mxu0 0.0
      %1674 = vmatprep.subr.mxu0 0.0
      %1675 = vmatpush2.msra.mxu0 0.0
      %1676 = vmatprep.mubr.f32.mxu0 0.0
      %1677 = vmatmul.mubr.f32.gmra.mxu0 %v1608
      %v1678 = vpop.f32.mrf.mxu0
      %v1679 = vadd.f32 0.0, %v1678
      %v1680 = vpop.f32.mrf.mxu0
      %1681 = vdwg.mxu0
      %v1682 = vadd.f32 %v1591, %v1679
      %v1683 = vld [vmem:[%s886] sm:$0xf]
      %1684 = vrot.lane.b32.xlu0 %v1606, 127
      %v1685 = vpop.permute.xlu0 %1684
      %v1687 = vsel %vm310, %v1683, 0
      %v1689 = vsel %vm314, %v1685, 0
      %1691 = vmatprep.subr.mxu0 0.0
      %1692 = vmatpush1.msra.mxu0 0.0
      %1693 = vmatprep.subr.mxu0 0.0
      %1694 = vmatpush1.msra.mxu0 0.0
      %1695 = vmatprep.subr.mxu0 0.0
      %1696 = vmatpush1.msra.mxu0 0.0
      %1697 = vmatprep.subr.mxu0 0.0
      %1698 = vmatpush1.msra.mxu0 0.0
      %1699 = vmatprep.subr.mxu0 0.0
      %1700 = vmatpush1.msra.mxu0 0.0
      %1701 = vmatprep.subr.mxu0 0.0
      %1702 = vmatpush1.msra.mxu0 0.0
      %1703 = vmatprep.subr.mxu0 0.0
      %1704 = vmatpush1.msra.mxu0 0.0
      %1705 = vmatprep.subr.mxu0 0.0
      %1706 = vmatpush1.msra.mxu0 0.0
      %1707 = vmatprep.subr.mxu0 0.0
      %1708 = vmatpush1.msra.mxu0 0.0
      %1709 = vmatprep.subr.mxu0 0.0
      %1710 = vmatpush1.msra.mxu0 0.0
      %1711 = vmatprep.subr.mxu0 0.0
      %1712 = vmatpush1.msra.mxu0 0.0
      %1713 = vmatprep.subr.mxu0 0.0
      %1714 = vmatpush1.msra.mxu0 0.0
      %1715 = vmatprep.subr.mxu0 0.0
      %1716 = vmatpush1.msra.mxu0 0.0
      %1717 = vmatprep.subr.mxu0 0.0
      %1718 = vmatpush1.msra.mxu0 0.0
      %1719 = vmatprep.subr.mxu0 0.0
      %1720 = vmatpush1.msra.mxu0 0.0
      %1721 = vmatprep.subr.mxu0 0.0
      %1722 = vmatpush1.msra.mxu0 %v1689
      %1723 = vmatprep.subr.mxu0 0.0
      %1724 = vmatpush2.msra.mxu0 0.0
      %1725 = vmatprep.subr.mxu0 0.0
      %1726 = vmatpush2.msra.mxu0 0.0
      %1727 = vmatprep.subr.mxu0 0.0
      %1728 = vmatpush2.msra.mxu0 0.0
      %1729 = vmatprep.subr.mxu0 0.0
      %1730 = vmatpush2.msra.mxu0 0.0
      %1731 = vmatprep.subr.mxu0 0.0
      %1732 = vmatpush2.msra.mxu0 0.0
      %1733 = vmatprep.subr.mxu0 0.0
      %1734 = vmatpush2.msra.mxu0 0.0
      %1735 = vmatprep.subr.mxu0 0.0
      %1736 = vmatpush2.msra.mxu0 0.0
      %1737 = vmatprep.subr.mxu0 0.0
      %1738 = vmatpush2.msra.mxu0 0.0
      %1739 = vmatprep.subr.mxu0 0.0
      %1740 = vmatpush2.msra.mxu0 0.0
      %1741 = vmatprep.subr.mxu0 0.0
      %1742 = vmatpush2.msra.mxu0 0.0
      %1743 = vmatprep.subr.mxu0 0.0
      %1744 = vmatpush2.msra.mxu0 0.0
      %1745 = vmatprep.subr.mxu0 0.0
      %1746 = vmatpush2.msra.mxu0 0.0
      %1747 = vmatprep.subr.mxu0 0.0
      %1748 = vmatpush2.msra.mxu0 0.0
      %1749 = vmatprep.subr.mxu0 0.0
      %1750 = vmatpush2.msra.mxu0 0.0
      %1751 = vmatprep.subr.mxu0 0.0
      %1752 = vmatpush2.msra.mxu0 0.0
      %1753 = vmatprep.subr.mxu0 0.0
      %1754 = vmatpush2.msra.mxu0 0.0
      %1755 = vmatprep.mubr.f32.mxu0 0.0
      %1756 = vmatmul.mubr.f32.gmra.mxu0 %v1687
      %v1757 = vpop.f32.mrf.mxu0
      %v1758 = vadd.f32 0.0, %v1757
      %v1759 = vpop.f32.mrf.mxu0
      %1760 = vdwg.mxu0
      %v1761 = vadd.f32 %v1682, %v1758
      %v1762 = vld [vmem:[%s966] sm:$0xf]
      %1763 = vrot.lane.b32.xlu0 %v1606, 126
      %v1764 = vpop.permute.xlu0 %1763
      %v1766 = vsel %vm310, %v1762, 0
      %v1768 = vsel %vm314, %v1764, 0
      %1770 = vmatprep.subr.mxu0 0.0
      %1771 = vmatpush1.msra.mxu0 0.0
      %1772 = vmatprep.subr.mxu0 0.0
      %1773 = vmatpush1.msra.mxu0 0.0
      %1774 = vmatprep.subr.mxu0 0.0
      %1775 = vmatpush1.msra.mxu0 0.0
      %1776 = vmatprep.subr.mxu0 0.0
      %1777 = vmatpush1.msra.mxu0 0.0
      %1778 = vmatprep.subr.mxu0 0.0
      %1779 = vmatpush1.msra.mxu0 0.0
      %1780 = vmatprep.subr.mxu0 0.0
      %1781 = vmatpush1.msra.mxu0 0.0
      %1782 = vmatprep.subr.mxu0 0.0
      %1783 = vmatpush1.msra.mxu0 0.0
      %1784 = vmatprep.subr.mxu0 0.0
      %1785 = vmatpush1.msra.mxu0 0.0
      %1786 = vmatprep.subr.mxu0 0.0
      %1787 = vmatpush1.msra.mxu0 0.0
      %1788 = vmatprep.subr.mxu0 0.0
      %1789 = vmatpush1.msra.mxu0 0.0
      %1790 = vmatprep.subr.mxu0 0.0
      %1791 = vmatpush1.msra.mxu0 0.0
      %1792 = vmatprep.subr.mxu0 0.0
      %1793 = vmatpush1.msra.mxu0 0.0
      %1794 = vmatprep.subr.mxu0 0.0
      %1795 = vmatpush1.msra.mxu0 0.0
      %1796 = vmatprep.subr.mxu0 0.0
      %1797 = vmatpush1.msra.mxu0 0.0
      %1798 = vmatprep.subr.mxu0 0.0
      %1799 = vmatpush1.msra.mxu0 0.0
      %1800 = vmatprep.subr.mxu0 0.0
      %1801 = vmatpush1.msra.mxu0 %v1768
      %1802 = vmatprep.subr.mxu0 0.0
      %1803 = vmatpush2.msra.mxu0 0.0
      %1804 = vmatprep.subr.mxu0 0.0
      %1805 = vmatpush2.msra.mxu0 0.0
      %1806 = vmatprep.subr.mxu0 0.0
      %1807 = vmatpush2.msra.mxu0 0.0
      %1808 = vmatprep.subr.mxu0 0.0
      %1809 = vmatpush2.msra.mxu0 0.0
      %1810 = vmatprep.subr.mxu0 0.0
      %1811 = vmatpush2.msra.mxu0 0.0
      %1812 = vmatprep.subr.mxu0 0.0
      %1813 = vmatpush2.msra.mxu0 0.0
      %1814 = vmatprep.subr.mxu0 0.0
      %1815 = vmatpush2.msra.mxu0 0.0
      %1816 = vmatprep.subr.mxu0 0.0
      %1817 = vmatpush2.msra.mxu0 0.0
      %1818 = vmatprep.subr.mxu0 0.0
      %1819 = vmatpush2.msra.mxu0 0.0
      %1820 = vmatprep.subr.mxu0 0.0
      %1821 = vmatpush2.msra.mxu0 0.0
      %1822 = vmatprep.subr.mxu0 0.0
      %1823 = vmatpush2.msra.mxu0 0.0
      %1824 = vmatprep.subr.mxu0 0.0
      %1825 = vmatpush2.msra.mxu0 0.0
      %1826 = vmatprep.subr.mxu0 0.0
      %1827 = vmatpush2.msra.mxu0 0.0
      %1828 = vmatprep.subr.mxu0 0.0
      %1829 = vmatpush2.msra.mxu0 0.0
      %1830 = vmatprep.subr.mxu0 0.0
      %1831 = vmatpush2.msra.mxu0 0.0
      %1832 = vmatprep.subr.mxu0 0.0
      %1833 = vmatpush2.msra.mxu0 0.0
      %1834 = vmatprep.mubr.f32.mxu0 0.0
      %1835 = vmatmul.mubr.f32.gmra.mxu0 %v1766
      %v1836 = vpop.f32.mrf.mxu0
      %v1837 = vadd.f32 0.0, %v1836
      %v1838 = vpop.f32.mrf.mxu0
      %1839 = vdwg.mxu0
      %v1840 = vadd.f32 %v1761, %v1837
      %v1841 = vld [vmem:[%s2] sm:$0xf]
      %1843 = vset.pattern.permute.xlu0 0
      %1844 = vperm.xlu0 %1843, %v1841
      %v1845 = vpop.permute.xlu0 %1844
      %v1847 = vadd.f32 %v1840, %v1845
      %v1848 = vmax.f32 %v1847, 0.0
      %1850 = vrot.lane.b32.xlu0 %v1848, 1
      %v1851 = vpop.permute.xlu0 %1850
      %v1853 = vsel %vm1058, 0.0, %v1851
      %v1854 = vsel %vm1060, %v1853, 0.0
      %v1857 = vunpack.c.l.s4 1966171168
      %v1858 = vunpack.c.0.s8 %v1857
      %v1859 = vlaneseq
      %v1860 = vshrl.u32 %v1859, 7
      %v1861 = vsub.s32 %v1858, %v1860
      %v1862 = vrot.slane %v1854, %v1861
      %v1863 = vcombine.high %v1862, %v1862
      %v1865 = vunpack.c.l.s4 1966171168
      %v1866 = vunpack.c.0.s8 %v1865
      %v1867 = vlaneseq
      %v1868 = vshrl.u32 %v1867, 7
      %v1869 = vsub.s32 %v1866, %v1868
      %v1870 = vrot.slane %v1862, %v1869
      %v1872 = vunpack.c.l.s4 1966171168
      %v1873 = vunpack.c.0.s8 %v1872
      %v1874 = vlaneseq
      %v1875 = vshrl.u32 %v1874, 7
      %v1876 = vsub.s32 %v1873, %v1875
      %v1877 = vrot.slane %v1863, %v1876
      %v1878 = vcombine.high %v1870, %v1870
      %v1879 = vcombine.high %v1877, %v1877
      %1884 = vst.msk [vmem:[#allocation2 + $0x2] sm:$0x1] %vm1091, %v1870
      %1885 = vst.msk [vmem:[#allocation2 + $0x6] sm:$0x1] %vm1091, %v1877
      %1886 = vst.msk [vmem:[#allocation2 + $0xa] sm:$0x1] %vm1091, %v1878
      %1887 = vst.msk [vmem:[#allocation2 + $0xe] sm:$0x1] %vm1091, %v1879
      %v1888 = vld [vmem:[#allocation2] sm:$0x1]
      %v1889 = vld [vmem:[#allocation2 + $0x4] sm:$0x1]
      %v1890 = vld [vmem:[#allocation2 + $0x8] sm:$0x1]
      %v1891 = vld [vmem:[#allocation2 + $0xc] sm:$0x1]
      %v1892 = vld [vmem:[%s3] sm:$0xf]
      %s1893 = scalar_lea.vmem %s3, 4
      %v1894 = vld [vmem:[%s1893] sm:$0xf]
      %v1899 = vrot.slane %v1889, 7
      %v1900 = vsel %vm300, %v1899, %v1888
      %v1901 = vrot.slane %v1890, 6
      %v1902 = vsel %vm303, %v1901, %v1900
      %v1903 = vrot.slane %v1891, 5
      %v1904 = vsel %vm306, %v1903, %v1902
      %1905 = vrot.lane.b32.xlu0 %v1904, 127
      %v1906 = vpop.permute.xlu0 %1905
      %v1908 = vsel %vm310, %v1894, 0
      %v1910 = vsel %vm314, %v1906, 0
      %1912 = vmatprep.subr.mxu0 0.0
      %1913 = vmatpush1.msra.mxu0 0.0
      %1914 = vmatprep.subr.mxu0 0.0
      %1915 = vmatpush1.msra.mxu0 0.0
      %1916 = vmatprep.subr.mxu0 0.0
      %1917 = vmatpush1.msra.mxu0 0.0
      %1918 = vmatprep.subr.mxu0 0.0
      %1919 = vmatpush1.msra.mxu0 0.0
      %1920 = vmatprep.subr.mxu0 0.0
      %1921 = vmatpush1.msra.mxu0 0.0
      %1922 = vmatprep.subr.mxu0 0.0
      %1923 = vmatpush1.msra.mxu0 0.0
      %1924 = vmatprep.subr.mxu0 0.0
      %1925 = vmatpush1.msra.mxu0 0.0
      %1926 = vmatprep.subr.mxu0 0.0
      %1927 = vmatpush1.msra.mxu0 0.0
      %1928 = vmatprep.subr.mxu0 0.0
      %1929 = vmatpush1.msra.mxu0 0.0
      %1930 = vmatprep.subr.mxu0 0.0
      %1931 = vmatpush1.msra.mxu0 0.0
      %1932 = vmatprep.subr.mxu0 0.0
      %1933 = vmatpush1.msra.mxu0 0.0
      %1934 = vmatprep.subr.mxu0 0.0
      %1935 = vmatpush1.msra.mxu0 0.0
      %1936 = vmatprep.subr.mxu0 0.0
      %1937 = vmatpush1.msra.mxu0 0.0
      %1938 = vmatprep.subr.mxu0 0.0
      %1939 = vmatpush1.msra.mxu0 0.0
      %1940 = vmatprep.subr.mxu0 0.0
      %1941 = vmatpush1.msra.mxu0 0.0
      %1942 = vmatprep.subr.mxu0 0.0
      %1943 = vmatpush1.msra.mxu0 %v1910
      %1944 = vmatprep.subr.mxu0 0.0
      %1945 = vmatpush2.msra.mxu0 0.0
      %1946 = vmatprep.subr.mxu0 0.0
      %1947 = vmatpush2.msra.mxu0 0.0
      %1948 = vmatprep.subr.mxu0 0.0
      %1949 = vmatpush2.msra.mxu0 0.0
      %1950 = vmatprep.subr.mxu0 0.0
      %1951 = vmatpush2.msra.mxu0 0.0
      %1952 = vmatprep.subr.mxu0 0.0
      %1953 = vmatpush2.msra.mxu0 0.0
      %1954 = vmatprep.subr.mxu0 0.0
      %1955 = vmatpush2.msra.mxu0 0.0
      %1956 = vmatprep.subr.mxu0 0.0
      %1957 = vmatpush2.msra.mxu0 0.0
      %1958 = vmatprep.subr.mxu0 0.0
      %1959 = vmatpush2.msra.mxu0 0.0
      %1960 = vmatprep.subr.mxu0 0.0
      %1961 = vmatpush2.msra.mxu0 0.0
      %1962 = vmatprep.subr.mxu0 0.0
      %1963 = vmatpush2.msra.mxu0 0.0
      %1964 = vmatprep.subr.mxu0 0.0
      %1965 = vmatpush2.msra.mxu0 0.0
      %1966 = vmatprep.subr.mxu0 0.0
      %1967 = vmatpush2.msra.mxu0 0.0
      %1968 = vmatprep.subr.mxu0 0.0
      %1969 = vmatpush2.msra.mxu0 0.0
      %1970 = vmatprep.subr.mxu0 0.0
      %1971 = vmatpush2.msra.mxu0 0.0
      %1972 = vmatprep.subr.mxu0 0.0
      %1973 = vmatpush2.msra.mxu0 0.0
      %1974 = vmatprep.subr.mxu0 0.0
      %1975 = vmatpush2.msra.mxu0 0.0
      %1976 = vmatprep.mubr.f32.mxu0 0.0
      %1977 = vmatmul.mubr.f32.gmra.mxu0 %v1908
      %v1978 = vpop.f32.mrf.mxu0
      %v1979 = vadd.f32 0.0, %v1978
      %v1980 = vpop.f32.mrf.mxu0
      %1981 = vdwg.mxu0
      %v1983 = vsel %vm310, %v1892, 0
      %v1985 = vsel %vm314, %v1904, 0
      %1987 = vmatprep.subr.mxu0 0.0
      %1988 = vmatpush1.msra.mxu0 0.0
      %1989 = vmatprep.subr.mxu0 0.0
      %1990 = vmatpush1.msra.mxu0 0.0
      %1991 = vmatprep.subr.mxu0 0.0
      %1992 = vmatpush1.msra.mxu0 0.0
      %1993 = vmatprep.subr.mxu0 0.0
      %1994 = vmatpush1.msra.mxu0 0.0
      %1995 = vmatprep.subr.mxu0 0.0
      %1996 = vmatpush1.msra.mxu0 0.0
      %1997 = vmatprep.subr.mxu0 0.0
      %1998 = vmatpush1.msra.mxu0 0.0
      %1999 = vmatprep.subr.mxu0 0.0
      %2000 = vmatpush1.msra.mxu0 0.0
      %2001 = vmatprep.subr.mxu0 0.0
      %2002 = vmatpush1.msra.mxu0 0.0
      %2003 = vmatprep.subr.mxu0 0.0
      %2004 = vmatpush1.msra.mxu0 0.0
      %2005 = vmatprep.subr.mxu0 0.0
      %2006 = vmatpush1.msra.mxu0 0.0
      %2007 = vmatprep.subr.mxu0 0.0
      %2008 = vmatpush1.msra.mxu0 0.0
      %2009 = vmatprep.subr.mxu0 0.0
      %2010 = vmatpush1.msra.mxu0 0.0
      %2011 = vmatprep.subr.mxu0 0.0
      %2012 = vmatpush1.msra.mxu0 0.0
      %2013 = vmatprep.subr.mxu0 0.0
      %2014 = vmatpush1.msra.mxu0 0.0
      %2015 = vmatprep.subr.mxu0 0.0
      %2016 = vmatpush1.msra.mxu0 0.0
      %2017 = vmatprep.subr.mxu0 0.0
      %2018 = vmatpush1.msra.mxu0 %v1985
      %2019 = vmatprep.subr.mxu0 0.0
      %2020 = vmatpush2.msra.mxu0 0.0
      %2021 = vmatprep.subr.mxu0 0.0
      %2022 = vmatpush2.msra.mxu0 0.0
      %2023 = vmatprep.subr.mxu0 0.0
      %2024 = vmatpush2.msra.mxu0 0.0
      %2025 = vmatprep.subr.mxu0 0.0
      %2026 = vmatpush2.msra.mxu0 0.0
      %2027 = vmatprep.subr.mxu0 0.0
      %2028 = vmatpush2.msra.mxu0 0.0
      %2029 = vmatprep.subr.mxu0 0.0
      %2030 = vmatpush2.msra.mxu0 0.0
      %2031 = vmatprep.subr.mxu0 0.0
      %2032 = vmatpush2.msra.mxu0 0.0
      %2033 = vmatprep.subr.mxu0 0.0
      %2034 = vmatpush2.msra.mxu0 0.0
      %2035 = vmatprep.subr.mxu0 0.0
      %2036 = vmatpush2.msra.mxu0 0.0
      %2037 = vmatprep.subr.mxu0 0.0
      %2038 = vmatpush2.msra.mxu0 0.0
      %2039 = vmatprep.subr.mxu0 0.0
      %2040 = vmatpush2.msra.mxu0 0.0
      %2041 = vmatprep.subr.mxu0 0.0
      %2042 = vmatpush2.msra.mxu0 0.0
      %2043 = vmatprep.subr.mxu0 0.0
      %2044 = vmatpush2.msra.mxu0 0.0
      %2045 = vmatprep.subr.mxu0 0.0
      %2046 = vmatpush2.msra.mxu0 0.0
      %2047 = vmatprep.subr.mxu0 0.0
      %2048 = vmatpush2.msra.mxu0 0.0
      %2049 = vmatprep.subr.mxu0 0.0
      %2050 = vmatpush2.msra.mxu0 0.0
      %2051 = vmatprep.mubr.f32.mxu0 0.0
      %2052 = vmatmul.mubr.f32.gmra.mxu0 %v1983
      %v2053 = vpop.f32.mrf.mxu0
      %v2054 = vadd.f32 %v1979, %v2053
      %v2055 = vpop.f32.mrf.mxu0
      %2056 = vdwg.mxu0
      %s2057 = scalar_lea.vmem %s3, 8
      %v2058 = vld [vmem:[%s2057] sm:$0xf]
      %2059 = vrot.lane.b32.xlu0 %v1904, 126
      %v2060 = vpop.permute.xlu0 %2059
      %v2062 = vsel %vm310, %v2058, 0
      %v2064 = vsel %vm314, %v2060, 0
      %2066 = vmatprep.subr.mxu0 0.0
      %2067 = vmatpush1.msra.mxu0 0.0
      %2068 = vmatprep.subr.mxu0 0.0
      %2069 = vmatpush1.msra.mxu0 0.0
      %2070 = vmatprep.subr.mxu0 0.0
      %2071 = vmatpush1.msra.mxu0 0.0
      %2072 = vmatprep.subr.mxu0 0.0
      %2073 = vmatpush1.msra.mxu0 0.0
      %2074 = vmatprep.subr.mxu0 0.0
      %2075 = vmatpush1.msra.mxu0 0.0
      %2076 = vmatprep.subr.mxu0 0.0
      %2077 = vmatpush1.msra.mxu0 0.0
      %2078 = vmatprep.subr.mxu0 0.0
      %2079 = vmatpush1.msra.mxu0 0.0
      %2080 = vmatprep.subr.mxu0 0.0
      %2081 = vmatpush1.msra.mxu0 0.0
      %2082 = vmatprep.subr.mxu0 0.0
      %2083 = vmatpush1.msra.mxu0 0.0
      %2084 = vmatprep.subr.mxu0 0.0
      %2085 = vmatpush1.msra.mxu0 0.0
      %2086 = vmatprep.subr.mxu0 0.0
      %2087 = vmatpush1.msra.mxu0 0.0
      %2088 = vmatprep.subr.mxu0 0.0
      %2089 = vmatpush1.msra.mxu0 0.0
      %2090 = vmatprep.subr.mxu0 0.0
      %2091 = vmatpush1.msra.mxu0 0.0
      %2092 = vmatprep.subr.mxu0 0.0
      %2093 = vmatpush1.msra.mxu0 0.0
      %2094 = vmatprep.subr.mxu0 0.0
      %2095 = vmatpush1.msra.mxu0 0.0
      %2096 = vmatprep.subr.mxu0 0.0
      %2097 = vmatpush1.msra.mxu0 %v2064
      %2098 = vmatprep.subr.mxu0 0.0
      %2099 = vmatpush2.msra.mxu0 0.0
      %2100 = vmatprep.subr.mxu0 0.0
      %2101 = vmatpush2.msra.mxu0 0.0
      %2102 = vmatprep.subr.mxu0 0.0
      %2103 = vmatpush2.msra.mxu0 0.0
      %2104 = vmatprep.subr.mxu0 0.0
      %2105 = vmatpush2.msra.mxu0 0.0
      %2106 = vmatprep.subr.mxu0 0.0
      %2107 = vmatpush2.msra.mxu0 0.0
      %2108 = vmatprep.subr.mxu0 0.0
      %2109 = vmatpush2.msra.mxu0 0.0
      %2110 = vmatprep.subr.mxu0 0.0
      %2111 = vmatpush2.msra.mxu0 0.0
      %2112 = vmatprep.subr.mxu0 0.0
      %2113 = vmatpush2.msra.mxu0 0.0
      %2114 = vmatprep.subr.mxu0 0.0
      %2115 = vmatpush2.msra.mxu0 0.0
      %2116 = vmatprep.subr.mxu0 0.0
      %2117 = vmatpush2.msra.mxu0 0.0
      %2118 = vmatprep.subr.mxu0 0.0
      %2119 = vmatpush2.msra.mxu0 0.0
      %2120 = vmatprep.subr.mxu0 0.0
      %2121 = vmatpush2.msra.mxu0 0.0
      %2122 = vmatprep.subr.mxu0 0.0
      %2123 = vmatpush2.msra.mxu0 0.0
      %2124 = vmatprep.subr.mxu0 0.0
      %2125 = vmatpush2.msra.mxu0 0.0
      %2126 = vmatprep.subr.mxu0 0.0
      %2127 = vmatpush2.msra.mxu0 0.0
      %2128 = vmatprep.subr.mxu0 0.0
      %2129 = vmatpush2.msra.mxu0 0.0
      %2130 = vmatprep.mubr.f32.mxu0 0.0
      %2131 = vmatmul.mubr.f32.gmra.mxu0 %v2062
      %v2132 = vpop.f32.mrf.mxu0
      %v2133 = vadd.f32 0.0, %v2132
      %v2134 = vpop.f32.mrf.mxu0
      %2135 = vdwg.mxu0
      %v2136 = vadd.f32 %v2054, %v2133
      %v2137 = vld [vmem:[#allocation2 + $0x1] sm:$0x1]
      %v2138 = vld [vmem:[#allocation2 + $0x5] sm:$0x1]
      %v2139 = vld [vmem:[#allocation2 + $0x9] sm:$0x1]
      %v2140 = vld [vmem:[#allocation2 + $0xd] sm:$0x1]
      %s2141 = scalar_lea.vmem %s3, 12
      %v2142 = vld [vmem:[%s2141] sm:$0xf]
      %v2147 = vrot.slane %v2138, 7
      %v2148 = vsel %vm300, %v2147, %v2137
      %v2149 = vrot.slane %v2139, 6
      %v2150 = vsel %vm303, %v2149, %v2148
      %v2151 = vrot.slane %v2140, 5
      %v2152 = vsel %vm306, %v2151, %v2150
      %v2154 = vsel %vm310, %v2142, 0
      %v2156 = vsel %vm314, %v2152, 0
      %2158 = vmatprep.subr.mxu0 0.0
      %2159 = vmatpush1.msra.mxu0 0.0
      %2160 = vmatprep.subr.mxu0 0.0
      %2161 = vmatpush1.msra.mxu0 0.0
      %2162 = vmatprep.subr.mxu0 0.0
      %2163 = vmatpush1.msra.mxu0 0.0
      %2164 = vmatprep.subr.mxu0 0.0
      %2165 = vmatpush1.msra.mxu0 0.0
      %2166 = vmatprep.subr.mxu0 0.0
      %2167 = vmatpush1.msra.mxu0 0.0
      %2168 = vmatprep.subr.mxu0 0.0
      %2169 = vmatpush1.msra.mxu0 0.0
      %2170 = vmatprep.subr.mxu0 0.0
      %2171 = vmatpush1.msra.mxu0 0.0
      %2172 = vmatprep.subr.mxu0 0.0
      %2173 = vmatpush1.msra.mxu0 0.0
      %2174 = vmatprep.subr.mxu0 0.0
      %2175 = vmatpush1.msra.mxu0 0.0
      %2176 = vmatprep.subr.mxu0 0.0
      %2177 = vmatpush1.msra.mxu0 0.0
      %2178 = vmatprep.subr.mxu0 0.0
      %2179 = vmatpush1.msra.mxu0 0.0
      %2180 = vmatprep.subr.mxu0 0.0
      %2181 = vmatpush1.msra.mxu0 0.0
      %2182 = vmatprep.subr.mxu0 0.0
      %2183 = vmatpush1.msra.mxu0 0.0
      %2184 = vmatprep.subr.mxu0 0.0
      %2185 = vmatpush1.msra.mxu0 0.0
      %2186 = vmatprep.subr.mxu0 0.0
      %2187 = vmatpush1.msra.mxu0 0.0
      %2188 = vmatprep.subr.mxu0 0.0
      %2189 = vmatpush1.msra.mxu0 %v2156
      %2190 = vmatprep.subr.mxu0 0.0
      %2191 = vmatpush2.msra.mxu0 0.0
      %2192 = vmatprep.subr.mxu0 0.0
      %2193 = vmatpush2.msra.mxu0 0.0
      %2194 = vmatprep.subr.mxu0 0.0
      %2195 = vmatpush2.msra.mxu0 0.0
      %2196 = vmatprep.subr.mxu0 0.0
      %2197 = vmatpush2.msra.mxu0 0.0
      %2198 = vmatprep.subr.mxu0 0.0
      %2199 = vmatpush2.msra.mxu0 0.0
      %2200 = vmatprep.subr.mxu0 0.0
      %2201 = vmatpush2.msra.mxu0 0.0
      %2202 = vmatprep.subr.mxu0 0.0
      %2203 = vmatpush2.msra.mxu0 0.0
      %2204 = vmatprep.subr.mxu0 0.0
      %2205 = vmatpush2.msra.mxu0 0.0
      %2206 = vmatprep.subr.mxu0 0.0
      %2207 = vmatpush2.msra.mxu0 0.0
      %2208 = vmatprep.subr.mxu0 0.0
      %2209 = vmatpush2.msra.mxu0 0.0
      %2210 = vmatprep.subr.mxu0 0.0
      %2211 = vmatpush2.msra.mxu0 0.0
      %2212 = vmatprep.subr.mxu0 0.0
      %2213 = vmatpush2.msra.mxu0 0.0
      %2214 = vmatprep.subr.mxu0 0.0
      %2215 = vmatpush2.msra.mxu0 0.0
      %2216 = vmatprep.subr.mxu0 0.0
      %2217 = vmatpush2.msra.mxu0 0.0
      %2218 = vmatprep.subr.mxu0 0.0
      %2219 = vmatpush2.msra.mxu0 0.0
      %2220 = vmatprep.subr.mxu0 0.0
      %2221 = vmatpush2.msra.mxu0 0.0
      %2222 = vmatprep.mubr.f32.mxu0 0.0
      %2223 = vmatmul.mubr.f32.gmra.mxu0 %v2154
      %v2224 = vpop.f32.mrf.mxu0
      %v2225 = vadd.f32 0.0, %v2224
      %v2226 = vpop.f32.mrf.mxu0
      %2227 = vdwg.mxu0
      %v2228 = vadd.f32 %v2136, %v2225
      %s2229 = scalar_lea.vmem %s3, 16
      %v2230 = vld [vmem:[%s2229] sm:$0xf]
      %2231 = vrot.lane.b32.xlu0 %v2152, 127
      %v2232 = vpop.permute.xlu0 %2231
      %v2234 = vsel %vm310, %v2230, 0
      %v2236 = vsel %vm314, %v2232, 0
      %2238 = vmatprep.subr.mxu0 0.0
      %2239 = vmatpush1.msra.mxu0 0.0
      %2240 = vmatprep.subr.mxu0 0.0
      %2241 = vmatpush1.msra.mxu0 0.0
      %2242 = vmatprep.subr.mxu0 0.0
      %2243 = vmatpush1.msra.mxu0 0.0
      %2244 = vmatprep.subr.mxu0 0.0
      %2245 = vmatpush1.msra.mxu0 0.0
      %2246 = vmatprep.subr.mxu0 0.0
      %2247 = vmatpush1.msra.mxu0 0.0
      %2248 = vmatprep.subr.mxu0 0.0
      %2249 = vmatpush1.msra.mxu0 0.0
      %2250 = vmatprep.subr.mxu0 0.0
      %2251 = vmatpush1.msra.mxu0 0.0
      %2252 = vmatprep.subr.mxu0 0.0
      %2253 = vmatpush1.msra.mxu0 0.0
      %2254 = vmatprep.subr.mxu0 0.0
      %2255 = vmatpush1.msra.mxu0 0.0
      %2256 = vmatprep.subr.mxu0 0.0
      %2257 = vmatpush1.msra.mxu0 0.0
      %2258 = vmatprep.subr.mxu0 0.0
      %2259 = vmatpush1.msra.mxu0 0.0
      %2260 = vmatprep.subr.mxu0 0.0
      %2261 = vmatpush1.msra.mxu0 0.0
      %2262 = vmatprep.subr.mxu0 0.0
      %2263 = vmatpush1.msra.mxu0 0.0
      %2264 = vmatprep.subr.mxu0 0.0
      %2265 = vmatpush1.msra.mxu0 0.0
      %2266 = vmatprep.subr.mxu0 0.0
      %2267 = vmatpush1.msra.mxu0 0.0
      %2268 = vmatprep.subr.mxu0 0.0
      %2269 = vmatpush1.msra.mxu0 %v2236
      %2270 = vmatprep.subr.mxu0 0.0
      %2271 = vmatpush2.msra.mxu0 0.0
      %2272 = vmatprep.subr.mxu0 0.0
      %2273 = vmatpush2.msra.mxu0 0.0
      %2274 = vmatprep.subr.mxu0 0.0
      %2275 = vmatpush2.msra.mxu0 0.0
      %2276 = vmatprep.subr.mxu0 0.0
      %2277 = vmatpush2.msra.mxu0 0.0
      %2278 = vmatprep.subr.mxu0 0.0
      %2279 = vmatpush2.msra.mxu0 0.0
      %2280 = vmatprep.subr.mxu0 0.0
      %2281 = vmatpush2.msra.mxu0 0.0
      %2282 = vmatprep.subr.mxu0 0.0
      %2283 = vmatpush2.msra.mxu0 0.0
      %2284 = vmatprep.subr.mxu0 0.0
      %2285 = vmatpush2.msra.mxu0 0.0
      %2286 = vmatprep.subr.mxu0 0.0
      %2287 = vmatpush2.msra.mxu0 0.0
      %2288 = vmatprep.subr.mxu0 0.0
      %2289 = vmatpush2.msra.mxu0 0.0
      %2290 = vmatprep.subr.mxu0 0.0
      %2291 = vmatpush2.msra.mxu0 0.0
      %2292 = vmatprep.subr.mxu0 0.0
      %2293 = vmatpush2.msra.mxu0 0.0
      %2294 = vmatprep.subr.mxu0 0.0
      %2295 = vmatpush2.msra.mxu0 0.0
      %2296 = vmatprep.subr.mxu0 0.0
      %2297 = vmatpush2.msra.mxu0 0.0
      %2298 = vmatprep.subr.mxu0 0.0
      %2299 = vmatpush2.msra.mxu0 0.0
      %2300 = vmatprep.subr.mxu0 0.0
      %2301 = vmatpush2.msra.mxu0 0.0
      %2302 = vmatprep.mubr.f32.mxu0 0.0
      %2303 = vmatmul.mubr.f32.gmra.mxu0 %v2234
      %v2304 = vpop.f32.mrf.mxu0
      %v2305 = vadd.f32 0.0, %v2304
      %v2306 = vpop.f32.mrf.mxu0
      %2307 = vdwg.mxu0
      %v2308 = vadd.f32 %v2228, %v2305
      %s2309 = scalar_lea.vmem %s3, 20
      %v2310 = vld [vmem:[%s2309] sm:$0xf]
      %2311 = vrot.lane.b32.xlu0 %v2152, 126
      %v2312 = vpop.permute.xlu0 %2311
      %v2314 = vsel %vm310, %v2310, 0
      %v2316 = vsel %vm314, %v2312, 0
      %2318 = vmatprep.subr.mxu0 0.0
      %2319 = vmatpush1.msra.mxu0 0.0
      %2320 = vmatprep.subr.mxu0 0.0
      %2321 = vmatpush1.msra.mxu0 0.0
      %2322 = vmatprep.subr.mxu0 0.0
      %2323 = vmatpush1.msra.mxu0 0.0
      %2324 = vmatprep.subr.mxu0 0.0
      %2325 = vmatpush1.msra.mxu0 0.0
      %2326 = vmatprep.subr.mxu0 0.0
      %2327 = vmatpush1.msra.mxu0 0.0
      %2328 = vmatprep.subr.mxu0 0.0
      %2329 = vmatpush1.msra.mxu0 0.0
      %2330 = vmatprep.subr.mxu0 0.0
      %2331 = vmatpush1.msra.mxu0 0.0
      %2332 = vmatprep.subr.mxu0 0.0
      %2333 = vmatpush1.msra.mxu0 0.0
      %2334 = vmatprep.subr.mxu0 0.0
      %2335 = vmatpush1.msra.mxu0 0.0
      %2336 = vmatprep.subr.mxu0 0.0
      %2337 = vmatpush1.msra.mxu0 0.0
      %2338 = vmatprep.subr.mxu0 0.0
      %2339 = vmatpush1.msra.mxu0 0.0
      %2340 = vmatprep.subr.mxu0 0.0
      %2341 = vmatpush1.msra.mxu0 0.0
      %2342 = vmatprep.subr.mxu0 0.0
      %2343 = vmatpush1.msra.mxu0 0.0
      %2344 = vmatprep.subr.mxu0 0.0
      %2345 = vmatpush1.msra.mxu0 0.0
      %2346 = vmatprep.subr.mxu0 0.0
      %2347 = vmatpush1.msra.mxu0 0.0
      %2348 = vmatprep.subr.mxu0 0.0
      %2349 = vmatpush1.msra.mxu0 %v2316
      %2350 = vmatprep.subr.mxu0 0.0
      %2351 = vmatpush2.msra.mxu0 0.0
      %2352 = vmatprep.subr.mxu0 0.0
      %2353 = vmatpush2.msra.mxu0 0.0
      %2354 = vmatprep.subr.mxu0 0.0
      %2355 = vmatpush2.msra.mxu0 0.0
      %2356 = vmatprep.subr.mxu0 0.0
      %2357 = vmatpush2.msra.mxu0 0.0
      %2358 = vmatprep.subr.mxu0 0.0
      %2359 = vmatpush2.msra.mxu0 0.0
      %2360 = vmatprep.subr.mxu0 0.0
      %2361 = vmatpush2.msra.mxu0 0.0
      %2362 = vmatprep.subr.mxu0 0.0
      %2363 = vmatpush2.msra.mxu0 0.0
      %2364 = vmatprep.subr.mxu0 0.0
      %2365 = vmatpush2.msra.mxu0 0.0
      %2366 = vmatprep.subr.mxu0 0.0
      %2367 = vmatpush2.msra.mxu0 0.0
      %2368 = vmatprep.subr.mxu0 0.0
      %2369 = vmatpush2.msra.mxu0 0.0
      %2370 = vmatprep.subr.mxu0 0.0
      %2371 = vmatpush2.msra.mxu0 0.0
      %2372 = vmatprep.subr.mxu0 0.0
      %2373 = vmatpush2.msra.mxu0 0.0
      %2374 = vmatprep.subr.mxu0 0.0
      %2375 = vmatpush2.msra.mxu0 0.0
      %2376 = vmatprep.subr.mxu0 0.0
      %2377 = vmatpush2.msra.mxu0 0.0
      %2378 = vmatprep.subr.mxu0 0.0
      %2379 = vmatpush2.msra.mxu0 0.0
      %2380 = vmatprep.subr.mxu0 0.0
      %2381 = vmatpush2.msra.mxu0 0.0
      %2382 = vmatprep.mubr.f32.mxu0 0.0
      %2383 = vmatmul.mubr.f32.gmra.mxu0 %v2314
      %v2384 = vpop.f32.mrf.mxu0
      %v2385 = vadd.f32 0.0, %v2384
      %v2386 = vpop.f32.mrf.mxu0
      %2387 = vdwg.mxu0
      %v2388 = vadd.f32 %v2308, %v2385
      %v2389 = vld [vmem:[#allocation2 + $0x2] sm:$0x1]
      %v2390 = vld [vmem:[#allocation2 + $0x6] sm:$0x1]
      %v2391 = vld [vmem:[#allocation2 + $0xa] sm:$0x1]
      %v2392 = vld [vmem:[#allocation2 + $0xe] sm:$0x1]
      %s2393 = scalar_lea.vmem %s3, 24
      %v2394 = vld [vmem:[%s2393] sm:$0xf]
      %v2399 = vrot.slane %v2390, 7
      %v2400 = vsel %vm300, %v2399, %v2389
      %v2401 = vrot.slane %v2391, 6
      %v2402 = vsel %vm303, %v2401, %v2400
      %v2403 = vrot.slane %v2392, 5
      %v2404 = vsel %vm306, %v2403, %v2402
      %v2406 = vsel %vm310, %v2394, 0
      %v2408 = vsel %vm314, %v2404, 0
      %2410 = vmatprep.subr.mxu0 0.0
      %2411 = vmatpush1.msra.mxu0 0.0
      %2412 = vmatprep.subr.mxu0 0.0
      %2413 = vmatpush1.msra.mxu0 0.0
      %2414 = vmatprep.subr.mxu0 0.0
      %2415 = vmatpush1.msra.mxu0 0.0
      %2416 = vmatprep.subr.mxu0 0.0
      %2417 = vmatpush1.msra.mxu0 0.0
      %2418 = vmatprep.subr.mxu0 0.0
      %2419 = vmatpush1.msra.mxu0 0.0
      %2420 = vmatprep.subr.mxu0 0.0
      %2421 = vmatpush1.msra.mxu0 0.0
      %2422 = vmatprep.subr.mxu0 0.0
      %2423 = vmatpush1.msra.mxu0 0.0
      %2424 = vmatprep.subr.mxu0 0.0
      %2425 = vmatpush1.msra.mxu0 0.0
      %2426 = vmatprep.subr.mxu0 0.0
      %2427 = vmatpush1.msra.mxu0 0.0
      %2428 = vmatprep.subr.mxu0 0.0
      %2429 = vmatpush1.msra.mxu0 0.0
      %2430 = vmatprep.subr.mxu0 0.0
      %2431 = vmatpush1.msra.mxu0 0.0
      %2432 = vmatprep.subr.mxu0 0.0
      %2433 = vmatpush1.msra.mxu0 0.0
      %2434 = vmatprep.subr.mxu0 0.0
      %2435 = vmatpush1.msra.mxu0 0.0
      %2436 = vmatprep.subr.mxu0 0.0
      %2437 = vmatpush1.msra.mxu0 0.0
      %2438 = vmatprep.subr.mxu0 0.0
      %2439 = vmatpush1.msra.mxu0 0.0
      %2440 = vmatprep.subr.mxu0 0.0
      %2441 = vmatpush1.msra.mxu0 %v2408
      %2442 = vmatprep.subr.mxu0 0.0
      %2443 = vmatpush2.msra.mxu0 0.0
      %2444 = vmatprep.subr.mxu0 0.0
      %2445 = vmatpush2.msra.mxu0 0.0
      %2446 = vmatprep.subr.mxu0 0.0
      %2447 = vmatpush2.msra.mxu0 0.0
      %2448 = vmatprep.subr.mxu0 0.0
      %2449 = vmatpush2.msra.mxu0 0.0
      %2450 = vmatprep.subr.mxu0 0.0
      %2451 = vmatpush2.msra.mxu0 0.0
      %2452 = vmatprep.subr.mxu0 0.0
      %2453 = vmatpush2.msra.mxu0 0.0
      %2454 = vmatprep.subr.mxu0 0.0
      %2455 = vmatpush2.msra.mxu0 0.0
      %2456 = vmatprep.subr.mxu0 0.0
      %2457 = vmatpush2.msra.mxu0 0.0
      %2458 = vmatprep.subr.mxu0 0.0
      %2459 = vmatpush2.msra.mxu0 0.0
      %2460 = vmatprep.subr.mxu0 0.0
      %2461 = vmatpush2.msra.mxu0 0.0
      %2462 = vmatprep.subr.mxu0 0.0
      %2463 = vmatpush2.msra.mxu0 0.0
      %2464 = vmatprep.subr.mxu0 0.0
      %2465 = vmatpush2.msra.mxu0 0.0
      %2466 = vmatprep.subr.mxu0 0.0
      %2467 = vmatpush2.msra.mxu0 0.0
      %2468 = vmatprep.subr.mxu0 0.0
      %2469 = vmatpush2.msra.mxu0 0.0
      %2470 = vmatprep.subr.mxu0 0.0
      %2471 = vmatpush2.msra.mxu0 0.0
      %2472 = vmatprep.subr.mxu0 0.0
      %2473 = vmatpush2.msra.mxu0 0.0
      %2474 = vmatprep.mubr.f32.mxu0 0.0
      %2475 = vmatmul.mubr.f32.gmra.mxu0 %v2406
      %v2476 = vpop.f32.mrf.mxu0
      %v2477 = vadd.f32 0.0, %v2476
      %v2478 = vpop.f32.mrf.mxu0
      %2479 = vdwg.mxu0
      %v2480 = vadd.f32 %v2388, %v2477
      %s2481 = scalar_lea.vmem %s3, 28
      %v2482 = vld [vmem:[%s2481] sm:$0xf]
      %2483 = vrot.lane.b32.xlu0 %v2404, 127
      %v2484 = vpop.permute.xlu0 %2483
      %v2486 = vsel %vm310, %v2482, 0
      %v2488 = vsel %vm314, %v2484, 0
      %2490 = vmatprep.subr.mxu0 0.0
      %2491 = vmatpush1.msra.mxu0 0.0
      %2492 = vmatprep.subr.mxu0 0.0
      %2493 = vmatpush1.msra.mxu0 0.0
      %2494 = vmatprep.subr.mxu0 0.0
      %2495 = vmatpush1.msra.mxu0 0.0
      %2496 = vmatprep.subr.mxu0 0.0
      %2497 = vmatpush1.msra.mxu0 0.0
      %2498 = vmatprep.subr.mxu0 0.0
      %2499 = vmatpush1.msra.mxu0 0.0
      %2500 = vmatprep.subr.mxu0 0.0
      %2501 = vmatpush1.msra.mxu0 0.0
      %2502 = vmatprep.subr.mxu0 0.0
      %2503 = vmatpush1.msra.mxu0 0.0
      %2504 = vmatprep.subr.mxu0 0.0
      %2505 = vmatpush1.msra.mxu0 0.0
      %2506 = vmatprep.subr.mxu0 0.0
      %2507 = vmatpush1.msra.mxu0 0.0
      %2508 = vmatprep.subr.mxu0 0.0
      %2509 = vmatpush1.msra.mxu0 0.0
      %2510 = vmatprep.subr.mxu0 0.0
      %2511 = vmatpush1.msra.mxu0 0.0
      %2512 = vmatprep.subr.mxu0 0.0
      %2513 = vmatpush1.msra.mxu0 0.0
      %2514 = vmatprep.subr.mxu0 0.0
      %2515 = vmatpush1.msra.mxu0 0.0
      %2516 = vmatprep.subr.mxu0 0.0
      %2517 = vmatpush1.msra.mxu0 0.0
      %2518 = vmatprep.subr.mxu0 0.0
      %2519 = vmatpush1.msra.mxu0 0.0
      %2520 = vmatprep.subr.mxu0 0.0
      %2521 = vmatpush1.msra.mxu0 %v2488
      %2522 = vmatprep.subr.mxu0 0.0
      %2523 = vmatpush2.msra.mxu0 0.0
      %2524 = vmatprep.subr.mxu0 0.0
      %2525 = vmatpush2.msra.mxu0 0.0
      %2526 = vmatprep.subr.mxu0 0.0
      %2527 = vmatpush2.msra.mxu0 0.0
      %2528 = vmatprep.subr.mxu0 0.0
      %2529 = vmatpush2.msra.mxu0 0.0
      %2530 = vmatprep.subr.mxu0 0.0
      %2531 = vmatpush2.msra.mxu0 0.0
      %2532 = vmatprep.subr.mxu0 0.0
      %2533 = vmatpush2.msra.mxu0 0.0
      %2534 = vmatprep.subr.mxu0 0.0
      %2535 = vmatpush2.msra.mxu0 0.0
      %2536 = vmatprep.subr.mxu0 0.0
      %2537 = vmatpush2.msra.mxu0 0.0
      %2538 = vmatprep.subr.mxu0 0.0
      %2539 = vmatpush2.msra.mxu0 0.0
      %2540 = vmatprep.subr.mxu0 0.0
      %2541 = vmatpush2.msra.mxu0 0.0
      %2542 = vmatprep.subr.mxu0 0.0
      %2543 = vmatpush2.msra.mxu0 0.0
      %2544 = vmatprep.subr.mxu0 0.0
      %2545 = vmatpush2.msra.mxu0 0.0
      %2546 = vmatprep.subr.mxu0 0.0
      %2547 = vmatpush2.msra.mxu0 0.0
      %2548 = vmatprep.subr.mxu0 0.0
      %2549 = vmatpush2.msra.mxu0 0.0
      %2550 = vmatprep.subr.mxu0 0.0
      %2551 = vmatpush2.msra.mxu0 0.0
      %2552 = vmatprep.subr.mxu0 0.0
      %2553 = vmatpush2.msra.mxu0 0.0
      %2554 = vmatprep.mubr.f32.mxu0 0.0
      %2555 = vmatmul.mubr.f32.gmra.mxu0 %v2486
      %v2556 = vpop.f32.mrf.mxu0
      %v2557 = vadd.f32 0.0, %v2556
      %v2558 = vpop.f32.mrf.mxu0
      %2559 = vdwg.mxu0
      %v2560 = vadd.f32 %v2480, %v2557
      %s2561 = scalar_lea.vmem %s3, 32
      %v2562 = vld [vmem:[%s2561] sm:$0xf]
      %2563 = vrot.lane.b32.xlu0 %v2404, 126
      %v2564 = vpop.permute.xlu0 %2563
      %v2566 = vsel %vm310, %v2562, 0
      %v2568 = vsel %vm314, %v2564, 0
      %2570 = vmatprep.subr.mxu0 0.0
      %2571 = vmatpush1.msra.mxu0 0.0
      %2572 = vmatprep.subr.mxu0 0.0
      %2573 = vmatpush1.msra.mxu0 0.0
      %2574 = vmatprep.subr.mxu0 0.0
      %2575 = vmatpush1.msra.mxu0 0.0
      %2576 = vmatprep.subr.mxu0 0.0
      %2577 = vmatpush1.msra.mxu0 0.0
      %2578 = vmatprep.subr.mxu0 0.0
      %2579 = vmatpush1.msra.mxu0 0.0
      %2580 = vmatprep.subr.mxu0 0.0
      %2581 = vmatpush1.msra.mxu0 0.0
      %2582 = vmatprep.subr.mxu0 0.0
      %2583 = vmatpush1.msra.mxu0 0.0
      %2584 = vmatprep.subr.mxu0 0.0
      %2585 = vmatpush1.msra.mxu0 0.0
      %2586 = vmatprep.subr.mxu0 0.0
      %2587 = vmatpush1.msra.mxu0 0.0
      %2588 = vmatprep.subr.mxu0 0.0
      %2589 = vmatpush1.msra.mxu0 0.0
      %2590 = vmatprep.subr.mxu0 0.0
      %2591 = vmatpush1.msra.mxu0 0.0
      %2592 = vmatprep.subr.mxu0 0.0
      %2593 = vmatpush1.msra.mxu0 0.0
      %2594 = vmatprep.subr.mxu0 0.0
      %2595 = vmatpush1.msra.mxu0 0.0
      %2596 = vmatprep.subr.mxu0 0.0
      %2597 = vmatpush1.msra.mxu0 0.0
      %2598 = vmatprep.subr.mxu0 0.0
      %2599 = vmatpush1.msra.mxu0 0.0
      %2600 = vmatprep.subr.mxu0 0.0
      %2601 = vmatpush1.msra.mxu0 %v2568
      %2602 = vmatprep.subr.mxu0 0.0
      %2603 = vmatpush2.msra.mxu0 0.0
      %2604 = vmatprep.subr.mxu0 0.0
      %2605 = vmatpush2.msra.mxu0 0.0
      %2606 = vmatprep.subr.mxu0 0.0
      %2607 = vmatpush2.msra.mxu0 0.0
      %2608 = vmatprep.subr.mxu0 0.0
      %2609 = vmatpush2.msra.mxu0 0.0
      %2610 = vmatprep.subr.mxu0 0.0
      %2611 = vmatpush2.msra.mxu0 0.0
      %2612 = vmatprep.subr.mxu0 0.0
      %2613 = vmatpush2.msra.mxu0 0.0
      %2614 = vmatprep.subr.mxu0 0.0
      %2615 = vmatpush2.msra.mxu0 0.0
      %2616 = vmatprep.subr.mxu0 0.0
      %2617 = vmatpush2.msra.mxu0 0.0
      %2618 = vmatprep.subr.mxu0 0.0
      %2619 = vmatpush2.msra.mxu0 0.0
      %2620 = vmatprep.subr.mxu0 0.0
      %2621 = vmatpush2.msra.mxu0 0.0
      %2622 = vmatprep.subr.mxu0 0.0
      %2623 = vmatpush2.msra.mxu0 0.0
      %2624 = vmatprep.subr.mxu0 0.0
      %2625 = vmatpush2.msra.mxu0 0.0
      %2626 = vmatprep.subr.mxu0 0.0
      %2627 = vmatpush2.msra.mxu0 0.0
      %2628 = vmatprep.subr.mxu0 0.0
      %2629 = vmatpush2.msra.mxu0 0.0
      %2630 = vmatprep.subr.mxu0 0.0
      %2631 = vmatpush2.msra.mxu0 0.0
      %2632 = vmatprep.subr.mxu0 0.0
      %2633 = vmatpush2.msra.mxu0 0.0
      %2634 = vmatprep.mubr.f32.mxu0 0.0
      %2635 = vmatmul.mubr.f32.gmra.mxu0 %v2566
      %v2636 = vpop.f32.mrf.mxu0
      %v2637 = vadd.f32 0.0, %v2636
      %v2638 = vpop.f32.mrf.mxu0
      %2639 = vdwg.mxu0
      %v2640 = vadd.f32 %v2560, %v2637
      %v2641 = vld [vmem:[%s4] sm:$0xf]
      %2643 = vset.pattern.permute.xlu0 0
      %2644 = vperm.xlu0 %2643, %v2641
      %v2645 = vpop.permute.xlu0 %2644
      %v2647 = vadd.f32 %v2640, %v2645
      %v2648 = vmax.f32 %v2647, 0.0
      %2650 = vrot.lane.b32.xlu0 %v2648, 1
      %v2651 = vpop.permute.xlu0 %2650
      %v2653 = vsel %vm1058, 0.0, %v2651
      %v2654 = vsel %vm1060, %v2653, 0.0
      %v2657 = vunpack.c.l.s4 1966171168
      %v2658 = vunpack.c.0.s8 %v2657
      %v2659 = vlaneseq
      %v2660 = vshrl.u32 %v2659, 7
      %v2661 = vsub.s32 %v2658, %v2660
      %v2662 = vrot.slane %v2654, %v2661
      %v2663 = vcombine.high %v2662, %v2662
      %v2665 = vunpack.c.l.s4 1966171168
      %v2666 = vunpack.c.0.s8 %v2665
      %v2667 = vlaneseq
      %v2668 = vshrl.u32 %v2667, 7
      %v2669 = vsub.s32 %v2666, %v2668
      %v2670 = vrot.slane %v2662, %v2669
      %v2672 = vunpack.c.l.s4 1966171168
      %v2673 = vunpack.c.0.s8 %v2672
      %v2674 = vlaneseq
      %v2675 = vshrl.u32 %v2674, 7
      %v2676 = vsub.s32 %v2673, %v2675
      %v2677 = vrot.slane %v2663, %v2676
      %v2678 = vcombine.high %v2670, %v2670
      %v2679 = vcombine.high %v2677, %v2677
      %2684 = vst.msk [vmem:[#allocation3 + $0x1] sm:$0x1] %vm1091, %v2670
      %2685 = vst.msk [vmem:[#allocation3 + $0x5] sm:$0x1] %vm1091, %v2677
      %2686 = vst.msk [vmem:[#allocation3 + $0x9] sm:$0x1] %vm1091, %v2678
      %2687 = vst.msk [vmem:[#allocation3 + $0xd] sm:$0x1] %vm1091, %v2679
      %v2688 = vld [vmem:[#allocation2 + $0x1] sm:$0x1]
      %v2689 = vld [vmem:[#allocation2 + $0x5] sm:$0x1]
      %v2690 = vld [vmem:[#allocation2 + $0x9] sm:$0x1]
      %v2691 = vld [vmem:[#allocation2 + $0xd] sm:$0x1]
      %v2692 = vld [vmem:[%s3] sm:$0xf]
      %v2693 = vld [vmem:[%s1893] sm:$0xf]
      %v2698 = vrot.slane %v2689, 7
      %v2699 = vsel %vm300, %v2698, %v2688
      %v2700 = vrot.slane %v2690, 6
      %v2701 = vsel %vm303, %v2700, %v2699
      %v2702 = vrot.slane %v2691, 5
      %v2703 = vsel %vm306, %v2702, %v2701
      %2704 = vrot.lane.b32.xlu0 %v2703, 127
      %v2705 = vpop.permute.xlu0 %2704
      %v2707 = vsel %vm310, %v2693, 0
      %v2709 = vsel %vm314, %v2705, 0
      %2711 = vmatprep.subr.mxu0 0.0
      %2712 = vmatpush1.msra.mxu0 0.0
      %2713 = vmatprep.subr.mxu0 0.0
      %2714 = vmatpush1.msra.mxu0 0.0
      %2715 = vmatprep.subr.mxu0 0.0
      %2716 = vmatpush1.msra.mxu0 0.0
      %2717 = vmatprep.subr.mxu0 0.0
      %2718 = vmatpush1.msra.mxu0 0.0
      %2719 = vmatprep.subr.mxu0 0.0
      %2720 = vmatpush1.msra.mxu0 0.0
      %2721 = vmatprep.subr.mxu0 0.0
      %2722 = vmatpush1.msra.mxu0 0.0
      %2723 = vmatprep.subr.mxu0 0.0
      %2724 = vmatpush1.msra.mxu0 0.0
      %2725 = vmatprep.subr.mxu0 0.0
      %2726 = vmatpush1.msra.mxu0 0.0
      %2727 = vmatprep.subr.mxu0 0.0
      %2728 = vmatpush1.msra.mxu0 0.0
      %2729 = vmatprep.subr.mxu0 0.0
      %2730 = vmatpush1.msra.mxu0 0.0
      %2731 = vmatprep.subr.mxu0 0.0
      %2732 = vmatpush1.msra.mxu0 0.0
      %2733 = vmatprep.subr.mxu0 0.0
      %2734 = vmatpush1.msra.mxu0 0.0
      %2735 = vmatprep.subr.mxu0 0.0
      %2736 = vmatpush1.msra.mxu0 0.0
      %2737 = vmatprep.subr.mxu0 0.0
      %2738 = vmatpush1.msra.mxu0 0.0
      %2739 = vmatprep.subr.mxu0 0.0
      %2740 = vmatpush1.msra.mxu0 0.0
      %2741 = vmatprep.subr.mxu0 0.0
      %2742 = vmatpush1.msra.mxu0 %v2709
      %2743 = vmatprep.subr.mxu0 0.0
      %2744 = vmatpush2.msra.mxu0 0.0
      %2745 = vmatprep.subr.mxu0 0.0
      %2746 = vmatpush2.msra.mxu0 0.0
      %2747 = vmatprep.subr.mxu0 0.0
      %2748 = vmatpush2.msra.mxu0 0.0
      %2749 = vmatprep.subr.mxu0 0.0
      %2750 = vmatpush2.msra.mxu0 0.0
      %2751 = vmatprep.subr.mxu0 0.0
      %2752 = vmatpush2.msra.mxu0 0.0
      %2753 = vmatprep.subr.mxu0 0.0
      %2754 = vmatpush2.msra.mxu0 0.0
      %2755 = vmatprep.subr.mxu0 0.0
      %2756 = vmatpush2.msra.mxu0 0.0
      %2757 = vmatprep.subr.mxu0 0.0
      %2758 = vmatpush2.msra.mxu0 0.0
      %2759 = vmatprep.subr.mxu0 0.0
      %2760 = vmatpush2.msra.mxu0 0.0
      %2761 = vmatprep.subr.mxu0 0.0
      %2762 = vmatpush2.msra.mxu0 0.0
      %2763 = vmatprep.subr.mxu0 0.0
      %2764 = vmatpush2.msra.mxu0 0.0
      %2765 = vmatprep.subr.mxu0 0.0
      %2766 = vmatpush2.msra.mxu0 0.0
      %2767 = vmatprep.subr.mxu0 0.0
      %2768 = vmatpush2.msra.mxu0 0.0
      %2769 = vmatprep.subr.mxu0 0.0
      %2770 = vmatpush2.msra.mxu0 0.0
      %2771 = vmatprep.subr.mxu0 0.0
      %2772 = vmatpush2.msra.mxu0 0.0
      %2773 = vmatprep.subr.mxu0 0.0
      %2774 = vmatpush2.msra.mxu0 0.0
      %2775 = vmatprep.mubr.f32.mxu0 0.0
      %2776 = vmatmul.mubr.f32.gmra.mxu0 %v2707
      %v2777 = vpop.f32.mrf.mxu0
      %v2778 = vadd.f32 0.0, %v2777
      %v2779 = vpop.f32.mrf.mxu0
      %2780 = vdwg.mxu0
      %v2782 = vsel %vm310, %v2692, 0
      %v2784 = vsel %vm314, %v2703, 0
      %2786 = vmatprep.subr.mxu0 0.0
      %2787 = vmatpush1.msra.mxu0 0.0
      %2788 = vmatprep.subr.mxu0 0.0
      %2789 = vmatpush1.msra.mxu0 0.0
      %2790 = vmatprep.subr.mxu0 0.0
      %2791 = vmatpush1.msra.mxu0 0.0
      %2792 = vmatprep.subr.mxu0 0.0
      %2793 = vmatpush1.msra.mxu0 0.0
      %2794 = vmatprep.subr.mxu0 0.0
      %2795 = vmatpush1.msra.mxu0 0.0
      %2796 = vmatprep.subr.mxu0 0.0
      %2797 = vmatpush1.msra.mxu0 0.0
      %2798 = vmatprep.subr.mxu0 0.0
      %2799 = vmatpush1.msra.mxu0 0.0
      %2800 = vmatprep.subr.mxu0 0.0
      %2801 = vmatpush1.msra.mxu0 0.0
      %2802 = vmatprep.subr.mxu0 0.0
      %2803 = vmatpush1.msra.mxu0 0.0
      %2804 = vmatprep.subr.mxu0 0.0
      %2805 = vmatpush1.msra.mxu0 0.0
      %2806 = vmatprep.subr.mxu0 0.0
      %2807 = vmatpush1.msra.mxu0 0.0
      %2808 = vmatprep.subr.mxu0 0.0
      %2809 = vmatpush1.msra.mxu0 0.0
      %2810 = vmatprep.subr.mxu0 0.0
      %2811 = vmatpush1.msra.mxu0 0.0
      %2812 = vmatprep.subr.mxu0 0.0
      %2813 = vmatpush1.msra.mxu0 0.0
      %2814 = vmatprep.subr.mxu0 0.0
      %2815 = vmatpush1.msra.mxu0 0.0
      %2816 = vmatprep.subr.mxu0 0.0
      %2817 = vmatpush1.msra.mxu0 %v2784
      %2818 = vmatprep.subr.mxu0 0.0
      %2819 = vmatpush2.msra.mxu0 0.0
      %2820 = vmatprep.subr.mxu0 0.0
      %2821 = vmatpush2.msra.mxu0 0.0
      %2822 = vmatprep.subr.mxu0 0.0
      %2823 = vmatpush2.msra.mxu0 0.0
      %2824 = vmatprep.subr.mxu0 0.0
      %2825 = vmatpush2.msra.mxu0 0.0
      %2826 = vmatprep.subr.mxu0 0.0
      %2827 = vmatpush2.msra.mxu0 0.0
      %2828 = vmatprep.subr.mxu0 0.0
      %2829 = vmatpush2.msra.mxu0 0.0
      %2830 = vmatprep.subr.mxu0 0.0
      %2831 = vmatpush2.msra.mxu0 0.0
      %2832 = vmatprep.subr.mxu0 0.0
      %2833 = vmatpush2.msra.mxu0 0.0
      %2834 = vmatprep.subr.mxu0 0.0
      %2835 = vmatpush2.msra.mxu0 0.0
      %2836 = vmatprep.subr.mxu0 0.0
      %2837 = vmatpush2.msra.mxu0 0.0
      %2838 = vmatprep.subr.mxu0 0.0
      %2839 = vmatpush2.msra.mxu0 0.0
      %2840 = vmatprep.subr.mxu0 0.0
      %2841 = vmatpush2.msra.mxu0 0.0
      %2842 = vmatprep.subr.mxu0 0.0
      %2843 = vmatpush2.msra.mxu0 0.0
      %2844 = vmatprep.subr.mxu0 0.0
      %2845 = vmatpush2.msra.mxu0 0.0
      %2846 = vmatprep.subr.mxu0 0.0
      %2847 = vmatpush2.msra.mxu0 0.0
      %2848 = vmatprep.subr.mxu0 0.0
      %2849 = vmatpush2.msra.mxu0 0.0
      %2850 = vmatprep.mubr.f32.mxu0 0.0
      %2851 = vmatmul.mubr.f32.gmra.mxu0 %v2782
      %v2852 = vpop.f32.mrf.mxu0
      %v2853 = vadd.f32 %v2778, %v2852
      %v2854 = vpop.f32.mrf.mxu0
      %2855 = vdwg.mxu0
      %v2856 = vld [vmem:[%s2057] sm:$0xf]
      %2857 = vrot.lane.b32.xlu0 %v2703, 126
      %v2858 = vpop.permute.xlu0 %2857
      %v2860 = vsel %vm310, %v2856, 0
      %v2862 = vsel %vm314, %v2858, 0
      %2864 = vmatprep.subr.mxu0 0.0
      %2865 = vmatpush1.msra.mxu0 0.0
      %2866 = vmatprep.subr.mxu0 0.0
      %2867 = vmatpush1.msra.mxu0 0.0
      %2868 = vmatprep.subr.mxu0 0.0
      %2869 = vmatpush1.msra.mxu0 0.0
      %2870 = vmatprep.subr.mxu0 0.0
      %2871 = vmatpush1.msra.mxu0 0.0
      %2872 = vmatprep.subr.mxu0 0.0
      %2873 = vmatpush1.msra.mxu0 0.0
      %2874 = vmatprep.subr.mxu0 0.0
      %2875 = vmatpush1.msra.mxu0 0.0
      %2876 = vmatprep.subr.mxu0 0.0
      %2877 = vmatpush1.msra.mxu0 0.0
      %2878 = vmatprep.subr.mxu0 0.0
      %2879 = vmatpush1.msra.mxu0 0.0
      %2880 = vmatprep.subr.mxu0 0.0
      %2881 = vmatpush1.msra.mxu0 0.0
      %2882 = vmatprep.subr.mxu0 0.0
      %2883 = vmatpush1.msra.mxu0 0.0
      %2884 = vmatprep.subr.mxu0 0.0
      %2885 = vmatpush1.msra.mxu0 0.0
      %2886 = vmatprep.subr.mxu0 0.0
      %2887 = vmatpush1.msra.mxu0 0.0
      %2888 = vmatprep.subr.mxu0 0.0
      %2889 = vmatpush1.msra.mxu0 0.0
      %2890 = vmatprep.subr.mxu0 0.0
      %2891 = vmatpush1.msra.mxu0 0.0
      %2892 = vmatprep.subr.mxu0 0.0
      %2893 = vmatpush1.msra.mxu0 0.0
      %2894 = vmatprep.subr.mxu0 0.0
      %2895 = vmatpush1.msra.mxu0 %v2862
      %2896 = vmatprep.subr.mxu0 0.0
      %2897 = vmatpush2.msra.mxu0 0.0
      %2898 = vmatprep.subr.mxu0 0.0
      %2899 = vmatpush2.msra.mxu0 0.0
      %2900 = vmatprep.subr.mxu0 0.0
      %2901 = vmatpush2.msra.mxu0 0.0
      %2902 = vmatprep.subr.mxu0 0.0
      %2903 = vmatpush2.msra.mxu0 0.0
      %2904 = vmatprep.subr.mxu0 0.0
      %2905 = vmatpush2.msra.mxu0 0.0
      %2906 = vmatprep.subr.mxu0 0.0
      %2907 = vmatpush2.msra.mxu0 0.0
      %2908 = vmatprep.subr.mxu0 0.0
      %2909 = vmatpush2.msra.mxu0 0.0
      %2910 = vmatprep.subr.mxu0 0.0
      %2911 = vmatpush2.msra.mxu0 0.0
      %2912 = vmatprep.subr.mxu0 0.0
      %2913 = vmatpush2.msra.mxu0 0.0
      %2914 = vmatprep.subr.mxu0 0.0
      %2915 = vmatpush2.msra.mxu0 0.0
      %2916 = vmatprep.subr.mxu0 0.0
      %2917 = vmatpush2.msra.mxu0 0.0
      %2918 = vmatprep.subr.mxu0 0.0
      %2919 = vmatpush2.msra.mxu0 0.0
      %2920 = vmatprep.subr.mxu0 0.0
      %2921 = vmatpush2.msra.mxu0 0.0
      %2922 = vmatprep.subr.mxu0 0.0
      %2923 = vmatpush2.msra.mxu0 0.0
      %2924 = vmatprep.subr.mxu0 0.0
      %2925 = vmatpush2.msra.mxu0 0.0
      %2926 = vmatprep.subr.mxu0 0.0
      %2927 = vmatpush2.msra.mxu0 0.0
      %2928 = vmatprep.mubr.f32.mxu0 0.0
      %2929 = vmatmul.mubr.f32.gmra.mxu0 %v2860
      %v2930 = vpop.f32.mrf.mxu0
      %v2931 = vadd.f32 0.0, %v2930
      %v2932 = vpop.f32.mrf.mxu0
      %2933 = vdwg.mxu0
      %v2934 = vadd.f32 %v2853, %v2931
      %v2935 = vld [vmem:[#allocation2 + $0x2] sm:$0x1]
      %v2936 = vld [vmem:[#allocation2 + $0x6] sm:$0x1]
      %v2937 = vld [vmem:[#allocation2 + $0xa] sm:$0x1]
      %v2938 = vld [vmem:[#allocation2 + $0xe] sm:$0x1]
      %v2939 = vld [vmem:[%s2141] sm:$0xf]
      %v2944 = vrot.slane %v2936, 7
      %v2945 = vsel %vm300, %v2944, %v2935
      %v2946 = vrot.slane %v2937, 6
      %v2947 = vsel %vm303, %v2946, %v2945
      %v2948 = vrot.slane %v2938, 5
      %v2949 = vsel %vm306, %v2948, %v2947
      %v2951 = vsel %vm310, %v2939, 0
      %v2953 = vsel %vm314, %v2949, 0
      %2955 = vmatprep.subr.mxu0 0.0
      %2956 = vmatpush1.msra.mxu0 0.0
      %2957 = vmatprep.subr.mxu0 0.0
      %2958 = vmatpush1.msra.mxu0 0.0
      %2959 = vmatprep.subr.mxu0 0.0
      %2960 = vmatpush1.msra.mxu0 0.0
      %2961 = vmatprep.subr.mxu0 0.0
      %2962 = vmatpush1.msra.mxu0 0.0
      %2963 = vmatprep.subr.mxu0 0.0
      %2964 = vmatpush1.msra.mxu0 0.0
      %2965 = vmatprep.subr.mxu0 0.0
      %2966 = vmatpush1.msra.mxu0 0.0
      %2967 = vmatprep.subr.mxu0 0.0
      %2968 = vmatpush1.msra.mxu0 0.0
      %2969 = vmatprep.subr.mxu0 0.0
      %2970 = vmatpush1.msra.mxu0 0.0
      %2971 = vmatprep.subr.mxu0 0.0
      %2972 = vmatpush1.msra.mxu0 0.0
      %2973 = vmatprep.subr.mxu0 0.0
      %2974 = vmatpush1.msra.mxu0 0.0
      %2975 = vmatprep.subr.mxu0 0.0
      %2976 = vmatpush1.msra.mxu0 0.0
      %2977 = vmatprep.subr.mxu0 0.0
      %2978 = vmatpush1.msra.mxu0 0.0
      %2979 = vmatprep.subr.mxu0 0.0
      %2980 = vmatpush1.msra.mxu0 0.0
      %2981 = vmatprep.subr.mxu0 0.0
      %2982 = vmatpush1.msra.mxu0 0.0
      %2983 = vmatprep.subr.mxu0 0.0
      %2984 = vmatpush1.msra.mxu0 0.0
      %2985 = vmatprep.subr.mxu0 0.0
      %2986 = vmatpush1.msra.mxu0 %v2953
      %2987 = vmatprep.subr.mxu0 0.0
      %2988 = vmatpush2.msra.mxu0 0.0
      %2989 = vmatprep.subr.mxu0 0.0
      %2990 = vmatpush2.msra.mxu0 0.0
      %2991 = vmatprep.subr.mxu0 0.0
      %2992 = vmatpush2.msra.mxu0 0.0
      %2993 = vmatprep.subr.mxu0 0.0
      %2994 = vmatpush2.msra.mxu0 0.0
      %2995 = vmatprep.subr.mxu0 0.0
      %2996 = vmatpush2.msra.mxu0 0.0
      %2997 = vmatprep.subr.mxu0 0.0
      %2998 = vmatpush2.msra.mxu0 0.0
      %2999 = vmatprep.subr.mxu0 0.0
      %3000 = vmatpush2.msra.mxu0 0.0
      %3001 = vmatprep.subr.mxu0 0.0
      %3002 = vmatpush2.msra.mxu0 0.0
      %3003 = vmatprep.subr.mxu0 0.0
      %3004 = vmatpush2.msra.mxu0 0.0
      %3005 = vmatprep.subr.mxu0 0.0
      %3006 = vmatpush2.msra.mxu0 0.0
      %3007 = vmatprep.subr.mxu0 0.0
      %3008 = vmatpush2.msra.mxu0 0.0
      %3009 = vmatprep.subr.mxu0 0.0
      %3010 = vmatpush2.msra.mxu0 0.0
      %3011 = vmatprep.subr.mxu0 0.0
      %3012 = vmatpush2.msra.mxu0 0.0
      %3013 = vmatprep.subr.mxu0 0.0
      %3014 = vmatpush2.msra.mxu0 0.0
      %3015 = vmatprep.subr.mxu0 0.0
      %3016 = vmatpush2.msra.mxu0 0.0
      %3017 = vmatprep.subr.mxu0 0.0
      %3018 = vmatpush2.msra.mxu0 0.0
      %3019 = vmatprep.mubr.f32.mxu0 0.0
      %3020 = vmatmul.mubr.f32.gmra.mxu0 %v2951
      %v3021 = vpop.f32.mrf.mxu0
      %v3022 = vadd.f32 0.0, %v3021
      %v3023 = vpop.f32.mrf.mxu0
      %3024 = vdwg.mxu0
      %v3025 = vadd.f32 %v2934, %v3022
      %v3026 = vld [vmem:[%s2229] sm:$0xf]
      %3027 = vrot.lane.b32.xlu0 %v2949, 127
      %v3028 = vpop.permute.xlu0 %3027
      %v3030 = vsel %vm310, %v3026, 0
      %v3032 = vsel %vm314, %v3028, 0
      %3034 = vmatprep.subr.mxu0 0.0
      %3035 = vmatpush1.msra.mxu0 0.0
      %3036 = vmatprep.subr.mxu0 0.0
      %3037 = vmatpush1.msra.mxu0 0.0
      %3038 = vmatprep.subr.mxu0 0.0
      %3039 = vmatpush1.msra.mxu0 0.0
      %3040 = vmatprep.subr.mxu0 0.0
      %3041 = vmatpush1.msra.mxu0 0.0
      %3042 = vmatprep.subr.mxu0 0.0
      %3043 = vmatpush1.msra.mxu0 0.0
      %3044 = vmatprep.subr.mxu0 0.0
      %3045 = vmatpush1.msra.mxu0 0.0
      %3046 = vmatprep.subr.mxu0 0.0
      %3047 = vmatpush1.msra.mxu0 0.0
      %3048 = vmatprep.subr.mxu0 0.0
      %3049 = vmatpush1.msra.mxu0 0.0
      %3050 = vmatprep.subr.mxu0 0.0
      %3051 = vmatpush1.msra.mxu0 0.0
      %3052 = vmatprep.subr.mxu0 0.0
      %3053 = vmatpush1.msra.mxu0 0.0
      %3054 = vmatprep.subr.mxu0 0.0
      %3055 = vmatpush1.msra.mxu0 0.0
      %3056 = vmatprep.subr.mxu0 0.0
      %3057 = vmatpush1.msra.mxu0 0.0
      %3058 = vmatprep.subr.mxu0 0.0
      %3059 = vmatpush1.msra.mxu0 0.0
      %3060 = vmatprep.subr.mxu0 0.0
      %3061 = vmatpush1.msra.mxu0 0.0
      %3062 = vmatprep.subr.mxu0 0.0
      %3063 = vmatpush1.msra.mxu0 0.0
      %3064 = vmatprep.subr.mxu0 0.0
      %3065 = vmatpush1.msra.mxu0 %v3032
      %3066 = vmatprep.subr.mxu0 0.0
      %3067 = vmatpush2.msra.mxu0 0.0
      %3068 = vmatprep.subr.mxu0 0.0
      %3069 = vmatpush2.msra.mxu0 0.0
      %3070 = vmatprep.subr.mxu0 0.0
      %3071 = vmatpush2.msra.mxu0 0.0
      %3072 = vmatprep.subr.mxu0 0.0
      %3073 = vmatpush2.msra.mxu0 0.0
      %3074 = vmatprep.subr.mxu0 0.0
      %3075 = vmatpush2.msra.mxu0 0.0
      %3076 = vmatprep.subr.mxu0 0.0
      %3077 = vmatpush2.msra.mxu0 0.0
      %3078 = vmatprep.subr.mxu0 0.0
      %3079 = vmatpush2.msra.mxu0 0.0
      %3080 = vmatprep.subr.mxu0 0.0
      %3081 = vmatpush2.msra.mxu0 0.0
      %3082 = vmatprep.subr.mxu0 0.0
      %3083 = vmatpush2.msra.mxu0 0.0
      %3084 = vmatprep.subr.mxu0 0.0
      %3085 = vmatpush2.msra.mxu0 0.0
      %3086 = vmatprep.subr.mxu0 0.0
      %3087 = vmatpush2.msra.mxu0 0.0
      %3088 = vmatprep.subr.mxu0 0.0
      %3089 = vmatpush2.msra.mxu0 0.0
      %3090 = vmatprep.subr.mxu0 0.0
      %3091 = vmatpush2.msra.mxu0 0.0
      %3092 = vmatprep.subr.mxu0 0.0
      %3093 = vmatpush2.msra.mxu0 0.0
      %3094 = vmatprep.subr.mxu0 0.0
      %3095 = vmatpush2.msra.mxu0 0.0
      %3096 = vmatprep.subr.mxu0 0.0
      %3097 = vmatpush2.msra.mxu0 0.0
      %3098 = vmatprep.mubr.f32.mxu0 0.0
      %3099 = vmatmul.mubr.f32.gmra.mxu0 %v3030
      %v3100 = vpop.f32.mrf.mxu0
      %v3101 = vadd.f32 0.0, %v3100
      %v3102 = vpop.f32.mrf.mxu0
      %3103 = vdwg.mxu0
      %v3104 = vadd.f32 %v3025, %v3101
      %v3105 = vld [vmem:[%s2309] sm:$0xf]
      %3106 = vrot.lane.b32.xlu0 %v2949, 126
      %v3107 = vpop.permute.xlu0 %3106
      %v3109 = vsel %vm310, %v3105, 0
      %v3111 = vsel %vm314, %v3107, 0
      %3113 = vmatprep.subr.mxu0 0.0
      %3114 = vmatpush1.msra.mxu0 0.0
      %3115 = vmatprep.subr.mxu0 0.0
      %3116 = vmatpush1.msra.mxu0 0.0
      %3117 = vmatprep.subr.mxu0 0.0
      %3118 = vmatpush1.msra.mxu0 0.0
      %3119 = vmatprep.subr.mxu0 0.0
      %3120 = vmatpush1.msra.mxu0 0.0
      %3121 = vmatprep.subr.mxu0 0.0
      %3122 = vmatpush1.msra.mxu0 0.0
      %3123 = vmatprep.subr.mxu0 0.0
      %3124 = vmatpush1.msra.mxu0 0.0
      %3125 = vmatprep.subr.mxu0 0.0
      %3126 = vmatpush1.msra.mxu0 0.0
      %3127 = vmatprep.subr.mxu0 0.0
      %3128 = vmatpush1.msra.mxu0 0.0
      %3129 = vmatprep.subr.mxu0 0.0
      %3130 = vmatpush1.msra.mxu0 0.0
      %3131 = vmatprep.subr.mxu0 0.0
      %3132 = vmatpush1.msra.mxu0 0.0
      %3133 = vmatprep.subr.mxu0 0.0
      %3134 = vmatpush1.msra.mxu0 0.0
      %3135 = vmatprep.subr.mxu0 0.0
      %3136 = vmatpush1.msra.mxu0 0.0
      %3137 = vmatprep.subr.mxu0 0.0
      %3138 = vmatpush1.msra.mxu0 0.0
      %3139 = vmatprep.subr.mxu0 0.0
      %3140 = vmatpush1.msra.mxu0 0.0
      %3141 = vmatprep.subr.mxu0 0.0
      %3142 = vmatpush1.msra.mxu0 0.0
      %3143 = vmatprep.subr.mxu0 0.0
      %3144 = vmatpush1.msra.mxu0 %v3111
      %3145 = vmatprep.subr.mxu0 0.0
      %3146 = vmatpush2.msra.mxu0 0.0
      %3147 = vmatprep.subr.mxu0 0.0
      %3148 = vmatpush2.msra.mxu0 0.0
      %3149 = vmatprep.subr.mxu0 0.0
      %3150 = vmatpush2.msra.mxu0 0.0
      %3151 = vmatprep.subr.mxu0 0.0
      %3152 = vmatpush2.msra.mxu0 0.0
      %3153 = vmatprep.subr.mxu0 0.0
      %3154 = vmatpush2.msra.mxu0 0.0
      %3155 = vmatprep.subr.mxu0 0.0
      %3156 = vmatpush2.msra.mxu0 0.0
      %3157 = vmatprep.subr.mxu0 0.0
      %3158 = vmatpush2.msra.mxu0 0.0
      %3159 = vmatprep.subr.mxu0 0.0
      %3160 = vmatpush2.msra.mxu0 0.0
      %3161 = vmatprep.subr.mxu0 0.0
      %3162 = vmatpush2.msra.mxu0 0.0
      %3163 = vmatprep.subr.mxu0 0.0
      %3164 = vmatpush2.msra.mxu0 0.0
      %3165 = vmatprep.subr.mxu0 0.0
      %3166 = vmatpush2.msra.mxu0 0.0
      %3167 = vmatprep.subr.mxu0 0.0
      %3168 = vmatpush2.msra.mxu0 0.0
      %3169 = vmatprep.subr.mxu0 0.0
      %3170 = vmatpush2.msra.mxu0 0.0
      %3171 = vmatprep.subr.mxu0 0.0
      %3172 = vmatpush2.msra.mxu0 0.0
      %3173 = vmatprep.subr.mxu0 0.0
      %3174 = vmatpush2.msra.mxu0 0.0
      %3175 = vmatprep.subr.mxu0 0.0
      %3176 = vmatpush2.msra.mxu0 0.0
      %3177 = vmatprep.mubr.f32.mxu0 0.0
      %3178 = vmatmul.mubr.f32.gmra.mxu0 %v3109
      %v3179 = vpop.f32.mrf.mxu0
      %v3180 = vadd.f32 0.0, %v3179
      %v3181 = vpop.f32.mrf.mxu0
      %3182 = vdwg.mxu0
      %v3183 = vadd.f32 %v3104, %v3180
      %v3184 = vld [vmem:[#allocation2 + $0x3] sm:$0x1]
      %v3185 = vld [vmem:[#allocation2 + $0x7] sm:$0x1]
      %v3186 = vld [vmem:[#allocation2 + $0xb] sm:$0x1]
      %v3187 = vld [vmem:[#allocation2 + $0xf] sm:$0x1]
      %v3188 = vld [vmem:[%s2393] sm:$0xf]
      %v3193 = vrot.slane %v3185, 7
      %v3194 = vsel %vm300, %v3193, %v3184
      %v3195 = vrot.slane %v3186, 6
      %v3196 = vsel %vm303, %v3195, %v3194
      %v3197 = vrot.slane %v3187, 5
      %v3198 = vsel %vm306, %v3197, %v3196
      %v3200 = vsel %vm310, %v3188, 0
      %v3202 = vsel %vm314, %v3198, 0
      %3204 = vmatprep.subr.mxu0 0.0
      %3205 = vmatpush1.msra.mxu0 0.0
      %3206 = vmatprep.subr.mxu0 0.0
      %3207 = vmatpush1.msra.mxu0 0.0
      %3208 = vmatprep.subr.mxu0 0.0
      %3209 = vmatpush1.msra.mxu0 0.0
      %3210 = vmatprep.subr.mxu0 0.0
      %3211 = vmatpush1.msra.mxu0 0.0
      %3212 = vmatprep.subr.mxu0 0.0
      %3213 = vmatpush1.msra.mxu0 0.0
      %3214 = vmatprep.subr.mxu0 0.0
      %3215 = vmatpush1.msra.mxu0 0.0
      %3216 = vmatprep.subr.mxu0 0.0
      %3217 = vmatpush1.msra.mxu0 0.0
      %3218 = vmatprep.subr.mxu0 0.0
      %3219 = vmatpush1.msra.mxu0 0.0
      %3220 = vmatprep.subr.mxu0 0.0
      %3221 = vmatpush1.msra.mxu0 0.0
      %3222 = vmatprep.subr.mxu0 0.0
      %3223 = vmatpush1.msra.mxu0 0.0
      %3224 = vmatprep.subr.mxu0 0.0
      %3225 = vmatpush1.msra.mxu0 0.0
      %3226 = vmatprep.subr.mxu0 0.0
      %3227 = vmatpush1.msra.mxu0 0.0
      %3228 = vmatprep.subr.mxu0 0.0
      %3229 = vmatpush1.msra.mxu0 0.0
      %3230 = vmatprep.subr.mxu0 0.0
      %3231 = vmatpush1.msra.mxu0 0.0
      %3232 = vmatprep.subr.mxu0 0.0
      %3233 = vmatpush1.msra.mxu0 0.0
      %3234 = vmatprep.subr.mxu0 0.0
      %3235 = vmatpush1.msra.mxu0 %v3202
      %3236 = vmatprep.subr.mxu0 0.0
      %3237 = vmatpush2.msra.mxu0 0.0
      %3238 = vmatprep.subr.mxu0 0.0
      %3239 = vmatpush2.msra.mxu0 0.0
      %3240 = vmatprep.subr.mxu0 0.0
      %3241 = vmatpush2.msra.mxu0 0.0
      %3242 = vmatprep.subr.mxu0 0.0
      %3243 = vmatpush2.msra.mxu0 0.0
      %3244 = vmatprep.subr.mxu0 0.0
      %3245 = vmatpush2.msra.mxu0 0.0
      %3246 = vmatprep.subr.mxu0 0.0
      %3247 = vmatpush2.msra.mxu0 0.0
      %3248 = vmatprep.subr.mxu0 0.0
      %3249 = vmatpush2.msra.mxu0 0.0
      %3250 = vmatprep.subr.mxu0 0.0
      %3251 = vmatpush2.msra.mxu0 0.0
      %3252 = vmatprep.subr.mxu0 0.0
      %3253 = vmatpush2.msra.mxu0 0.0
      %3254 = vmatprep.subr.mxu0 0.0
      %3255 = vmatpush2.msra.mxu0 0.0
      %3256 = vmatprep.subr.mxu0 0.0
      %3257 = vmatpush2.msra.mxu0 0.0
      %3258 = vmatprep.subr.mxu0 0.0
      %3259 = vmatpush2.msra.mxu0 0.0
      %3260 = vmatprep.subr.mxu0 0.0
      %3261 = vmatpush2.msra.mxu0 0.0
      %3262 = vmatprep.subr.mxu0 0.0
      %3263 = vmatpush2.msra.mxu0 0.0
      %3264 = vmatprep.subr.mxu0 0.0
      %3265 = vmatpush2.msra.mxu0 0.0
      %3266 = vmatprep.subr.mxu0 0.0
      %3267 = vmatpush2.msra.mxu0 0.0
      %3268 = vmatprep.mubr.f32.mxu0 0.0
      %3269 = vmatmul.mubr.f32.gmra.mxu0 %v3200
      %v3270 = vpop.f32.mrf.mxu0
      %v3271 = vadd.f32 0.0, %v3270
      %v3272 = vpop.f32.mrf.mxu0
      %3273 = vdwg.mxu0
      %v3274 = vadd.f32 %v3183, %v3271
      %v3275 = vld [vmem:[%s2481] sm:$0xf]
      %3276 = vrot.lane.b32.xlu0 %v3198, 127
      %v3277 = vpop.permute.xlu0 %3276
      %v3279 = vsel %vm310, %v3275, 0
      %v3281 = vsel %vm314, %v3277, 0
      %3283 = vmatprep.subr.mxu0 0.0
      %3284 = vmatpush1.msra.mxu0 0.0
      %3285 = vmatprep.subr.mxu0 0.0
      %3286 = vmatpush1.msra.mxu0 0.0
      %3287 = vmatprep.subr.mxu0 0.0
      %3288 = vmatpush1.msra.mxu0 0.0
      %3289 = vmatprep.subr.mxu0 0.0
      %3290 = vmatpush1.msra.mxu0 0.0
      %3291 = vmatprep.subr.mxu0 0.0
      %3292 = vmatpush1.msra.mxu0 0.0
      %3293 = vmatprep.subr.mxu0 0.0
      %3294 = vmatpush1.msra.mxu0 0.0
      %3295 = vmatprep.subr.mxu0 0.0
      %3296 = vmatpush1.msra.mxu0 0.0
      %3297 = vmatprep.subr.mxu0 0.0
      %3298 = vmatpush1.msra.mxu0 0.0
      %3299 = vmatprep.subr.mxu0 0.0
      %3300 = vmatpush1.msra.mxu0 0.0
      %3301 = vmatprep.subr.mxu0 0.0
      %3302 = vmatpush1.msra.mxu0 0.0
      %3303 = vmatprep.subr.mxu0 0.0
      %3304 = vmatpush1.msra.mxu0 0.0
      %3305 = vmatprep.subr.mxu0 0.0
      %3306 = vmatpush1.msra.mxu0 0.0
      %3307 = vmatprep.subr.mxu0 0.0
      %3308 = vmatpush1.msra.mxu0 0.0
      %3309 = vmatprep.subr.mxu0 0.0
      %3310 = vmatpush1.msra.mxu0 0.0
      %3311 = vmatprep.subr.mxu0 0.0
      %3312 = vmatpush1.msra.mxu0 0.0
      %3313 = vmatprep.subr.mxu0 0.0
      %3314 = vmatpush1.msra.mxu0 %v3281
      %3315 = vmatprep.subr.mxu0 0.0
      %3316 = vmatpush2.msra.mxu0 0.0
      %3317 = vmatprep.subr.mxu0 0.0
      %3318 = vmatpush2.msra.mxu0 0.0
      %3319 = vmatprep.subr.mxu0 0.0
      %3320 = vmatpush2.msra.mxu0 0.0
      %3321 = vmatprep.subr.mxu0 0.0
      %3322 = vmatpush2.msra.mxu0 0.0
      %3323 = vmatprep.subr.mxu0 0.0
      %3324 = vmatpush2.msra.mxu0 0.0
      %3325 = vmatprep.subr.mxu0 0.0
      %3326 = vmatpush2.msra.mxu0 0.0
      %3327 = vmatprep.subr.mxu0 0.0
      %3328 = vmatpush2.msra.mxu0 0.0
      %3329 = vmatprep.subr.mxu0 0.0
      %3330 = vmatpush2.msra.mxu0 0.0
      %3331 = vmatprep.subr.mxu0 0.0
      %3332 = vmatpush2.msra.mxu0 0.0
      %3333 = vmatprep.subr.mxu0 0.0
      %3334 = vmatpush2.msra.mxu0 0.0
      %3335 = vmatprep.subr.mxu0 0.0
      %3336 = vmatpush2.msra.mxu0 0.0
      %3337 = vmatprep.subr.mxu0 0.0
      %3338 = vmatpush2.msra.mxu0 0.0
      %3339 = vmatprep.subr.mxu0 0.0
      %3340 = vmatpush2.msra.mxu0 0.0
      %3341 = vmatprep.subr.mxu0 0.0
      %3342 = vmatpush2.msra.mxu0 0.0
      %3343 = vmatprep.subr.mxu0 0.0
      %3344 = vmatpush2.msra.mxu0 0.0
      %3345 = vmatprep.subr.mxu0 0.0
      %3346 = vmatpush2.msra.mxu0 0.0
      %3347 = vmatprep.mubr.f32.mxu0 0.0
      %3348 = vmatmul.mubr.f32.gmra.mxu0 %v3279
      %v3349 = vpop.f32.mrf.mxu0
      %v3350 = vadd.f32 0.0, %v3349
      %v3351 = vpop.f32.mrf.mxu0
      %3352 = vdwg.mxu0
      %v3353 = vadd.f32 %v3274, %v3350
      %v3354 = vld [vmem:[%s2561] sm:$0xf]
      %3355 = vrot.lane.b32.xlu0 %v3198, 126
      %v3356 = vpop.permute.xlu0 %3355
      %v3358 = vsel %vm310, %v3354, 0
      %v3360 = vsel %vm314, %v3356, 0
      %3362 = vmatprep.subr.mxu0 0.0
      %3363 = vmatpush1.msra.mxu0 0.0
      %3364 = vmatprep.subr.mxu0 0.0
      %3365 = vmatpush1.msra.mxu0 0.0
      %3366 = vmatprep.subr.mxu0 0.0
      %3367 = vmatpush1.msra.mxu0 0.0
      %3368 = vmatprep.subr.mxu0 0.0
      %3369 = vmatpush1.msra.mxu0 0.0
      %3370 = vmatprep.subr.mxu0 0.0
      %3371 = vmatpush1.msra.mxu0 0.0
      %3372 = vmatprep.subr.mxu0 0.0
      %3373 = vmatpush1.msra.mxu0 0.0
      %3374 = vmatprep.subr.mxu0 0.0
      %3375 = vmatpush1.msra.mxu0 0.0
      %3376 = vmatprep.subr.mxu0 0.0
      %3377 = vmatpush1.msra.mxu0 0.0
      %3378 = vmatprep.subr.mxu0 0.0
      %3379 = vmatpush1.msra.mxu0 0.0
      %3380 = vmatprep.subr.mxu0 0.0
      %3381 = vmatpush1.msra.mxu0 0.0
      %3382 = vmatprep.subr.mxu0 0.0
      %3383 = vmatpush1.msra.mxu0 0.0
      %3384 = vmatprep.subr.mxu0 0.0
      %3385 = vmatpush1.msra.mxu0 0.0
      %3386 = vmatprep.subr.mxu0 0.0
      %3387 = vmatpush1.msra.mxu0 0.0
      %3388 = vmatprep.subr.mxu0 0.0
      %3389 = vmatpush1.msra.mxu0 0.0
      %3390 = vmatprep.subr.mxu0 0.0
      %3391 = vmatpush1.msra.mxu0 0.0
      %3392 = vmatprep.subr.mxu0 0.0
      %3393 = vmatpush1.msra.mxu0 %v3360
      %3394 = vmatprep.subr.mxu0 0.0
      %3395 = vmatpush2.msra.mxu0 0.0
      %3396 = vmatprep.subr.mxu0 0.0
      %3397 = vmatpush2.msra.mxu0 0.0
      %3398 = vmatprep.subr.mxu0 0.0
      %3399 = vmatpush2.msra.mxu0 0.0
      %3400 = vmatprep.subr.mxu0 0.0
      %3401 = vmatpush2.msra.mxu0 0.0
      %3402 = vmatprep.subr.mxu0 0.0
      %3403 = vmatpush2.msra.mxu0 0.0
      %3404 = vmatprep.subr.mxu0 0.0
      %3405 = vmatpush2.msra.mxu0 0.0
      %3406 = vmatprep.subr.mxu0 0.0
      %3407 = vmatpush2.msra.mxu0 0.0
      %3408 = vmatprep.subr.mxu0 0.0
      %3409 = vmatpush2.msra.mxu0 0.0
      %3410 = vmatprep.subr.mxu0 0.0
      %3411 = vmatpush2.msra.mxu0 0.0
      %3412 = vmatprep.subr.mxu0 0.0
      %3413 = vmatpush2.msra.mxu0 0.0
      %3414 = vmatprep.subr.mxu0 0.0
      %3415 = vmatpush2.msra.mxu0 0.0
      %3416 = vmatprep.subr.mxu0 0.0
      %3417 = vmatpush2.msra.mxu0 0.0
      %3418 = vmatprep.subr.mxu0 0.0
      %3419 = vmatpush2.msra.mxu0 0.0
      %3420 = vmatprep.subr.mxu0 0.0
      %3421 = vmatpush2.msra.mxu0 0.0
      %3422 = vmatprep.subr.mxu0 0.0
      %3423 = vmatpush2.msra.mxu0 0.0
      %3424 = vmatprep.subr.mxu0 0.0
      %3425 = vmatpush2.msra.mxu0 0.0
      %3426 = vmatprep.mubr.f32.mxu0 0.0
      %3427 = vmatmul.mubr.f32.gmra.mxu0 %v3358
      %v3428 = vpop.f32.mrf.mxu0
      %v3429 = vadd.f32 0.0, %v3428
      %v3430 = vpop.f32.mrf.mxu0
      %3431 = vdwg.mxu0
      %v3432 = vadd.f32 %v3353, %v3429
      %v3433 = vld [vmem:[%s4] sm:$0xf]
      %3435 = vset.pattern.permute.xlu0 0
      %3436 = vperm.xlu0 %3435, %v3433
      %v3437 = vpop.permute.xlu0 %3436
      %v3439 = vadd.f32 %v3432, %v3437
      %v3440 = vmax.f32 %v3439, 0.0
      %3442 = vrot.lane.b32.xlu0 %v3440, 1
      %v3443 = vpop.permute.xlu0 %3442
      %v3445 = vsel %vm1058, 0.0, %v3443
      %v3446 = vsel %vm1060, %v3445, 0.0
      %v3449 = vunpack.c.l.s4 1966171168
      %v3450 = vunpack.c.0.s8 %v3449
      %v3451 = vlaneseq
      %v3452 = vshrl.u32 %v3451, 7
      %v3453 = vsub.s32 %v3450, %v3452
      %v3454 = vrot.slane %v3446, %v3453
      %v3455 = vcombine.high %v3454, %v3454
      %v3457 = vunpack.c.l.s4 1966171168
      %v3458 = vunpack.c.0.s8 %v3457
      %v3459 = vlaneseq
      %v3460 = vshrl.u32 %v3459, 7
      %v3461 = vsub.s32 %v3458, %v3460
      %v3462 = vrot.slane %v3454, %v3461
      %v3464 = vunpack.c.l.s4 1966171168
      %v3465 = vunpack.c.0.s8 %v3464
      %v3466 = vlaneseq
      %v3467 = vshrl.u32 %v3466, 7
      %v3468 = vsub.s32 %v3465, %v3467
      %v3469 = vrot.slane %v3455, %v3468
      %v3470 = vcombine.high %v3462, %v3462
      %v3471 = vcombine.high %v3469, %v3469
      %3476 = vst.msk [vmem:[#allocation3 + $0x2] sm:$0x1] %vm1091, %v3462
      %3477 = vst.msk [vmem:[#allocation3 + $0x6] sm:$0x1] %vm1091, %v3469
      %3478 = vst.msk [vmem:[#allocation3 + $0xa] sm:$0x1] %vm1091, %v3470
      %3479 = vst.msk [vmem:[#allocation3 + $0xe] sm:$0x1] %vm1091, %v3471
      %v3480 = vld [vmem:[#allocation3] sm:$0x1]
      %v3481 = vld [vmem:[#allocation3 + $0x4] sm:$0x1]
      %v3482 = vld [vmem:[#allocation3 + $0x8] sm:$0x1]
      %v3483 = vld [vmem:[#allocation3 + $0xc] sm:$0x1]
      %v3484 = vld [vmem:[%s5] sm:$0xf]
      %s3485 = scalar_lea.vmem %s5, 4
      %v3486 = vld [vmem:[%s3485] sm:$0xf]
      %v3491 = vrot.slane %v3481, 7
      %v3492 = vsel %vm300, %v3491, %v3480
      %v3493 = vrot.slane %v3482, 6
      %v3494 = vsel %vm303, %v3493, %v3492
      %v3495 = vrot.slane %v3483, 5
      %v3496 = vsel %vm306, %v3495, %v3494
      %3497 = vrot.lane.b32.xlu0 %v3496, 127
      %v3498 = vpop.permute.xlu0 %3497
      %v3500 = vsel %vm310, %v3486, 0
      %v3502 = vsel %vm314, %v3498, 0
      %3504 = vmatprep.subr.mxu0 0.0
      %3505 = vmatpush1.msra.mxu0 0.0
      %3506 = vmatprep.subr.mxu0 0.0
      %3507 = vmatpush1.msra.mxu0 0.0
      %3508 = vmatprep.subr.mxu0 0.0
      %3509 = vmatpush1.msra.mxu0 0.0
      %3510 = vmatprep.subr.mxu0 0.0
      %3511 = vmatpush1.msra.mxu0 0.0
      %3512 = vmatprep.subr.mxu0 0.0
      %3513 = vmatpush1.msra.mxu0 0.0
      %3514 = vmatprep.subr.mxu0 0.0
      %3515 = vmatpush1.msra.mxu0 0.0
      %3516 = vmatprep.subr.mxu0 0.0
      %3517 = vmatpush1.msra.mxu0 0.0
      %3518 = vmatprep.subr.mxu0 0.0
      %3519 = vmatpush1.msra.mxu0 0.0
      %3520 = vmatprep.subr.mxu0 0.0
      %3521 = vmatpush1.msra.mxu0 0.0
      %3522 = vmatprep.subr.mxu0 0.0
      %3523 = vmatpush1.msra.mxu0 0.0
      %3524 = vmatprep.subr.mxu0 0.0
      %3525 = vmatpush1.msra.mxu0 0.0
      %3526 = vmatprep.subr.mxu0 0.0
      %3527 = vmatpush1.msra.mxu0 0.0
      %3528 = vmatprep.subr.mxu0 0.0
      %3529 = vmatpush1.msra.mxu0 0.0
      %3530 = vmatprep.subr.mxu0 0.0
      %3531 = vmatpush1.msra.mxu0 0.0
      %3532 = vmatprep.subr.mxu0 0.0
      %3533 = vmatpush1.msra.mxu0 0.0
      %3534 = vmatprep.subr.mxu0 0.0
      %3535 = vmatpush1.msra.mxu0 %v3502
      %3536 = vmatprep.subr.mxu0 0.0
      %3537 = vmatpush2.msra.mxu0 0.0
      %3538 = vmatprep.subr.mxu0 0.0
      %3539 = vmatpush2.msra.mxu0 0.0
      %3540 = vmatprep.subr.mxu0 0.0
      %3541 = vmatpush2.msra.mxu0 0.0
      %3542 = vmatprep.subr.mxu0 0.0
      %3543 = vmatpush2.msra.mxu0 0.0
      %3544 = vmatprep.subr.mxu0 0.0
      %3545 = vmatpush2.msra.mxu0 0.0
      %3546 = vmatprep.subr.mxu0 0.0
      %3547 = vmatpush2.msra.mxu0 0.0
      %3548 = vmatprep.subr.mxu0 0.0
      %3549 = vmatpush2.msra.mxu0 0.0
      %3550 = vmatprep.subr.mxu0 0.0
      %3551 = vmatpush2.msra.mxu0 0.0
      %3552 = vmatprep.subr.mxu0 0.0
      %3553 = vmatpush2.msra.mxu0 0.0
      %3554 = vmatprep.subr.mxu0 0.0
      %3555 = vmatpush2.msra.mxu0 0.0
      %3556 = vmatprep.subr.mxu0 0.0
      %3557 = vmatpush2.msra.mxu0 0.0
      %3558 = vmatprep.subr.mxu0 0.0
      %3559 = vmatpush2.msra.mxu0 0.0
      %3560 = vmatprep.subr.mxu0 0.0
      %3561 = vmatpush2.msra.mxu0 0.0
      %3562 = vmatprep.subr.mxu0 0.0
      %3563 = vmatpush2.msra.mxu0 0.0
      %3564 = vmatprep.subr.mxu0 0.0
      %3565 = vmatpush2.msra.mxu0 0.0
      %3566 = vmatprep.subr.mxu0 0.0
      %3567 = vmatpush2.msra.mxu0 0.0
      %3568 = vmatprep.mubr.f32.mxu0 0.0
      %3569 = vmatmul.mubr.f32.gmra.mxu0 %v3500
      %v3570 = vpop.f32.mrf.mxu0
      %v3571 = vadd.f32 0.0, %v3570
      %v3572 = vpop.f32.mrf.mxu0
      %3573 = vdwg.mxu0
      %v3575 = vsel %vm310, %v3484, 0
      %v3577 = vsel %vm314, %v3496, 0
      %3579 = vmatprep.subr.mxu0 0.0
      %3580 = vmatpush1.msra.mxu0 0.0
      %3581 = vmatprep.subr.mxu0 0.0
      %3582 = vmatpush1.msra.mxu0 0.0
      %3583 = vmatprep.subr.mxu0 0.0
      %3584 = vmatpush1.msra.mxu0 0.0
      %3585 = vmatprep.subr.mxu0 0.0
      %3586 = vmatpush1.msra.mxu0 0.0
      %3587 = vmatprep.subr.mxu0 0.0
      %3588 = vmatpush1.msra.mxu0 0.0
      %3589 = vmatprep.subr.mxu0 0.0
      %3590 = vmatpush1.msra.mxu0 0.0
      %3591 = vmatprep.subr.mxu0 0.0
      %3592 = vmatpush1.msra.mxu0 0.0
      %3593 = vmatprep.subr.mxu0 0.0
      %3594 = vmatpush1.msra.mxu0 0.0
      %3595 = vmatprep.subr.mxu0 0.0
      %3596 = vmatpush1.msra.mxu0 0.0
      %3597 = vmatprep.subr.mxu0 0.0
      %3598 = vmatpush1.msra.mxu0 0.0
      %3599 = vmatprep.subr.mxu0 0.0
      %3600 = vmatpush1.msra.mxu0 0.0
      %3601 = vmatprep.subr.mxu0 0.0
      %3602 = vmatpush1.msra.mxu0 0.0
      %3603 = vmatprep.subr.mxu0 0.0
      %3604 = vmatpush1.msra.mxu0 0.0
      %3605 = vmatprep.subr.mxu0 0.0
      %3606 = vmatpush1.msra.mxu0 0.0
      %3607 = vmatprep.subr.mxu0 0.0
      %3608 = vmatpush1.msra.mxu0 0.0
      %3609 = vmatprep.subr.mxu0 0.0
      %3610 = vmatpush1.msra.mxu0 %v3577
      %3611 = vmatprep.subr.mxu0 0.0
      %3612 = vmatpush2.msra.mxu0 0.0
      %3613 = vmatprep.subr.mxu0 0.0
      %3614 = vmatpush2.msra.mxu0 0.0
      %3615 = vmatprep.subr.mxu0 0.0
      %3616 = vmatpush2.msra.mxu0 0.0
      %3617 = vmatprep.subr.mxu0 0.0
      %3618 = vmatpush2.msra.mxu0 0.0
      %3619 = vmatprep.subr.mxu0 0.0
      %3620 = vmatpush2.msra.mxu0 0.0
      %3621 = vmatprep.subr.mxu0 0.0
      %3622 = vmatpush2.msra.mxu0 0.0
      %3623 = vmatprep.subr.mxu0 0.0
      %3624 = vmatpush2.msra.mxu0 0.0
      %3625 = vmatprep.subr.mxu0 0.0
      %3626 = vmatpush2.msra.mxu0 0.0
      %3627 = vmatprep.subr.mxu0 0.0
      %3628 = vmatpush2.msra.mxu0 0.0
      %3629 = vmatprep.subr.mxu0 0.0
      %3630 = vmatpush2.msra.mxu0 0.0
      %3631 = vmatprep.subr.mxu0 0.0
      %3632 = vmatpush2.msra.mxu0 0.0
      %3633 = vmatprep.subr.mxu0 0.0
      %3634 = vmatpush2.msra.mxu0 0.0
      %3635 = vmatprep.subr.mxu0 0.0
      %3636 = vmatpush2.msra.mxu0 0.0
      %3637 = vmatprep.subr.mxu0 0.0
      %3638 = vmatpush2.msra.mxu0 0.0
      %3639 = vmatprep.subr.mxu0 0.0
      %3640 = vmatpush2.msra.mxu0 0.0
      %3641 = vmatprep.subr.mxu0 0.0
      %3642 = vmatpush2.msra.mxu0 0.0
      %3643 = vmatprep.mubr.f32.mxu0 0.0
      %3644 = vmatmul.mubr.f32.gmra.mxu0 %v3575
      %v3645 = vpop.f32.mrf.mxu0
      %v3646 = vadd.f32 %v3571, %v3645
      %v3647 = vpop.f32.mrf.mxu0
      %3648 = vdwg.mxu0
      %s3649 = scalar_lea.vmem %s5, 8
      %v3650 = vld [vmem:[%s3649] sm:$0xf]
      %3651 = vrot.lane.b32.xlu0 %v3496, 126
      %v3652 = vpop.permute.xlu0 %3651
      %v3654 = vsel %vm310, %v3650, 0
      %v3656 = vsel %vm314, %v3652, 0
      %3658 = vmatprep.subr.mxu0 0.0
      %3659 = vmatpush1.msra.mxu0 0.0
      %3660 = vmatprep.subr.mxu0 0.0
      %3661 = vmatpush1.msra.mxu0 0.0
      %3662 = vmatprep.subr.mxu0 0.0
      %3663 = vmatpush1.msra.mxu0 0.0
      %3664 = vmatprep.subr.mxu0 0.0
      %3665 = vmatpush1.msra.mxu0 0.0
      %3666 = vmatprep.subr.mxu0 0.0
      %3667 = vmatpush1.msra.mxu0 0.0
      %3668 = vmatprep.subr.mxu0 0.0
      %3669 = vmatpush1.msra.mxu0 0.0
      %3670 = vmatprep.subr.mxu0 0.0
      %3671 = vmatpush1.msra.mxu0 0.0
      %3672 = vmatprep.subr.mxu0 0.0
      %3673 = vmatpush1.msra.mxu0 0.0
      %3674 = vmatprep.subr.mxu0 0.0
      %3675 = vmatpush1.msra.mxu0 0.0
      %3676 = vmatprep.subr.mxu0 0.0
      %3677 = vmatpush1.msra.mxu0 0.0
      %3678 = vmatprep.subr.mxu0 0.0
      %3679 = vmatpush1.msra.mxu0 0.0
      %3680 = vmatprep.subr.mxu0 0.0
      %3681 = vmatpush1.msra.mxu0 0.0
      %3682 = vmatprep.subr.mxu0 0.0
      %3683 = vmatpush1.msra.mxu0 0.0
      %3684 = vmatprep.subr.mxu0 0.0
      %3685 = vmatpush1.msra.mxu0 0.0
      %3686 = vmatprep.subr.mxu0 0.0
      %3687 = vmatpush1.msra.mxu0 0.0
      %3688 = vmatprep.subr.mxu0 0.0
      %3689 = vmatpush1.msra.mxu0 %v3656
      %3690 = vmatprep.subr.mxu0 0.0
      %3691 = vmatpush2.msra.mxu0 0.0
      %3692 = vmatprep.subr.mxu0 0.0
      %3693 = vmatpush2.msra.mxu0 0.0
      %3694 = vmatprep.subr.mxu0 0.0
      %3695 = vmatpush2.msra.mxu0 0.0
      %3696 = vmatprep.subr.mxu0 0.0
      %3697 = vmatpush2.msra.mxu0 0.0
      %3698 = vmatprep.subr.mxu0 0.0
      %3699 = vmatpush2.msra.mxu0 0.0
      %3700 = vmatprep.subr.mxu0 0.0
      %3701 = vmatpush2.msra.mxu0 0.0
      %3702 = vmatprep.subr.mxu0 0.0
      %3703 = vmatpush2.msra.mxu0 0.0
      %3704 = vmatprep.subr.mxu0 0.0
      %3705 = vmatpush2.msra.mxu0 0.0
      %3706 = vmatprep.subr.mxu0 0.0
      %3707 = vmatpush2.msra.mxu0 0.0
      %3708 = vmatprep.subr.mxu0 0.0
      %3709 = vmatpush2.msra.mxu0 0.0
      %3710 = vmatprep.subr.mxu0 0.0
      %3711 = vmatpush2.msra.mxu0 0.0
      %3712 = vmatprep.subr.mxu0 0.0
      %3713 = vmatpush2.msra.mxu0 0.0
      %3714 = vmatprep.subr.mxu0 0.0
      %3715 = vmatpush2.msra.mxu0 0.0
      %3716 = vmatprep.subr.mxu0 0.0
      %3717 = vmatpush2.msra.mxu0 0.0
      %3718 = vmatprep.subr.mxu0 0.0
      %3719 = vmatpush2.msra.mxu0 0.0
      %3720 = vmatprep.subr.mxu0 0.0
      %3721 = vmatpush2.msra.mxu0 0.0
      %3722 = vmatprep.mubr.f32.mxu0 0.0
      %3723 = vmatmul.mubr.f32.gmra.mxu0 %v3654
      %v3724 = vpop.f32.mrf.mxu0
      %v3725 = vadd.f32 0.0, %v3724
      %v3726 = vpop.f32.mrf.mxu0
      %3727 = vdwg.mxu0
      %v3728 = vadd.f32 %v3646, %v3725
      %v3729 = vld [vmem:[#allocation3 + $0x1] sm:$0x1]
      %v3730 = vld [vmem:[#allocation3 + $0x5] sm:$0x1]
      %v3731 = vld [vmem:[#allocation3 + $0x9] sm:$0x1]
      %v3732 = vld [vmem:[#allocation3 + $0xd] sm:$0x1]
      %s3733 = scalar_lea.vmem %s5, 12
      %v3734 = vld [vmem:[%s3733] sm:$0xf]
      %v3739 = vrot.slane %v3730, 7
      %v3740 = vsel %vm300, %v3739, %v3729
      %v3741 = vrot.slane %v3731, 6
      %v3742 = vsel %vm303, %v3741, %v3740
      %v3743 = vrot.slane %v3732, 5
      %v3744 = vsel %vm306, %v3743, %v3742
      %v3746 = vsel %vm310, %v3734, 0
      %v3748 = vsel %vm314, %v3744, 0
      %3750 = vmatprep.subr.mxu0 0.0
      %3751 = vmatpush1.msra.mxu0 0.0
      %3752 = vmatprep.subr.mxu0 0.0
      %3753 = vmatpush1.msra.mxu0 0.0
      %3754 = vmatprep.subr.mxu0 0.0
      %3755 = vmatpush1.msra.mxu0 0.0
      %3756 = vmatprep.subr.mxu0 0.0
      %3757 = vmatpush1.msra.mxu0 0.0
      %3758 = vmatprep.subr.mxu0 0.0
      %3759 = vmatpush1.msra.mxu0 0.0
      %3760 = vmatprep.subr.mxu0 0.0
      %3761 = vmatpush1.msra.mxu0 0.0
      %3762 = vmatprep.subr.mxu0 0.0
      %3763 = vmatpush1.msra.mxu0 0.0
      %3764 = vmatprep.subr.mxu0 0.0
      %3765 = vmatpush1.msra.mxu0 0.0
      %3766 = vmatprep.subr.mxu0 0.0
      %3767 = vmatpush1.msra.mxu0 0.0
      %3768 = vmatprep.subr.mxu0 0.0
      %3769 = vmatpush1.msra.mxu0 0.0
      %3770 = vmatprep.subr.mxu0 0.0
      %3771 = vmatpush1.msra.mxu0 0.0
      %3772 = vmatprep.subr.mxu0 0.0
      %3773 = vmatpush1.msra.mxu0 0.0
      %3774 = vmatprep.subr.mxu0 0.0
      %3775 = vmatpush1.msra.mxu0 0.0
      %3776 = vmatprep.subr.mxu0 0.0
      %3777 = vmatpush1.msra.mxu0 0.0
      %3778 = vmatprep.subr.mxu0 0.0
      %3779 = vmatpush1.msra.mxu0 0.0
      %3780 = vmatprep.subr.mxu0 0.0
      %3781 = vmatpush1.msra.mxu0 %v3748
      %3782 = vmatprep.subr.mxu0 0.0
      %3783 = vmatpush2.msra.mxu0 0.0
      %3784 = vmatprep.subr.mxu0 0.0
      %3785 = vmatpush2.msra.mxu0 0.0
      %3786 = vmatprep.subr.mxu0 0.0
      %3787 = vmatpush2.msra.mxu0 0.0
      %3788 = vmatprep.subr.mxu0 0.0
      %3789 = vmatpush2.msra.mxu0 0.0
      %3790 = vmatprep.subr.mxu0 0.0
      %3791 = vmatpush2.msra.mxu0 0.0
      %3792 = vmatprep.subr.mxu0 0.0
      %3793 = vmatpush2.msra.mxu0 0.0
      %3794 = vmatprep.subr.mxu0 0.0
      %3795 = vmatpush2.msra.mxu0 0.0
      %3796 = vmatprep.subr.mxu0 0.0
      %3797 = vmatpush2.msra.mxu0 0.0
      %3798 = vmatprep.subr.mxu0 0.0
      %3799 = vmatpush2.msra.mxu0 0.0
      %3800 = vmatprep.subr.mxu0 0.0
      %3801 = vmatpush2.msra.mxu0 0.0
      %3802 = vmatprep.subr.mxu0 0.0
      %3803 = vmatpush2.msra.mxu0 0.0
      %3804 = vmatprep.subr.mxu0 0.0
      %3805 = vmatpush2.msra.mxu0 0.0
      %3806 = vmatprep.subr.mxu0 0.0
      %3807 = vmatpush2.msra.mxu0 0.0
      %3808 = vmatprep.subr.mxu0 0.0
      %3809 = vmatpush2.msra.mxu0 0.0
      %3810 = vmatprep.subr.mxu0 0.0
      %3811 = vmatpush2.msra.mxu0 0.0
      %3812 = vmatprep.subr.mxu0 0.0
      %3813 = vmatpush2.msra.mxu0 0.0
      %3814 = vmatprep.mubr.f32.mxu0 0.0
      %3815 = vmatmul.mubr.f32.gmra.mxu0 %v3746
      %v3816 = vpop.f32.mrf.mxu0
      %v3817 = vadd.f32 0.0, %v3816
      %v3818 = vpop.f32.mrf.mxu0
      %3819 = vdwg.mxu0
      %v3820 = vadd.f32 %v3728, %v3817
      %s3821 = scalar_lea.vmem %s5, 16
      %v3822 = vld [vmem:[%s3821] sm:$0xf]
      %3823 = vrot.lane.b32.xlu0 %v3744, 127
      %v3824 = vpop.permute.xlu0 %3823
      %v3826 = vsel %vm310, %v3822, 0
      %v3828 = vsel %vm314, %v3824, 0
      %3830 = vmatprep.subr.mxu0 0.0
      %3831 = vmatpush1.msra.mxu0 0.0
      %3832 = vmatprep.subr.mxu0 0.0
      %3833 = vmatpush1.msra.mxu0 0.0
      %3834 = vmatprep.subr.mxu0 0.0
      %3835 = vmatpush1.msra.mxu0 0.0
      %3836 = vmatprep.subr.mxu0 0.0
      %3837 = vmatpush1.msra.mxu0 0.0
      %3838 = vmatprep.subr.mxu0 0.0
      %3839 = vmatpush1.msra.mxu0 0.0
      %3840 = vmatprep.subr.mxu0 0.0
      %3841 = vmatpush1.msra.mxu0 0.0
      %3842 = vmatprep.subr.mxu0 0.0
      %3843 = vmatpush1.msra.mxu0 0.0
      %3844 = vmatprep.subr.mxu0 0.0
      %3845 = vmatpush1.msra.mxu0 0.0
      %3846 = vmatprep.subr.mxu0 0.0
      %3847 = vmatpush1.msra.mxu0 0.0
      %3848 = vmatprep.subr.mxu0 0.0
      %3849 = vmatpush1.msra.mxu0 0.0
      %3850 = vmatprep.subr.mxu0 0.0
      %3851 = vmatpush1.msra.mxu0 0.0
      %3852 = vmatprep.subr.mxu0 0.0
      %3853 = vmatpush1.msra.mxu0 0.0
      %3854 = vmatprep.subr.mxu0 0.0
      %3855 = vmatpush1.msra.mxu0 0.0
      %3856 = vmatprep.subr.mxu0 0.0
      %3857 = vmatpush1.msra.mxu0 0.0
      %3858 = vmatprep.subr.mxu0 0.0
      %3859 = vmatpush1.msra.mxu0 0.0
      %3860 = vmatprep.subr.mxu0 0.0
      %3861 = vmatpush1.msra.mxu0 %v3828
      %3862 = vmatprep.subr.mxu0 0.0
      %3863 = vmatpush2.msra.mxu0 0.0
      %3864 = vmatprep.subr.mxu0 0.0
      %3865 = vmatpush2.msra.mxu0 0.0
      %3866 = vmatprep.subr.mxu0 0.0
      %3867 = vmatpush2.msra.mxu0 0.0
      %3868 = vmatprep.subr.mxu0 0.0
      %3869 = vmatpush2.msra.mxu0 0.0
      %3870 = vmatprep.subr.mxu0 0.0
      %3871 = vmatpush2.msra.mxu0 0.0
      %3872 = vmatprep.subr.mxu0 0.0
      %3873 = vmatpush2.msra.mxu0 0.0
      %3874 = vmatprep.subr.mxu0 0.0
      %3875 = vmatpush2.msra.mxu0 0.0
      %3876 = vmatprep.subr.mxu0 0.0
      %3877 = vmatpush2.msra.mxu0 0.0
      %3878 = vmatprep.subr.mxu0 0.0
      %3879 = vmatpush2.msra.mxu0 0.0
      %3880 = vmatprep.subr.mxu0 0.0
      %3881 = vmatpush2.msra.mxu0 0.0
      %3882 = vmatprep.subr.mxu0 0.0
      %3883 = vmatpush2.msra.mxu0 0.0
      %3884 = vmatprep.subr.mxu0 0.0
      %3885 = vmatpush2.msra.mxu0 0.0
      %3886 = vmatprep.subr.mxu0 0.0
      %3887 = vmatpush2.msra.mxu0 0.0
      %3888 = vmatprep.subr.mxu0 0.0
      %3889 = vmatpush2.msra.mxu0 0.0
      %3890 = vmatprep.subr.mxu0 0.0
      %3891 = vmatpush2.msra.mxu0 0.0
      %3892 = vmatprep.subr.mxu0 0.0
      %3893 = vmatpush2.msra.mxu0 0.0
      %3894 = vmatprep.mubr.f32.mxu0 0.0
      %3895 = vmatmul.mubr.f32.gmra.mxu0 %v3826
      %v3896 = vpop.f32.mrf.mxu0
      %v3897 = vadd.f32 0.0, %v3896
      %v3898 = vpop.f32.mrf.mxu0
      %3899 = vdwg.mxu0
      %v3900 = vadd.f32 %v3820, %v3897
      %s3901 = scalar_lea.vmem %s5, 20
      %v3902 = vld [vmem:[%s3901] sm:$0xf]
      %3903 = vrot.lane.b32.xlu0 %v3744, 126
      %v3904 = vpop.permute.xlu0 %3903
      %v3906 = vsel %vm310, %v3902, 0
      %v3908 = vsel %vm314, %v3904, 0
      %3910 = vmatprep.subr.mxu0 0.0
      %3911 = vmatpush1.msra.mxu0 0.0
      %3912 = vmatprep.subr.mxu0 0.0
      %3913 = vmatpush1.msra.mxu0 0.0
      %3914 = vmatprep.subr.mxu0 0.0
      %3915 = vmatpush1.msra.mxu0 0.0
      %3916 = vmatprep.subr.mxu0 0.0
      %3917 = vmatpush1.msra.mxu0 0.0
      %3918 = vmatprep.subr.mxu0 0.0
      %3919 = vmatpush1.msra.mxu0 0.0
      %3920 = vmatprep.subr.mxu0 0.0
      %3921 = vmatpush1.msra.mxu0 0.0
      %3922 = vmatprep.subr.mxu0 0.0
      %3923 = vmatpush1.msra.mxu0 0.0
      %3924 = vmatprep.subr.mxu0 0.0
      %3925 = vmatpush1.msra.mxu0 0.0
      %3926 = vmatprep.subr.mxu0 0.0
      %3927 = vmatpush1.msra.mxu0 0.0
      %3928 = vmatprep.subr.mxu0 0.0
      %3929 = vmatpush1.msra.mxu0 0.0
      %3930 = vmatprep.subr.mxu0 0.0
      %3931 = vmatpush1.msra.mxu0 0.0
      %3932 = vmatprep.subr.mxu0 0.0
      %3933 = vmatpush1.msra.mxu0 0.0
      %3934 = vmatprep.subr.mxu0 0.0
      %3935 = vmatpush1.msra.mxu0 0.0
      %3936 = vmatprep.subr.mxu0 0.0
      %3937 = vmatpush1.msra.mxu0 0.0
      %3938 = vmatprep.subr.mxu0 0.0
      %3939 = vmatpush1.msra.mxu0 0.0
      %3940 = vmatprep.subr.mxu0 0.0
      %3941 = vmatpush1.msra.mxu0 %v3908
      %3942 = vmatprep.subr.mxu0 0.0
      %3943 = vmatpush2.msra.mxu0 0.0
      %3944 = vmatprep.subr.mxu0 0.0
      %3945 = vmatpush2.msra.mxu0 0.0
      %3946 = vmatprep.subr.mxu0 0.0
      %3947 = vmatpush2.msra.mxu0 0.0
      %3948 = vmatprep.subr.mxu0 0.0
      %3949 = vmatpush2.msra.mxu0 0.0
      %3950 = vmatprep.subr.mxu0 0.0
      %3951 = vmatpush2.msra.mxu0 0.0
      %3952 = vmatprep.subr.mxu0 0.0
      %3953 = vmatpush2.msra.mxu0 0.0
      %3954 = vmatprep.subr.mxu0 0.0
      %3955 = vmatpush2.msra.mxu0 0.0
      %3956 = vmatprep.subr.mxu0 0.0
      %3957 = vmatpush2.msra.mxu0 0.0
      %3958 = vmatprep.subr.mxu0 0.0
      %3959 = vmatpush2.msra.mxu0 0.0
      %3960 = vmatprep.subr.mxu0 0.0
      %3961 = vmatpush2.msra.mxu0 0.0
      %3962 = vmatprep.subr.mxu0 0.0
      %3963 = vmatpush2.msra.mxu0 0.0
      %3964 = vmatprep.subr.mxu0 0.0
      %3965 = vmatpush2.msra.mxu0 0.0
      %3966 = vmatprep.subr.mxu0 0.0
      %3967 = vmatpush2.msra.mxu0 0.0
      %3968 = vmatprep.subr.mxu0 0.0
      %3969 = vmatpush2.msra.mxu0 0.0
      %3970 = vmatprep.subr.mxu0 0.0
      %3971 = vmatpush2.msra.mxu0 0.0
      %3972 = vmatprep.subr.mxu0 0.0
      %3973 = vmatpush2.msra.mxu0 0.0
      %3974 = vmatprep.mubr.f32.mxu0 0.0
      %3975 = vmatmul.mubr.f32.gmra.mxu0 %v3906
      %v3976 = vpop.f32.mrf.mxu0
      %v3977 = vadd.f32 0.0, %v3976
      %v3978 = vpop.f32.mrf.mxu0
      %3979 = vdwg.mxu0
      %v3980 = vadd.f32 %v3900, %v3977
      %v3981 = vld [vmem:[#allocation3 + $0x2] sm:$0x1]
      %v3982 = vld [vmem:[#allocation3 + $0x6] sm:$0x1]
      %v3983 = vld [vmem:[#allocation3 + $0xa] sm:$0x1]
      %v3984 = vld [vmem:[#allocation3 + $0xe] sm:$0x1]
      %s3985 = scalar_lea.vmem %s5, 24
      %v3986 = vld [vmem:[%s3985] sm:$0xf]
      %v3991 = vrot.slane %v3982, 7
      %v3992 = vsel %vm300, %v3991, %v3981
      %v3993 = vrot.slane %v3983, 6
      %v3994 = vsel %vm303, %v3993, %v3992
      %v3995 = vrot.slane %v3984, 5
      %v3996 = vsel %vm306, %v3995, %v3994
      %v3998 = vsel %vm310, %v3986, 0
      %v4000 = vsel %vm314, %v3996, 0
      %4002 = vmatprep.subr.mxu0 0.0
      %4003 = vmatpush1.msra.mxu0 0.0
      %4004 = vmatprep.subr.mxu0 0.0
      %4005 = vmatpush1.msra.mxu0 0.0
      %4006 = vmatprep.subr.mxu0 0.0
      %4007 = vmatpush1.msra.mxu0 0.0
      %4008 = vmatprep.subr.mxu0 0.0
      %4009 = vmatpush1.msra.mxu0 0.0
      %4010 = vmatprep.subr.mxu0 0.0
      %4011 = vmatpush1.msra.mxu0 0.0
      %4012 = vmatprep.subr.mxu0 0.0
      %4013 = vmatpush1.msra.mxu0 0.0
      %4014 = vmatprep.subr.mxu0 0.0
      %4015 = vmatpush1.msra.mxu0 0.0
      %4016 = vmatprep.subr.mxu0 0.0
      %4017 = vmatpush1.msra.mxu0 0.0
      %4018 = vmatprep.subr.mxu0 0.0
      %4019 = vmatpush1.msra.mxu0 0.0
      %4020 = vmatprep.subr.mxu0 0.0
      %4021 = vmatpush1.msra.mxu0 0.0
      %4022 = vmatprep.subr.mxu0 0.0
      %4023 = vmatpush1.msra.mxu0 0.0
      %4024 = vmatprep.subr.mxu0 0.0
      %4025 = vmatpush1.msra.mxu0 0.0
      %4026 = vmatprep.subr.mxu0 0.0
      %4027 = vmatpush1.msra.mxu0 0.0
      %4028 = vmatprep.subr.mxu0 0.0
      %4029 = vmatpush1.msra.mxu0 0.0
      %4030 = vmatprep.subr.mxu0 0.0
      %4031 = vmatpush1.msra.mxu0 0.0
      %4032 = vmatprep.subr.mxu0 0.0
      %4033 = vmatpush1.msra.mxu0 %v4000
      %4034 = vmatprep.subr.mxu0 0.0
      %4035 = vmatpush2.msra.mxu0 0.0
      %4036 = vmatprep.subr.mxu0 0.0
      %4037 = vmatpush2.msra.mxu0 0.0
      %4038 = vmatprep.subr.mxu0 0.0
      %4039 = vmatpush2.msra.mxu0 0.0
      %4040 = vmatprep.subr.mxu0 0.0
      %4041 = vmatpush2.msra.mxu0 0.0
      %4042 = vmatprep.subr.mxu0 0.0
      %4043 = vmatpush2.msra.mxu0 0.0
      %4044 = vmatprep.subr.mxu0 0.0
      %4045 = vmatpush2.msra.mxu0 0.0
      %4046 = vmatprep.subr.mxu0 0.0
      %4047 = vmatpush2.msra.mxu0 0.0
      %4048 = vmatprep.subr.mxu0 0.0
      %4049 = vmatpush2.msra.mxu0 0.0
      %4050 = vmatprep.subr.mxu0 0.0
      %4051 = vmatpush2.msra.mxu0 0.0
      %4052 = vmatprep.subr.mxu0 0.0
      %4053 = vmatpush2.msra.mxu0 0.0
      %4054 = vmatprep.subr.mxu0 0.0
      %4055 = vmatpush2.msra.mxu0 0.0
      %4056 = vmatprep.subr.mxu0 0.0
      %4057 = vmatpush2.msra.mxu0 0.0
      %4058 = vmatprep.subr.mxu0 0.0
      %4059 = vmatpush2.msra.mxu0 0.0
      %4060 = vmatprep.subr.mxu0 0.0
      %4061 = vmatpush2.msra.mxu0 0.0
      %4062 = vmatprep.subr.mxu0 0.0
      %4063 = vmatpush2.msra.mxu0 0.0
      %4064 = vmatprep.subr.mxu0 0.0
      %4065 = vmatpush2.msra.mxu0 0.0
      %4066 = vmatprep.mubr.f32.mxu0 0.0
      %4067 = vmatmul.mubr.f32.gmra.mxu0 %v3998
      %v4068 = vpop.f32.mrf.mxu0
      %v4069 = vadd.f32 0.0, %v4068
      %v4070 = vpop.f32.mrf.mxu0
      %4071 = vdwg.mxu0
      %v4072 = vadd.f32 %v3980, %v4069
      %s4073 = scalar_lea.vmem %s5, 28
      %v4074 = vld [vmem:[%s4073] sm:$0xf]
      %4075 = vrot.lane.b32.xlu0 %v3996, 127
      %v4076 = vpop.permute.xlu0 %4075
      %v4078 = vsel %vm310, %v4074, 0
      %v4080 = vsel %vm314, %v4076, 0
      %4082 = vmatprep.subr.mxu0 0.0
      %4083 = vmatpush1.msra.mxu0 0.0
      %4084 = vmatprep.subr.mxu0 0.0
      %4085 = vmatpush1.msra.mxu0 0.0
      %4086 = vmatprep.subr.mxu0 0.0
      %4087 = vmatpush1.msra.mxu0 0.0
      %4088 = vmatprep.subr.mxu0 0.0
      %4089 = vmatpush1.msra.mxu0 0.0
      %4090 = vmatprep.subr.mxu0 0.0
      %4091 = vmatpush1.msra.mxu0 0.0
      %4092 = vmatprep.subr.mxu0 0.0
      %4093 = vmatpush1.msra.mxu0 0.0
      %4094 = vmatprep.subr.mxu0 0.0
      %4095 = vmatpush1.msra.mxu0 0.0
      %4096 = vmatprep.subr.mxu0 0.0
      %4097 = vmatpush1.msra.mxu0 0.0
      %4098 = vmatprep.subr.mxu0 0.0
      %4099 = vmatpush1.msra.mxu0 0.0
      %4100 = vmatprep.subr.mxu0 0.0
      %4101 = vmatpush1.msra.mxu0 0.0
      %4102 = vmatprep.subr.mxu0 0.0
      %4103 = vmatpush1.msra.mxu0 0.0
      %4104 = vmatprep.subr.mxu0 0.0
      %4105 = vmatpush1.msra.mxu0 0.0
      %4106 = vmatprep.subr.mxu0 0.0
      %4107 = vmatpush1.msra.mxu0 0.0
      %4108 = vmatprep.subr.mxu0 0.0
      %4109 = vmatpush1.msra.mxu0 0.0
      %4110 = vmatprep.subr.mxu0 0.0
      %4111 = vmatpush1.msra.mxu0 0.0
      %4112 = vmatprep.subr.mxu0 0.0
      %4113 = vmatpush1.msra.mxu0 %v4080
      %4114 = vmatprep.subr.mxu0 0.0
      %4115 = vmatpush2.msra.mxu0 0.0
      %4116 = vmatprep.subr.mxu0 0.0
      %4117 = vmatpush2.msra.mxu0 0.0
      %4118 = vmatprep.subr.mxu0 0.0
      %4119 = vmatpush2.msra.mxu0 0.0
      %4120 = vmatprep.subr.mxu0 0.0
      %4121 = vmatpush2.msra.mxu0 0.0
      %4122 = vmatprep.subr.mxu0 0.0
      %4123 = vmatpush2.msra.mxu0 0.0
      %4124 = vmatprep.subr.mxu0 0.0
      %4125 = vmatpush2.msra.mxu0 0.0
      %4126 = vmatprep.subr.mxu0 0.0
      %4127 = vmatpush2.msra.mxu0 0.0
      %4128 = vmatprep.subr.mxu0 0.0
      %4129 = vmatpush2.msra.mxu0 0.0
      %4130 = vmatprep.subr.mxu0 0.0
      %4131 = vmatpush2.msra.mxu0 0.0
      %4132 = vmatprep.subr.mxu0 0.0
      %4133 = vmatpush2.msra.mxu0 0.0
      %4134 = vmatprep.subr.mxu0 0.0
      %4135 = vmatpush2.msra.mxu0 0.0
      %4136 = vmatprep.subr.mxu0 0.0
      %4137 = vmatpush2.msra.mxu0 0.0
      %4138 = vmatprep.subr.mxu0 0.0
      %4139 = vmatpush2.msra.mxu0 0.0
      %4140 = vmatprep.subr.mxu0 0.0
      %4141 = vmatpush2.msra.mxu0 0.0
      %4142 = vmatprep.subr.mxu0 0.0
      %4143 = vmatpush2.msra.mxu0 0.0
      %4144 = vmatprep.subr.mxu0 0.0
      %4145 = vmatpush2.msra.mxu0 0.0
      %4146 = vmatprep.mubr.f32.mxu0 0.0
      %4147 = vmatmul.mubr.f32.gmra.mxu0 %v4078
      %v4148 = vpop.f32.mrf.mxu0
      %v4149 = vadd.f32 0.0, %v4148
      %v4150 = vpop.f32.mrf.mxu0
      %4151 = vdwg.mxu0
      %v4152 = vadd.f32 %v4072, %v4149
      %s4153 = scalar_lea.vmem %s5, 32
      %v4154 = vld [vmem:[%s4153] sm:$0xf]
      %4155 = vrot.lane.b32.xlu0 %v3996, 126
      %v4156 = vpop.permute.xlu0 %4155
      %v4158 = vsel %vm310, %v4154, 0
      %v4160 = vsel %vm314, %v4156, 0
      %4162 = vmatprep.subr.mxu0 0.0
      %4163 = vmatpush1.msra.mxu0 0.0
      %4164 = vmatprep.subr.mxu0 0.0
      %4165 = vmatpush1.msra.mxu0 0.0
      %4166 = vmatprep.subr.mxu0 0.0
      %4167 = vmatpush1.msra.mxu0 0.0
      %4168 = vmatprep.subr.mxu0 0.0
      %4169 = vmatpush1.msra.mxu0 0.0
      %4170 = vmatprep.subr.mxu0 0.0
      %4171 = vmatpush1.msra.mxu0 0.0
      %4172 = vmatprep.subr.mxu0 0.0
      %4173 = vmatpush1.msra.mxu0 0.0
      %4174 = vmatprep.subr.mxu0 0.0
      %4175 = vmatpush1.msra.mxu0 0.0
      %4176 = vmatprep.subr.mxu0 0.0
      %4177 = vmatpush1.msra.mxu0 0.0
      %4178 = vmatprep.subr.mxu0 0.0
      %4179 = vmatpush1.msra.mxu0 0.0
      %4180 = vmatprep.subr.mxu0 0.0
      %4181 = vmatpush1.msra.mxu0 0.0
      %4182 = vmatprep.subr.mxu0 0.0
      %4183 = vmatpush1.msra.mxu0 0.0
      %4184 = vmatprep.subr.mxu0 0.0
      %4185 = vmatpush1.msra.mxu0 0.0
      %4186 = vmatprep.subr.mxu0 0.0
      %4187 = vmatpush1.msra.mxu0 0.0
      %4188 = vmatprep.subr.mxu0 0.0
      %4189 = vmatpush1.msra.mxu0 0.0
      %4190 = vmatprep.subr.mxu0 0.0
      %4191 = vmatpush1.msra.mxu0 0.0
      %4192 = vmatprep.subr.mxu0 0.0
      %4193 = vmatpush1.msra.mxu0 %v4160
      %4194 = vmatprep.subr.mxu0 0.0
      %4195 = vmatpush2.msra.mxu0 0.0
      %4196 = vmatprep.subr.mxu0 0.0
      %4197 = vmatpush2.msra.mxu0 0.0
      %4198 = vmatprep.subr.mxu0 0.0
      %4199 = vmatpush2.msra.mxu0 0.0
      %4200 = vmatprep.subr.mxu0 0.0
      %4201 = vmatpush2.msra.mxu0 0.0
      %4202 = vmatprep.subr.mxu0 0.0
      %4203 = vmatpush2.msra.mxu0 0.0
      %4204 = vmatprep.subr.mxu0 0.0
      %4205 = vmatpush2.msra.mxu0 0.0
      %4206 = vmatprep.subr.mxu0 0.0
      %4207 = vmatpush2.msra.mxu0 0.0
      %4208 = vmatprep.subr.mxu0 0.0
      %4209 = vmatpush2.msra.mxu0 0.0
      %4210 = vmatprep.subr.mxu0 0.0
      %4211 = vmatpush2.msra.mxu0 0.0
      %4212 = vmatprep.subr.mxu0 0.0
      %4213 = vmatpush2.msra.mxu0 0.0
      %4214 = vmatprep.subr.mxu0 0.0
      %4215 = vmatpush2.msra.mxu0 0.0
      %4216 = vmatprep.subr.mxu0 0.0
      %4217 = vmatpush2.msra.mxu0 0.0
      %4218 = vmatprep.subr.mxu0 0.0
      %4219 = vmatpush2.msra.mxu0 0.0
      %4220 = vmatprep.subr.mxu0 0.0
      %4221 = vmatpush2.msra.mxu0 0.0
      %4222 = vmatprep.subr.mxu0 0.0
      %4223 = vmatpush2.msra.mxu0 0.0
      %4224 = vmatprep.subr.mxu0 0.0
      %4225 = vmatpush2.msra.mxu0 0.0
      %4226 = vmatprep.mubr.f32.mxu0 0.0
      %4227 = vmatmul.mubr.f32.gmra.mxu0 %v4158
      %v4228 = vpop.f32.mrf.mxu0
      %v4229 = vadd.f32 0.0, %v4228
      %v4230 = vpop.f32.mrf.mxu0
      %4231 = vdwg.mxu0
      %v4232 = vadd.f32 %v4152, %v4229
      %v4233 = vld [vmem:[%s6] sm:$0xf]
      %4235 = vset.pattern.permute.xlu0 0
      %4236 = vperm.xlu0 %4235, %v4233
      %v4237 = vpop.permute.xlu0 %4236
      %v4239 = vadd.f32 %v4232, %v4237
      %v4242 = vunpack.c.l.s4 1966171168
      %v4243 = vunpack.c.0.s8 %v4242
      %v4244 = vlaneseq
      %v4245 = vshrl.u32 %v4244, 7
      %v4246 = vsub.s32 %v4243, %v4245
      %v4247 = vrot.slane %v4239, %v4246
      %v4248 = vcombine.high %v4247, %v4247
      %v4250 = vunpack.c.l.s4 1966171168
      %v4251 = vunpack.c.0.s8 %v4250
      %v4252 = vlaneseq
      %v4253 = vshrl.u32 %v4252, 7
      %v4254 = vsub.s32 %v4251, %v4253
      %v4255 = vrot.slane %v4247, %v4254
      %v4257 = vunpack.c.l.s4 1966171168
      %v4258 = vunpack.c.0.s8 %v4257
      %v4259 = vlaneseq
      %v4260 = vshrl.u32 %v4259, 7
      %v4261 = vsub.s32 %v4258, %v4260
      %v4262 = vrot.slane %v4248, %v4261
      %v4263 = vcombine.high %v4255, %v4255
      %v4264 = vcombine.high %v4262, %v4262
      %vm4269 = vcmask 8192
      %4270 = vst.msk [vmem:[%s278] sm:$0x1] %vm4269, %v4255
      %4271 = vst.msk [vmem:[%s278 + $0x2] sm:$0x1] %vm4269, %v4262
      %4272 = vst.msk [vmem:[%s278 + $0x4] sm:$0x1] %vm4269, %v4263
      %4273 = vst.msk [vmem:[%s278 + $0x6] sm:$0x1] %vm4269, %v4264
      %v4274 = vld [vmem:[#allocation3 + $0x1] sm:$0x1]
      %v4275 = vld [vmem:[#allocation3 + $0x5] sm:$0x1]
      %v4276 = vld [vmem:[#allocation3 + $0x9] sm:$0x1]
      %v4277 = vld [vmem:[#allocation3 + $0xd] sm:$0x1]
      %v4278 = vld [vmem:[%s5] sm:$0xf]
      %v4279 = vld [vmem:[%s3485] sm:$0xf]
      %v4284 = vrot.slane %v4275, 7
      %v4285 = vsel %vm300, %v4284, %v4274
      %v4286 = vrot.slane %v4276, 6
      %v4287 = vsel %vm303, %v4286, %v4285
      %v4288 = vrot.slane %v4277, 5
      %v4289 = vsel %vm306, %v4288, %v4287
      %4290 = vrot.lane.b32.xlu0 %v4289, 127
      %v4291 = vpop.permute.xlu0 %4290
      %v4293 = vsel %vm310, %v4279, 0
      %v4295 = vsel %vm314, %v4291, 0
      %4297 = vmatprep.subr.mxu0 0.0
      %4298 = vmatpush1.msra.mxu0 0.0
      %4299 = vmatprep.subr.mxu0 0.0
      %4300 = vmatpush1.msra.mxu0 0.0
      %4301 = vmatprep.subr.mxu0 0.0
      %4302 = vmatpush1.msra.mxu0 0.0
      %4303 = vmatprep.subr.mxu0 0.0
      %4304 = vmatpush1.msra.mxu0 0.0
      %4305 = vmatprep.subr.mxu0 0.0
      %4306 = vmatpush1.msra.mxu0 0.0
      %4307 = vmatprep.subr.mxu0 0.0
      %4308 = vmatpush1.msra.mxu0 0.0
      %4309 = vmatprep.subr.mxu0 0.0
      %4310 = vmatpush1.msra.mxu0 0.0
      %4311 = vmatprep.subr.mxu0 0.0
      %4312 = vmatpush1.msra.mxu0 0.0
      %4313 = vmatprep.subr.mxu0 0.0
      %4314 = vmatpush1.msra.mxu0 0.0
      %4315 = vmatprep.subr.mxu0 0.0
      %4316 = vmatpush1.msra.mxu0 0.0
      %4317 = vmatprep.subr.mxu0 0.0
      %4318 = vmatpush1.msra.mxu0 0.0
      %4319 = vmatprep.subr.mxu0 0.0
      %4320 = vmatpush1.msra.mxu0 0.0
      %4321 = vmatprep.subr.mxu0 0.0
      %4322 = vmatpush1.msra.mxu0 0.0
      %4323 = vmatprep.subr.mxu0 0.0
      %4324 = vmatpush1.msra.mxu0 0.0
      %4325 = vmatprep.subr.mxu0 0.0
      %4326 = vmatpush1.msra.mxu0 0.0
      %4327 = vmatprep.subr.mxu0 0.0
      %4328 = vmatpush1.msra.mxu0 %v4295
      %4329 = vmatprep.subr.mxu0 0.0
      %4330 = vmatpush2.msra.mxu0 0.0
      %4331 = vmatprep.subr.mxu0 0.0
      %4332 = vmatpush2.msra.mxu0 0.0
      %4333 = vmatprep.subr.mxu0 0.0
      %4334 = vmatpush2.msra.mxu0 0.0
      %4335 = vmatprep.subr.mxu0 0.0
      %4336 = vmatpush2.msra.mxu0 0.0
      %4337 = vmatprep.subr.mxu0 0.0
      %4338 = vmatpush2.msra.mxu0 0.0
      %4339 = vmatprep.subr.mxu0 0.0
      %4340 = vmatpush2.msra.mxu0 0.0
      %4341 = vmatprep.subr.mxu0 0.0
      %4342 = vmatpush2.msra.mxu0 0.0
      %4343 = vmatprep.subr.mxu0 0.0
      %4344 = vmatpush2.msra.mxu0 0.0
      %4345 = vmatprep.subr.mxu0 0.0
      %4346 = vmatpush2.msra.mxu0 0.0
      %4347 = vmatprep.subr.mxu0 0.0
      %4348 = vmatpush2.msra.mxu0 0.0
      %4349 = vmatprep.subr.mxu0 0.0
      %4350 = vmatpush2.msra.mxu0 0.0
      %4351 = vmatprep.subr.mxu0 0.0
      %4352 = vmatpush2.msra.mxu0 0.0
      %4353 = vmatprep.subr.mxu0 0.0
      %4354 = vmatpush2.msra.mxu0 0.0
      %4355 = vmatprep.subr.mxu0 0.0
      %4356 = vmatpush2.msra.mxu0 0.0
      %4357 = vmatprep.subr.mxu0 0.0
      %4358 = vmatpush2.msra.mxu0 0.0
      %4359 = vmatprep.subr.mxu0 0.0
      %4360 = vmatpush2.msra.mxu0 0.0
      %4361 = vmatprep.mubr.f32.mxu0 0.0
      %4362 = vmatmul.mubr.f32.gmra.mxu0 %v4293
      %v4363 = vpop.f32.mrf.mxu0
      %v4364 = vadd.f32 0.0, %v4363
      %v4365 = vpop.f32.mrf.mxu0
      %4366 = vdwg.mxu0
      %v4368 = vsel %vm310, %v4278, 0
      %v4370 = vsel %vm314, %v4289, 0
      %4372 = vmatprep.subr.mxu0 0.0
      %4373 = vmatpush1.msra.mxu0 0.0
      %4374 = vmatprep.subr.mxu0 0.0
      %4375 = vmatpush1.msra.mxu0 0.0
      %4376 = vmatprep.subr.mxu0 0.0
      %4377 = vmatpush1.msra.mxu0 0.0
      %4378 = vmatprep.subr.mxu0 0.0
      %4379 = vmatpush1.msra.mxu0 0.0
      %4380 = vmatprep.subr.mxu0 0.0
      %4381 = vmatpush1.msra.mxu0 0.0
      %4382 = vmatprep.subr.mxu0 0.0
      %4383 = vmatpush1.msra.mxu0 0.0
      %4384 = vmatprep.subr.mxu0 0.0
      %4385 = vmatpush1.msra.mxu0 0.0
      %4386 = vmatprep.subr.mxu0 0.0
      %4387 = vmatpush1.msra.mxu0 0.0
      %4388 = vmatprep.subr.mxu0 0.0
      %4389 = vmatpush1.msra.mxu0 0.0
      %4390 = vmatprep.subr.mxu0 0.0
      %4391 = vmatpush1.msra.mxu0 0.0
      %4392 = vmatprep.subr.mxu0 0.0
      %4393 = vmatpush1.msra.mxu0 0.0
      %4394 = vmatprep.subr.mxu0 0.0
      %4395 = vmatpush1.msra.mxu0 0.0
      %4396 = vmatprep.subr.mxu0 0.0
      %4397 = vmatpush1.msra.mxu0 0.0
      %4398 = vmatprep.subr.mxu0 0.0
      %4399 = vmatpush1.msra.mxu0 0.0
      %4400 = vmatprep.subr.mxu0 0.0
      %4401 = vmatpush1.msra.mxu0 0.0
      %4402 = vmatprep.subr.mxu0 0.0
      %4403 = vmatpush1.msra.mxu0 %v4370
      %4404 = vmatprep.subr.mxu0 0.0
      %4405 = vmatpush2.msra.mxu0 0.0
      %4406 = vmatprep.subr.mxu0 0.0
      %4407 = vmatpush2.msra.mxu0 0.0
      %4408 = vmatprep.subr.mxu0 0.0
      %4409 = vmatpush2.msra.mxu0 0.0
      %4410 = vmatprep.subr.mxu0 0.0
      %4411 = vmatpush2.msra.mxu0 0.0
      %4412 = vmatprep.subr.mxu0 0.0
      %4413 = vmatpush2.msra.mxu0 0.0
      %4414 = vmatprep.subr.mxu0 0.0
      %4415 = vmatpush2.msra.mxu0 0.0
      %4416 = vmatprep.subr.mxu0 0.0
      %4417 = vmatpush2.msra.mxu0 0.0
      %4418 = vmatprep.subr.mxu0 0.0
      %4419 = vmatpush2.msra.mxu0 0.0
      %4420 = vmatprep.subr.mxu0 0.0
      %4421 = vmatpush2.msra.mxu0 0.0
      %4422 = vmatprep.subr.mxu0 0.0
      %4423 = vmatpush2.msra.mxu0 0.0
      %4424 = vmatprep.subr.mxu0 0.0
      %4425 = vmatpush2.msra.mxu0 0.0
      %4426 = vmatprep.subr.mxu0 0.0
      %4427 = vmatpush2.msra.mxu0 0.0
      %4428 = vmatprep.subr.mxu0 0.0
      %4429 = vmatpush2.msra.mxu0 0.0
      %4430 = vmatprep.subr.mxu0 0.0
      %4431 = vmatpush2.msra.mxu0 0.0
      %4432 = vmatprep.subr.mxu0 0.0
      %4433 = vmatpush2.msra.mxu0 0.0
      %4434 = vmatprep.subr.mxu0 0.0
      %4435 = vmatpush2.msra.mxu0 0.0
      %4436 = vmatprep.mubr.f32.mxu0 0.0
      %4437 = vmatmul.mubr.f32.gmra.mxu0 %v4368
      %v4438 = vpop.f32.mrf.mxu0
      %v4439 = vadd.f32 %v4364, %v4438
      %v4440 = vpop.f32.mrf.mxu0
      %4441 = vdwg.mxu0
      %v4442 = vld [vmem:[%s3649] sm:$0xf]
      %4443 = vrot.lane.b32.xlu0 %v4289, 126
      %v4444 = vpop.permute.xlu0 %4443
      %v4446 = vsel %vm310, %v4442, 0
      %v4448 = vsel %vm314, %v4444, 0
      %4450 = vmatprep.subr.mxu0 0.0
      %4451 = vmatpush1.msra.mxu0 0.0
      %4452 = vmatprep.subr.mxu0 0.0
      %4453 = vmatpush1.msra.mxu0 0.0
      %4454 = vmatprep.subr.mxu0 0.0
      %4455 = vmatpush1.msra.mxu0 0.0
      %4456 = vmatprep.subr.mxu0 0.0
      %4457 = vmatpush1.msra.mxu0 0.0
      %4458 = vmatprep.subr.mxu0 0.0
      %4459 = vmatpush1.msra.mxu0 0.0
      %4460 = vmatprep.subr.mxu0 0.0
      %4461 = vmatpush1.msra.mxu0 0.0
      %4462 = vmatprep.subr.mxu0 0.0
      %4463 = vmatpush1.msra.mxu0 0.0
      %4464 = vmatprep.subr.mxu0 0.0
      %4465 = vmatpush1.msra.mxu0 0.0
      %4466 = vmatprep.subr.mxu0 0.0
      %4467 = vmatpush1.msra.mxu0 0.0
      %4468 = vmatprep.subr.mxu0 0.0
      %4469 = vmatpush1.msra.mxu0 0.0
      %4470 = vmatprep.subr.mxu0 0.0
      %4471 = vmatpush1.msra.mxu0 0.0
      %4472 = vmatprep.subr.mxu0 0.0
      %4473 = vmatpush1.msra.mxu0 0.0
      %4474 = vmatprep.subr.mxu0 0.0
      %4475 = vmatpush1.msra.mxu0 0.0
      %4476 = vmatprep.subr.mxu0 0.0
      %4477 = vmatpush1.msra.mxu0 0.0
      %4478 = vmatprep.subr.mxu0 0.0
      %4479 = vmatpush1.msra.mxu0 0.0
      %4480 = vmatprep.subr.mxu0 0.0
      %4481 = vmatpush1.msra.mxu0 %v4448
      %4482 = vmatprep.subr.mxu0 0.0
      %4483 = vmatpush2.msra.mxu0 0.0
      %4484 = vmatprep.subr.mxu0 0.0
      %4485 = vmatpush2.msra.mxu0 0.0
      %4486 = vmatprep.subr.mxu0 0.0
      %4487 = vmatpush2.msra.mxu0 0.0
      %4488 = vmatprep.subr.mxu0 0.0
      %4489 = vmatpush2.msra.mxu0 0.0
      %4490 = vmatprep.subr.mxu0 0.0
      %4491 = vmatpush2.msra.mxu0 0.0
      %4492 = vmatprep.subr.mxu0 0.0
      %4493 = vmatpush2.msra.mxu0 0.0
      %4494 = vmatprep.subr.mxu0 0.0
      %4495 = vmatpush2.msra.mxu0 0.0
      %4496 = vmatprep.subr.mxu0 0.0
      %4497 = vmatpush2.msra.mxu0 0.0
      %4498 = vmatprep.subr.mxu0 0.0
      %4499 = vmatpush2.msra.mxu0 0.0
      %4500 = vmatprep.subr.mxu0 0.0
      %4501 = vmatpush2.msra.mxu0 0.0
      %4502 = vmatprep.subr.mxu0 0.0
      %4503 = vmatpush2.msra.mxu0 0.0
      %4504 = vmatprep.subr.mxu0 0.0
      %4505 = vmatpush2.msra.mxu0 0.0
      %4506 = vmatprep.subr.mxu0 0.0
      %4507 = vmatpush2.msra.mxu0 0.0
      %4508 = vmatprep.subr.mxu0 0.0
      %4509 = vmatpush2.msra.mxu0 0.0
      %4510 = vmatprep.subr.mxu0 0.0
      %4511 = vmatpush2.msra.mxu0 0.0
      %4512 = vmatprep.subr.mxu0 0.0
      %4513 = vmatpush2.msra.mxu0 0.0
      %4514 = vmatprep.mubr.f32.mxu0 0.0
      %4515 = vmatmul.mubr.f32.gmra.mxu0 %v4446
      %v4516 = vpop.f32.mrf.mxu0
      %v4517 = vadd.f32 0.0, %v4516
      %v4518 = vpop.f32.mrf.mxu0
      %4519 = vdwg.mxu0
      %v4520 = vadd.f32 %v4439, %v4517
      %v4521 = vld [vmem:[#allocation3 + $0x2] sm:$0x1]
      %v4522 = vld [vmem:[#allocation3 + $0x6] sm:$0x1]
      %v4523 = vld [vmem:[#allocation3 + $0xa] sm:$0x1]
      %v4524 = vld [vmem:[#allocation3 + $0xe] sm:$0x1]
      %v4525 = vld [vmem:[%s3733] sm:$0xf]
      %v4530 = vrot.slane %v4522, 7
      %v4531 = vsel %vm300, %v4530, %v4521
      %v4532 = vrot.slane %v4523, 6
      %v4533 = vsel %vm303, %v4532, %v4531
      %v4534 = vrot.slane %v4524, 5
      %v4535 = vsel %vm306, %v4534, %v4533
      %v4537 = vsel %vm310, %v4525, 0
      %v4539 = vsel %vm314, %v4535, 0
      %4541 = vmatprep.subr.mxu0 0.0
      %4542 = vmatpush1.msra.mxu0 0.0
      %4543 = vmatprep.subr.mxu0 0.0
      %4544 = vmatpush1.msra.mxu0 0.0
      %4545 = vmatprep.subr.mxu0 0.0
      %4546 = vmatpush1.msra.mxu0 0.0
      %4547 = vmatprep.subr.mxu0 0.0
      %4548 = vmatpush1.msra.mxu0 0.0
      %4549 = vmatprep.subr.mxu0 0.0
      %4550 = vmatpush1.msra.mxu0 0.0
      %4551 = vmatprep.subr.mxu0 0.0
      %4552 = vmatpush1.msra.mxu0 0.0
      %4553 = vmatprep.subr.mxu0 0.0
      %4554 = vmatpush1.msra.mxu0 0.0
      %4555 = vmatprep.subr.mxu0 0.0
      %4556 = vmatpush1.msra.mxu0 0.0
      %4557 = vmatprep.subr.mxu0 0.0
      %4558 = vmatpush1.msra.mxu0 0.0
      %4559 = vmatprep.subr.mxu0 0.0
      %4560 = vmatpush1.msra.mxu0 0.0
      %4561 = vmatprep.subr.mxu0 0.0
      %4562 = vmatpush1.msra.mxu0 0.0
      %4563 = vmatprep.subr.mxu0 0.0
      %4564 = vmatpush1.msra.mxu0 0.0
      %4565 = vmatprep.subr.mxu0 0.0
      %4566 = vmatpush1.msra.mxu0 0.0
      %4567 = vmatprep.subr.mxu0 0.0
      %4568 = vmatpush1.msra.mxu0 0.0
      %4569 = vmatprep.subr.mxu0 0.0
      %4570 = vmatpush1.msra.mxu0 0.0
      %4571 = vmatprep.subr.mxu0 0.0
      %4572 = vmatpush1.msra.mxu0 %v4539
      %4573 = vmatprep.subr.mxu0 0.0
      %4574 = vmatpush2.msra.mxu0 0.0
      %4575 = vmatprep.subr.mxu0 0.0
      %4576 = vmatpush2.msra.mxu0 0.0
      %4577 = vmatprep.subr.mxu0 0.0
      %4578 = vmatpush2.msra.mxu0 0.0
      %4579 = vmatprep.subr.mxu0 0.0
      %4580 = vmatpush2.msra.mxu0 0.0
      %4581 = vmatprep.subr.mxu0 0.0
      %4582 = vmatpush2.msra.mxu0 0.0
      %4583 = vmatprep.subr.mxu0 0.0
      %4584 = vmatpush2.msra.mxu0 0.0
      %4585 = vmatprep.subr.mxu0 0.0
      %4586 = vmatpush2.msra.mxu0 0.0
      %4587 = vmatprep.subr.mxu0 0.0
      %4588 = vmatpush2.msra.mxu0 0.0
      %4589 = vmatprep.subr.mxu0 0.0
      %4590 = vmatpush2.msra.mxu0 0.0
      %4591 = vmatprep.subr.mxu0 0.0
      %4592 = vmatpush2.msra.mxu0 0.0
      %4593 = vmatprep.subr.mxu0 0.0
      %4594 = vmatpush2.msra.mxu0 0.0
      %4595 = vmatprep.subr.mxu0 0.0
      %4596 = vmatpush2.msra.mxu0 0.0
      %4597 = vmatprep.subr.mxu0 0.0
      %4598 = vmatpush2.msra.mxu0 0.0
      %4599 = vmatprep.subr.mxu0 0.0
      %4600 = vmatpush2.msra.mxu0 0.0
      %4601 = vmatprep.subr.mxu0 0.0
      %4602 = vmatpush2.msra.mxu0 0.0
      %4603 = vmatprep.subr.mxu0 0.0
      %4604 = vmatpush2.msra.mxu0 0.0
      %4605 = vmatprep.mubr.f32.mxu0 0.0
      %4606 = vmatmul.mubr.f32.gmra.mxu0 %v4537
      %v4607 = vpop.f32.mrf.mxu0
      %v4608 = vadd.f32 0.0, %v4607
      %v4609 = vpop.f32.mrf.mxu0
      %4610 = vdwg.mxu0
      %v4611 = vadd.f32 %v4520, %v4608
      %v4612 = vld [vmem:[%s3821] sm:$0xf]
      %4613 = vrot.lane.b32.xlu0 %v4535, 127
      %v4614 = vpop.permute.xlu0 %4613
      %v4616 = vsel %vm310, %v4612, 0
      %v4618 = vsel %vm314, %v4614, 0
      %4620 = vmatprep.subr.mxu0 0.0
      %4621 = vmatpush1.msra.mxu0 0.0
      %4622 = vmatprep.subr.mxu0 0.0
      %4623 = vmatpush1.msra.mxu0 0.0
      %4624 = vmatprep.subr.mxu0 0.0
      %4625 = vmatpush1.msra.mxu0 0.0
      %4626 = vmatprep.subr.mxu0 0.0
      %4627 = vmatpush1.msra.mxu0 0.0
      %4628 = vmatprep.subr.mxu0 0.0
      %4629 = vmatpush1.msra.mxu0 0.0
      %4630 = vmatprep.subr.mxu0 0.0
      %4631 = vmatpush1.msra.mxu0 0.0
      %4632 = vmatprep.subr.mxu0 0.0
      %4633 = vmatpush1.msra.mxu0 0.0
      %4634 = vmatprep.subr.mxu0 0.0
      %4635 = vmatpush1.msra.mxu0 0.0
      %4636 = vmatprep.subr.mxu0 0.0
      %4637 = vmatpush1.msra.mxu0 0.0
      %4638 = vmatprep.subr.mxu0 0.0
      %4639 = vmatpush1.msra.mxu0 0.0
      %4640 = vmatprep.subr.mxu0 0.0
      %4641 = vmatpush1.msra.mxu0 0.0
      %4642 = vmatprep.subr.mxu0 0.0
      %4643 = vmatpush1.msra.mxu0 0.0
      %4644 = vmatprep.subr.mxu0 0.0
      %4645 = vmatpush1.msra.mxu0 0.0
      %4646 = vmatprep.subr.mxu0 0.0
      %4647 = vmatpush1.msra.mxu0 0.0
      %4648 = vmatprep.subr.mxu0 0.0
      %4649 = vmatpush1.msra.mxu0 0.0
      %4650 = vmatprep.subr.mxu0 0.0
      %4651 = vmatpush1.msra.mxu0 %v4618
      %4652 = vmatprep.subr.mxu0 0.0
      %4653 = vmatpush2.msra.mxu0 0.0
      %4654 = vmatprep.subr.mxu0 0.0
      %4655 = vmatpush2.msra.mxu0 0.0
      %4656 = vmatprep.subr.mxu0 0.0
      %4657 = vmatpush2.msra.mxu0 0.0
      %4658 = vmatprep.subr.mxu0 0.0
      %4659 = vmatpush2.msra.mxu0 0.0
      %4660 = vmatprep.subr.mxu0 0.0
      %4661 = vmatpush2.msra.mxu0 0.0
      %4662 = vmatprep.subr.mxu0 0.0
      %4663 = vmatpush2.msra.mxu0 0.0
      %4664 = vmatprep.subr.mxu0 0.0
      %4665 = vmatpush2.msra.mxu0 0.0
      %4666 = vmatprep.subr.mxu0 0.0
      %4667 = vmatpush2.msra.mxu0 0.0
      %4668 = vmatprep.subr.mxu0 0.0
      %4669 = vmatpush2.msra.mxu0 0.0
      %4670 = vmatprep.subr.mxu0 0.0
      %4671 = vmatpush2.msra.mxu0 0.0
      %4672 = vmatprep.subr.mxu0 0.0
      %4673 = vmatpush2.msra.mxu0 0.0
      %4674 = vmatprep.subr.mxu0 0.0
      %4675 = vmatpush2.msra.mxu0 0.0
      %4676 = vmatprep.subr.mxu0 0.0
      %4677 = vmatpush2.msra.mxu0 0.0
      %4678 = vmatprep.subr.mxu0 0.0
      %4679 = vmatpush2.msra.mxu0 0.0
      %4680 = vmatprep.subr.mxu0 0.0
      %4681 = vmatpush2.msra.mxu0 0.0
      %4682 = vmatprep.subr.mxu0 0.0
      %4683 = vmatpush2.msra.mxu0 0.0
      %4684 = vmatprep.mubr.f32.mxu0 0.0
      %4685 = vmatmul.mubr.f32.gmra.mxu0 %v4616
      %v4686 = vpop.f32.mrf.mxu0
      %v4687 = vadd.f32 0.0, %v4686
      %v4688 = vpop.f32.mrf.mxu0
      %4689 = vdwg.mxu0
      %v4690 = vadd.f32 %v4611, %v4687
      %v4691 = vld [vmem:[%s3901] sm:$0xf]
      %4692 = vrot.lane.b32.xlu0 %v4535, 126
      %v4693 = vpop.permute.xlu0 %4692
      %v4695 = vsel %vm310, %v4691, 0
      %v4697 = vsel %vm314, %v4693, 0
      %4699 = vmatprep.subr.mxu0 0.0
      %4700 = vmatpush1.msra.mxu0 0.0
      %4701 = vmatprep.subr.mxu0 0.0
      %4702 = vmatpush1.msra.mxu0 0.0
      %4703 = vmatprep.subr.mxu0 0.0
      %4704 = vmatpush1.msra.mxu0 0.0
      %4705 = vmatprep.subr.mxu0 0.0
      %4706 = vmatpush1.msra.mxu0 0.0
      %4707 = vmatprep.subr.mxu0 0.0
      %4708 = vmatpush1.msra.mxu0 0.0
      %4709 = vmatprep.subr.mxu0 0.0
      %4710 = vmatpush1.msra.mxu0 0.0
      %4711 = vmatprep.subr.mxu0 0.0
      %4712 = vmatpush1.msra.mxu0 0.0
      %4713 = vmatprep.subr.mxu0 0.0
      %4714 = vmatpush1.msra.mxu0 0.0
      %4715 = vmatprep.subr.mxu0 0.0
      %4716 = vmatpush1.msra.mxu0 0.0
      %4717 = vmatprep.subr.mxu0 0.0
      %4718 = vmatpush1.msra.mxu0 0.0
      %4719 = vmatprep.subr.mxu0 0.0
      %4720 = vmatpush1.msra.mxu0 0.0
      %4721 = vmatprep.subr.mxu0 0.0
      %4722 = vmatpush1.msra.mxu0 0.0
      %4723 = vmatprep.subr.mxu0 0.0
      %4724 = vmatpush1.msra.mxu0 0.0
      %4725 = vmatprep.subr.mxu0 0.0
      %4726 = vmatpush1.msra.mxu0 0.0
      %4727 = vmatprep.subr.mxu0 0.0
      %4728 = vmatpush1.msra.mxu0 0.0
      %4729 = vmatprep.subr.mxu0 0.0
      %4730 = vmatpush1.msra.mxu0 %v4697
      %4731 = vmatprep.subr.mxu0 0.0
      %4732 = vmatpush2.msra.mxu0 0.0
      %4733 = vmatprep.subr.mxu0 0.0
      %4734 = vmatpush2.msra.mxu0 0.0
      %4735 = vmatprep.subr.mxu0 0.0
      %4736 = vmatpush2.msra.mxu0 0.0
      %4737 = vmatprep.subr.mxu0 0.0
      %4738 = vmatpush2.msra.mxu0 0.0
      %4739 = vmatprep.subr.mxu0 0.0
      %4740 = vmatpush2.msra.mxu0 0.0
      %4741 = vmatprep.subr.mxu0 0.0
      %4742 = vmatpush2.msra.mxu0 0.0
      %4743 = vmatprep.subr.mxu0 0.0
      %4744 = vmatpush2.msra.mxu0 0.0
      %4745 = vmatprep.subr.mxu0 0.0
      %4746 = vmatpush2.msra.mxu0 0.0
      %4747 = vmatprep.subr.mxu0 0.0
      %4748 = vmatpush2.msra.mxu0 0.0
      %4749 = vmatprep.subr.mxu0 0.0
      %4750 = vmatpush2.msra.mxu0 0.0
      %4751 = vmatprep.subr.mxu0 0.0
      %4752 = vmatpush2.msra.mxu0 0.0
      %4753 = vmatprep.subr.mxu0 0.0
      %4754 = vmatpush2.msra.mxu0 0.0
      %4755 = vmatprep.subr.mxu0 0.0
      %4756 = vmatpush2.msra.mxu0 0.0
      %4757 = vmatprep.subr.mxu0 0.0
      %4758 = vmatpush2.msra.mxu0 0.0
      %4759 = vmatprep.subr.mxu0 0.0
      %4760 = vmatpush2.msra.mxu0 0.0
      %4761 = vmatprep.subr.mxu0 0.0
      %4762 = vmatpush2.msra.mxu0 0.0
      %4763 = vmatprep.mubr.f32.mxu0 0.0
      %4764 = vmatmul.mubr.f32.gmra.mxu0 %v4695
      %v4765 = vpop.f32.mrf.mxu0
      %v4766 = vadd.f32 0.0, %v4765
      %v4767 = vpop.f32.mrf.mxu0
      %4768 = vdwg.mxu0
      %v4769 = vadd.f32 %v4690, %v4766
      %v4770 = vld [vmem:[#allocation3 + $0x3] sm:$0x1]
      %v4771 = vld [vmem:[#allocation3 + $0x7] sm:$0x1]
      %v4772 = vld [vmem:[#allocation3 + $0xb] sm:$0x1]
      %v4773 = vld [vmem:[#allocation3 + $0xf] sm:$0x1]
      %v4774 = vld [vmem:[%s3985] sm:$0xf]
      %v4779 = vrot.slane %v4771, 7
      %v4780 = vsel %vm300, %v4779, %v4770
      %v4781 = vrot.slane %v4772, 6
      %v4782 = vsel %vm303, %v4781, %v4780
      %v4783 = vrot.slane %v4773, 5
      %v4784 = vsel %vm306, %v4783, %v4782
      %v4786 = vsel %vm310, %v4774, 0
      %v4788 = vsel %vm314, %v4784, 0
      %4790 = vmatprep.subr.mxu0 0.0
      %4791 = vmatpush1.msra.mxu0 0.0
      %4792 = vmatprep.subr.mxu0 0.0
      %4793 = vmatpush1.msra.mxu0 0.0
      %4794 = vmatprep.subr.mxu0 0.0
      %4795 = vmatpush1.msra.mxu0 0.0
      %4796 = vmatprep.subr.mxu0 0.0
      %4797 = vmatpush1.msra.mxu0 0.0
      %4798 = vmatprep.subr.mxu0 0.0
      %4799 = vmatpush1.msra.mxu0 0.0
      %4800 = vmatprep.subr.mxu0 0.0
      %4801 = vmatpush1.msra.mxu0 0.0
      %4802 = vmatprep.subr.mxu0 0.0
      %4803 = vmatpush1.msra.mxu0 0.0
      %4804 = vmatprep.subr.mxu0 0.0
      %4805 = vmatpush1.msra.mxu0 0.0
      %4806 = vmatprep.subr.mxu0 0.0
      %4807 = vmatpush1.msra.mxu0 0.0
      %4808 = vmatprep.subr.mxu0 0.0
      %4809 = vmatpush1.msra.mxu0 0.0
      %4810 = vmatprep.subr.mxu0 0.0
      %4811 = vmatpush1.msra.mxu0 0.0
      %4812 = vmatprep.subr.mxu0 0.0
      %4813 = vmatpush1.msra.mxu0 0.0
      %4814 = vmatprep.subr.mxu0 0.0
      %4815 = vmatpush1.msra.mxu0 0.0
      %4816 = vmatprep.subr.mxu0 0.0
      %4817 = vmatpush1.msra.mxu0 0.0
      %4818 = vmatprep.subr.mxu0 0.0
      %4819 = vmatpush1.msra.mxu0 0.0
      %4820 = vmatprep.subr.mxu0 0.0
      %4821 = vmatpush1.msra.mxu0 %v4788
      %4822 = vmatprep.subr.mxu0 0.0
      %4823 = vmatpush2.msra.mxu0 0.0
      %4824 = vmatprep.subr.mxu0 0.0
      %4825 = vmatpush2.msra.mxu0 0.0
      %4826 = vmatprep.subr.mxu0 0.0
      %4827 = vmatpush2.msra.mxu0 0.0
      %4828 = vmatprep.subr.mxu0 0.0
      %4829 = vmatpush2.msra.mxu0 0.0
      %4830 = vmatprep.subr.mxu0 0.0
      %4831 = vmatpush2.msra.mxu0 0.0
      %4832 = vmatprep.subr.mxu0 0.0
      %4833 = vmatpush2.msra.mxu0 0.0
      %4834 = vmatprep.subr.mxu0 0.0
      %4835 = vmatpush2.msra.mxu0 0.0
      %4836 = vmatprep.subr.mxu0 0.0
      %4837 = vmatpush2.msra.mxu0 0.0
      %4838 = vmatprep.subr.mxu0 0.0
      %4839 = vmatpush2.msra.mxu0 0.0
      %4840 = vmatprep.subr.mxu0 0.0
      %4841 = vmatpush2.msra.mxu0 0.0
      %4842 = vmatprep.subr.mxu0 0.0
      %4843 = vmatpush2.msra.mxu0 0.0
      %4844 = vmatprep.subr.mxu0 0.0
      %4845 = vmatpush2.msra.mxu0 0.0
      %4846 = vmatprep.subr.mxu0 0.0
      %4847 = vmatpush2.msra.mxu0 0.0
      %4848 = vmatprep.subr.mxu0 0.0
      %4849 = vmatpush2.msra.mxu0 0.0
      %4850 = vmatprep.subr.mxu0 0.0
      %4851 = vmatpush2.msra.mxu0 0.0
      %4852 = vmatprep.subr.mxu0 0.0
      %4853 = vmatpush2.msra.mxu0 0.0
      %4854 = vmatprep.mubr.f32.mxu0 0.0
      %4855 = vmatmul.mubr.f32.gmra.mxu0 %v4786
      %v4856 = vpop.f32.mrf.mxu0
      %v4857 = vadd.f32 0.0, %v4856
      %v4858 = vpop.f32.mrf.mxu0
      %4859 = vdwg.mxu0
      %v4860 = vadd.f32 %v4769, %v4857
      %v4861 = vld [vmem:[%s4073] sm:$0xf]
      %4862 = vrot.lane.b32.xlu0 %v4784, 127
      %v4863 = vpop.permute.xlu0 %4862
      %v4865 = vsel %vm310, %v4861, 0
      %v4867 = vsel %vm314, %v4863, 0
      %4869 = vmatprep.subr.mxu0 0.0
      %4870 = vmatpush1.msra.mxu0 0.0
      %4871 = vmatprep.subr.mxu0 0.0
      %4872 = vmatpush1.msra.mxu0 0.0
      %4873 = vmatprep.subr.mxu0 0.0
      %4874 = vmatpush1.msra.mxu0 0.0
      %4875 = vmatprep.subr.mxu0 0.0
      %4876 = vmatpush1.msra.mxu0 0.0
      %4877 = vmatprep.subr.mxu0 0.0
      %4878 = vmatpush1.msra.mxu0 0.0
      %4879 = vmatprep.subr.mxu0 0.0
      %4880 = vmatpush1.msra.mxu0 0.0
      %4881 = vmatprep.subr.mxu0 0.0
      %4882 = vmatpush1.msra.mxu0 0.0
      %4883 = vmatprep.subr.mxu0 0.0
      %4884 = vmatpush1.msra.mxu0 0.0
      %4885 = vmatprep.subr.mxu0 0.0
      %4886 = vmatpush1.msra.mxu0 0.0
      %4887 = vmatprep.subr.mxu0 0.0
      %4888 = vmatpush1.msra.mxu0 0.0
      %4889 = vmatprep.subr.mxu0 0.0
      %4890 = vmatpush1.msra.mxu0 0.0
      %4891 = vmatprep.subr.mxu0 0.0
      %4892 = vmatpush1.msra.mxu0 0.0
      %4893 = vmatprep.subr.mxu0 0.0
      %4894 = vmatpush1.msra.mxu0 0.0
      %4895 = vmatprep.subr.mxu0 0.0
      %4896 = vmatpush1.msra.mxu0 0.0
      %4897 = vmatprep.subr.mxu0 0.0
      %4898 = vmatpush1.msra.mxu0 0.0
      %4899 = vmatprep.subr.mxu0 0.0
      %4900 = vmatpush1.msra.mxu0 %v4867
      %4901 = vmatprep.subr.mxu0 0.0
      %4902 = vmatpush2.msra.mxu0 0.0
      %4903 = vmatprep.subr.mxu0 0.0
      %4904 = vmatpush2.msra.mxu0 0.0
      %4905 = vmatprep.subr.mxu0 0.0
      %4906 = vmatpush2.msra.mxu0 0.0
      %4907 = vmatprep.subr.mxu0 0.0
      %4908 = vmatpush2.msra.mxu0 0.0
      %4909 = vmatprep.subr.mxu0 0.0
      %4910 = vmatpush2.msra.mxu0 0.0
      %4911 = vmatprep.subr.mxu0 0.0
      %4912 = vmatpush2.msra.mxu0 0.0
      %4913 = vmatprep.subr.mxu0 0.0
      %4914 = vmatpush2.msra.mxu0 0.0
      %4915 = vmatprep.subr.mxu0 0.0
      %4916 = vmatpush2.msra.mxu0 0.0
      %4917 = vmatprep.subr.mxu0 0.0
      %4918 = vmatpush2.msra.mxu0 0.0
      %4919 = vmatprep.subr.mxu0 0.0
      %4920 = vmatpush2.msra.mxu0 0.0
      %4921 = vmatprep.subr.mxu0 0.0
      %4922 = vmatpush2.msra.mxu0 0.0
      %4923 = vmatprep.subr.mxu0 0.0
      %4924 = vmatpush2.msra.mxu0 0.0
      %4925 = vmatprep.subr.mxu0 0.0
      %4926 = vmatpush2.msra.mxu0 0.0
      %4927 = vmatprep.subr.mxu0 0.0
      %4928 = vmatpush2.msra.mxu0 0.0
      %4929 = vmatprep.subr.mxu0 0.0
      %4930 = vmatpush2.msra.mxu0 0.0
      %4931 = vmatprep.subr.mxu0 0.0
      %4932 = vmatpush2.msra.mxu0 0.0
      %4933 = vmatprep.mubr.f32.mxu0 0.0
      %4934 = vmatmul.mubr.f32.gmra.mxu0 %v4865
      %v4935 = vpop.f32.mrf.mxu0
      %v4936 = vadd.f32 0.0, %v4935
      %v4937 = vpop.f32.mrf.mxu0
      %4938 = vdwg.mxu0
      %v4939 = vadd.f32 %v4860, %v4936
      %v4940 = vld [vmem:[%s4153] sm:$0xf]
      %4941 = vrot.lane.b32.xlu0 %v4784, 126
      %v4942 = vpop.permute.xlu0 %4941
      %v4944 = vsel %vm310, %v4940, 0
      %v4946 = vsel %vm314, %v4942, 0
      %4948 = vmatprep.subr.mxu0 0.0
      %4949 = vmatpush1.msra.mxu0 0.0
      %4950 = vmatprep.subr.mxu0 0.0
      %4951 = vmatpush1.msra.mxu0 0.0
      %4952 = vmatprep.subr.mxu0 0.0
      %4953 = vmatpush1.msra.mxu0 0.0
      %4954 = vmatprep.subr.mxu0 0.0
      %4955 = vmatpush1.msra.mxu0 0.0
      %4956 = vmatprep.subr.mxu0 0.0
      %4957 = vmatpush1.msra.mxu0 0.0
      %4958 = vmatprep.subr.mxu0 0.0
      %4959 = vmatpush1.msra.mxu0 0.0
      %4960 = vmatprep.subr.mxu0 0.0
      %4961 = vmatpush1.msra.mxu0 0.0
      %4962 = vmatprep.subr.mxu0 0.0
      %4963 = vmatpush1.msra.mxu0 0.0
      %4964 = vmatprep.subr.mxu0 0.0
      %4965 = vmatpush1.msra.mxu0 0.0
      %4966 = vmatprep.subr.mxu0 0.0
      %4967 = vmatpush1.msra.mxu0 0.0
      %4968 = vmatprep.subr.mxu0 0.0
      %4969 = vmatpush1.msra.mxu0 0.0
      %4970 = vmatprep.subr.mxu0 0.0
      %4971 = vmatpush1.msra.mxu0 0.0
      %4972 = vmatprep.subr.mxu0 0.0
      %4973 = vmatpush1.msra.mxu0 0.0
      %4974 = vmatprep.subr.mxu0 0.0
      %4975 = vmatpush1.msra.mxu0 0.0
      %4976 = vmatprep.subr.mxu0 0.0
      %4977 = vmatpush1.msra.mxu0 0.0
      %4978 = vmatprep.subr.mxu0 0.0
      %4979 = vmatpush1.msra.mxu0 %v4946
      %4980 = vmatprep.subr.mxu0 0.0
      %4981 = vmatpush2.msra.mxu0 0.0
      %4982 = vmatprep.subr.mxu0 0.0
      %4983 = vmatpush2.msra.mxu0 0.0
      %4984 = vmatprep.subr.mxu0 0.0
      %4985 = vmatpush2.msra.mxu0 0.0
      %4986 = vmatprep.subr.mxu0 0.0
      %4987 = vmatpush2.msra.mxu0 0.0
      %4988 = vmatprep.subr.mxu0 0.0
      %4989 = vmatpush2.msra.mxu0 0.0
      %4990 = vmatprep.subr.mxu0 0.0
      %4991 = vmatpush2.msra.mxu0 0.0
      %4992 = vmatprep.subr.mxu0 0.0
      %4993 = vmatpush2.msra.mxu0 0.0
      %4994 = vmatprep.subr.mxu0 0.0
      %4995 = vmatpush2.msra.mxu0 0.0
      %4996 = vmatprep.subr.mxu0 0.0
      %4997 = vmatpush2.msra.mxu0 0.0
      %4998 = vmatprep.subr.mxu0 0.0
      %4999 = vmatpush2.msra.mxu0 0.0
      %5000 = vmatprep.subr.mxu0 0.0
      %5001 = vmatpush2.msra.mxu0 0.0
      %5002 = vmatprep.subr.mxu0 0.0
      %5003 = vmatpush2.msra.mxu0 0.0
      %5004 = vmatprep.subr.mxu0 0.0
      %5005 = vmatpush2.msra.mxu0 0.0
      %5006 = vmatprep.subr.mxu0 0.0
      %5007 = vmatpush2.msra.mxu0 0.0
      %5008 = vmatprep.subr.mxu0 0.0
      %5009 = vmatpush2.msra.mxu0 0.0
      %5010 = vmatprep.subr.mxu0 0.0
      %5011 = vmatpush2.msra.mxu0 0.0
      %5012 = vmatprep.mubr.f32.mxu0 0.0
      %5013 = vmatmul.mubr.f32.gmra.mxu0 %v4944
      %v5014 = vpop.f32.mrf.mxu0
      %v5015 = vadd.f32 0.0, %v5014
      %v5016 = vpop.f32.mrf.mxu0
      %5017 = vdwg.mxu0
      %v5018 = vadd.f32 %v4939, %v5015
      %v5019 = vld [vmem:[%s6] sm:$0xf]
      %5021 = vset.pattern.permute.xlu0 0
      %5022 = vperm.xlu0 %5021, %v5019
      %v5023 = vpop.permute.xlu0 %5022
      %v5025 = vadd.f32 %v5018, %v5023
      %v5028 = vunpack.c.l.s4 1966171168
      %v5029 = vunpack.c.0.s8 %v5028
      %v5030 = vlaneseq
      %v5031 = vshrl.u32 %v5030, 7
      %v5032 = vsub.s32 %v5029, %v5031
      %v5033 = vrot.slane %v5025, %v5032
      %v5034 = vcombine.high %v5033, %v5033
      %v5036 = vunpack.c.l.s4 1966171168
      %v5037 = vunpack.c.0.s8 %v5036
      %v5038 = vlaneseq
      %v5039 = vshrl.u32 %v5038, 7
      %v5040 = vsub.s32 %v5037, %v5039
      %v5041 = vrot.slane %v5033, %v5040
      %v5043 = vunpack.c.l.s4 1966171168
      %v5044 = vunpack.c.0.s8 %v5043
      %v5045 = vlaneseq
      %v5046 = vshrl.u32 %v5045, 7
      %v5047 = vsub.s32 %v5044, %v5046
      %v5048 = vrot.slane %v5034, %v5047
      %v5049 = vcombine.high %v5041, %v5041
      %v5050 = vcombine.high %v5048, %v5048
      %5055 = vst.msk [vmem:[%s278 + $0x1] sm:$0x1] %vm4269, %v5041
      %5056 = vst.msk [vmem:[%s278 + $0x3] sm:$0x1] %vm4269, %v5048
      %5057 = vst.msk [vmem:[%s278 + $0x5] sm:$0x1] %vm4269, %v5049
      %5058 = vst.msk [vmem:[%s278 + $0x7] sm:$0x1] %vm4269, %v5050
      %p5059 = scmp.lt.s32.totalorder %s18, 1
      %s5060 = scalar_select %p5059, %s18, 1
      %s5061 = smul.addr %s5060, 4
      %s5062 = smul.addr %s5061, 2
      %s5063 = scalar_lea.vmem %s7, %s5062
      // Predicated region
      $region49: #{esa_forward.6} parent=47 // pred_check
        %p5064 = pneg %p188
      $region50: #{esa_forward.6} parent=47 // pred_check_branch
        %5066 = sbr.rel (%p5064) target = $region52
      $region51: #{esa_forward.6} parent=47 // pred_region
        _
      $region52: #{esa_forward.6} parent=47 // pred_fallthru
        _
    $region48: #{esa_forward.6} parent=5 // pred_fallthru
      _
    %p5067 = scmp.le.s32.totalorder 2, %s13
    // Predicated region
    $region53: #{esa_forward.6} parent=5 // pred_check
      %p5068 = pneg %p5067
    $region54: #{esa_forward.6} parent=5 // pred_check_branch
      %5070 = sbr.rel (%p5068) target = $region56
    $region55: #{esa_forward.6} parent=5 // pred_region
      %s5071 = ssub.s32 %s13, 2
      // Predicated region
      $region57: #{esa_forward.6} parent=55 // pred_check
        %p5072 = pneg %p194
      $region58: #{esa_forward.6} parent=55 // pred_check_branch
        %5074 = sbr.rel (%p5072) target = $region60
      $region59: #{esa_forward.6} parent=55 // pred_region
        %p5075 = scmp.lt.s32.totalorder %s19, 1
        %s5076 = scalar_select %p5075, %s19, 1
        %s5077 = smul.addr %s5076, 4
        %s5078 = smul.addr %s5077, 2
        %s5079 = scalar_lea.vmem %s7, %s5078
      $region60: #{esa_forward.6} parent=55 // pred_fallthru
        _
    $region56: #{esa_forward.6} parent=5 // pred_fallthru
      _
  $region6: #{esa_forward.6} parent=0 // loop_footer
    %s17 = sadd.s32 1, %s13
  $region7: #{esa_forward.6} parent=0 // loop_footer_branch
    %12 = sbr.rel target = $region3
  $region8: #{esa_forward.6} parent=0 // loop_exit
    _

</llo_original>
